<compile_context>
chip_gen: v5e
topology: v5e:2x2
jax: 0.10.0
libtpu: 0.0.40
codegen_flags: <defaults>
</compile_context>

<pallas_src>
import functools

import jax
import jax.numpy as jnp
from jax.experimental import pallas as pl
from jax.experimental.pallas import tpu as pltpu


def _round_up(x, m):
    return (x + m - 1) // m * m


_VMEM_LIMIT = 32 * 1024 * 1024
_BN_EPS = 1e-5


# ---------------------------------------------------------------------------
# Pallas kernels
# ---------------------------------------------------------------------------

def _conv_fused_kernel(offsets, slope, x_ref, w_ref, s_ref, b_ref, o_ref):
    """Direct stride-1 conv on one padded NHWC image (no im2col in HBM).

    x_ref: (1, Hp, Wp, C) bf16   padded input image
    w_ref: (KK, C, F)     bf16   per-tap weight matrices (tap order == offsets)
    s_ref: (1, F)  f32           folded BN scale (or 1)
    b_ref: (1, F)  f32           folded BN bias (or conv bias)
    o_ref: (1, OH, OW, F) bf16
    """
    OH, OW, F = o_ref.shape[1], o_ref.shape[2], o_ref.shape[3]
    C = x_ref.shape[3]
    acc = jnp.zeros((OH * OW, F), jnp.float32)
    for t, (dy, dx) in enumerate(offsets):
        patch = x_ref[0, dy:dy + OH, dx:dx + OW, :].reshape(OH * OW, C)
        acc = acc + jnp.dot(patch, w_ref[t], preferred_element_type=jnp.float32)
    y = acc * s_ref[...] + b_ref[...]
    if slope != 1.0:                       # leaky / relu; 'linear' skips this
        y = jnp.maximum(y, y * slope)
    y = y.astype(o_ref.dtype)
    o_ref[...] = y.reshape(1, OH, OW, F)


def _im2col_matmul_kernel(slope, p_ref, w_ref, s_ref, b_ref, o_ref):
    """Fallback path (strided convs only): (TM, K) @ (K, F) + affine + act."""
    y = jnp.dot(p_ref[...], w_ref[...], preferred_element_type=jnp.float32)
    y = y * s_ref[...] + b_ref[...]
    if slope != 1.0:
        y = jnp.maximum(y, y * slope)
    o_ref[...] = y.astype(o_ref.dtype)


def _add_act_kernel(slope, a_ref, b_ref, o_ref):
    y = a_ref[...] + b_ref[...]
    if slope != 1.0:
        y = jnp.maximum(y, y * slope)
    o_ref[...] = y


def _maxpool_s1_kernel(size, x_ref, o_ref):
    """size x size max pool, stride 1; windowing from VMEM (overlapping)."""
    OH, OW = o_ref.shape[1], o_ref.shape[2]
    acc = x_ref[0, 0:OH, 0:OW, :]
    for dy in range(size):
        for dx in range(size):
            if dy == 0 and dx == 0:
                continue
            acc = jnp.maximum(acc, x_ref[0, dy:dy + OH, dx:dx + OW, :])
    o_ref[...] = acc[None]


def _maxpool_eq_kernel(size, x_ref, o_ref):
    """size x size max pool with stride == size (non-overlapping windows)."""
    OH, OW, C = o_ref.shape[1], o_ref.shape[2], o_ref.shape[3]
    x = x_ref[0, 0:OH * size, 0:OW * size, :]                 # (OH*s, OW*s, C)
    x = jnp.max(x.reshape(OH, size, OW * size, C), axis=1)    # pool along H
    x = jnp.max(x.reshape(OH, OW, size, C), axis=2)           # pool along W
    o_ref[...] = x[None]


# ---------------------------------------------------------------------------
# Layer wrappers (thin glue in JAX, compute in Pallas)
# ---------------------------------------------------------------------------

def conv2d_fused(x, w_taps, scale, bias, k, stride, pad, slope):
    """Conv2d + folded-BN affine + leaky activation.  x: (N,H,W,C) bf16."""
    N, H, W, C = x.shape
    KK, Cw, F = w_taps.shape
    assert Cw == C and KK == k * k
    if pad:
        x = jnp.pad(x, ((0, 0), (pad, pad), (pad, pad), (0, 0)))
    Hp, Wp = H + 2 * pad, W + 2 * pad
    OH = (Hp - k) // stride + 1
    OW = (Wp - k) // stride + 1

    flops = 2 * N * OH * OW * KK * C * F
    bytes_accessed = 2 * (N * Hp * Wp * C + KK * C * F + N * OH * OW * F) + 8 * F
    cost = pl.CostEstimate(flops=flops, transcendentals=0,
                           bytes_accessed=bytes_accessed)

    if stride == 1:
        offsets = tuple((dy, dx) for dy in range(k) for dx in range(k))
        return pl.pallas_call(
            functools.partial(_conv_fused_kernel, offsets, slope),
            out_shape=jax.ShapeDtypeStruct((N, OH, OW, F), jnp.bfloat16),
            grid=(N,),
            in_specs=[
                pl.BlockSpec((1, Hp, Wp, C), lambda n: (n, 0, 0, 0)),
                pl.BlockSpec((KK, C, F), lambda n: (0, 0, 0)),
                pl.BlockSpec((1, F), lambda n: (0, 0)),
                pl.BlockSpec((1, F), lambda n: (0, 0)),
            ],
            out_specs=pl.BlockSpec((1, OH, OW, F), lambda n: (n, 0, 0, 0)),
            compiler_params=pltpu.CompilerParams(
                dimension_semantics=("parallel",),
                vmem_limit_bytes=_VMEM_LIMIT),
            cost_estimate=cost,
        )(x, w_taps, scale, bias)

    # TODO(synk): strided convs (none in this cfg) fall back to XLA-side
    # im2col feeding a tiled Pallas matmul; the stride-1 hot path above never
    # materializes the patch matrix.
    cols = [x[:, dy:dy + stride * OH:stride, dx:dx + stride * OW:stride, :]
            for dy in range(k) for dx in range(k)]
    patches = jnp.concatenate(cols, axis=-1).reshape(N * OH * OW, KK * C)
    wmat = w_taps.reshape(KK * C, F)
    M = N * OH * OW
    TM = min(512, _round_up(M, 8))
    Mp = _round_up(M, TM)
    patches = jnp.pad(patches, ((0, Mp - M), (0, 0)))
    out = pl.pallas_call(
        functools.partial(_im2col_matmul_kernel, slope),
        out_shape=jax.ShapeDtypeStruct((Mp, F), jnp.bfloat16),
        grid=(Mp // TM,),
        in_specs=[
            pl.BlockSpec((TM, KK * C), lambda i: (i, 0)),
            pl.BlockSpec((KK * C, F), lambda i: (0, 0)),
            pl.BlockSpec((1, F), lambda i: (0, 0)),
            pl.BlockSpec((1, F), lambda i: (0, 0)),
        ],
        out_specs=pl.BlockSpec((TM, F), lambda i: (i, 0)),
        compiler_params=pltpu.CompilerParams(
            dimension_semantics=("parallel",),
            vmem_limit_bytes=_VMEM_LIMIT),
        cost_estimate=cost,
    )(patches, wmat, scale, bias)
    return out[:M].reshape(N, OH, OW, F)


def add_act(x1, x2, slope):
    """Shortcut: x1 + x2 with optional leaky/relu (tiled Pallas elementwise)."""
    shape, dtype, flat = x1.shape, x1.dtype, x1.size
    R = -(-flat // 128)
    TR = min(1024, _round_up(R, 8))
    Rp = _round_up(R, TR)
    a = jnp.pad(x1.reshape(-1), (0, Rp * 128 - flat)).reshape(Rp, 128)
    b = jnp.pad(x2.reshape(-1), (0, Rp * 128 - flat)).reshape(Rp, 128)
    out = pl.pallas_call(
        functools.partial(_add_act_kernel, slope),
        out_shape=jax.ShapeDtypeStruct((Rp, 128), dtype),
        grid=(Rp // TR,),
        in_specs=[pl.BlockSpec((TR, 128), lambda i: (i, 0)),
                  pl.BlockSpec((TR, 128), lambda i: (i, 0))],
        out_specs=pl.BlockSpec((TR, 128), lambda i: (i, 0)),
        compiler_params=pltpu.CompilerParams(
            dimension_semantics=("parallel",),
            vmem_limit_bytes=_VMEM_LIMIT),
    )(a, b)
    return out.reshape(-1)[:flat].reshape(shape)


def maxpool2d(x, size, stride):
    """Max pool on NHWC input; window extraction happens inside the kernel."""
    N, H, W, C = x.shape
    OH = (H - size) // stride + 1
    OW = (W - size) // stride + 1
    if stride == 1:
        kernel = functools.partial(_maxpool_s1_kernel, size)
    elif stride == size:
        kernel = functools.partial(_maxpool_eq_kernel, size)
    else:
        # TODO(synk): general size/stride maxpool combos are not used by
        # Darknet cfgs (only size==stride or stride==1 occur).
        raise NotImplementedError("maxpool size=%d stride=%d" % (size, stride))
    return pl.pallas_call(
        kernel,
        out_shape=jax.ShapeDtypeStruct((N, OH, OW, C), x.dtype),
        grid=(N,),
        in_specs=[pl.BlockSpec((1, H, W, C), lambda n: (n, 0, 0, 0))],
        out_specs=pl.BlockSpec((1, OH, OW, C), lambda n: (n, 0, 0, 0)),
        compiler_params=pltpu.CompilerParams(
            dimension_semantics=("parallel",),
            vmem_limit_bytes=_VMEM_LIMIT),
    )(x)


def maxpool_stride1(x):
    # MaxPoolStride1: replicate-pad (0,1,0,1) then 2x2 maxpool, stride 1.
    xp = jnp.pad(x, ((0, 0), (0, 1), (0, 1), (0, 0)), mode="edge")
    return maxpool2d(xp, 2, 1)


def upsample(x, stride):
    N, H, W, C = x.shape
    x = jnp.broadcast_to(x[:, :, None, :, None, :],
                         (N, H, stride, W, stride, C))
    return x.reshape(N, H * stride, W * stride, C)


# ---------------------------------------------------------------------------
# Darknet network (synthetic in-script cfg, deterministic params)
# ---------------------------------------------------------------------------

BLOCKS = [
    {'type': 'net', 'channels': '4', 'width': '16', 'height': '16'},
    {'type': 'convolutional', 'batch_normalize': '1', 'filters': '8',
     'size': '3', 'stride': '1', 'pad': '1', 'activation': 'leaky'},
    {'type': 'maxpool', 'size': '2', 'stride': '2'},
    {'type': 'convolutional', 'batch_normalize': '1', 'filters': '16',
     'size': '3', 'stride': '1', 'pad': '1', 'activation': 'leaky'},
    {'type': 'convolutional', 'batch_normalize': '0', 'filters': '16',
     'size': '1', 'stride': '1', 'pad': '1', 'activation': 'linear'},
    {'type': 'shortcut', 'from': '-2', 'activation': 'leaky'},
    {'type': 'maxpool', 'size': '2', 'stride': '1'},
    {'type': 'convolutional', 'batch_normalize': '1', 'filters': '8',
     'size': '1', 'stride': '1', 'pad': '1', 'activation': 'leaky'},
    {'type': 'upsample', 'stride': '2'},
    {'type': 'route', 'layers': '-1,-8'},
    {'type': 'convolutional', 'batch_normalize': '0', 'filters': '8',
     'size': '3', 'stride': '1', 'pad': '1', 'activation': 'leaky'},
]


def _act_slope(name):
    if name == 'leaky':
        return 0.1
    if name == 'relu':
        return 0.0
    return 1.0   # 'linear' -> identity (kernel skips the activation entirely)


class DarknetPallas:
    def __init__(self, blocks):
        self.blocks = blocks
        self.width = int(blocks[0]['width'])
        self.height = int(blocks[0]['height'])
        self.params = self._create_network(blocks)

    def _create_network(self, blocks):
        params = {}
        prev_filters = 3
        out_filters = []
        ind = -2
        for block in blocks:
            ind += 1
            if block['type'] == 'net':
                prev_filters = int(block['channels'])
                continue
            if block['type'] == 'convolutional':
                bn = int(block['batch_normalize'])
                filters = int(block['filters'])
                k = int(block['size'])
                key = jax.random.PRNGKey(1000 + ind)
                kw, kg, kb, km, kv = jax.random.split(key, 5)
                weight = 0.1 * jax.random.normal(
                    kw, (filters, prev_filters, k, k), jnp.float32)
                if bn:
                    gamma = 1.0 + 0.05 * jax.random.normal(kg, (filters,), jnp.float32)
                    beta = 0.05 * jax.random.normal(kb, (filters,), jnp.float32)
                    mean = 0.05 * jax.random.normal(km, (filters,), jnp.float32)
                    var = 1.0 + 0.1 * jnp.abs(jax.random.normal(kv, (filters,), jnp.float32))
                    scale = gamma / jnp.sqrt(var + _BN_EPS)   # fold BN (eval mode)
                    bias = beta - mean * scale
                else:
                    scale = jnp.ones((filters,), jnp.float32)
                    bias = 0.05 * jax.random.normal(kb, (filters,), jnp.float32)
                # Pre-transform once at init: (F,C,KH,KW) -> per-tap (KH*KW,C,F) bf16
                w_taps = weight.transpose(2, 3, 1, 0).reshape(
                    k * k, prev_filters, filters)
                params[ind] = {
                    'w_taps': w_taps.astype(jnp.bfloat16),
                    'scale': scale.reshape(1, filters),
                    'bias': bias.reshape(1, filters),
                }
                prev_filters = filters
                out_filters.append(prev_filters)
            elif block['type'] in ('maxpool', 'upsample', 'shortcut'):
                out_filters.append(prev_filters)
            elif block['type'] == 'route':
                layers = [int(i) for i in block['layers'].split(',')]
                layers = [l if l > 0 else l + ind for l in layers]
                if len(layers) == 1:
                    prev_filters = out_filters[layers[0]]
                else:
                    prev_filters = out_filters[layers[0]] + out_filters[layers[1]]
                out_filters.append(prev_filters)
            else:
                raise ValueError('unknown type %s' % block['type'])
        return params

    def forward(self, x):
        """x: (N, C, H, W) f32 (PyTorch layout); returns NCHW f32."""
        x = x.transpose(0, 2, 3, 1).astype(jnp.bfloat16)   # NHWC + bf16 internally
        ind = -2
        outputs = {}
        for block in self.blocks:
            ind += 1
            btype = block['type']
            if btype == 'net':
                continue
            elif btype == 'convolutional':
                p = self.params[ind]
                k = int(block['size'])
                stride = int(block['stride'])
                pad = (k - 1) // 2 if int(block['pad']) else 0
                slope = _act_slope(block['activation'])
                x = conv2d_fused(x, p['w_taps'], p['scale'], p['bias'],
                                 k, stride, pad, slope)
                outputs[ind] = x
            elif btype == 'maxpool':
                size = int(block['size'])
                stride = int(block['stride'])
                if stride > 1:
                    x = maxpool2d(x, size, stride)
                else:
                    x = maxpool_stride1(x)
                outputs[ind] = x
            elif btype == 'upsample':
                x = upsample(x, int(block['stride']))
                outputs[ind] = x
            elif btype == 'route':
                layers = [int(i) for i in block['layers'].split(',')]
                layers = [l if l > 0 else l + ind for l in layers]
                if len(layers) == 1:
                    x = outputs[layers[0]]
                else:
                    x = jnp.concatenate((outputs[layers[0]], outputs[layers[1]]),
                                        axis=-1)
                outputs[ind] = x
            elif btype == 'shortcut':
                from_layer = int(block['from'])
                from_layer = from_layer if from_layer > 0 else from_layer + ind
                slope = _act_slope(block['activation'])
                x = add_act(outputs[from_layer], outputs[ind - 1], slope)
                outputs[ind] = x
            else:
                raise ValueError('unknown type %s' % btype)
        # TODO(synk): reference returns out_boxes from YoloLayer (get_region_boxes
        # undefined in the reference); returning the final feature map instead.
        return x.transpose(0, 3, 1, 2).astype(jnp.float32)   # back to NCHW f32


if __name__ == "__main__":
    net = DarknetPallas(BLOCKS)
    key = jax.random.PRNGKey(0)
    x = jax.random.normal(key, (2, 4, 16, 16), jnp.float32)  # NCHW
    out = jax.jit(net.forward)(x)
    out = jax.block_until_ready(out)
    assert out.shape == (2, 8, 16, 16), out.shape
    assert jnp.all(jnp.isfinite(out))
    print("KERNEL_OK")
</pallas_src>

<mosaic_0001>
module attributes {stable_mosaic.version = 11 : i64} {
  func.func @_conv_fused_kernel(%arg0: i32, %arg1: memref<1x18x18x4xbf16, #tpu.memory_space<vmem>>, %arg2: memref<9x4x8xbf16, #tpu.memory_space<vmem>>, %arg3: memref<1x8xf32, #tpu.memory_space<vmem>>, %arg4: memref<1x8xf32, #tpu.memory_space<vmem>>, %arg5: memref<1x16x16x8xbf16, #tpu.memory_space<vmem>>) attributes {dimension_semantics = [#tpu.dimension_semantics<parallel>], iteration_bounds = array<i64: 2>, scalar_prefetch = 0 : i64, scratch_operands = 0 : i64, tpu.core_type = #tpu.core_type<tc>, window_params = [{transform_indices = @transform_0, window_bounds = array<i64: 1, 18, 18, 4>}, {pipeline_mode = #tpu.pipeline_mode<synchronous>, transform_indices = @transform_1, window_bounds = array<i64: 9, 4, 8>}, {pipeline_mode = #tpu.pipeline_mode<synchronous>, transform_indices = @transform_2, window_bounds = array<i64: 1, 8>}, {pipeline_mode = #tpu.pipeline_mode<synchronous>, transform_indices = @transform_3, window_bounds = array<i64: 1, 8>}, {transform_indices = @transform_4, window_bounds = array<i64: 1, 16, 16, 8>}]} {
    %cst = arith.constant 0.000000e+00 : f32
    %0 = vector.broadcast %cst : f32 to vector<256x8xf32>
    %c0 = arith.constant 0 : index
    %c0_0 = arith.constant 0 : index
    %c0_1 = arith.constant 0 : index
    %c0_2 = arith.constant 0 : index
    %1 = vector.load %arg1[%c0, %c0_0, %c0_1, %c0_2] : memref<1x18x18x4xbf16, #tpu.memory_space<vmem>>, vector<1x16x16x4xbf16>
    %2 = vector.shape_cast %1 : vector<1x16x16x4xbf16> to vector<16x16x4xbf16>
    %3 = vector.shape_cast %2 : vector<16x16x4xbf16> to vector<256x4xbf16>
    %c0_3 = arith.constant 0 : index
    %c0_4 = arith.constant 0 : index
    %c0_5 = arith.constant 0 : index
    %4 = vector.load %arg2[%c0_3, %c0_4, %c0_5] : memref<9x4x8xbf16, #tpu.memory_space<vmem>>, vector<1x4x8xbf16>
    %5 = vector.shape_cast %4 : vector<1x4x8xbf16> to vector<4x8xbf16>
    %cst_6 = arith.constant dense<0.000000e+00> : vector<256x8xf32>
    %6 = tpu.matmul %3, %5, %cst_6 {dimension_numbers = #tpu.dot_dimension_numbers<[1], [0], [0], [1], [0, 0, 1, 1], [], []>} : vector<256x4xbf16>, vector<4x8xbf16>, vector<256x8xf32> -> vector<256x8xf32>
    %7 = arith.addf %0, %6 : vector<256x8xf32>
    %c0_7 = arith.constant 0 : index
    %c0_8 = arith.constant 0 : index
    %c1 = arith.constant 1 : index
    %c0_9 = arith.constant 0 : index
    %8 = vector.load %arg1[%c0_7, %c0_8, %c1, %c0_9] : memref<1x18x18x4xbf16, #tpu.memory_space<vmem>>, vector<1x16x16x4xbf16>
    %9 = vector.shape_cast %8 : vector<1x16x16x4xbf16> to vector<16x16x4xbf16>
    %10 = vector.shape_cast %9 : vector<16x16x4xbf16> to vector<256x4xbf16>
    %c1_10 = arith.constant 1 : index
    %c0_11 = arith.constant 0 : index
    %c0_12 = arith.constant 0 : index
    %11 = vector.load %arg2[%c1_10, %c0_11, %c0_12] : memref<9x4x8xbf16, #tpu.memory_space<vmem>>, vector<1x4x8xbf16>
    %12 = vector.shape_cast %11 : vector<1x4x8xbf16> to vector<4x8xbf16>
    %cst_13 = arith.constant dense<0.000000e+00> : vector<256x8xf32>
    %13 = tpu.matmul %10, %12, %cst_13 {dimension_numbers = #tpu.dot_dimension_numbers<[1], [0], [0], [1], [0, 0, 1, 1], [], []>} : vector<256x4xbf16>, vector<4x8xbf16>, vector<256x8xf32> -> vector<256x8xf32>
    %14 = arith.addf %7, %13 : vector<256x8xf32>
    %c0_14 = arith.constant 0 : index
    %c0_15 = arith.constant 0 : index
    %c2 = arith.constant 2 : index
    %c0_16 = arith.constant 0 : index
    %15 = vector.load %arg1[%c0_14, %c0_15, %c2, %c0_16] : memref<1x18x18x4xbf16, #tpu.memory_space<vmem>>, vector<1x16x16x4xbf16>
    %16 = vector.shape_cast %15 : vector<1x16x16x4xbf16> to vector<16x16x4xbf16>
    %17 = vector.shape_cast %16 : vector<16x16x4xbf16> to vector<256x4xbf16>
    %c2_17 = arith.constant 2 : index
    %c0_18 = arith.constant 0 : index
    %c0_19 = arith.constant 0 : index
    %18 = vector.load %arg2[%c2_17, %c0_18, %c0_19] : memref<9x4x8xbf16, #tpu.memory_space<vmem>>, vector<1x4x8xbf16>
    %19 = vector.shape_cast %18 : vector<1x4x8xbf16> to vector<4x8xbf16>
    %cst_20 = arith.constant dense<0.000000e+00> : vector<256x8xf32>
    %20 = tpu.matmul %17, %19, %cst_20 {dimension_numbers = #tpu.dot_dimension_numbers<[1], [0], [0], [1], [0, 0, 1, 1], [], []>} : vector<256x4xbf16>, vector<4x8xbf16>, vector<256x8xf32> -> vector<256x8xf32>
    %21 = arith.addf %14, %20 : vector<256x8xf32>
    %c0_21 = arith.constant 0 : index
    %c1_22 = arith.constant 1 : index
    %c0_23 = arith.constant 0 : index
    %c0_24 = arith.constant 0 : index
    %22 = vector.load %arg1[%c0_21, %c1_22, %c0_23, %c0_24] : memref<1x18x18x4xbf16, #tpu.memory_space<vmem>>, vector<1x16x16x4xbf16>
    %23 = vector.shape_cast %22 : vector<1x16x16x4xbf16> to vector<16x16x4xbf16>
    %24 = vector.shape_cast %23 : vector<16x16x4xbf16> to vector<256x4xbf16>
    %c3 = arith.constant 3 : index
    %c0_25 = arith.constant 0 : index
    %c0_26 = arith.constant 0 : index
    %25 = vector.load %arg2[%c3, %c0_25, %c0_26] : memref<9x4x8xbf16, #tpu.memory_space<vmem>>, vector<1x4x8xbf16>
    %26 = vector.shape_cast %25 : vector<1x4x8xbf16> to vector<4x8xbf16>
    %cst_27 = arith.constant dense<0.000000e+00> : vector<256x8xf32>
    %27 = tpu.matmul %24, %26, %cst_27 {dimension_numbers = #tpu.dot_dimension_numbers<[1], [0], [0], [1], [0, 0, 1, 1], [], []>} : vector<256x4xbf16>, vector<4x8xbf16>, vector<256x8xf32> -> vector<256x8xf32>
    %28 = arith.addf %21, %27 : vector<256x8xf32>
    %c0_28 = arith.constant 0 : index
    %c1_29 = arith.constant 1 : index
    %c1_30 = arith.constant 1 : index
    %c0_31 = arith.constant 0 : index
    %29 = vector.load %arg1[%c0_28, %c1_29, %c1_30, %c0_31] : memref<1x18x18x4xbf16, #tpu.memory_space<vmem>>, vector<1x16x16x4xbf16>
    %30 = vector.shape_cast %29 : vector<1x16x16x4xbf16> to vector<16x16x4xbf16>
    %31 = vector.shape_cast %30 : vector<16x16x4xbf16> to vector<256x4xbf16>
    %c4 = arith.constant 4 : index
    %c0_32 = arith.constant 0 : index
    %c0_33 = arith.constant 0 : index
    %32 = vector.load %arg2[%c4, %c0_32, %c0_33] : memref<9x4x8xbf16, #tpu.memory_space<vmem>>, vector<1x4x8xbf16>
    %33 = vector.shape_cast %32 : vector<1x4x8xbf16> to vector<4x8xbf16>
    %cst_34 = arith.constant dense<0.000000e+00> : vector<256x8xf32>
    %34 = tpu.matmul %31, %33, %cst_34 {dimension_numbers = #tpu.dot_dimension_numbers<[1], [0], [0], [1], [0, 0, 1, 1], [], []>} : vector<256x4xbf16>, vector<4x8xbf16>, vector<256x8xf32> -> vector<256x8xf32>
    %35 = arith.addf %28, %34 : vector<256x8xf32>
    %c0_35 = arith.constant 0 : index
    %c1_36 = arith.constant 1 : index
    %c2_37 = arith.constant 2 : index
    %c0_38 = arith.constant 0 : index
    %36 = vector.load %arg1[%c0_35, %c1_36, %c2_37, %c0_38] : memref<1x18x18x4xbf16, #tpu.memory_space<vmem>>, vector<1x16x16x4xbf16>
    %37 = vector.shape_cast %36 : vector<1x16x16x4xbf16> to vector<16x16x4xbf16>
    %38 = vector.shape_cast %37 : vector<16x16x4xbf16> to vector<256x4xbf16>
    %c5 = arith.constant 5 : index
    %c0_39 = arith.constant 0 : index
    %c0_40 = arith.constant 0 : index
    %39 = vector.load %arg2[%c5, %c0_39, %c0_40] : memref<9x4x8xbf16, #tpu.memory_space<vmem>>, vector<1x4x8xbf16>
    %40 = vector.shape_cast %39 : vector<1x4x8xbf16> to vector<4x8xbf16>
    %cst_41 = arith.constant dense<0.000000e+00> : vector<256x8xf32>
    %41 = tpu.matmul %38, %40, %cst_41 {dimension_numbers = #tpu.dot_dimension_numbers<[1], [0], [0], [1], [0, 0, 1, 1], [], []>} : vector<256x4xbf16>, vector<4x8xbf16>, vector<256x8xf32> -> vector<256x8xf32>
    %42 = arith.addf %35, %41 : vector<256x8xf32>
    %c0_42 = arith.constant 0 : index
    %c2_43 = arith.constant 2 : index
    %c0_44 = arith.constant 0 : index
    %c0_45 = arith.constant 0 : index
    %43 = vector.load %arg1[%c0_42, %c2_43, %c0_44, %c0_45] : memref<1x18x18x4xbf16, #tpu.memory_space<vmem>>, vector<1x16x16x4xbf16>
    %44 = vector.shape_cast %43 : vector<1x16x16x4xbf16> to vector<16x16x4xbf16>
    %45 = vector.shape_cast %44 : vector<16x16x4xbf16> to vector<256x4xbf16>
    %c6 = arith.constant 6 : index
    %c0_46 = arith.constant 0 : index
    %c0_47 = arith.constant 0 : index
    %46 = vector.load %arg2[%c6, %c0_46, %c0_47] : memref<9x4x8xbf16, #tpu.memory_space<vmem>>, vector<1x4x8xbf16>
    %47 = vector.shape_cast %46 : vector<1x4x8xbf16> to vector<4x8xbf16>
    %cst_48 = arith.constant dense<0.000000e+00> : vector<256x8xf32>
    %48 = tpu.matmul %45, %47, %cst_48 {dimension_numbers = #tpu.dot_dimension_numbers<[1], [0], [0], [1], [0, 0, 1, 1], [], []>} : vector<256x4xbf16>, vector<4x8xbf16>, vector<256x8xf32> -> vector<256x8xf32>
    %49 = arith.addf %42, %48 : vector<256x8xf32>
    %c0_49 = arith.constant 0 : index
    %c2_50 = arith.constant 2 : index
    %c1_51 = arith.constant 1 : index
    %c0_52 = arith.constant 0 : index
    %50 = vector.load %arg1[%c0_49, %c2_50, %c1_51, %c0_52] : memref<1x18x18x4xbf16, #tpu.memory_space<vmem>>, vector<1x16x16x4xbf16>
    %51 = vector.shape_cast %50 : vector<1x16x16x4xbf16> to vector<16x16x4xbf16>
    %52 = vector.shape_cast %51 : vector<16x16x4xbf16> to vector<256x4xbf16>
    %c7 = arith.constant 7 : index
    %c0_53 = arith.constant 0 : index
    %c0_54 = arith.constant 0 : index
    %53 = vector.load %arg2[%c7, %c0_53, %c0_54] : memref<9x4x8xbf16, #tpu.memory_space<vmem>>, vector<1x4x8xbf16>
    %54 = vector.shape_cast %53 : vector<1x4x8xbf16> to vector<4x8xbf16>
    %cst_55 = arith.constant dense<0.000000e+00> : vector<256x8xf32>
    %55 = tpu.matmul %52, %54, %cst_55 {dimension_numbers = #tpu.dot_dimension_numbers<[1], [0], [0], [1], [0, 0, 1, 1], [], []>} : vector<256x4xbf16>, vector<4x8xbf16>, vector<256x8xf32> -> vector<256x8xf32>
    %56 = arith.addf %49, %55 : vector<256x8xf32>
    %c0_56 = arith.constant 0 : index
    %c2_57 = arith.constant 2 : index
    %c2_58 = arith.constant 2 : index
    %c0_59 = arith.constant 0 : index
    %57 = vector.load %arg1[%c0_56, %c2_57, %c2_58, %c0_59] : memref<1x18x18x4xbf16, #tpu.memory_space<vmem>>, vector<1x16x16x4xbf16>
    %58 = vector.shape_cast %57 : vector<1x16x16x4xbf16> to vector<16x16x4xbf16>
    %59 = vector.shape_cast %58 : vector<16x16x4xbf16> to vector<256x4xbf16>
    %c8 = arith.constant 8 : index
    %c0_60 = arith.constant 0 : index
    %c0_61 = arith.constant 0 : index
    %60 = vector.load %arg2[%c8, %c0_60, %c0_61] : memref<9x4x8xbf16, #tpu.memory_space<vmem>>, vector<1x4x8xbf16>
    %61 = vector.shape_cast %60 : vector<1x4x8xbf16> to vector<4x8xbf16>
    %cst_62 = arith.constant dense<0.000000e+00> : vector<256x8xf32>
    %62 = tpu.matmul %59, %61, %cst_62 {dimension_numbers = #tpu.dot_dimension_numbers<[1], [0], [0], [1], [0, 0, 1, 1], [], []>} : vector<256x4xbf16>, vector<4x8xbf16>, vector<256x8xf32> -> vector<256x8xf32>
    %63 = arith.addf %56, %62 : vector<256x8xf32>
    %c0_63 = arith.constant 0 : index
    %c0_64 = arith.constant 0 : index
    %64 = vector.load %arg3[%c0_63, %c0_64] : memref<1x8xf32, #tpu.memory_space<vmem>>, vector<1x8xf32>
    %65 = vector.broadcast %64 : vector<1x8xf32> to vector<256x8xf32>
    %66 = arith.mulf %63, %65 : vector<256x8xf32>
    %c0_65 = arith.constant 0 : index
    %c0_66 = arith.constant 0 : index
    %67 = vector.load %arg4[%c0_65, %c0_66] : memref<1x8xf32, #tpu.memory_space<vmem>>, vector<1x8xf32>
    %68 = vector.broadcast %67 : vector<1x8xf32> to vector<256x8xf32>
    %69 = arith.addf %66, %68 : vector<256x8xf32>
    %cst_67 = arith.constant 1.000000e-01 : f32
    %70 = vector.broadcast %cst_67 : f32 to vector<256x8xf32>
    %71 = arith.mulf %69, %70 : vector<256x8xf32>
    %72 = arith.maximumf %69, %71 : vector<256x8xf32>
    %73 = arith.truncf %72 : vector<256x8xf32> to vector<256x8xbf16>
    %74 = vector.shape_cast %73 : vector<256x8xbf16> to vector<1x16x16x8xbf16>
    %c0_68 = arith.constant 0 : index
    %c0_69 = arith.constant 0 : index
    %c0_70 = arith.constant 0 : index
    %c0_71 = arith.constant 0 : index
    %75 = vector.load %arg5[%c0_68, %c0_69, %c0_70, %c0_71] : memref<1x16x16x8xbf16, #tpu.memory_space<vmem>>, vector<1x16x16x8xbf16>
    tpu.vector_store %arg5[%c0_68, %c0_69, %c0_70, %c0_71], %74 {strides = array<i32>} : memref<1x16x16x8xbf16, #tpu.memory_space<vmem>>, vector<1x16x16x8xbf16>,
    return
  }
  func.func @transform_0(%arg0: i32) -> (i32, i32, i32, i32) {
    %c0_i32 = arith.constant 0 : i32
    %c0_i32_0 = arith.constant 0 : i32
    %c0_i32_1 = arith.constant 0 : i32
    %c0_i32_2 = arith.constant 0 : i32
    return %arg0, %c0_i32, %c0_i32_0, %c0_i32_1 : i32, i32, i32, i32
  }
  func.func @transform_1(%arg0: i32) -> (i32, i32, i32) {
    %c0_i32 = arith.constant 0 : i32
    %c0_i32_0 = arith.constant 0 : i32
    %c0_i32_1 = arith.constant 0 : i32
    %c0_i32_2 = arith.constant 0 : i32
    return %c0_i32, %c0_i32_0, %c0_i32_1 : i32, i32, i32
  }
  func.func @transform_2(%arg0: i32) -> (i32, i32) {
    %c0_i32 = arith.constant 0 : i32
    %c0_i32_0 = arith.constant 0 : i32
    %c0_i32_1 = arith.constant 0 : i32
    return %c0_i32, %c0_i32_0 : i32, i32
  }
  func.func @transform_3(%arg0: i32) -> (i32, i32) {
    %c0_i32 = arith.constant 0 : i32
    %c0_i32_0 = arith.constant 0 : i32
    %c0_i32_1 = arith.constant 0 : i32
    return %c0_i32, %c0_i32_0 : i32, i32
  }
  func.func @transform_4(%arg0: i32) -> (i32, i32, i32, i32) {
    %c0_i32 = arith.constant 0 : i32
    %c0_i32_0 = arith.constant 0 : i32
    %c0_i32_1 = arith.constant 0 : i32
    %c0_i32_2 = arith.constant 0 : i32
    return %arg0, %c0_i32, %c0_i32_0, %c0_i32_1 : i32, i32, i32, i32
  }
}

module attributes {stable_mosaic.version = 11 : i64} {
  func.func @_maxpool_eq_kernel(%arg0: i32, %arg1: memref<1x16x16x8xbf16, #tpu.memory_space<vmem>>, %arg2: memref<1x8x8x8xbf16, #tpu.memory_space<vmem>>) attributes {dimension_semantics = [#tpu.dimension_semantics<parallel>], iteration_bounds = array<i64: 2>, scalar_prefetch = 0 : i64, scratch_operands = 0 : i64, tpu.core_type = #tpu.core_type<tc>, window_params = [{transform_indices = @transform_0, window_bounds = array<i64: 1, 16, 16, 8>}, {transform_indices = @transform_1, window_bounds = array<i64: 1, 8, 8, 8>}]} {
    %c0 = arith.constant 0 : index
    %c0_0 = arith.constant 0 : index
    %c0_1 = arith.constant 0 : index
    %c0_2 = arith.constant 0 : index
    %0 = vector.load %arg1[%c0, %c0_0, %c0_1, %c0_2] : memref<1x16x16x8xbf16, #tpu.memory_space<vmem>>, vector<1x16x16x8xbf16>
    %1 = vector.shape_cast %0 : vector<1x16x16x8xbf16> to vector<16x16x8xbf16>
    %2 = vector.shape_cast %1 : vector<16x16x8xbf16> to vector<8x2x16x8xbf16>
    %cst = arith.constant dense<0xFF80> : vector<8x16x8xbf16>
    %3 = vector.multi_reduction <maximumf>, %2, %cst [1] : vector<8x2x16x8xbf16> to vector<8x16x8xbf16>
    %4 = vector.shape_cast %3 : vector<8x16x8xbf16> to vector<8x8x2x8xbf16>
    %cst_3 = arith.constant dense<0xFF80> : vector<8x8x8xbf16>
    %5 = vector.multi_reduction <maximumf>, %4, %cst_3 [2] : vector<8x8x2x8xbf16> to vector<8x8x8xbf16>
    %6 = vector.shape_cast %5 : vector<8x8x8xbf16> to vector<1x8x8x8xbf16>
    %c0_4 = arith.constant 0 : index
    %c0_5 = arith.constant 0 : index
    %c0_6 = arith.constant 0 : index
    %c0_7 = arith.constant 0 : index
    %7 = vector.load %arg2[%c0_4, %c0_5, %c0_6, %c0_7] : memref<1x8x8x8xbf16, #tpu.memory_space<vmem>>, vector<1x8x8x8xbf16>
    tpu.vector_store %arg2[%c0_4, %c0_5, %c0_6, %c0_7], %6 {strides = array<i32>} : memref<1x8x8x8xbf16, #tpu.memory_space<vmem>>, vector<1x8x8x8xbf16>,
    return
  }
  func.func @transform_0(%arg0: i32) -> (i32, i32, i32, i32) {
    %c0_i32 = arith.constant 0 : i32
    %c0_i32_0 = arith.constant 0 : i32
    %c0_i32_1 = arith.constant 0 : i32
    %c0_i32_2 = arith.constant 0 : i32
    return %arg0, %c0_i32, %c0_i32_0, %c0_i32_1 : i32, i32, i32, i32
  }
  func.func @transform_1(%arg0: i32) -> (i32, i32, i32, i32) {
    %c0_i32 = arith.constant 0 : i32
    %c0_i32_0 = arith.constant 0 : i32
    %c0_i32_1 = arith.constant 0 : i32
    %c0_i32_2 = arith.constant 0 : i32
    return %arg0, %c0_i32, %c0_i32_0, %c0_i32_1 : i32, i32, i32, i32
  }
}

module attributes {stable_mosaic.version = 11 : i64} {
  func.func @_conv_fused_kernel(%arg0: i32, %arg1: memref<1x10x10x8xbf16, #tpu.memory_space<vmem>>, %arg2: memref<9x8x16xbf16, #tpu.memory_space<vmem>>, %arg3: memref<1x16xf32, #tpu.memory_space<vmem>>, %arg4: memref<1x16xf32, #tpu.memory_space<vmem>>, %arg5: memref<1x8x8x16xbf16, #tpu.memory_space<vmem>>) attributes {dimension_semantics = [#tpu.dimension_semantics<parallel>], iteration_bounds = array<i64: 2>, scalar_prefetch = 0 : i64, scratch_operands = 0 : i64, tpu.core_type = #tpu.core_type<tc>, window_params = [{transform_indices = @transform_0, window_bounds = array<i64: 1, 10, 10, 8>}, {pipeline_mode = #tpu.pipeline_mode<synchronous>, transform_indices = @transform_1, window_bounds = array<i64: 9, 8, 16>}, {pipeline_mode = #tpu.pipeline_mode<synchronous>, transform_indices = @transform_2, window_bounds = array<i64: 1, 16>}, {pipeline_mode = #tpu.pipeline_mode<synchronous>, transform_indices = @transform_3, window_bounds = array<i64: 1, 16>}, {transform_indices = @transform_4, window_bounds = array<i64: 1, 8, 8, 16>}]} {
    %cst = arith.constant 0.000000e+00 : f32
    %0 = vector.broadcast %cst : f32 to vector<64x16xf32>
    %c0 = arith.constant 0 : index
    %c0_0 = arith.constant 0 : index
    %c0_1 = arith.constant 0 : index
    %c0_2 = arith.constant 0 : index
    %1 = vector.load %arg1[%c0, %c0_0, %c0_1, %c0_2] : memref<1x10x10x8xbf16, #tpu.memory_space<vmem>>, vector<1x8x8x8xbf16>
    %2 = vector.shape_cast %1 : vector<1x8x8x8xbf16> to vector<8x8x8xbf16>
    %3 = vector.shape_cast %2 : vector<8x8x8xbf16> to vector<64x8xbf16>
    %c0_3 = arith.constant 0 : index
    %c0_4 = arith.constant 0 : index
    %c0_5 = arith.constant 0 : index
    %4 = vector.load %arg2[%c0_3, %c0_4, %c0_5] : memref<9x8x16xbf16, #tpu.memory_space<vmem>>, vector<1x8x16xbf16>
    %5 = vector.shape_cast %4 : vector<1x8x16xbf16> to vector<8x16xbf16>
    %cst_6 = arith.constant dense<0.000000e+00> : vector<64x16xf32>
    %6 = tpu.matmul %3, %5, %cst_6 {dimension_numbers = #tpu.dot_dimension_numbers<[1], [0], [0], [1], [0, 0, 1, 1], [], []>} : vector<64x8xbf16>, vector<8x16xbf16>, vector<64x16xf32> -> vector<64x16xf32>
    %7 = arith.addf %0, %6 : vector<64x16xf32>
    %c0_7 = arith.constant 0 : index
    %c0_8 = arith.constant 0 : index
    %c1 = arith.constant 1 : index
    %c0_9 = arith.constant 0 : index
    %8 = vector.load %arg1[%c0_7, %c0_8, %c1, %c0_9] : memref<1x10x10x8xbf16, #tpu.memory_space<vmem>>, vector<1x8x8x8xbf16>
    %9 = vector.shape_cast %8 : vector<1x8x8x8xbf16> to vector<8x8x8xbf16>
    %10 = vector.shape_cast %9 : vector<8x8x8xbf16> to vector<64x8xbf16>
    %c1_10 = arith.constant 1 : index
    %c0_11 = arith.constant 0 : index
    %c0_12 = arith.constant 0 : index
    %11 = vector.load %arg2[%c1_10, %c0_11, %c0_12] : memref<9x8x16xbf16, #tpu.memory_space<vmem>>, vector<1x8x16xbf16>
    %12 = vector.shape_cast %11 : vector<1x8x16xbf16> to vector<8x16xbf16>
    %cst_13 = arith.constant dense<0.000000e+00> : vector<64x16xf32>
    %13 = tpu.matmul %10, %12, %cst_13 {dimension_numbers = #tpu.dot_dimension_numbers<[1], [0], [0], [1], [0, 0, 1, 1], [], []>} : vector<64x8xbf16>, vector<8x16xbf16>, vector<64x16xf32> -> vector<64x16xf32>
    %14 = arith.addf %7, %13 : vector<64x16xf32>
    %c0_14 = arith.constant 0 : index
    %c0_15 = arith.constant 0 : index
    %c2 = arith.constant 2 : index
    %c0_16 = arith.constant 0 : index
    %15 = vector.load %arg1[%c0_14, %c0_15, %c2, %c0_16] : memref<1x10x10x8xbf16, #tpu.memory_space<vmem>>, vector<1x8x8x8xbf16>
    %16 = vector.shape_cast %15 : vector<1x8x8x8xbf16> to vector<8x8x8xbf16>
    %17 = vector.shape_cast %16 : vector<8x8x8xbf16> to vector<64x8xbf16>
    %c2_17 = arith.constant 2 : index
    %c0_18 = arith.constant 0 : index
    %c0_19 = arith.constant 0 : index
    %18 = vector.load %arg2[%c2_17, %c0_18, %c0_19] : memref<9x8x16xbf16, #tpu.memory_space<vmem>>, vector<1x8x16xbf16>
    %19 = vector.shape_cast %18 : vector<1x8x16xbf16> to vector<8x16xbf16>
    %cst_20 = arith.constant dense<0.000000e+00> : vector<64x16xf32>
    %20 = tpu.matmul %17, %19, %cst_20 {dimension_numbers = #tpu.dot_dimension_numbers<[1], [0], [0], [1], [0, 0, 1, 1], [], []>} : vector<64x8xbf16>, vector<8x16xbf16>, vector<64x16xf32> -> vector<64x16xf32>
    %21 = arith.addf %14, %20 : vector<64x16xf32>
    %c0_21 = arith.constant 0 : index
    %c1_22 = arith.constant 1 : index
    %c0_23 = arith.constant 0 : index
    %c0_24 = arith.constant 0 : index
    %22 = vector.load %arg1[%c0_21, %c1_22, %c0_23, %c0_24] : memref<1x10x10x8xbf16, #tpu.memory_space<vmem>>, vector<1x8x8x8xbf16>
    %23 = vector.shape_cast %22 : vector<1x8x8x8xbf16> to vector<8x8x8xbf16>
    %24 = vector.shape_cast %23 : vector<8x8x8xbf16> to vector<64x8xbf16>
    %c3 = arith.constant 3 : index
    %c0_25 = arith.constant 0 : index
    %c0_26 = arith.constant 0 : index
    %25 = vector.load %arg2[%c3, %c0_25, %c0_26] : memref<9x8x16xbf16, #tpu.memory_space<vmem>>, vector<1x8x16xbf16>
    %26 = vector.shape_cast %25 : vector<1x8x16xbf16> to vector<8x16xbf16>
    %cst_27 = arith.constant dense<0.000000e+00> : vector<64x16xf32>
    %27 = tpu.matmul %24, %26, %cst_27 {dimension_numbers = #tpu.dot_dimension_numbers<[1], [0], [0], [1], [0, 0, 1, 1], [], []>} : vector<64x8xbf16>, vector<8x16xbf16>, vector<64x16xf32> -> vector<64x16xf32>
    %28 = arith.addf %21, %27 : vector<64x16xf32>
    %c0_28 = arith.constant 0 : index
    %c1_29 = arith.constant 1 : index
    %c1_30 = arith.constant 1 : index
    %c0_31 = arith.constant 0 : index
    %29 = vector.load %arg1[%c0_28, %c1_29, %c1_30, %c0_31] : memref<1x10x10x8xbf16, #tpu.memory_space<vmem>>, vector<1x8x8x8xbf16>
    %30 = vector.shape_cast %29 : vector<1x8x8x8xbf16> to vector<8x8x8xbf16>
    %31 = vector.shape_cast %30 : vector<8x8x8xbf16> to vector<64x8xbf16>
    %c4 = arith.constant 4 : index
    %c0_32 = arith.constant 0 : index
    %c0_33 = arith.constant 0 : index
    %32 = vector.load %arg2[%c4, %c0_32, %c0_33] : memref<9x8x16xbf16, #tpu.memory_space<vmem>>, vector<1x8x16xbf16>
    %33 = vector.shape_cast %32 : vector<1x8x16xbf16> to vector<8x16xbf16>
    %cst_34 = arith.constant dense<0.000000e+00> : vector<64x16xf32>
    %34 = tpu.matmul %31, %33, %cst_34 {dimension_numbers = #tpu.dot_dimension_numbers<[1], [0], [0], [1], [0, 0, 1, 1], [], []>} : vector<64x8xbf16>, vector<8x16xbf16>, vector<64x16xf32> -> vector<64x16xf32>
    %35 = arith.addf %28, %34 : vector<64x16xf32>
    %c0_35 = arith.constant 0 : index
    %c1_36 = arith.constant 1 : index
    %c2_37 = arith.constant 2 : index
    %c0_38 = arith.constant 0 : index
    %36 = vector.load %arg1[%c0_35, %c1_36, %c2_37, %c0_38] : memref<1x10x10x8xbf16, #tpu.memory_space<vmem>>, vector<1x8x8x8xbf16>
    %37 = vector.shape_cast %36 : vector<1x8x8x8xbf16> to vector<8x8x8xbf16>
    %38 = vector.shape_cast %37 : vector<8x8x8xbf16> to vector<64x8xbf16>
    %c5 = arith.constant 5 : index
    %c0_39 = arith.constant 0 : index
    %c0_40 = arith.constant 0 : index
    %39 = vector.load %arg2[%c5, %c0_39, %c0_40] : memref<9x8x16xbf16, #tpu.memory_space<vmem>>, vector<1x8x16xbf16>
    %40 = vector.shape_cast %39 : vector<1x8x16xbf16> to vector<8x16xbf16>
    %cst_41 = arith.constant dense<0.000000e+00> : vector<64x16xf32>
    %41 = tpu.matmul %38, %40, %cst_41 {dimension_numbers = #tpu.dot_dimension_numbers<[1], [0], [0], [1], [0, 0, 1, 1], [], []>} : vector<64x8xbf16>, vector<8x16xbf16>, vector<64x16xf32> -> vector<64x16xf32>
    %42 = arith.addf %35, %41 : vector<64x16xf32>
    %c0_42 = arith.constant 0 : index
    %c2_43 = arith.constant 2 : index
    %c0_44 = arith.constant 0 : index
    %c0_45 = arith.constant 0 : index
    %43 = vector.load %arg1[%c0_42, %c2_43, %c0_44, %c0_45] : memref<1x10x10x8xbf16, #tpu.memory_space<vmem>>, vector<1x8x8x8xbf16>
    %44 = vector.shape_cast %43 : vector<1x8x8x8xbf16> to vector<8x8x8xbf16>
    %45 = vector.shape_cast %44 : vector<8x8x8xbf16> to vector<64x8xbf16>
    %c6 = arith.constant 6 : index
    %c0_46 = arith.constant 0 : index
    %c0_47 = arith.constant 0 : index
    %46 = vector.load %arg2[%c6, %c0_46, %c0_47] : memref<9x8x16xbf16, #tpu.memory_space<vmem>>, vector<1x8x16xbf16>
    %47 = vector.shape_cast %46 : vector<1x8x16xbf16> to vector<8x16xbf16>
    %cst_48 = arith.constant dense<0.000000e+00> : vector<64x16xf32>
    %48 = tpu.matmul %45, %47, %cst_48 {dimension_numbers = #tpu.dot_dimension_numbers<[1], [0], [0], [1], [0, 0, 1, 1], [], []>} : vector<64x8xbf16>, vector<8x16xbf16>, vector<64x16xf32> -> vector<64x16xf32>
    %49 = arith.addf %42, %48 : vector<64x16xf32>
    %c0_49 = arith.constant 0 : index
    %c2_50 = arith.constant 2 : index
    %c1_51 = arith.constant 1 : index
    %c0_52 = arith.constant 0 : index
    %50 = vector.load %arg1[%c0_49, %c2_50, %c1_51, %c0_52] : memref<1x10x10x8xbf16, #tpu.memory_space<vmem>>, vector<1x8x8x8xbf16>
    %51 = vector.shape_cast %50 : vector<1x8x8x8xbf16> to vector<8x8x8xbf16>
    %52 = vector.shape_cast %51 : vector<8x8x8xbf16> to vector<64x8xbf16>
    %c7 = arith.constant 7 : index
    %c0_53 = arith.constant 0 : index
    %c0_54 = arith.constant 0 : index
    %53 = vector.load %arg2[%c7, %c0_53, %c0_54] : memref<9x8x16xbf16, #tpu.memory_space<vmem>>, vector<1x8x16xbf16>
    %54 = vector.shape_cast %53 : vector<1x8x16xbf16> to vector<8x16xbf16>
    %cst_55 = arith.constant dense<0.000000e+00> : vector<64x16xf32>
    %55 = tpu.matmul %52, %54, %cst_55 {dimension_numbers = #tpu.dot_dimension_numbers<[1], [0], [0], [1], [0, 0, 1, 1], [], []>} : vector<64x8xbf16>, vector<8x16xbf16>, vector<64x16xf32> -> vector<64x16xf32>
    %56 = arith.addf %49, %55 : vector<64x16xf32>
    %c0_56 = arith.constant 0 : index
    %c2_57 = arith.constant 2 : index
    %c2_58 = arith.constant 2 : index
    %c0_59 = arith.constant 0 : index
    %57 = vector.load %arg1[%c0_56, %c2_57, %c2_58, %c0_59] : memref<1x10x10x8xbf16, #tpu.memory_space<vmem>>, vector<1x8x8x8xbf16>
    %58 = vector.shape_cast %57 : vector<1x8x8x8xbf16> to vector<8x8x8xbf16>
    %59 = vector.shape_cast %58 : vector<8x8x8xbf16> to vector<64x8xbf16>
    %c8 = arith.constant 8 : index
    %c0_60 = arith.constant 0 : index
    %c0_61 = arith.constant 0 : index
    %60 = vector.load %arg2[%c8, %c0_60, %c0_61] : memref<9x8x16xbf16, #tpu.memory_space<vmem>>, vector<1x8x16xbf16>
    %61 = vector.shape_cast %60 : vector<1x8x16xbf16> to vector<8x16xbf16>
    %cst_62 = arith.constant dense<0.000000e+00> : vector<64x16xf32>
    %62 = tpu.matmul %59, %61, %cst_62 {dimension_numbers = #tpu.dot_dimension_numbers<[1], [0], [0], [1], [0, 0, 1, 1], [], []>} : vector<64x8xbf16>, vector<8x16xbf16>, vector<64x16xf32> -> vector<64x16xf32>
    %63 = arith.addf %56, %62 : vector<64x16xf32>
    %c0_63 = arith.constant 0 : index
    %c0_64 = arith.constant 0 : index
    %64 = vector.load %arg3[%c0_63, %c0_64] : memref<1x16xf32, #tpu.memory_space<vmem>>, vector<1x16xf32>
    %65 = vector.broadcast %64 : vector<1x16xf32> to vector<64x16xf32>
    %66 = arith.mulf %63, %65 : vector<64x16xf32>
    %c0_65 = arith.constant 0 : index
    %c0_66 = arith.constant 0 : index
    %67 = vector.load %arg4[%c0_65, %c0_66] : memref<1x16xf32, #tpu.memory_space<vmem>>, vector<1x16xf32>
    %68 = vector.broadcast %67 : vector<1x16xf32> to vector<64x16xf32>
    %69 = arith.addf %66, %68 : vector<64x16xf32>
    %cst_67 = arith.constant 1.000000e-01 : f32
    %70 = vector.broadcast %cst_67 : f32 to vector<64x16xf32>
    %71 = arith.mulf %69, %70 : vector<64x16xf32>
    %72 = arith.maximumf %69, %71 : vector<64x16xf32>
    %73 = arith.truncf %72 : vector<64x16xf32> to vector<64x16xbf16>
    %74 = vector.shape_cast %73 : vector<64x16xbf16> to vector<1x8x8x16xbf16>
    %c0_68 = arith.constant 0 : index
    %c0_69 = arith.constant 0 : index
    %c0_70 = arith.constant 0 : index
    %c0_71 = arith.constant 0 : index
    %75 = vector.load %arg5[%c0_68, %c0_69, %c0_70, %c0_71] : memref<1x8x8x16xbf16, #tpu.memory_space<vmem>>, vector<1x8x8x16xbf16>
    tpu.vector_store %arg5[%c0_68, %c0_69, %c0_70, %c0_71], %74 {strides = array<i32>} : memref<1x8x8x16xbf16, #tpu.memory_space<vmem>>, vector<1x8x8x16xbf16>,
    return
  }
  func.func @transform_0(%arg0: i32) -> (i32, i32, i32, i32) {
    %c0_i32 = arith.constant 0 : i32
    %c0_i32_0 = arith.constant 0 : i32
    %c0_i32_1 = arith.constant 0 : i32
    %c0_i32_2 = arith.constant 0 : i32
    return %arg0, %c0_i32, %c0_i32_0, %c0_i32_1 : i32, i32, i32, i32
  }
  func.func @transform_1(%arg0: i32) -> (i32, i32, i32) {
    %c0_i32 = arith.constant 0 : i32
    %c0_i32_0 = arith.constant 0 : i32
    %c0_i32_1 = arith.constant 0 : i32
    %c0_i32_2 = arith.constant 0 : i32
    return %c0_i32, %c0_i32_0, %c0_i32_1 : i32, i32, i32
  }
  func.func @transform_2(%arg0: i32) -> (i32, i32) {
    %c0_i32 = arith.constant 0 : i32
    %c0_i32_0 = arith.constant 0 : i32
    %c0_i32_1 = arith.constant 0 : i32
    return %c0_i32, %c0_i32_0 : i32, i32
  }
  func.func @transform_3(%arg0: i32) -> (i32, i32) {
    %c0_i32 = arith.constant 0 : i32
    %c0_i32_0 = arith.constant 0 : i32
    %c0_i32_1 = arith.constant 0 : i32
    return %c0_i32, %c0_i32_0 : i32, i32
  }
  func.func @transform_4(%arg0: i32) -> (i32, i32, i32, i32) {
    %c0_i32 = arith.constant 0 : i32
    %c0_i32_0 = arith.constant 0 : i32
    %c0_i32_1 = arith.constant 0 : i32
    %c0_i32_2 = arith.constant 0 : i32
    return %arg0, %c0_i32, %c0_i32_0, %c0_i32_1 : i32, i32, i32, i32
  }
}

module attributes {stable_mosaic.version = 11 : i64} {
  func.func @_conv_fused_kernel(%arg0: i32, %arg1: memref<1x8x8x16xbf16, #tpu.memory_space<vmem>>, %arg2: memref<1x16x16xbf16, #tpu.memory_space<vmem>>, %arg3: memref<1x16xf32, #tpu.memory_space<vmem>>, %arg4: memref<1x16xf32, #tpu.memory_space<vmem>>, %arg5: memref<1x8x8x16xbf16, #tpu.memory_space<vmem>>) attributes {dimension_semantics = [#tpu.dimension_semantics<parallel>], iteration_bounds = array<i64: 2>, scalar_prefetch = 0 : i64, scratch_operands = 0 : i64, tpu.core_type = #tpu.core_type<tc>, window_params = [{transform_indices = @transform_0, window_bounds = array<i64: 1, 8, 8, 16>}, {pipeline_mode = #tpu.pipeline_mode<synchronous>, transform_indices = @transform_1, window_bounds = array<i64: 1, 16, 16>}, {pipeline_mode = #tpu.pipeline_mode<synchronous>, transform_indices = @transform_2, window_bounds = array<i64: 1, 16>}, {pipeline_mode = #tpu.pipeline_mode<synchronous>, transform_indices = @transform_3, window_bounds = array<i64: 1, 16>}, {transform_indices = @transform_4, window_bounds = array<i64: 1, 8, 8, 16>}]} {
    %cst = arith.constant 0.000000e+00 : f32
    %0 = vector.broadcast %cst : f32 to vector<64x16xf32>
    %c0 = arith.constant 0 : index
    %c0_0 = arith.constant 0 : index
    %c0_1 = arith.constant 0 : index
    %c0_2 = arith.constant 0 : index
    %1 = vector.load %arg1[%c0, %c0_0, %c0_1, %c0_2] : memref<1x8x8x16xbf16, #tpu.memory_space<vmem>>, vector<1x8x8x16xbf16>
    %2 = vector.shape_cast %1 : vector<1x8x8x16xbf16> to vector<8x8x16xbf16>
    %3 = vector.shape_cast %2 : vector<8x8x16xbf16> to vector<64x16xbf16>
    %c0_3 = arith.constant 0 : index
    %c0_4 = arith.constant 0 : index
    %c0_5 = arith.constant 0 : index
    %4 = vector.load %arg2[%c0_3, %c0_4, %c0_5] : memref<1x16x16xbf16, #tpu.memory_space<vmem>>, vector<1x16x16xbf16>
    %5 = vector.shape_cast %4 : vector<1x16x16xbf16> to vector<16x16xbf16>
    %cst_6 = arith.constant dense<0.000000e+00> : vector<64x16xf32>
    %6 = tpu.matmul %3, %5, %cst_6 {dimension_numbers = #tpu.dot_dimension_numbers<[1], [0], [0], [1], [0, 0, 1, 1], [], []>} : vector<64x16xbf16>, vector<16x16xbf16>, vector<64x16xf32> -> vector<64x16xf32>
    %7 = arith.addf %0, %6 : vector<64x16xf32>
    %c0_7 = arith.constant 0 : index
    %c0_8 = arith.constant 0 : index
    %8 = vector.load %arg3[%c0_7, %c0_8] : memref<1x16xf32, #tpu.memory_space<vmem>>, vector<1x16xf32>
    %9 = vector.broadcast %8 : vector<1x16xf32> to vector<64x16xf32>
    %10 = arith.mulf %7, %9 : vector<64x16xf32>
    %c0_9 = arith.constant 0 : index
    %c0_10 = arith.constant 0 : index
    %11 = vector.load %arg4[%c0_9, %c0_10] : memref<1x16xf32, #tpu.memory_space<vmem>>, vector<1x16xf32>
    %12 = vector.broadcast %11 : vector<1x16xf32> to vector<64x16xf32>
    %13 = arith.addf %10, %12 : vector<64x16xf32>
    %14 = arith.truncf %13 : vector<64x16xf32> to vector<64x16xbf16>
    %15 = vector.shape_cast %14 : vector<64x16xbf16> to vector<1x8x8x16xbf16>
    %c0_11 = arith.constant 0 : index
    %c0_12 = arith.constant 0 : index
    %c0_13 = arith.constant 0 : index
    %c0_14 = arith.constant 0 : index
    %16 = vector.load %arg5[%c0_11, %c0_12, %c0_13, %c0_14] : memref<1x8x8x16xbf16, #tpu.memory_space<vmem>>, vector<1x8x8x16xbf16>
    tpu.vector_store %arg5[%c0_11, %c0_12, %c0_13, %c0_14], %15 {strides = array<i32>} : memref<1x8x8x16xbf16, #tpu.memory_space<vmem>>, vector<1x8x8x16xbf16>,
    return
  }
  func.func @transform_0(%arg0: i32) -> (i32, i32, i32, i32) {
    %c0_i32 = arith.constant 0 : i32
    %c0_i32_0 = arith.constant 0 : i32
    %c0_i32_1 = arith.constant 0 : i32
    %c0_i32_2 = arith.constant 0 : i32
    return %arg0, %c0_i32, %c0_i32_0, %c0_i32_1 : i32, i32, i32, i32
  }
  func.func @transform_1(%arg0: i32) -> (i32, i32, i32) {
    %c0_i32 = arith.constant 0 : i32
    %c0_i32_0 = arith.constant 0 : i32
    %c0_i32_1 = arith.constant 0 : i32
    %c0_i32_2 = arith.constant 0 : i32
    return %c0_i32, %c0_i32_0, %c0_i32_1 : i32, i32, i32
  }
  func.func @transform_2(%arg0: i32) -> (i32, i32) {
    %c0_i32 = arith.constant 0 : i32
    %c0_i32_0 = arith.constant 0 : i32
    %c0_i32_1 = arith.constant 0 : i32
    return %c0_i32, %c0_i32_0 : i32, i32
  }
  func.func @transform_3(%arg0: i32) -> (i32, i32) {
    %c0_i32 = arith.constant 0 : i32
    %c0_i32_0 = arith.constant 0 : i32
    %c0_i32_1 = arith.constant 0 : i32
    return %c0_i32, %c0_i32_0 : i32, i32
  }
  func.func @transform_4(%arg0: i32) -> (i32, i32, i32, i32) {
    %c0_i32 = arith.constant 0 : i32
    %c0_i32_0 = arith.constant 0 : i32
    %c0_i32_1 = arith.constant 0 : i32
    %c0_i32_2 = arith.constant 0 : i32
    return %arg0, %c0_i32, %c0_i32_0, %c0_i32_1 : i32, i32, i32, i32
  }
}

module attributes {stable_mosaic.version = 11 : i64} {
  func.func @_add_act_kernel(%arg0: i32, %arg1: memref<16x128xbf16, #tpu.memory_space<vmem>>, %arg2: memref<16x128xbf16, #tpu.memory_space<vmem>>, %arg3: memref<16x128xbf16, #tpu.memory_space<vmem>>) attributes {dimension_semantics = [#tpu.dimension_semantics<parallel>], iteration_bounds = array<i64: 1>, scalar_prefetch = 0 : i64, scratch_operands = 0 : i64, tpu.core_type = #tpu.core_type<tc>, window_params = [{transform_indices = @transform_0, window_bounds = array<i64: 16, 128>}, {transform_indices = @transform_1, window_bounds = array<i64: 16, 128>}, {transform_indices = @transform_2, window_bounds = array<i64: 16, 128>}]} {
    %c0 = arith.constant 0 : index
    %c0_0 = arith.constant 0 : index
    %0 = vector.load %arg1[%c0, %c0_0] : memref<16x128xbf16, #tpu.memory_space<vmem>>, vector<16x128xbf16>
    %c0_1 = arith.constant 0 : index
    %c0_2 = arith.constant 0 : index
    %1 = vector.load %arg2[%c0_1, %c0_2] : memref<16x128xbf16, #tpu.memory_space<vmem>>, vector<16x128xbf16>
    %2 = arith.addf %0, %1 : vector<16x128xbf16>
    %cst = arith.constant 1.000980e-01 : bf16
    %3 = vector.broadcast %cst : bf16 to vector<16x128xbf16>
    %4 = arith.mulf %2, %3 : vector<16x128xbf16>
    %5 = arith.maximumf %2, %4 : vector<16x128xbf16>
    %c0_3 = arith.constant 0 : index
    %c0_4 = arith.constant 0 : index
    %6 = vector.load %arg3[%c0_3, %c0_4] : memref<16x128xbf16, #tpu.memory_space<vmem>>, vector<16x128xbf16>
    tpu.vector_store %arg3[%c0_3, %c0_4], %5 {strides = array<i32>} : memref<16x128xbf16, #tpu.memory_space<vmem>>, vector<16x128xbf16>,
    return
  }
  func.func @transform_0(%arg0: i32) -> (i32, i32) {
    %c0_i32 = arith.constant 0 : i32
    %c0_i32_0 = arith.constant 0 : i32
    return %arg0, %c0_i32 : i32, i32
  }
  func.func @transform_1(%arg0: i32) -> (i32, i32) {
    %c0_i32 = arith.constant 0 : i32
    %c0_i32_0 = arith.constant 0 : i32
    return %arg0, %c0_i32 : i32, i32
  }
  func.func @transform_2(%arg0: i32) -> (i32, i32) {
    %c0_i32 = arith.constant 0 : i32
    %c0_i32_0 = arith.constant 0 : i32
    return %arg0, %c0_i32 : i32, i32
  }
}

module attributes {stable_mosaic.version = 11 : i64} {
  func.func @_maxpool_s1_kernel(%arg0: i32, %arg1: memref<1x9x9x16xbf16, #tpu.memory_space<vmem>>, %arg2: memref<1x8x8x16xbf16, #tpu.memory_space<vmem>>) attributes {dimension_semantics = [#tpu.dimension_semantics<parallel>], iteration_bounds = array<i64: 2>, scalar_prefetch = 0 : i64, scratch_operands = 0 : i64, tpu.core_type = #tpu.core_type<tc>, window_params = [{transform_indices = @transform_0, window_bounds = array<i64: 1, 9, 9, 16>}, {transform_indices = @transform_1, window_bounds = array<i64: 1, 8, 8, 16>}]} {
    %c0 = arith.constant 0 : index
    %c0_0 = arith.constant 0 : index
    %c0_1 = arith.constant 0 : index
    %c0_2 = arith.constant 0 : index
    %0 = vector.load %arg1[%c0, %c0_0, %c0_1, %c0_2] : memref<1x9x9x16xbf16, #tpu.memory_space<vmem>>, vector<1x8x8x16xbf16>
    %1 = vector.shape_cast %0 : vector<1x8x8x16xbf16> to vector<8x8x16xbf16>
    %c0_3 = arith.constant 0 : index
    %c0_4 = arith.constant 0 : index
    %c1 = arith.constant 1 : index
    %c0_5 = arith.constant 0 : index
    %2 = vector.load %arg1[%c0_3, %c0_4, %c1, %c0_5] : memref<1x9x9x16xbf16, #tpu.memory_space<vmem>>, vector<1x8x8x16xbf16>
    %3 = vector.shape_cast %2 : vector<1x8x8x16xbf16> to vector<8x8x16xbf16>
    %4 = arith.maximumf %1, %3 : vector<8x8x16xbf16>
    %c0_6 = arith.constant 0 : index
    %c1_7 = arith.constant 1 : index
    %c0_8 = arith.constant 0 : index
    %c0_9 = arith.constant 0 : index
    %5 = vector.load %arg1[%c0_6, %c1_7, %c0_8, %c0_9] : memref<1x9x9x16xbf16, #tpu.memory_space<vmem>>, vector<1x8x8x16xbf16>
    %6 = vector.shape_cast %5 : vector<1x8x8x16xbf16> to vector<8x8x16xbf16>
    %7 = arith.maximumf %4, %6 : vector<8x8x16xbf16>
    %c0_10 = arith.constant 0 : index
    %c1_11 = arith.constant 1 : index
    %c1_12 = arith.constant 1 : index
    %c0_13 = arith.constant 0 : index
    %8 = vector.load %arg1[%c0_10, %c1_11, %c1_12, %c0_13] : memref<1x9x9x16xbf16, #tpu.memory_space<vmem>>, vector<1x8x8x16xbf16>
    %9 = vector.shape_cast %8 : vector<1x8x8x16xbf16> to vector<8x8x16xbf16>
    %10 = arith.maximumf %7, %9 : vector<8x8x16xbf16>
    %11 = vector.shape_cast %10 : vector<8x8x16xbf16> to vector<1x8x8x16xbf16>
    %c0_14 = arith.constant 0 : index
    %c0_15 = arith.constant 0 : index
    %c0_16 = arith.constant 0 : index
    %c0_17 = arith.constant 0 : index
    %12 = vector.load %arg2[%c0_14, %c0_15, %c0_16, %c0_17] : memref<1x8x8x16xbf16, #tpu.memory_space<vmem>>, vector<1x8x8x16xbf16>
    tpu.vector_store %arg2[%c0_14, %c0_15, %c0_16, %c0_17], %11 {strides = array<i32>} : memref<1x8x8x16xbf16, #tpu.memory_space<vmem>>, vector<1x8x8x16xbf16>,
    return
  }
  func.func @transform_0(%arg0: i32) -> (i32, i32, i32, i32) {
    %c0_i32 = arith.constant 0 : i32
    %c0_i32_0 = arith.constant 0 : i32
    %c0_i32_1 = arith.constant 0 : i32
    %c0_i32_2 = arith.constant 0 : i32
    return %arg0, %c0_i32, %c0_i32_0, %c0_i32_1 : i32, i32, i32, i32
  }
  func.func @transform_1(%arg0: i32) -> (i32, i32, i32, i32) {
    %c0_i32 = arith.constant 0 : i32
    %c0_i32_0 = arith.constant 0 : i32
    %c0_i32_1 = arith.constant 0 : i32
    %c0_i32_2 = arith.constant 0 : i32
    return %arg0, %c0_i32, %c0_i32_0, %c0_i32_1 : i32, i32, i32, i32
  }
}

module attributes {stable_mosaic.version = 11 : i64} {
  func.func @_conv_fused_kernel(%arg0: i32, %arg1: memref<1x8x8x16xbf16, #tpu.memory_space<vmem>>, %arg2: memref<1x16x8xbf16, #tpu.memory_space<vmem>>, %arg3: memref<1x8xf32, #tpu.memory_space<vmem>>, %arg4: memref<1x8xf32, #tpu.memory_space<vmem>>, %arg5: memref<1x8x8x8xbf16, #tpu.memory_space<vmem>>) attributes {dimension_semantics = [#tpu.dimension_semantics<parallel>], iteration_bounds = array<i64: 2>, scalar_prefetch = 0 : i64, scratch_operands = 0 : i64, tpu.core_type = #tpu.core_type<tc>, window_params = [{transform_indices = @transform_0, window_bounds = array<i64: 1, 8, 8, 16>}, {pipeline_mode = #tpu.pipeline_mode<synchronous>, transform_indices = @transform_1, window_bounds = array<i64: 1, 16, 8>}, {pipeline_mode = #tpu.pipeline_mode<synchronous>, transform_indices = @transform_2, window_bounds = array<i64: 1, 8>}, {pipeline_mode = #tpu.pipeline_mode<synchronous>, transform_indices = @transform_3, window_bounds = array<i64: 1, 8>}, {transform_indices = @transform_4, window_bounds = array<i64: 1, 8, 8, 8>}]} {
    %cst = arith.constant 0.000000e+00 : f32
    %0 = vector.broadcast %cst : f32 to vector<64x8xf32>
    %c0 = arith.constant 0 : index
    %c0_0 = arith.constant 0 : index
    %c0_1 = arith.constant 0 : index
    %c0_2 = arith.constant 0 : index
    %1 = vector.load %arg1[%c0, %c0_0, %c0_1, %c0_2] : memref<1x8x8x16xbf16, #tpu.memory_space<vmem>>, vector<1x8x8x16xbf16>
    %2 = vector.shape_cast %1 : vector<1x8x8x16xbf16> to vector<8x8x16xbf16>
    %3 = vector.shape_cast %2 : vector<8x8x16xbf16> to vector<64x16xbf16>
    %c0_3 = arith.constant 0 : index
    %c0_4 = arith.constant 0 : index
    %c0_5 = arith.constant 0 : index
    %4 = vector.load %arg2[%c0_3, %c0_4, %c0_5] : memref<1x16x8xbf16, #tpu.memory_space<vmem>>, vector<1x16x8xbf16>
    %5 = vector.shape_cast %4 : vector<1x16x8xbf16> to vector<16x8xbf16>
    %cst_6 = arith.constant dense<0.000000e+00> : vector<64x8xf32>
    %6 = tpu.matmul %3, %5, %cst_6 {dimension_numbers = #tpu.dot_dimension_numbers<[1], [0], [0], [1], [0, 0, 1, 1], [], []>} : vector<64x16xbf16>, vector<16x8xbf16>, vector<64x8xf32> -> vector<64x8xf32>
    %7 = arith.addf %0, %6 : vector<64x8xf32>
    %c0_7 = arith.constant 0 : index
    %c0_8 = arith.constant 0 : index
    %8 = vector.load %arg3[%c0_7, %c0_8] : memref<1x8xf32, #tpu.memory_space<vmem>>, vector<1x8xf32>
    %9 = vector.broadcast %8 : vector<1x8xf32> to vector<64x8xf32>
    %10 = arith.mulf %7, %9 : vector<64x8xf32>
    %c0_9 = arith.constant 0 : index
    %c0_10 = arith.constant 0 : index
    %11 = vector.load %arg4[%c0_9, %c0_10] : memref<1x8xf32, #tpu.memory_space<vmem>>, vector<1x8xf32>
    %12 = vector.broadcast %11 : vector<1x8xf32> to vector<64x8xf32>
    %13 = arith.addf %10, %12 : vector<64x8xf32>
    %cst_11 = arith.constant 1.000000e-01 : f32
    %14 = vector.broadcast %cst_11 : f32 to vector<64x8xf32>
    %15 = arith.mulf %13, %14 : vector<64x8xf32>
    %16 = arith.maximumf %13, %15 : vector<64x8xf32>
    %17 = arith.truncf %16 : vector<64x8xf32> to vector<64x8xbf16>
    %18 = vector.shape_cast %17 : vector<64x8xbf16> to vector<1x8x8x8xbf16>
    %c0_12 = arith.constant 0 : index
    %c0_13 = arith.constant 0 : index
    %c0_14 = arith.constant 0 : index
    %c0_15 = arith.constant 0 : index
    %19 = vector.load %arg5[%c0_12, %c0_13, %c0_14, %c0_15] : memref<1x8x8x8xbf16, #tpu.memory_space<vmem>>, vector<1x8x8x8xbf16>
    tpu.vector_store %arg5[%c0_12, %c0_13, %c0_14, %c0_15], %18 {strides = array<i32>} : memref<1x8x8x8xbf16, #tpu.memory_space<vmem>>, vector<1x8x8x8xbf16>,
    return
  }
  func.func @transform_0(%arg0: i32) -> (i32, i32, i32, i32) {
    %c0_i32 = arith.constant 0 : i32
    %c0_i32_0 = arith.constant 0 : i32
    %c0_i32_1 = arith.constant 0 : i32
    %c0_i32_2 = arith.constant 0 : i32
    return %arg0, %c0_i32, %c0_i32_0, %c0_i32_1 : i32, i32, i32, i32
  }
  func.func @transform_1(%arg0: i32) -> (i32, i32, i32) {
    %c0_i32 = arith.constant 0 : i32
    %c0_i32_0 = arith.constant 0 : i32
    %c0_i32_1 = arith.constant 0 : i32
    %c0_i32_2 = arith.constant 0 : i32
    return %c0_i32, %c0_i32_0, %c0_i32_1 : i32, i32, i32
  }
  func.func @transform_2(%arg0: i32) -> (i32, i32) {
    %c0_i32 = arith.constant 0 : i32
    %c0_i32_0 = arith.constant 0 : i32
    %c0_i32_1 = arith.constant 0 : i32
    return %c0_i32, %c0_i32_0 : i32, i32
  }
  func.func @transform_3(%arg0: i32) -> (i32, i32) {
    %c0_i32 = arith.constant 0 : i32
    %c0_i32_0 = arith.constant 0 : i32
    %c0_i32_1 = arith.constant 0 : i32
    return %c0_i32, %c0_i32_0 : i32, i32
  }
  func.func @transform_4(%arg0: i32) -> (i32, i32, i32, i32) {
    %c0_i32 = arith.constant 0 : i32
    %c0_i32_0 = arith.constant 0 : i32
    %c0_i32_1 = arith.constant 0 : i32
    %c0_i32_2 = arith.constant 0 : i32
    return %arg0, %c0_i32, %c0_i32_0, %c0_i32_1 : i32, i32, i32, i32
  }
}

module attributes {stable_mosaic.version = 11 : i64} {
  func.func @_conv_fused_kernel(%arg0: i32, %arg1: memref<1x18x18x16xbf16, #tpu.memory_space<vmem>>, %arg2: memref<9x16x8xbf16, #tpu.memory_space<vmem>>, %arg3: memref<1x8xf32, #tpu.memory_space<vmem>>, %arg4: memref<1x8xf32, #tpu.memory_space<vmem>>, %arg5: memref<1x16x16x8xbf16, #tpu.memory_space<vmem>>) attributes {dimension_semantics = [#tpu.dimension_semantics<parallel>], iteration_bounds = array<i64: 2>, scalar_prefetch = 0 : i64, scratch_operands = 0 : i64, tpu.core_type = #tpu.core_type<tc>, window_params = [{transform_indices = @transform_0, window_bounds = array<i64: 1, 18, 18, 16>}, {pipeline_mode = #tpu.pipeline_mode<synchronous>, transform_indices = @transform_1, window_bounds = array<i64: 9, 16, 8>}, {pipeline_mode = #tpu.pipeline_mode<synchronous>, transform_indices = @transform_2, window_bounds = array<i64: 1, 8>}, {pipeline_mode = #tpu.pipeline_mode<synchronous>, transform_indices = @transform_3, window_bounds = array<i64: 1, 8>}, {transform_indices = @transform_4, window_bounds = array<i64: 1, 16, 16, 8>}]} {
    %cst = arith.constant 0.000000e+00 : f32
    %0 = vector.broadcast %cst : f32 to vector<256x8xf32>
    %c0 = arith.constant 0 : index
    %c0_0 = arith.constant 0 : index
    %c0_1 = arith.constant 0 : index
    %c0_2 = arith.constant 0 : index
    %1 = vector.load %arg1[%c0, %c0_0, %c0_1, %c0_2] : memref<1x18x18x16xbf16, #tpu.memory_space<vmem>>, vector<1x16x16x16xbf16>
    %2 = vector.shape_cast %1 : vector<1x16x16x16xbf16> to vector<16x16x16xbf16>
    %3 = vector.shape_cast %2 : vector<16x16x16xbf16> to vector<256x16xbf16>
    %c0_3 = arith.constant 0 : index
    %c0_4 = arith.constant 0 : index
    %c0_5 = arith.constant 0 : index
    %4 = vector.load %arg2[%c0_3, %c0_4, %c0_5] : memref<9x16x8xbf16, #tpu.memory_space<vmem>>, vector<1x16x8xbf16>
    %5 = vector.shape_cast %4 : vector<1x16x8xbf16> to vector<16x8xbf16>
    %cst_6 = arith.constant dense<0.000000e+00> : vector<256x8xf32>
    %6 = tpu.matmul %3, %5, %cst_6 {dimension_numbers = #tpu.dot_dimension_numbers<[1], [0], [0], [1], [0, 0, 1, 1], [], []>} : vector<256x16xbf16>, vector<16x8xbf16>, vector<256x8xf32> -> vector<256x8xf32>
    %7 = arith.addf %0, %6 : vector<256x8xf32>
    %c0_7 = arith.constant 0 : index
    %c0_8 = arith.constant 0 : index
    %c1 = arith.constant 1 : index
    %c0_9 = arith.constant 0 : index
    %8 = vector.load %arg1[%c0_7, %c0_8, %c1, %c0_9] : memref<1x18x18x16xbf16, #tpu.memory_space<vmem>>, vector<1x16x16x16xbf16>
    %9 = vector.shape_cast %8 : vector<1x16x16x16xbf16> to vector<16x16x16xbf16>
    %10 = vector.shape_cast %9 : vector<16x16x16xbf16> to vector<256x16xbf16>
    %c1_10 = arith.constant 1 : index
    %c0_11 = arith.constant 0 : index
    %c0_12 = arith.constant 0 : index
    %11 = vector.load %arg2[%c1_10, %c0_11, %c0_12] : memref<9x16x8xbf16, #tpu.memory_space<vmem>>, vector<1x16x8xbf16>
    %12 = vector.shape_cast %11 : vector<1x16x8xbf16> to vector<16x8xbf16>
    %cst_13 = arith.constant dense<0.000000e+00> : vector<256x8xf32>
    %13 = tpu.matmul %10, %12, %cst_13 {dimension_numbers = #tpu.dot_dimension_numbers<[1], [0], [0], [1], [0, 0, 1, 1], [], []>} : vector<256x16xbf16>, vector<16x8xbf16>, vector<256x8xf32> -> vector<256x8xf32>
    %14 = arith.addf %7, %13 : vector<256x8xf32>
    %c0_14 = arith.constant 0 : index
    %c0_15 = arith.constant 0 : index
    %c2 = arith.constant 2 : index
    %c0_16 = arith.constant 0 : index
    %15 = vector.load %arg1[%c0_14, %c0_15, %c2, %c0_16] : memref<1x18x18x16xbf16, #tpu.memory_space<vmem>>, vector<1x16x16x16xbf16>
    %16 = vector.shape_cast %15 : vector<1x16x16x16xbf16> to vector<16x16x16xbf16>
    %17 = vector.shape_cast %16 : vector<16x16x16xbf16> to vector<256x16xbf16>
    %c2_17 = arith.constant 2 : index
    %c0_18 = arith.constant 0 : index
    %c0_19 = arith.constant 0 : index
    %18 = vector.load %arg2[%c2_17, %c0_18, %c0_19] : memref<9x16x8xbf16, #tpu.memory_space<vmem>>, vector<1x16x8xbf16>
    %19 = vector.shape_cast %18 : vector<1x16x8xbf16> to vector<16x8xbf16>
    %cst_20 = arith.constant dense<0.000000e+00> : vector<256x8xf32>
    %20 = tpu.matmul %17, %19, %cst_20 {dimension_numbers = #tpu.dot_dimension_numbers<[1], [0], [0], [1], [0, 0, 1, 1], [], []>} : vector<256x16xbf16>, vector<16x8xbf16>, vector<256x8xf32> -> vector<256x8xf32>
    %21 = arith.addf %14, %20 : vector<256x8xf32>
    %c0_21 = arith.constant 0 : index
    %c1_22 = arith.constant 1 : index
    %c0_23 = arith.constant 0 : index
    %c0_24 = arith.constant 0 : index
    %22 = vector.load %arg1[%c0_21, %c1_22, %c0_23, %c0_24] : memref<1x18x18x16xbf16, #tpu.memory_space<vmem>>, vector<1x16x16x16xbf16>
    %23 = vector.shape_cast %22 : vector<1x16x16x16xbf16> to vector<16x16x16xbf16>
    %24 = vector.shape_cast %23 : vector<16x16x16xbf16> to vector<256x16xbf16>
    %c3 = arith.constant 3 : index
    %c0_25 = arith.constant 0 : index
    %c0_26 = arith.constant 0 : index
    %25 = vector.load %arg2[%c3, %c0_25, %c0_26] : memref<9x16x8xbf16, #tpu.memory_space<vmem>>, vector<1x16x8xbf16>
    %26 = vector.shape_cast %25 : vector<1x16x8xbf16> to vector<16x8xbf16>
    %cst_27 = arith.constant dense<0.000000e+00> : vector<256x8xf32>
    %27 = tpu.matmul %24, %26, %cst_27 {dimension_numbers = #tpu.dot_dimension_numbers<[1], [0], [0], [1], [0, 0, 1, 1], [], []>} : vector<256x16xbf16>, vector<16x8xbf16>, vector<256x8xf32> -> vector<256x8xf32>
    %28 = arith.addf %21, %27 : vector<256x8xf32>
    %c0_28 = arith.constant 0 : index
    %c1_29 = arith.constant 1 : index
    %c1_30 = arith.constant 1 : index
    %c0_31 = arith.constant 0 : index
    %29 = vector.load %arg1[%c0_28, %c1_29, %c1_30, %c0_31] : memref<1x18x18x16xbf16, #tpu.memory_space<vmem>>, vector<1x16x16x16xbf16>
    %30 = vector.shape_cast %29 : vector<1x16x16x16xbf16> to vector<16x16x16xbf16>
    %31 = vector.shape_cast %30 : vector<16x16x16xbf16> to vector<256x16xbf16>
    %c4 = arith.constant 4 : index
    %c0_32 = arith.constant 0 : index
    %c0_33 = arith.constant 0 : index
    %32 = vector.load %arg2[%c4, %c0_32, %c0_33] : memref<9x16x8xbf16, #tpu.memory_space<vmem>>, vector<1x16x8xbf16>
    %33 = vector.shape_cast %32 : vector<1x16x8xbf16> to vector<16x8xbf16>
    %cst_34 = arith.constant dense<0.000000e+00> : vector<256x8xf32>
    %34 = tpu.matmul %31, %33, %cst_34 {dimension_numbers = #tpu.dot_dimension_numbers<[1], [0], [0], [1], [0, 0, 1, 1], [], []>} : vector<256x16xbf16>, vector<16x8xbf16>, vector<256x8xf32> -> vector<256x8xf32>
    %35 = arith.addf %28, %34 : vector<256x8xf32>
    %c0_35 = arith.constant 0 : index
    %c1_36 = arith.constant 1 : index
    %c2_37 = arith.constant 2 : index
    %c0_38 = arith.constant 0 : index
    %36 = vector.load %arg1[%c0_35, %c1_36, %c2_37, %c0_38] : memref<1x18x18x16xbf16, #tpu.memory_space<vmem>>, vector<1x16x16x16xbf16>
    %37 = vector.shape_cast %36 : vector<1x16x16x16xbf16> to vector<16x16x16xbf16>
    %38 = vector.shape_cast %37 : vector<16x16x16xbf16> to vector<256x16xbf16>
    %c5 = arith.constant 5 : index
    %c0_39 = arith.constant 0 : index
    %c0_40 = arith.constant 0 : index
    %39 = vector.load %arg2[%c5, %c0_39, %c0_40] : memref<9x16x8xbf16, #tpu.memory_space<vmem>>, vector<1x16x8xbf16>
    %40 = vector.shape_cast %39 : vector<1x16x8xbf16> to vector<16x8xbf16>
    %cst_41 = arith.constant dense<0.000000e+00> : vector<256x8xf32>
    %41 = tpu.matmul %38, %40, %cst_41 {dimension_numbers = #tpu.dot_dimension_numbers<[1], [0], [0], [1], [0, 0, 1, 1], [], []>} : vector<256x16xbf16>, vector<16x8xbf16>, vector<256x8xf32> -> vector<256x8xf32>
    %42 = arith.addf %35, %41 : vector<256x8xf32>
    %c0_42 = arith.constant 0 : index
    %c2_43 = arith.constant 2 : index
    %c0_44 = arith.constant 0 : index
    %c0_45 = arith.constant 0 : index
    %43 = vector.load %arg1[%c0_42, %c2_43, %c0_44, %c0_45] : memref<1x18x18x16xbf16, #tpu.memory_space<vmem>>, vector<1x16x16x16xbf16>
    %44 = vector.shape_cast %43 : vector<1x16x16x16xbf16> to vector<16x16x16xbf16>
    %45 = vector.shape_cast %44 : vector<16x16x16xbf16> to vector<256x16xbf16>
    %c6 = arith.constant 6 : index
    %c0_46 = arith.constant 0 : index
    %c0_47 = arith.constant 0 : index
    %46 = vector.load %arg2[%c6, %c0_46, %c0_47] : memref<9x16x8xbf16, #tpu.memory_space<vmem>>, vector<1x16x8xbf16>
    %47 = vector.shape_cast %46 : vector<1x16x8xbf16> to vector<16x8xbf16>
    %cst_48 = arith.constant dense<0.000000e+00> : vector<256x8xf32>
    %48 = tpu.matmul %45, %47, %cst_48 {dimension_numbers = #tpu.dot_dimension_numbers<[1], [0], [0], [1], [0, 0, 1, 1], [], []>} : vector<256x16xbf16>, vector<16x8xbf16>, vector<256x8xf32> -> vector<256x8xf32>
    %49 = arith.addf %42, %48 : vector<256x8xf32>
    %c0_49 = arith.constant 0 : index
    %c2_50 = arith.constant 2 : index
    %c1_51 = arith.constant 1 : index
    %c0_52 = arith.constant 0 : index
    %50 = vector.load %arg1[%c0_49, %c2_50, %c1_51, %c0_52] : memref<1x18x18x16xbf16, #tpu.memory_space<vmem>>, vector<1x16x16x16xbf16>
    %51 = vector.shape_cast %50 : vector<1x16x16x16xbf16> to vector<16x16x16xbf16>
    %52 = vector.shape_cast %51 : vector<16x16x16xbf16> to vector<256x16xbf16>
    %c7 = arith.constant 7 : index
    %c0_53 = arith.constant 0 : index
    %c0_54 = arith.constant 0 : index
    %53 = vector.load %arg2[%c7, %c0_53, %c0_54] : memref<9x16x8xbf16, #tpu.memory_space<vmem>>, vector<1x16x8xbf16>
    %54 = vector.shape_cast %53 : vector<1x16x8xbf16> to vector<16x8xbf16>
    %cst_55 = arith.constant dense<0.000000e+00> : vector<256x8xf32>
    %55 = tpu.matmul %52, %54, %cst_55 {dimension_numbers = #tpu.dot_dimension_numbers<[1], [0], [0], [1], [0, 0, 1, 1], [], []>} : vector<256x16xbf16>, vector<16x8xbf16>, vector<256x8xf32> -> vector<256x8xf32>
    %56 = arith.addf %49, %55 : vector<256x8xf32>
    %c0_56 = arith.constant 0 : index
    %c2_57 = arith.constant 2 : index
    %c2_58 = arith.constant 2 : index
    %c0_59 = arith.constant 0 : index
    %57 = vector.load %arg1[%c0_56, %c2_57, %c2_58, %c0_59] : memref<1x18x18x16xbf16, #tpu.memory_space<vmem>>, vector<1x16x16x16xbf16>
    %58 = vector.shape_cast %57 : vector<1x16x16x16xbf16> to vector<16x16x16xbf16>
    %59 = vector.shape_cast %58 : vector<16x16x16xbf16> to vector<256x16xbf16>
    %c8 = arith.constant 8 : index
    %c0_60 = arith.constant 0 : index
    %c0_61 = arith.constant 0 : index
    %60 = vector.load %arg2[%c8, %c0_60, %c0_61] : memref<9x16x8xbf16, #tpu.memory_space<vmem>>, vector<1x16x8xbf16>
    %61 = vector.shape_cast %60 : vector<1x16x8xbf16> to vector<16x8xbf16>
    %cst_62 = arith.constant dense<0.000000e+00> : vector<256x8xf32>
    %62 = tpu.matmul %59, %61, %cst_62 {dimension_numbers = #tpu.dot_dimension_numbers<[1], [0], [0], [1], [0, 0, 1, 1], [], []>} : vector<256x16xbf16>, vector<16x8xbf16>, vector<256x8xf32> -> vector<256x8xf32>
    %63 = arith.addf %56, %62 : vector<256x8xf32>
    %c0_63 = arith.constant 0 : index
    %c0_64 = arith.constant 0 : index
    %64 = vector.load %arg3[%c0_63, %c0_64] : memref<1x8xf32, #tpu.memory_space<vmem>>, vector<1x8xf32>
    %65 = vector.broadcast %64 : vector<1x8xf32> to vector<256x8xf32>
    %66 = arith.mulf %63, %65 : vector<256x8xf32>
    %c0_65 = arith.constant 0 : index
    %c0_66 = arith.constant 0 : index
    %67 = vector.load %arg4[%c0_65, %c0_66] : memref<1x8xf32, #tpu.memory_space<vmem>>, vector<1x8xf32>
    %68 = vector.broadcast %67 : vector<1x8xf32> to vector<256x8xf32>
    %69 = arith.addf %66, %68 : vector<256x8xf32>
    %cst_67 = arith.constant 1.000000e-01 : f32
    %70 = vector.broadcast %cst_67 : f32 to vector<256x8xf32>
    %71 = arith.mulf %69, %70 : vector<256x8xf32>
    %72 = arith.maximumf %69, %71 : vector<256x8xf32>
    %73 = arith.truncf %72 : vector<256x8xf32> to vector<256x8xbf16>
    %74 = vector.shape_cast %73 : vector<256x8xbf16> to vector<1x16x16x8xbf16>
    %c0_68 = arith.constant 0 : index
    %c0_69 = arith.constant 0 : index
    %c0_70 = arith.constant 0 : index
    %c0_71 = arith.constant 0 : index
    %75 = vector.load %arg5[%c0_68, %c0_69, %c0_70, %c0_71] : memref<1x16x16x8xbf16, #tpu.memory_space<vmem>>, vector<1x16x16x8xbf16>
    tpu.vector_store %arg5[%c0_68, %c0_69, %c0_70, %c0_71], %74 {strides = array<i32>} : memref<1x16x16x8xbf16, #tpu.memory_space<vmem>>, vector<1x16x16x8xbf16>,
    return
  }
  func.func @transform_0(%arg0: i32) -> (i32, i32, i32, i32) {
    %c0_i32 = arith.constant 0 : i32
    %c0_i32_0 = arith.constant 0 : i32
    %c0_i32_1 = arith.constant 0 : i32
    %c0_i32_2 = arith.constant 0 : i32
    return %arg0, %c0_i32, %c0_i32_0, %c0_i32_1 : i32, i32, i32, i32
  }
  func.func @transform_1(%arg0: i32) -> (i32, i32, i32) {
    %c0_i32 = arith.constant 0 : i32
    %c0_i32_0 = arith.constant 0 : i32
    %c0_i32_1 = arith.constant 0 : i32
    %c0_i32_2 = arith.constant 0 : i32
    return %c0_i32, %c0_i32_0, %c0_i32_1 : i32, i32, i32
  }
  func.func @transform_2(%arg0: i32) -> (i32, i32) {
    %c0_i32 = arith.constant 0 : i32
    %c0_i32_0 = arith.constant 0 : i32
    %c0_i32_1 = arith.constant 0 : i32
    return %c0_i32, %c0_i32_0 : i32, i32
  }
  func.func @transform_3(%arg0: i32) -> (i32, i32) {
    %c0_i32 = arith.constant 0 : i32
    %c0_i32_0 = arith.constant 0 : i32
    %c0_i32_1 = arith.constant 0 : i32
    return %c0_i32, %c0_i32_0 : i32, i32
  }
  func.func @transform_4(%arg0: i32) -> (i32, i32, i32, i32) {
    %c0_i32 = arith.constant 0 : i32
    %c0_i32_0 = arith.constant 0 : i32
    %c0_i32_1 = arith.constant 0 : i32
    %c0_i32_2 = arith.constant 0 : i32
    return %arg0, %c0_i32, %c0_i32_0, %c0_i32_1 : i32, i32, i32, i32
  }
}

</mosaic_0001>

<llo_original>
// kernel: forward.11
$region0: #{forward.11}
  #allocation0 [shape = 'u32[]', space=smem, size = 0x4, offset = 0x4, fixed_abs, tag = 'smem constant byte address 0x4 - core index']
  #allocation1 [shape = 'u32[72,128]{1,0:T(1,128)}', space=vmem, size = 0x9000, scoped, tag = 'internal scratch']
  %s0 = inlined_call_operand.vmem [shape: bf16[2,8,8,16], index: 0, kind: input, shape index: {}]
  %s1 = inlined_call_operand.vmem [shape: bf16[1,16,16], index: 1, kind: input, shape index: {}]
  %s2 = inlined_call_operand.vmem [shape: f32[1,16], index: 2, kind: input, shape index: {}]
  %s3 = inlined_call_operand.vmem [shape: f32[1,16], index: 3, kind: input, shape index: {}]
  %s4 = inlined_call_operand.vmem [shape: bf16[2,8,8,16], index: 4, kind: output, shape index: {}]
  %s5 = sld [smem:[#allocation0]]
  $region49: #{forward.11} parent=0
    _
  %s7 = ssub.s32 1, %s5
  %s8 = scalar_select 0, %s7, %s5
  loop: start=0, step=1, limit=4
  $region2: #{forward.11} parent=0 // loop_pre_header
    _
  $region3: #{forward.11} parent=0 // loop_header
    %s10 = sphi 0, %s14
    %p11 = scmp.ge.s32.totalorder %s10, 4
    %s20 = sphi 0, %s22
    %s23 = sphi 0, %s20
    %s24 = sphi 0, %s23
    %s40 = sphi 0, %s24
    %s44 = sphi 0, %s44
    %s46 = sphi 0, %s44
    %s47 = sphi 0, %s46
    %s61 = sphi 0, %s47
    %s65 = sphi 0, %s65
    %s67 = sphi 0, %s65
    %s68 = sphi 0, %s67
    %s82 = sphi 0, %s68
    %s86 = sphi 0, %s86
    %s88 = sphi 0, %s86
    %s89 = sphi 0, %s88
    %s103 = sphi 0, %s89
    %s109 = sphi 0, %s111
    %s112 = sphi 0, %s109
    %s113 = sphi 0, %s112
    %s129 = sphi 0, %s113
  $region4: #{forward.11} parent=0 // loop_header_branch
    %13 = sbr.rel (%p11) target = $region8
  $region5: #{forward.11} parent=0 // loop_body
    %s15 = ssub.s32 %s10, 1
    %s16 = ssub.s32 %s10, 2
    %s17 = sadd.s32 %s10, 1
    %s18 = ssub.s32 %s10, %s17
    %p19 = scmp.eq.s32.totalorder %s18, 0
    %s21 = sadd.s32 %s20, 1
    %s22 = scalar_select %p19, %s20, %s21
    %p25 = pneg %p19
    %p26 = scmp.eq.s32.totalorder %s10, 1
    %p27 = por %p25, %p26
    %p28 = scmp.ne.s32.totalorder %s20, %s23
    %p29 = scmp.eq.s32.totalorder %s10, 0
    %p30 = por %p28, %p29
    %p31 = scmp.ne.s32.totalorder %s20, %s23
    %p32 = scmp.eq.s32.totalorder %s15, 1
    %p33 = por %p31, %p32
    %p34 = scmp.ne.s32.totalorder %s23, %s24
    %p35 = scmp.eq.s32.totalorder %s15, 0
    %p36 = por %p34, %p35
    %p37 = scmp.ne.s32.totalorder %s23, %s24
    %p38 = scmp.eq.s32.totalorder %s16, 1
    %p39 = por %p37, %p38
    %p41 = scmp.ne.s32.totalorder %s24, %s40
    %p42 = scmp.eq.s32.totalorder %s16, 0
    %p43 = por %p41, %p42
    %s45 = sadd.s32 %s44, 1
    %p48 = scmp.eq.s32.totalorder %s10, 1
    %p49 = scmp.ne.s32.totalorder %s44, %s46
    %p50 = scmp.eq.s32.totalorder %s10, 0
    %p51 = por %p49, %p50
    %p52 = scmp.ne.s32.totalorder %s44, %s46
    %p53 = scmp.eq.s32.totalorder %s15, 1
    %p54 = por %p52, %p53
    %p55 = scmp.ne.s32.totalorder %s46, %s47
    %p56 = scmp.eq.s32.totalorder %s15, 0
    %p57 = por %p55, %p56
    %p58 = scmp.ne.s32.totalorder %s46, %s47
    %p59 = scmp.eq.s32.totalorder %s16, 1
    %p60 = por %p58, %p59
    %p62 = scmp.ne.s32.totalorder %s47, %s61
    %p63 = scmp.eq.s32.totalorder %s16, 0
    %p64 = por %p62, %p63
    %s66 = sadd.s32 %s65, 1
    %p69 = scmp.eq.s32.totalorder %s10, 1
    %p70 = scmp.ne.s32.totalorder %s65, %s67
    %p71 = scmp.eq.s32.totalorder %s10, 0
    %p72 = por %p70, %p71
    %p73 = scmp.ne.s32.totalorder %s65, %s67
    %p74 = scmp.eq.s32.totalorder %s15, 1
    %p75 = por %p73, %p74
    %p76 = scmp.ne.s32.totalorder %s67, %s68
    %p77 = scmp.eq.s32.totalorder %s15, 0
    %p78 = por %p76, %p77
    %p79 = scmp.ne.s32.totalorder %s67, %s68
    %p80 = scmp.eq.s32.totalorder %s16, 1
    %p81 = por %p79, %p80
    %p83 = scmp.ne.s32.totalorder %s68, %s82
    %p84 = scmp.eq.s32.totalorder %s16, 0
    %p85 = por %p83, %p84
    %s87 = sadd.s32 %s86, 1
    %p90 = scmp.eq.s32.totalorder %s10, 1
    %p91 = scmp.ne.s32.totalorder %s86, %s88
    %p92 = scmp.eq.s32.totalorder %s10, 0
    %p93 = por %p91, %p92
    %p94 = scmp.ne.s32.totalorder %s86, %s88
    %p95 = scmp.eq.s32.totalorder %s15, 1
    %p96 = por %p94, %p95
    %p97 = scmp.ne.s32.totalorder %s88, %s89
    %p98 = scmp.eq.s32.totalorder %s15, 0
    %p99 = por %p97, %p98
    %p100 = scmp.ne.s32.totalorder %s88, %s89
    %p101 = scmp.eq.s32.totalorder %s16, 1
    %p102 = por %p100, %p101
    %p104 = scmp.ne.s32.totalorder %s89, %s103
    %p105 = scmp.eq.s32.totalorder %s16, 0
    %p106 = por %p104, %p105
    %s107 = ssub.s32 %s10, %s17
    %p108 = scmp.eq.s32.totalorder %s107, 0
    %s110 = sadd.s32 %s109, 1
    %s111 = scalar_select %p108, %s109, %s110
    %p114 = pneg %p108
    %p115 = scmp.eq.s32.totalorder %s10, 1
    %p116 = por %p114, %p115
    %p117 = scmp.ne.s32.totalorder %s109, %s112
    %p118 = scmp.eq.s32.totalorder %s10, 0
    %p119 = por %p117, %p118
    %p120 = scmp.ne.s32.totalorder %s109, %s112
    %p121 = scmp.eq.s32.totalorder %s15, 1
    %p122 = por %p120, %p121
    %p123 = scmp.ne.s32.totalorder %s112, %s113
    %p124 = scmp.eq.s32.totalorder %s15, 0
    %p125 = por %p123, %p124
    %p126 = scmp.ne.s32.totalorder %s112, %s113
    %p127 = scmp.eq.s32.totalorder %s16, 1
    %p128 = por %p126, %p127
    %p130 = scmp.ne.s32.totalorder %s113, %s129
    %p131 = scmp.eq.s32.totalorder %s16, 0
    %p132 = por %p130, %p131
    %p133 = scmp.le.s32.totalorder 1, %s10
    %p134 = scmp.lt.s32.totalorder %s10, 3
    %p135 = pnand %p133, %p134
    %p136 = pneg %p135
    // Predicated region
    $region9: #{forward.11} parent=5 // pred_check
      _
    $region10: #{forward.11} parent=5 // pred_check_branch
      %138 = sbr.rel (%p135) target = $region12
    $region11: #{forward.11} parent=5 // pred_region
      %s139 = ssub.s32 %s10, 1
      // Predicated region
      $region13: #{forward.11} parent=11 // pred_check
        %p140 = pneg %p57
      $region14: #{forward.11} parent=11 // pred_check_branch
        %142 = sbr.rel (%p140) target = $region16
      $region15: #{forward.11} parent=11 // pred_region
        _
      $region16: #{forward.11} parent=11 // pred_fallthru
        _
      // Predicated region
      $region17: #{forward.11} parent=11 // pred_check
        %p143 = pneg %p78
      $region18: #{forward.11} parent=11 // pred_check_branch
        %145 = sbr.rel (%p143) target = $region20
      $region19: #{forward.11} parent=11 // pred_region
        _
      $region20: #{forward.11} parent=11 // pred_fallthru
        _
      // Predicated region
      $region21: #{forward.11} parent=11 // pred_check
        %p146 = pneg %p99
      $region22: #{forward.11} parent=11 // pred_check_branch
        %148 = sbr.rel (%p146) target = $region24
      $region23: #{forward.11} parent=11 // pred_region
        _
      $region24: #{forward.11} parent=11 // pred_fallthru
        _
    $region12: #{forward.11} parent=5 // pred_fallthru
      _
    %p149 = scmp.lt.s32.totalorder %s10, 2
    // Predicated region
    $region25: #{forward.11} parent=5 // pred_check
      %p150 = pneg %p149
    $region26: #{forward.11} parent=5 // pred_check_branch
      %152 = sbr.rel (%p150) target = $region28
    $region27: #{forward.11} parent=5 // pred_region
      // Predicated region
      $region29: #{forward.11} parent=27 // pred_check
        %p153 = pneg %p30
      $region30: #{forward.11} parent=27 // pred_check_branch
        %155 = sbr.rel (%p153) target = $region32
      $region31: #{forward.11} parent=27 // pred_region
        %p156 = scmp.lt.s32.totalorder %s10, 1
        %s157 = scalar_select %p156, %s10, 1
        %s158 = smul.addr %s157, 8
        %s159 = smul.addr %s158, 4
        %s160 = scalar_lea.vmem %s0, %s159
      $region32: #{forward.11} parent=27 // pred_fallthru
        _
    $region28: #{forward.11} parent=5 // pred_fallthru
      _
    %p161 = scmp.le.s32.totalorder 1, %s10
    %p162 = scmp.lt.s32.totalorder %s10, 3
    %p163 = pnand %p161, %p162
    %p164 = pneg %p163
    // Predicated region
    $region33: #{forward.11} parent=5 // pred_check
      _
    $region34: #{forward.11} parent=5 // pred_check_branch
      %166 = sbr.rel (%p163) target = $region36
    $region35: #{forward.11} parent=5 // pred_region
      %s167 = ssub.s32 %s10, 1
      %p168 = scmp.lt.s32.totalorder %s15, 1
      %s169 = scalar_select %p168, %s15, 1
      %s170 = smul.addr %s169, 8
      %s171 = smul.addr %s170, 4
      %s172 = scalar_lea.vmem %s0, %s171
      %p173 = pneg %p36
      %p174 = pneg %p33
      %p175 = pneg %p57
      %p176 = pneg %p54
      %p177 = pneg %p78
      %p178 = pneg %p75
      %p179 = pneg %p99
      %p180 = pneg %p96
      %p181 = pneg %p125
      %p182 = pneg %p122
      %p183 = scmp.lt.s32.totalorder %s15, 1
      %s184 = scalar_select %p183, %s15, 1
      %s185 = smul.addr %s184, 8
      %s186 = smul.addr %s185, 4
      %s187 = scalar_lea.vmem %s4, %s186
      %p188 = scmp.lt.s32.totalorder %s15, 1
      %s189 = scalar_select %p188, %s15, 1
      %s190 = smul.addr %s189, 8
      %s191 = smul.addr %s190, 4
      %s192 = scalar_lea.vmem %s0, %s191
      %p193 = scmp.lt.s32.totalorder %s15, 1
      %s194 = scalar_select %p193, %s15, 1
      %s195 = smul.addr %s194, 8
      %s196 = smul.addr %s195, 4
      %s197 = scalar_lea.vmem %s4, %s196
      %v199 = vld [vmem:[%s192] sm:$0xf]
      %v200 = vld [vmem:[%s192 + $0x4] sm:$0xf]
      %v201 = vld [vmem:[%s192 + $0x8] sm:$0xf]
      %v202 = vld [vmem:[%s192 + $0xc] sm:$0xf]
      %v203 = vld [vmem:[%s192 + $0x10] sm:$0xf]
      %v204 = vld [vmem:[%s192 + $0x14] sm:$0xf]
      %v205 = vld [vmem:[%s192 + $0x18] sm:$0xf]
      %v206 = vld [vmem:[%s192 + $0x1c] sm:$0xf]
      %v207 = vld [vmem:[%s1] sm:$0xf]
      %v208 = vld [vmem:[%s1 + $0x4] sm:$0xf]
      %v217 = vunpack.c.l.b16 %v199
      %v218 = vunpack.c.l.b16 %v200
      %v219 = vunpack.c.l.b16 %v201
      %v220 = vunpack.c.l.b16 %v202
      %v221 = vunpack.c.l.b16 %v203
      %v222 = vunpack.c.l.b16 %v204
      %v223 = vunpack.c.l.b16 %v205
      %v224 = vunpack.c.l.b16 %v206
      %v225 = vpack.c.b16 %v218, %v217
      %v226 = vpack.c.b16 %v220, %v219
      %v227 = vpack.c.b16 %v222, %v221
      %v228 = vpack.c.b16 %v224, %v223
      %v231 = vunpack.c.l.b16 %v207
      %v232 = vunpack.c.l.b16 %v208
      %v233 = vpack.c.b16 %v232, %v231
      %vm235 = vcmask 130048
      %v237 = vsel %vm235, %v225, 0
      %v240 = vsel %vm235, %v226, 0
      %v243 = vsel %vm235, %v227, 0
      %v246 = vsel %vm235, %v228, 0
      %248 = vmatpush.bf16.msra.mxu0 0
      %249 = vmatpush.bf16.msra.mxu0 0
      %250 = vmatpush.bf16.msra.mxu0 0
      %251 = vmatpush.bf16.msra.mxu0 0
      %252 = vmatpush.bf16.msra.mxu0 0
      %253 = vmatpush.bf16.msra.mxu0 0
      %254 = vmatpush.bf16.msra.mxu0 0
      %255 = vmatpush.bf16.msra.mxu0 %v233
      %256 = vmatmul.bf16.gmra.mxu0 %v237
      %v257 = vpop.f32.mrf.mxu0
      %v258 = vadd.f32 0.0, %v257
      %v259 = vpop.f32.mrf.mxu0
      %v260 = vadd.f32 0.0, %v259
      %261 = vmatmul.bf16.gmra.mxu0 %v240
      %v262 = vpop.f32.mrf.mxu0
      %v263 = vadd.f32 0.0, %v262
      %v264 = vpop.f32.mrf.mxu0
      %v265 = vadd.f32 0.0, %v264
      %266 = vmatmul.bf16.gmra.mxu0 %v243
      %v267 = vpop.f32.mrf.mxu0
      %v268 = vadd.f32 0.0, %v267
      %v269 = vpop.f32.mrf.mxu0
      %v270 = vadd.f32 0.0, %v269
      %271 = vmatmul.bf16.gmra.mxu0 %v246
      %v272 = vpop.f32.mrf.mxu0
      %v273 = vadd.f32 0.0, %v272
      %v274 = vpop.f32.mrf.mxu0
      %v275 = vadd.f32 0.0, %v274
      %276 = vdwg.mxu0
      %v277 = vld [vmem:[%s2] sm:$0x1]
      %v279 = vperm.slane %v277, 0
      %v281 = vmul.f32 %v258, %v279
      %v282 = vmul.f32 %v260, %v279
      %v283 = vmul.f32 %v263, %v279
      %v284 = vmul.f32 %v265, %v279
      %v285 = vmul.f32 %v268, %v279
      %v286 = vmul.f32 %v270, %v279
      %v287 = vmul.f32 %v273, %v279
      %v288 = vmul.f32 %v275, %v279
      %v289 = vld [vmem:[%s3] sm:$0x1]
      %v291 = vperm.slane %v289, 0
      %v293 = vadd.f32 %v281, %v291
      %v294 = vadd.f32 %v282, %v291
      %v295 = vadd.f32 %v283, %v291
      %v296 = vadd.f32 %v284, %v291
      %v297 = vadd.f32 %v285, %v291
      %v298 = vadd.f32 %v286, %v291
      %v299 = vadd.f32 %v287, %v291
      %v300 = vadd.f32 %v288, %v291
      %v301 = vpack.c.bf16 %v293, %v293
      %v302 = vpack.c.bf16 %v294, %v294
      %v303 = vpack.c.bf16 %v295, %v295
      %v304 = vpack.c.bf16 %v296, %v296
      %v305 = vpack.c.bf16 %v297, %v297
      %v306 = vpack.c.bf16 %v298, %v298
      %v307 = vpack.c.bf16 %v299, %v299
      %v308 = vpack.c.bf16 %v300, %v300
      %vm309 = vcmask 125952
      %310 = vst.msk [vmem:[%s197] sm:$0xf] %vm309, %v301
      %311 = vst.msk [vmem:[%s197 + $0x4] sm:$0xf] %vm309, %v302
      %312 = vst.msk [vmem:[%s197 + $0x8] sm:$0xf] %vm309, %v303
      %313 = vst.msk [vmem:[%s197 + $0xc] sm:$0xf] %vm309, %v304
      %314 = vst.msk [vmem:[%s197 + $0x10] sm:$0xf] %vm309, %v305
      %315 = vst.msk [vmem:[%s197 + $0x14] sm:$0xf] %vm309, %v306
      %316 = vst.msk [vmem:[%s197 + $0x18] sm:$0xf] %vm309, %v307
      %317 = vst.msk [vmem:[%s197 + $0x1c] sm:$0xf] %vm309, %v308
      %p318 = scmp.lt.s32.totalorder %s15, 1
      %s319 = scalar_select %p318, %s15, 1
      %s320 = smul.addr %s319, 8
      %s321 = smul.addr %s320, 4
      %s322 = scalar_lea.vmem %s4, %s321
      // Predicated region
      $region37: #{forward.11} parent=35 // pred_check
        %p323 = pneg %p122
      $region38: #{forward.11} parent=35 // pred_check_branch
        %325 = sbr.rel (%p323) target = $region40
      $region39: #{forward.11} parent=35 // pred_region
        _
      $region40: #{forward.11} parent=35 // pred_fallthru
        _
    $region36: #{forward.11} parent=5 // pred_fallthru
      _
    %p326 = scmp.le.s32.totalorder 2, %s10
    // Predicated region
    $region41: #{forward.11} parent=5 // pred_check
      %p327 = pneg %p326
    $region42: #{forward.11} parent=5 // pred_check_branch
      %329 = sbr.rel (%p327) target = $region44
    $region43: #{forward.11} parent=5 // pred_region
      %s330 = ssub.s32 %s10, 2
      // Predicated region
      $region45: #{forward.11} parent=43 // pred_check
        %p331 = pneg %p128
      $region46: #{forward.11} parent=43 // pred_check_branch
        %333 = sbr.rel (%p331) target = $region48
      $region47: #{forward.11} parent=43 // pred_region
        %p334 = scmp.lt.s32.totalorder %s16, 1
        %s335 = scalar_select %p334, %s16, 1
        %s336 = smul.addr %s335, 8
        %s337 = smul.addr %s336, 4
        %s338 = scalar_lea.vmem %s4, %s337
      $region48: #{forward.11} parent=43 // pred_fallthru
        _
    $region44: #{forward.11} parent=5 // pred_fallthru
      _
  $region6: #{forward.11} parent=0 // loop_footer
    %s14 = sadd.s32 1, %s10
  $region7: #{forward.11} parent=0 // loop_footer_branch
    %9 = sbr.rel target = $region3
  $region8: #{forward.11} parent=0 // loop_exit
    _

// kernel: forward.9
$region0: #{forward.9}
  #allocation0 [shape = 'u32[]', space=smem, size = 0x4, offset = 0x4, fixed_abs, tag = 'smem constant byte address 0x4 - core index']
  #allocation1 [shape = 'u32[72,128]{1,0:T(1,128)}', space=vmem, size = 0x9000, scoped, tag = 'internal scratch']
  %s0 = inlined_call_operand.vmem [shape: bf16[2,16,16,8], index: 0, kind: input, shape index: {}]
  %s1 = inlined_call_operand.vmem [shape: bf16[2,8,8,8], index: 1, kind: output, shape index: {}]
  %s2 = sld [smem:[#allocation0]]
  $region37: #{forward.9} parent=0
    _
  %s4 = ssub.s32 1, %s2
  %s5 = scalar_select 0, %s4, %s2
  loop: start=0, step=1, limit=4
  $region2: #{forward.9} parent=0 // loop_pre_header
    _
  $region3: #{forward.9} parent=0 // loop_header
    %s7 = sphi 0, %s11
    %p8 = scmp.ge.s32.totalorder %s7, 4
    %s17 = sphi 0, %s19
    %s20 = sphi 0, %s17
    %s21 = sphi 0, %s20
    %s37 = sphi 0, %s21
    %s43 = sphi 0, %s45
    %s46 = sphi 0, %s43
    %s47 = sphi 0, %s46
    %s63 = sphi 0, %s47
  $region4: #{forward.9} parent=0 // loop_header_branch
    %10 = sbr.rel (%p8) target = $region8
  $region5: #{forward.9} parent=0 // loop_body
    %s12 = ssub.s32 %s7, 1
    %s13 = ssub.s32 %s7, 2
    %s14 = sadd.s32 %s7, 1
    %s15 = ssub.s32 %s7, %s14
    %p16 = scmp.eq.s32.totalorder %s15, 0
    %s18 = sadd.s32 %s17, 1
    %s19 = scalar_select %p16, %s17, %s18
    %p22 = pneg %p16
    %p23 = scmp.eq.s32.totalorder %s7, 1
    %p24 = por %p22, %p23
    %p25 = scmp.ne.s32.totalorder %s17, %s20
    %p26 = scmp.eq.s32.totalorder %s7, 0
    %p27 = por %p25, %p26
    %p28 = scmp.ne.s32.totalorder %s17, %s20
    %p29 = scmp.eq.s32.totalorder %s12, 1
    %p30 = por %p28, %p29
    %p31 = scmp.ne.s32.totalorder %s20, %s21
    %p32 = scmp.eq.s32.totalorder %s12, 0
    %p33 = por %p31, %p32
    %p34 = scmp.ne.s32.totalorder %s20, %s21
    %p35 = scmp.eq.s32.totalorder %s13, 1
    %p36 = por %p34, %p35
    %p38 = scmp.ne.s32.totalorder %s21, %s37
    %p39 = scmp.eq.s32.totalorder %s13, 0
    %p40 = por %p38, %p39
    %s41 = ssub.s32 %s7, %s14
    %p42 = scmp.eq.s32.totalorder %s41, 0
    %s44 = sadd.s32 %s43, 1
    %s45 = scalar_select %p42, %s43, %s44
    %p48 = pneg %p42
    %p49 = scmp.eq.s32.totalorder %s7, 1
    %p50 = por %p48, %p49
    %p51 = scmp.ne.s32.totalorder %s43, %s46
    %p52 = scmp.eq.s32.totalorder %s7, 0
    %p53 = por %p51, %p52
    %p54 = scmp.ne.s32.totalorder %s43, %s46
    %p55 = scmp.eq.s32.totalorder %s12, 1
    %p56 = por %p54, %p55
    %p57 = scmp.ne.s32.totalorder %s46, %s47
    %p58 = scmp.eq.s32.totalorder %s12, 0
    %p59 = por %p57, %p58
    %p60 = scmp.ne.s32.totalorder %s46, %s47
    %p61 = scmp.eq.s32.totalorder %s13, 1
    %p62 = por %p60, %p61
    %p64 = scmp.ne.s32.totalorder %s47, %s63
    %p65 = scmp.eq.s32.totalorder %s13, 0
    %p66 = por %p64, %p65
    %p67 = scmp.le.s32.totalorder 1, %s7
    %p68 = scmp.lt.s32.totalorder %s7, 3
    %p69 = pnand %p67, %p68
    %p70 = pneg %p69
    // Predicated region
    $region9: #{forward.9} parent=5 // pred_check
      _
    $region10: #{forward.9} parent=5 // pred_check_branch
      %72 = sbr.rel (%p69) target = $region12
    $region11: #{forward.9} parent=5 // pred_region
      %s73 = ssub.s32 %s7, 1
    $region12: #{forward.9} parent=5 // pred_fallthru
      _
    %p74 = scmp.lt.s32.totalorder %s7, 2
    // Predicated region
    $region13: #{forward.9} parent=5 // pred_check
      %p75 = pneg %p74
    $region14: #{forward.9} parent=5 // pred_check_branch
      %77 = sbr.rel (%p75) target = $region16
    $region15: #{forward.9} parent=5 // pred_region
      // Predicated region
      $region17: #{forward.9} parent=15 // pred_check
        %p78 = pneg %p27
      $region18: #{forward.9} parent=15 // pred_check_branch
        %80 = sbr.rel (%p78) target = $region20
      $region19: #{forward.9} parent=15 // pred_region
        %p81 = scmp.lt.s32.totalorder %s7, 1
        %s82 = scalar_select %p81, %s7, 1
        %s83 = smul.addr %s82, 32
        %s84 = smul.addr %s83, 4
        %s85 = scalar_lea.vmem %s0, %s84
      $region20: #{forward.9} parent=15 // pred_fallthru
        _
    $region16: #{forward.9} parent=5 // pred_fallthru
      _
    %p86 = scmp.le.s32.totalorder 1, %s7
    %p87 = scmp.lt.s32.totalorder %s7, 3
    %p88 = pnand %p86, %p87
    %p89 = pneg %p88
    // Predicated region
    $region21: #{forward.9} parent=5 // pred_check
      _
    $region22: #{forward.9} parent=5 // pred_check_branch
      %91 = sbr.rel (%p88) target = $region24
    $region23: #{forward.9} parent=5 // pred_region
      %s92 = ssub.s32 %s7, 1
      %p93 = scmp.lt.s32.totalorder %s12, 1
      %s94 = scalar_select %p93, %s12, 1
      %s95 = smul.addr %s94, 32
      %s96 = smul.addr %s95, 4
      %s97 = scalar_lea.vmem %s0, %s96
      %p98 = pneg %p33
      %p99 = pneg %p30
      %p100 = pneg %p59
      %p101 = pneg %p56
      %p102 = scmp.lt.s32.totalorder %s12, 1
      %s103 = scalar_select %p102, %s12, 1
      %s104 = smul.addr %s103, 8
      %s105 = smul.addr %s104, 4
      %s106 = scalar_lea.vmem %s1, %s105
      %p107 = scmp.lt.s32.totalorder %s12, 1
      %s108 = scalar_select %p107, %s12, 1
      %s109 = smul.addr %s108, 32
      %s110 = smul.addr %s109, 4
      %s111 = scalar_lea.vmem %s0, %s110
      %p112 = scmp.lt.s32.totalorder %s12, 1
      %s113 = scalar_select %p112, %s12, 1
      %s114 = smul.addr %s113, 8
      %s115 = smul.addr %s114, 4
      %s116 = scalar_lea.vmem %s1, %s115
      %v117 = vld [vmem:[%s111] sm:$0xf]
      %v118 = vld [vmem:[%s111 + $0x4] sm:$0xf]
      %v119 = vld [vmem:[%s111 + $0x8] sm:$0xf]
      %v120 = vld [vmem:[%s111 + $0xc] sm:$0xf]
      %v121 = vld [vmem:[%s111 + $0x10] sm:$0xf]
      %v122 = vld [vmem:[%s111 + $0x14] sm:$0xf]
      %v123 = vld [vmem:[%s111 + $0x18] sm:$0xf]
      %v124 = vld [vmem:[%s111 + $0x1c] sm:$0xf]
      %v125 = vld [vmem:[%s111 + $0x20] sm:$0xf]
      %v126 = vld [vmem:[%s111 + $0x24] sm:$0xf]
      %v127 = vld [vmem:[%s111 + $0x28] sm:$0xf]
      %v128 = vld [vmem:[%s111 + $0x2c] sm:$0xf]
      %v129 = vld [vmem:[%s111 + $0x30] sm:$0xf]
      %v130 = vld [vmem:[%s111 + $0x34] sm:$0xf]
      %v131 = vld [vmem:[%s111 + $0x38] sm:$0xf]
      %v132 = vld [vmem:[%s111 + $0x3c] sm:$0xf]
      %v133 = vld [vmem:[%s111 + $0x40] sm:$0xf]
      %v134 = vld [vmem:[%s111 + $0x44] sm:$0xf]
      %v135 = vld [vmem:[%s111 + $0x48] sm:$0xf]
      %v136 = vld [vmem:[%s111 + $0x4c] sm:$0xf]
      %v137 = vld [vmem:[%s111 + $0x50] sm:$0xf]
      %v138 = vld [vmem:[%s111 + $0x54] sm:$0xf]
      %v139 = vld [vmem:[%s111 + $0x58] sm:$0xf]
      %v140 = vld [vmem:[%s111 + $0x5c] sm:$0xf]
      %v141 = vld [vmem:[%s111 + $0x60] sm:$0xf]
      %v142 = vld [vmem:[%s111 + $0x64] sm:$0xf]
      %v143 = vld [vmem:[%s111 + $0x68] sm:$0xf]
      %v144 = vld [vmem:[%s111 + $0x6c] sm:$0xf]
      %v145 = vld [vmem:[%s111 + $0x70] sm:$0xf]
      %v146 = vld [vmem:[%s111 + $0x74] sm:$0xf]
      %v147 = vld [vmem:[%s111 + $0x78] sm:$0xf]
      %v148 = vld [vmem:[%s111 + $0x7c] sm:$0xf]
      %v149 = vunpack.c.l.bf16 %v117
      %v150 = vunpack.c.l.bf16 %v118
      %v151 = vunpack.c.l.bf16 %v119
      %v152 = vunpack.c.l.bf16 %v120
      %v153 = vunpack.c.l.bf16 %v121
      %v154 = vunpack.c.l.bf16 %v122
      %v155 = vunpack.c.l.bf16 %v123
      %v156 = vunpack.c.l.bf16 %v124
      %v157 = vunpack.c.l.bf16 %v125
      %v158 = vunpack.c.l.bf16 %v126
      %v159 = vunpack.c.l.bf16 %v127
      %v160 = vunpack.c.l.bf16 %v128
      %v161 = vunpack.c.l.bf16 %v129
      %v162 = vunpack.c.l.bf16 %v130
      %v163 = vunpack.c.l.bf16 %v131
      %v164 = vunpack.c.l.bf16 %v132
      %v165 = vunpack.c.l.bf16 %v133
      %v166 = vunpack.c.l.bf16 %v134
      %v167 = vunpack.c.l.bf16 %v135
      %v168 = vunpack.c.l.bf16 %v136
      %v169 = vunpack.c.l.bf16 %v137
      %v170 = vunpack.c.l.bf16 %v138
      %v171 = vunpack.c.l.bf16 %v139
      %v172 = vunpack.c.l.bf16 %v140
      %v173 = vunpack.c.l.bf16 %v141
      %v174 = vunpack.c.l.bf16 %v142
      %v175 = vunpack.c.l.bf16 %v143
      %v176 = vunpack.c.l.bf16 %v144
      %v177 = vunpack.c.l.bf16 %v145
      %v178 = vunpack.c.l.bf16 %v146
      %v179 = vunpack.c.l.bf16 %v147
      %v180 = vunpack.c.l.bf16 %v148
      %vm181 = vcmask 64512
      %v182 = vsel %vm181, %v149, -inf
      %v183 = vsel %vm181, %v151, -inf
      %v184 = vmax.f32 %v182, %v183
      %v185 = vsel %vm181, %v150, -inf
      %v186 = vsel %vm181, %v152, -inf
      %v187 = vmax.f32 %v185, %v186
      %v188 = vsel %vm181, %v153, -inf
      %v189 = vsel %vm181, %v155, -inf
      %v190 = vmax.f32 %v188, %v189
      %v191 = vsel %vm181, %v154, -inf
      %v192 = vsel %vm181, %v156, -inf
      %v193 = vmax.f32 %v191, %v192
      %v194 = vsel %vm181, %v157, -inf
      %v195 = vsel %vm181, %v159, -inf
      %v196 = vmax.f32 %v194, %v195
      %v197 = vsel %vm181, %v158, -inf
      %v198 = vsel %vm181, %v160, -inf
      %v199 = vmax.f32 %v197, %v198
      %v200 = vsel %vm181, %v161, -inf
      %v201 = vsel %vm181, %v163, -inf
      %v202 = vmax.f32 %v200, %v201
      %v203 = vsel %vm181, %v162, -inf
      %v204 = vsel %vm181, %v164, -inf
      %v205 = vmax.f32 %v203, %v204
      %v206 = vsel %vm181, %v165, -inf
      %v207 = vsel %vm181, %v167, -inf
      %v208 = vmax.f32 %v206, %v207
      %v209 = vsel %vm181, %v166, -inf
      %v210 = vsel %vm181, %v168, -inf
      %v211 = vmax.f32 %v209, %v210
      %v212 = vsel %vm181, %v169, -inf
      %v213 = vsel %vm181, %v171, -inf
      %v214 = vmax.f32 %v212, %v213
      %v215 = vsel %vm181, %v170, -inf
      %v216 = vsel %vm181, %v172, -inf
      %v217 = vmax.f32 %v215, %v216
      %v218 = vsel %vm181, %v173, -inf
      %v219 = vsel %vm181, %v175, -inf
      %v220 = vmax.f32 %v218, %v219
      %v221 = vsel %vm181, %v174, -inf
      %v222 = vsel %vm181, %v176, -inf
      %v223 = vmax.f32 %v221, %v222
      %v224 = vsel %vm181, %v177, -inf
      %v225 = vsel %vm181, %v179, -inf
      %v226 = vmax.f32 %v224, %v225
      %v227 = vsel %vm181, %v178, -inf
      %v228 = vsel %vm181, %v180, -inf
      %v229 = vmax.f32 %v227, %v228
      %v230 = vpack.c.bf16 %v184, %v184
      %v231 = vpack.c.bf16 %v187, %v187
      %v232 = vpack.c.bf16 %v190, %v190
      %v233 = vpack.c.bf16 %v193, %v193
      %v234 = vpack.c.bf16 %v196, %v196
      %v235 = vpack.c.bf16 %v199, %v199
      %v236 = vpack.c.bf16 %v202, %v202
      %v237 = vpack.c.bf16 %v205, %v205
      %v238 = vpack.c.bf16 %v208, %v208
      %v239 = vpack.c.bf16 %v211, %v211
      %v240 = vpack.c.bf16 %v214, %v214
      %v241 = vpack.c.bf16 %v217, %v217
      %v242 = vpack.c.bf16 %v220, %v220
      %v243 = vpack.c.bf16 %v223, %v223
      %v244 = vpack.c.bf16 %v226, %v226
      %v245 = vpack.c.bf16 %v229, %v229
      %v262 = vrot.slane %v230, 3
      %v263 = vrot.slane %v231, 3
      %v264 = vrot.slane %v232, 3
      %v265 = vrot.slane %v233, 3
      %v266 = vrot.slane %v234, 3
      %v267 = vrot.slane %v235, 3
      %v268 = vrot.slane %v236, 3
      %v269 = vrot.slane %v237, 3
      %v270 = vrot.slane %v238, 3
      %v271 = vrot.slane %v239, 3
      %v272 = vrot.slane %v240, 3
      %v273 = vrot.slane %v241, 3
      %v274 = vrot.slane %v242, 3
      %v275 = vrot.slane %v243, 3
      %v276 = vrot.slane %v244, 3
      %v277 = vrot.slane %v245, 3
      %vm278 = vcmask 1040384
      %v281 = vsel %vm278, %v230, %v262
      %vm282 = vcmask 1041409
      %v283 = vsel %vm282, %v230, %v262
      %v285 = vrot.slane %v283, 1
      %vm286 = vcmask 1042434
      %v287 = vsel %vm286, %v230, %v262
      %v289 = vrot.slane %v287, 2
      %vm290 = vcmask 1043459
      %v291 = vsel %vm290, %v230, %v262
      %v293 = vrot.slane %v291, 3
      %v296 = vsel %vm278, %v231, %v263
      %v297 = vsel %vm282, %v231, %v263
      %v299 = vrot.slane %v297, 1
      %v300 = vsel %vm286, %v231, %v263
      %v302 = vrot.slane %v300, 2
      %v303 = vsel %vm290, %v231, %v263
      %v305 = vrot.slane %v303, 3
      %v308 = vsel %vm278, %v232, %v264
      %v309 = vsel %vm282, %v232, %v264
      %v311 = vrot.slane %v309, 1
      %v312 = vsel %vm286, %v232, %v264
      %v314 = vrot.slane %v312, 2
      %v315 = vsel %vm290, %v232, %v264
      %v317 = vrot.slane %v315, 3
      %v320 = vsel %vm278, %v233, %v265
      %v321 = vsel %vm282, %v233, %v265
      %v323 = vrot.slane %v321, 1
      %v324 = vsel %vm286, %v233, %v265
      %v326 = vrot.slane %v324, 2
      %v327 = vsel %vm290, %v233, %v265
      %v329 = vrot.slane %v327, 3
      %v332 = vsel %vm278, %v234, %v266
      %v333 = vsel %vm282, %v234, %v266
      %v335 = vrot.slane %v333, 1
      %v336 = vsel %vm286, %v234, %v266
      %v338 = vrot.slane %v336, 2
      %v339 = vsel %vm290, %v234, %v266
      %v341 = vrot.slane %v339, 3
      %v344 = vsel %vm278, %v235, %v267
      %v345 = vsel %vm282, %v235, %v267
      %v347 = vrot.slane %v345, 1
      %v348 = vsel %vm286, %v235, %v267
      %v350 = vrot.slane %v348, 2
      %v351 = vsel %vm290, %v235, %v267
      %v353 = vrot.slane %v351, 3
      %v356 = vsel %vm278, %v236, %v268
      %v357 = vsel %vm282, %v236, %v268
      %v359 = vrot.slane %v357, 1
      %v360 = vsel %vm286, %v236, %v268
      %v362 = vrot.slane %v360, 2
      %v363 = vsel %vm290, %v236, %v268
      %v365 = vrot.slane %v363, 3
      %v368 = vsel %vm278, %v237, %v269
      %v369 = vsel %vm282, %v237, %v269
      %v371 = vrot.slane %v369, 1
      %v372 = vsel %vm286, %v237, %v269
      %v374 = vrot.slane %v372, 2
      %v375 = vsel %vm290, %v237, %v269
      %v377 = vrot.slane %v375, 3
      %v380 = vsel %vm278, %v238, %v270
      %v381 = vsel %vm282, %v238, %v270
      %v383 = vrot.slane %v381, 1
      %v384 = vsel %vm286, %v238, %v270
      %v386 = vrot.slane %v384, 2
      %v387 = vsel %vm290, %v238, %v270
      %v389 = vrot.slane %v387, 3
      %v392 = vsel %vm278, %v239, %v271
      %v393 = vsel %vm282, %v239, %v271
      %v395 = vrot.slane %v393, 1
      %v396 = vsel %vm286, %v239, %v271
      %v398 = vrot.slane %v396, 2
      %v399 = vsel %vm290, %v239, %v271
      %v401 = vrot.slane %v399, 3
      %v404 = vsel %vm278, %v240, %v272
      %v405 = vsel %vm282, %v240, %v272
      %v407 = vrot.slane %v405, 1
      %v408 = vsel %vm286, %v240, %v272
      %v410 = vrot.slane %v408, 2
      %v411 = vsel %vm290, %v240, %v272
      %v413 = vrot.slane %v411, 3
      %v416 = vsel %vm278, %v241, %v273
      %v417 = vsel %vm282, %v241, %v273
      %v419 = vrot.slane %v417, 1
      %v420 = vsel %vm286, %v241, %v273
      %v422 = vrot.slane %v420, 2
      %v423 = vsel %vm290, %v241, %v273
      %v425 = vrot.slane %v423, 3
      %v428 = vsel %vm278, %v242, %v274
      %v429 = vsel %vm282, %v242, %v274
      %v431 = vrot.slane %v429, 1
      %v432 = vsel %vm286, %v242, %v274
      %v434 = vrot.slane %v432, 2
      %v435 = vsel %vm290, %v242, %v274
      %v437 = vrot.slane %v435, 3
      %v440 = vsel %vm278, %v243, %v275
      %v441 = vsel %vm282, %v243, %v275
      %v443 = vrot.slane %v441, 1
      %v444 = vsel %vm286, %v243, %v275
      %v446 = vrot.slane %v444, 2
      %v447 = vsel %vm290, %v243, %v275
      %v449 = vrot.slane %v447, 3
      %v452 = vsel %vm278, %v244, %v276
      %v453 = vsel %vm282, %v244, %v276
      %v455 = vrot.slane %v453, 1
      %v456 = vsel %vm286, %v244, %v276
      %v458 = vrot.slane %v456, 2
      %v459 = vsel %vm290, %v244, %v276
      %v461 = vrot.slane %v459, 3
      %v464 = vsel %vm278, %v245, %v277
      %v465 = vsel %vm282, %v245, %v277
      %v467 = vrot.slane %v465, 1
      %v468 = vsel %vm286, %v245, %v277
      %v470 = vrot.slane %v468, 2
      %v471 = vsel %vm290, %v245, %v277
      %v473 = vrot.slane %v471, 3
      %v538 = vunpack.c.l.bf16 %v281
      %v539 = vunpack.c.l.bf16 %v285
      %v540 = vunpack.c.l.bf16 %v289
      %v541 = vunpack.c.l.bf16 %v293
      %v542 = vunpack.c.l.bf16 %v296
      %v543 = vunpack.c.l.bf16 %v299
      %v544 = vunpack.c.l.bf16 %v302
      %v545 = vunpack.c.l.bf16 %v305
      %v546 = vunpack.c.l.bf16 %v308
      %v547 = vunpack.c.l.bf16 %v311
      %v548 = vunpack.c.l.bf16 %v314
      %v549 = vunpack.c.l.bf16 %v317
      %v550 = vunpack.c.l.bf16 %v320
      %v551 = vunpack.c.l.bf16 %v323
      %v552 = vunpack.c.l.bf16 %v326
      %v553 = vunpack.c.l.bf16 %v329
      %v554 = vunpack.c.l.bf16 %v332
      %v555 = vunpack.c.l.bf16 %v335
      %v556 = vunpack.c.l.bf16 %v338
      %v557 = vunpack.c.l.bf16 %v341
      %v558 = vunpack.c.l.bf16 %v344
      %v559 = vunpack.c.l.bf16 %v347
      %v560 = vunpack.c.l.bf16 %v350
      %v561 = vunpack.c.l.bf16 %v353
      %v562 = vunpack.c.l.bf16 %v356
      %v563 = vunpack.c.l.bf16 %v359
      %v564 = vunpack.c.l.bf16 %v362
      %v565 = vunpack.c.l.bf16 %v365
      %v566 = vunpack.c.l.bf16 %v368
      %v567 = vunpack.c.l.bf16 %v371
      %v568 = vunpack.c.l.bf16 %v374
      %v569 = vunpack.c.l.bf16 %v377
      %v570 = vunpack.c.l.bf16 %v380
      %v571 = vunpack.c.l.bf16 %v383
      %v572 = vunpack.c.l.bf16 %v386
      %v573 = vunpack.c.l.bf16 %v389
      %v574 = vunpack.c.l.bf16 %v392
      %v575 = vunpack.c.l.bf16 %v395
      %v576 = vunpack.c.l.bf16 %v398
      %v577 = vunpack.c.l.bf16 %v401
      %v578 = vunpack.c.l.bf16 %v404
      %v579 = vunpack.c.l.bf16 %v407
      %v580 = vunpack.c.l.bf16 %v410
      %v581 = vunpack.c.l.bf16 %v413
      %v582 = vunpack.c.l.bf16 %v416
      %v583 = vunpack.c.l.bf16 %v419
      %v584 = vunpack.c.l.bf16 %v422
      %v585 = vunpack.c.l.bf16 %v425
      %v586 = vunpack.c.l.bf16 %v428
      %v587 = vunpack.c.l.bf16 %v431
      %v588 = vunpack.c.l.bf16 %v434
      %v589 = vunpack.c.l.bf16 %v437
      %v590 = vunpack.c.l.bf16 %v440
      %v591 = vunpack.c.l.bf16 %v443
      %v592 = vunpack.c.l.bf16 %v446
      %v593 = vunpack.c.l.bf16 %v449
      %v594 = vunpack.c.l.bf16 %v452
      %v595 = vunpack.c.l.bf16 %v455
      %v596 = vunpack.c.l.bf16 %v458
      %v597 = vunpack.c.l.bf16 %v461
      %v598 = vunpack.c.l.bf16 %v464
      %v599 = vunpack.c.l.bf16 %v467
      %v600 = vunpack.c.l.bf16 %v470
      %v601 = vunpack.c.l.bf16 %v473
      %vm602 = vcmask 58368
      %v603 = vsel %vm602, %v538, -inf
      %v604 = vrot.slane %v603, 4
      %v605 = vmax.f32 %v603, %v604
      %v606 = vrot.slane %v605, 2
      %v607 = vmax.f32 %v605, %v606
      %v608 = vrot.slane %v607, 1
      %v609 = vmax.f32 %v607, %v608
      %v610 = vsel %vm602, %v539, -inf
      %v611 = vrot.slane %v610, 4
      %v612 = vmax.f32 %v610, %v611
      %v613 = vrot.slane %v612, 2
      %v614 = vmax.f32 %v612, %v613
      %v615 = vrot.slane %v614, 1
      %v616 = vmax.f32 %v614, %v615
      %v617 = vsel %vm602, %v540, -inf
      %v618 = vrot.slane %v617, 4
      %v619 = vmax.f32 %v617, %v618
      %v620 = vrot.slane %v619, 2
      %v621 = vmax.f32 %v619, %v620
      %v622 = vrot.slane %v621, 1
      %v623 = vmax.f32 %v621, %v622
      %v624 = vsel %vm602, %v541, -inf
      %v625 = vrot.slane %v624, 4
      %v626 = vmax.f32 %v624, %v625
      %v627 = vrot.slane %v626, 2
      %v628 = vmax.f32 %v626, %v627
      %v629 = vrot.slane %v628, 1
      %v630 = vmax.f32 %v628, %v629
      %v631 = vsel %vm602, %v542, -inf
      %v632 = vrot.slane %v631, 4
      %v633 = vmax.f32 %v631, %v632
      %v634 = vrot.slane %v633, 2
      %v635 = vmax.f32 %v633, %v634
      %v636 = vrot.slane %v635, 1
      %v637 = vmax.f32 %v635, %v636
      %v638 = vsel %vm602, %v543, -inf
      %v639 = vrot.slane %v638, 4
      %v640 = vmax.f32 %v638, %v639
      %v641 = vrot.slane %v640, 2
      %v642 = vmax.f32 %v640, %v641
      %v643 = vrot.slane %v642, 1
      %v644 = vmax.f32 %v642, %v643
      %v645 = vsel %vm602, %v544, -inf
      %v646 = vrot.slane %v645, 4
      %v647 = vmax.f32 %v645, %v646
      %v648 = vrot.slane %v647, 2
      %v649 = vmax.f32 %v647, %v648
      %v650 = vrot.slane %v649, 1
      %v651 = vmax.f32 %v649, %v650
      %v652 = vsel %vm602, %v545, -inf
      %v653 = vrot.slane %v652, 4
      %v654 = vmax.f32 %v652, %v653
      %v655 = vrot.slane %v654, 2
      %v656 = vmax.f32 %v654, %v655
      %v657 = vrot.slane %v656, 1
      %v658 = vmax.f32 %v656, %v657
      %v659 = vsel %vm602, %v546, -inf
      %v660 = vrot.slane %v659, 4
      %v661 = vmax.f32 %v659, %v660
      %v662 = vrot.slane %v661, 2
      %v663 = vmax.f32 %v661, %v662
      %v664 = vrot.slane %v663, 1
      %v665 = vmax.f32 %v663, %v664
      %v666 = vsel %vm602, %v547, -inf
      %v667 = vrot.slane %v666, 4
      %v668 = vmax.f32 %v666, %v667
      %v669 = vrot.slane %v668, 2
      %v670 = vmax.f32 %v668, %v669
      %v671 = vrot.slane %v670, 1
      %v672 = vmax.f32 %v670, %v671
      %v673 = vsel %vm602, %v548, -inf
      %v674 = vrot.slane %v673, 4
      %v675 = vmax.f32 %v673, %v674
      %v676 = vrot.slane %v675, 2
      %v677 = vmax.f32 %v675, %v676
      %v678 = vrot.slane %v677, 1
      %v679 = vmax.f32 %v677, %v678
      %v680 = vsel %vm602, %v549, -inf
      %v681 = vrot.slane %v680, 4
      %v682 = vmax.f32 %v680, %v681
      %v683 = vrot.slane %v682, 2
      %v684 = vmax.f32 %v682, %v683
      %v685 = vrot.slane %v684, 1
      %v686 = vmax.f32 %v684, %v685
      %v687 = vsel %vm602, %v550, -inf
      %v688 = vrot.slane %v687, 4
      %v689 = vmax.f32 %v687, %v688
      %v690 = vrot.slane %v689, 2
      %v691 = vmax.f32 %v689, %v690
      %v692 = vrot.slane %v691, 1
      %v693 = vmax.f32 %v691, %v692
      %v694 = vsel %vm602, %v551, -inf
      %v695 = vrot.slane %v694, 4
      %v696 = vmax.f32 %v694, %v695
      %v697 = vrot.slane %v696, 2
      %v698 = vmax.f32 %v696, %v697
      %v699 = vrot.slane %v698, 1
      %v700 = vmax.f32 %v698, %v699
      %v701 = vsel %vm602, %v552, -inf
      %v702 = vrot.slane %v701, 4
      %v703 = vmax.f32 %v701, %v702
      %v704 = vrot.slane %v703, 2
      %v705 = vmax.f32 %v703, %v704
      %v706 = vrot.slane %v705, 1
      %v707 = vmax.f32 %v705, %v706
      %v708 = vsel %vm602, %v553, -inf
      %v709 = vrot.slane %v708, 4
      %v710 = vmax.f32 %v708, %v709
      %v711 = vrot.slane %v710, 2
      %v712 = vmax.f32 %v710, %v711
      %v713 = vrot.slane %v712, 1
      %v714 = vmax.f32 %v712, %v713
      %v715 = vsel %vm602, %v554, -inf
      %v716 = vrot.slane %v715, 4
      %v717 = vmax.f32 %v715, %v716
      %v718 = vrot.slane %v717, 2
      %v719 = vmax.f32 %v717, %v718
      %v720 = vrot.slane %v719, 1
      %v721 = vmax.f32 %v719, %v720
      %v722 = vsel %vm602, %v555, -inf
      %v723 = vrot.slane %v722, 4
      %v724 = vmax.f32 %v722, %v723
      %v725 = vrot.slane %v724, 2
      %v726 = vmax.f32 %v724, %v725
      %v727 = vrot.slane %v726, 1
      %v728 = vmax.f32 %v726, %v727
      %v729 = vsel %vm602, %v556, -inf
      %v730 = vrot.slane %v729, 4
      %v731 = vmax.f32 %v729, %v730
      %v732 = vrot.slane %v731, 2
      %v733 = vmax.f32 %v731, %v732
      %v734 = vrot.slane %v733, 1
      %v735 = vmax.f32 %v733, %v734
      %v736 = vsel %vm602, %v557, -inf
      %v737 = vrot.slane %v736, 4
      %v738 = vmax.f32 %v736, %v737
      %v739 = vrot.slane %v738, 2
      %v740 = vmax.f32 %v738, %v739
      %v741 = vrot.slane %v740, 1
      %v742 = vmax.f32 %v740, %v741
      %v743 = vsel %vm602, %v558, -inf
      %v744 = vrot.slane %v743, 4
      %v745 = vmax.f32 %v743, %v744
      %v746 = vrot.slane %v745, 2
      %v747 = vmax.f32 %v745, %v746
      %v748 = vrot.slane %v747, 1
      %v749 = vmax.f32 %v747, %v748
      %v750 = vsel %vm602, %v559, -inf
      %v751 = vrot.slane %v750, 4
      %v752 = vmax.f32 %v750, %v751
      %v753 = vrot.slane %v752, 2
      %v754 = vmax.f32 %v752, %v753
      %v755 = vrot.slane %v754, 1
      %v756 = vmax.f32 %v754, %v755
      %v757 = vsel %vm602, %v560, -inf
      %v758 = vrot.slane %v757, 4
      %v759 = vmax.f32 %v757, %v758
      %v760 = vrot.slane %v759, 2
      %v761 = vmax.f32 %v759, %v760
      %v762 = vrot.slane %v761, 1
      %v763 = vmax.f32 %v761, %v762
      %v764 = vsel %vm602, %v561, -inf
      %v765 = vrot.slane %v764, 4
      %v766 = vmax.f32 %v764, %v765
      %v767 = vrot.slane %v766, 2
      %v768 = vmax.f32 %v766, %v767
      %v769 = vrot.slane %v768, 1
      %v770 = vmax.f32 %v768, %v769
      %v771 = vsel %vm602, %v562, -inf
      %v772 = vrot.slane %v771, 4
      %v773 = vmax.f32 %v771, %v772
      %v774 = vrot.slane %v773, 2
      %v775 = vmax.f32 %v773, %v774
      %v776 = vrot.slane %v775, 1
      %v777 = vmax.f32 %v775, %v776
      %v778 = vsel %vm602, %v563, -inf
      %v779 = vrot.slane %v778, 4
      %v780 = vmax.f32 %v778, %v779
      %v781 = vrot.slane %v780, 2
      %v782 = vmax.f32 %v780, %v781
      %v783 = vrot.slane %v782, 1
      %v784 = vmax.f32 %v782, %v783
      %v785 = vsel %vm602, %v564, -inf
      %v786 = vrot.slane %v785, 4
      %v787 = vmax.f32 %v785, %v786
      %v788 = vrot.slane %v787, 2
      %v789 = vmax.f32 %v787, %v788
      %v790 = vrot.slane %v789, 1
      %v791 = vmax.f32 %v789, %v790
      %v792 = vsel %vm602, %v565, -inf
      %v793 = vrot.slane %v792, 4
      %v794 = vmax.f32 %v792, %v793
      %v795 = vrot.slane %v794, 2
      %v796 = vmax.f32 %v794, %v795
      %v797 = vrot.slane %v796, 1
      %v798 = vmax.f32 %v796, %v797
      %v799 = vsel %vm602, %v566, -inf
      %v800 = vrot.slane %v799, 4
      %v801 = vmax.f32 %v799, %v800
      %v802 = vrot.slane %v801, 2
      %v803 = vmax.f32 %v801, %v802
      %v804 = vrot.slane %v803, 1
      %v805 = vmax.f32 %v803, %v804
      %v806 = vsel %vm602, %v567, -inf
      %v807 = vrot.slane %v806, 4
      %v808 = vmax.f32 %v806, %v807
      %v809 = vrot.slane %v808, 2
      %v810 = vmax.f32 %v808, %v809
      %v811 = vrot.slane %v810, 1
      %v812 = vmax.f32 %v810, %v811
      %v813 = vsel %vm602, %v568, -inf
      %v814 = vrot.slane %v813, 4
      %v815 = vmax.f32 %v813, %v814
      %v816 = vrot.slane %v815, 2
      %v817 = vmax.f32 %v815, %v816
      %v818 = vrot.slane %v817, 1
      %v819 = vmax.f32 %v817, %v818
      %v820 = vsel %vm602, %v569, -inf
      %v821 = vrot.slane %v820, 4
      %v822 = vmax.f32 %v820, %v821
      %v823 = vrot.slane %v822, 2
      %v824 = vmax.f32 %v822, %v823
      %v825 = vrot.slane %v824, 1
      %v826 = vmax.f32 %v824, %v825
      %v827 = vsel %vm602, %v570, -inf
      %v828 = vrot.slane %v827, 4
      %v829 = vmax.f32 %v827, %v828
      %v830 = vrot.slane %v829, 2
      %v831 = vmax.f32 %v829, %v830
      %v832 = vrot.slane %v831, 1
      %v833 = vmax.f32 %v831, %v832
      %v834 = vsel %vm602, %v571, -inf
      %v835 = vrot.slane %v834, 4
      %v836 = vmax.f32 %v834, %v835
      %v837 = vrot.slane %v836, 2
      %v838 = vmax.f32 %v836, %v837
      %v839 = vrot.slane %v838, 1
      %v840 = vmax.f32 %v838, %v839
      %v841 = vsel %vm602, %v572, -inf
      %v842 = vrot.slane %v841, 4
      %v843 = vmax.f32 %v841, %v842
      %v844 = vrot.slane %v843, 2
      %v845 = vmax.f32 %v843, %v844
      %v846 = vrot.slane %v845, 1
      %v847 = vmax.f32 %v845, %v846
      %v848 = vsel %vm602, %v573, -inf
      %v849 = vrot.slane %v848, 4
      %v850 = vmax.f32 %v848, %v849
      %v851 = vrot.slane %v850, 2
      %v852 = vmax.f32 %v850, %v851
      %v853 = vrot.slane %v852, 1
      %v854 = vmax.f32 %v852, %v853
      %v855 = vsel %vm602, %v574, -inf
      %v856 = vrot.slane %v855, 4
      %v857 = vmax.f32 %v855, %v856
      %v858 = vrot.slane %v857, 2
      %v859 = vmax.f32 %v857, %v858
      %v860 = vrot.slane %v859, 1
      %v861 = vmax.f32 %v859, %v860
      %v862 = vsel %vm602, %v575, -inf
      %v863 = vrot.slane %v862, 4
      %v864 = vmax.f32 %v862, %v863
      %v865 = vrot.slane %v864, 2
      %v866 = vmax.f32 %v864, %v865
      %v867 = vrot.slane %v866, 1
      %v868 = vmax.f32 %v866, %v867
      %v869 = vsel %vm602, %v576, -inf
      %v870 = vrot.slane %v869, 4
      %v871 = vmax.f32 %v869, %v870
      %v872 = vrot.slane %v871, 2
      %v873 = vmax.f32 %v871, %v872
      %v874 = vrot.slane %v873, 1
      %v875 = vmax.f32 %v873, %v874
      %v876 = vsel %vm602, %v577, -inf
      %v877 = vrot.slane %v876, 4
      %v878 = vmax.f32 %v876, %v877
      %v879 = vrot.slane %v878, 2
      %v880 = vmax.f32 %v878, %v879
      %v881 = vrot.slane %v880, 1
      %v882 = vmax.f32 %v880, %v881
      %v883 = vsel %vm602, %v578, -inf
      %v884 = vrot.slane %v883, 4
      %v885 = vmax.f32 %v883, %v884
      %v886 = vrot.slane %v885, 2
      %v887 = vmax.f32 %v885, %v886
      %v888 = vrot.slane %v887, 1
      %v889 = vmax.f32 %v887, %v888
      %v890 = vsel %vm602, %v579, -inf
      %v891 = vrot.slane %v890, 4
      %v892 = vmax.f32 %v890, %v891
      %v893 = vrot.slane %v892, 2
      %v894 = vmax.f32 %v892, %v893
      %v895 = vrot.slane %v894, 1
      %v896 = vmax.f32 %v894, %v895
      %v897 = vsel %vm602, %v580, -inf
      %v898 = vrot.slane %v897, 4
      %v899 = vmax.f32 %v897, %v898
      %v900 = vrot.slane %v899, 2
      %v901 = vmax.f32 %v899, %v900
      %v902 = vrot.slane %v901, 1
      %v903 = vmax.f32 %v901, %v902
      %v904 = vsel %vm602, %v581, -inf
      %v905 = vrot.slane %v904, 4
      %v906 = vmax.f32 %v904, %v905
      %v907 = vrot.slane %v906, 2
      %v908 = vmax.f32 %v906, %v907
      %v909 = vrot.slane %v908, 1
      %v910 = vmax.f32 %v908, %v909
      %v911 = vsel %vm602, %v582, -inf
      %v912 = vrot.slane %v911, 4
      %v913 = vmax.f32 %v911, %v912
      %v914 = vrot.slane %v913, 2
      %v915 = vmax.f32 %v913, %v914
      %v916 = vrot.slane %v915, 1
      %v917 = vmax.f32 %v915, %v916
      %v918 = vsel %vm602, %v583, -inf
      %v919 = vrot.slane %v918, 4
      %v920 = vmax.f32 %v918, %v919
      %v921 = vrot.slane %v920, 2
      %v922 = vmax.f32 %v920, %v921
      %v923 = vrot.slane %v922, 1
      %v924 = vmax.f32 %v922, %v923
      %v925 = vsel %vm602, %v584, -inf
      %v926 = vrot.slane %v925, 4
      %v927 = vmax.f32 %v925, %v926
      %v928 = vrot.slane %v927, 2
      %v929 = vmax.f32 %v927, %v928
      %v930 = vrot.slane %v929, 1
      %v931 = vmax.f32 %v929, %v930
      %v932 = vsel %vm602, %v585, -inf
      %v933 = vrot.slane %v932, 4
      %v934 = vmax.f32 %v932, %v933
      %v935 = vrot.slane %v934, 2
      %v936 = vmax.f32 %v934, %v935
      %v937 = vrot.slane %v936, 1
      %v938 = vmax.f32 %v936, %v937
      %v939 = vsel %vm602, %v586, -inf
      %v940 = vrot.slane %v939, 4
      %v941 = vmax.f32 %v939, %v940
      %v942 = vrot.slane %v941, 2
      %v943 = vmax.f32 %v941, %v942
      %v944 = vrot.slane %v943, 1
      %v945 = vmax.f32 %v943, %v944
      %v946 = vsel %vm602, %v587, -inf
      %v947 = vrot.slane %v946, 4
      %v948 = vmax.f32 %v946, %v947
      %v949 = vrot.slane %v948, 2
      %v950 = vmax.f32 %v948, %v949
      %v951 = vrot.slane %v950, 1
      %v952 = vmax.f32 %v950, %v951
      %v953 = vsel %vm602, %v588, -inf
      %v954 = vrot.slane %v953, 4
      %v955 = vmax.f32 %v953, %v954
      %v956 = vrot.slane %v955, 2
      %v957 = vmax.f32 %v955, %v956
      %v958 = vrot.slane %v957, 1
      %v959 = vmax.f32 %v957, %v958
      %v960 = vsel %vm602, %v589, -inf
      %v961 = vrot.slane %v960, 4
      %v962 = vmax.f32 %v960, %v961
      %v963 = vrot.slane %v962, 2
      %v964 = vmax.f32 %v962, %v963
      %v965 = vrot.slane %v964, 1
      %v966 = vmax.f32 %v964, %v965
      %v967 = vsel %vm602, %v590, -inf
      %v968 = vrot.slane %v967, 4
      %v969 = vmax.f32 %v967, %v968
      %v970 = vrot.slane %v969, 2
      %v971 = vmax.f32 %v969, %v970
      %v972 = vrot.slane %v971, 1
      %v973 = vmax.f32 %v971, %v972
      %v974 = vsel %vm602, %v591, -inf
      %v975 = vrot.slane %v974, 4
      %v976 = vmax.f32 %v974, %v975
      %v977 = vrot.slane %v976, 2
      %v978 = vmax.f32 %v976, %v977
      %v979 = vrot.slane %v978, 1
      %v980 = vmax.f32 %v978, %v979
      %v981 = vsel %vm602, %v592, -inf
      %v982 = vrot.slane %v981, 4
      %v983 = vmax.f32 %v981, %v982
      %v984 = vrot.slane %v983, 2
      %v985 = vmax.f32 %v983, %v984
      %v986 = vrot.slane %v985, 1
      %v987 = vmax.f32 %v985, %v986
      %v988 = vsel %vm602, %v593, -inf
      %v989 = vrot.slane %v988, 4
      %v990 = vmax.f32 %v988, %v989
      %v991 = vrot.slane %v990, 2
      %v992 = vmax.f32 %v990, %v991
      %v993 = vrot.slane %v992, 1
      %v994 = vmax.f32 %v992, %v993
      %v995 = vsel %vm602, %v594, -inf
      %v996 = vrot.slane %v995, 4
      %v997 = vmax.f32 %v995, %v996
      %v998 = vrot.slane %v997, 2
      %v999 = vmax.f32 %v997, %v998
      %v1000 = vrot.slane %v999, 1
      %v1001 = vmax.f32 %v999, %v1000
      %v1002 = vsel %vm602, %v595, -inf
      %v1003 = vrot.slane %v1002, 4
      %v1004 = vmax.f32 %v1002, %v1003
      %v1005 = vrot.slane %v1004, 2
      %v1006 = vmax.f32 %v1004, %v1005
      %v1007 = vrot.slane %v1006, 1
      %v1008 = vmax.f32 %v1006, %v1007
      %v1009 = vsel %vm602, %v596, -inf
      %v1010 = vrot.slane %v1009, 4
      %v1011 = vmax.f32 %v1009, %v1010
      %v1012 = vrot.slane %v1011, 2
      %v1013 = vmax.f32 %v1011, %v1012
      %v1014 = vrot.slane %v1013, 1
      %v1015 = vmax.f32 %v1013, %v1014
      %v1016 = vsel %vm602, %v597, -inf
      %v1017 = vrot.slane %v1016, 4
      %v1018 = vmax.f32 %v1016, %v1017
      %v1019 = vrot.slane %v1018, 2
      %v1020 = vmax.f32 %v1018, %v1019
      %v1021 = vrot.slane %v1020, 1
      %v1022 = vmax.f32 %v1020, %v1021
      %v1023 = vsel %vm602, %v598, -inf
      %v1024 = vrot.slane %v1023, 4
      %v1025 = vmax.f32 %v1023, %v1024
      %v1026 = vrot.slane %v1025, 2
      %v1027 = vmax.f32 %v1025, %v1026
      %v1028 = vrot.slane %v1027, 1
      %v1029 = vmax.f32 %v1027, %v1028
      %v1030 = vsel %vm602, %v599, -inf
      %v1031 = vrot.slane %v1030, 4
      %v1032 = vmax.f32 %v1030, %v1031
      %v1033 = vrot.slane %v1032, 2
      %v1034 = vmax.f32 %v1032, %v1033
      %v1035 = vrot.slane %v1034, 1
      %v1036 = vmax.f32 %v1034, %v1035
      %v1037 = vsel %vm602, %v600, -inf
      %v1038 = vrot.slane %v1037, 4
      %v1039 = vmax.f32 %v1037, %v1038
      %v1040 = vrot.slane %v1039, 2
      %v1041 = vmax.f32 %v1039, %v1040
      %v1042 = vrot.slane %v1041, 1
      %v1043 = vmax.f32 %v1041, %v1042
      %v1044 = vsel %vm602, %v601, -inf
      %v1045 = vrot.slane %v1044, 4
      %v1046 = vmax.f32 %v1044, %v1045
      %v1047 = vrot.slane %v1046, 2
      %v1048 = vmax.f32 %v1046, %v1047
      %v1049 = vrot.slane %v1048, 1
      %v1050 = vmax.f32 %v1048, %v1049
      %v1051 = vpack.c.bf16 %v609, %v609
      %v1052 = vpack.c.bf16 %v616, %v616
      %v1053 = vpack.c.bf16 %v623, %v623
      %v1054 = vpack.c.bf16 %v630, %v630
      %v1055 = vpack.c.bf16 %v637, %v637
      %v1056 = vpack.c.bf16 %v644, %v644
      %v1057 = vpack.c.bf16 %v651, %v651
      %v1058 = vpack.c.bf16 %v658, %v658
      %v1059 = vpack.c.bf16 %v665, %v665
      %v1060 = vpack.c.bf16 %v672, %v672
      %v1061 = vpack.c.bf16 %v679, %v679
      %v1062 = vpack.c.bf16 %v686, %v686
      %v1063 = vpack.c.bf16 %v693, %v693
      %v1064 = vpack.c.bf16 %v700, %v700
      %v1065 = vpack.c.bf16 %v707, %v707
      %v1066 = vpack.c.bf16 %v714, %v714
      %v1067 = vpack.c.bf16 %v721, %v721
      %v1068 = vpack.c.bf16 %v728, %v728
      %v1069 = vpack.c.bf16 %v735, %v735
      %v1070 = vpack.c.bf16 %v742, %v742
      %v1071 = vpack.c.bf16 %v749, %v749
      %v1072 = vpack.c.bf16 %v756, %v756
      %v1073 = vpack.c.bf16 %v763, %v763
      %v1074 = vpack.c.bf16 %v770, %v770
      %v1075 = vpack.c.bf16 %v777, %v777
      %v1076 = vpack.c.bf16 %v784, %v784
      %v1077 = vpack.c.bf16 %v791, %v791
      %v1078 = vpack.c.bf16 %v798, %v798
      %v1079 = vpack.c.bf16 %v805, %v805
      %v1080 = vpack.c.bf16 %v812, %v812
      %v1081 = vpack.c.bf16 %v819, %v819
      %v1082 = vpack.c.bf16 %v826, %v826
      %v1083 = vpack.c.bf16 %v833, %v833
      %v1084 = vpack.c.bf16 %v840, %v840
      %v1085 = vpack.c.bf16 %v847, %v847
      %v1086 = vpack.c.bf16 %v854, %v854
      %v1087 = vpack.c.bf16 %v861, %v861
      %v1088 = vpack.c.bf16 %v868, %v868
      %v1089 = vpack.c.bf16 %v875, %v875
      %v1090 = vpack.c.bf16 %v882, %v882
      %v1091 = vpack.c.bf16 %v889, %v889
      %v1092 = vpack.c.bf16 %v896, %v896
      %v1093 = vpack.c.bf16 %v903, %v903
      %v1094 = vpack.c.bf16 %v910, %v910
      %v1095 = vpack.c.bf16 %v917, %v917
      %v1096 = vpack.c.bf16 %v924, %v924
      %v1097 = vpack.c.bf16 %v931, %v931
      %v1098 = vpack.c.bf16 %v938, %v938
      %v1099 = vpack.c.bf16 %v945, %v945
      %v1100 = vpack.c.bf16 %v952, %v952
      %v1101 = vpack.c.bf16 %v959, %v959
      %v1102 = vpack.c.bf16 %v966, %v966
      %v1103 = vpack.c.bf16 %v973, %v973
      %v1104 = vpack.c.bf16 %v980, %v980
      %v1105 = vpack.c.bf16 %v987, %v987
      %v1106 = vpack.c.bf16 %v994, %v994
      %v1107 = vpack.c.bf16 %v1001, %v1001
      %v1108 = vpack.c.bf16 %v1008, %v1008
      %v1109 = vpack.c.bf16 %v1015, %v1015
      %v1110 = vpack.c.bf16 %v1022, %v1022
      %v1111 = vpack.c.bf16 %v1029, %v1029
      %v1112 = vpack.c.bf16 %v1036, %v1036
      %v1113 = vpack.c.bf16 %v1043, %v1043
      %v1114 = vpack.c.bf16 %v1050, %v1050
      %v1179 = vunpack.c.l.b16 %v1051
      %v1180 = vunpack.c.l.b16 %v1052
      %v1181 = vunpack.c.l.b16 %v1053
      %v1182 = vunpack.c.l.b16 %v1054
      %v1183 = vunpack.c.l.b16 %v1055
      %v1184 = vunpack.c.l.b16 %v1056
      %v1185 = vunpack.c.l.b16 %v1057
      %v1186 = vunpack.c.l.b16 %v1058
      %v1187 = vunpack.c.l.b16 %v1059
      %v1188 = vunpack.c.l.b16 %v1060
      %v1189 = vunpack.c.l.b16 %v1061
      %v1190 = vunpack.c.l.b16 %v1062
      %v1191 = vunpack.c.l.b16 %v1063
      %v1192 = vunpack.c.l.b16 %v1064
      %v1193 = vunpack.c.l.b16 %v1065
      %v1194 = vunpack.c.l.b16 %v1066
      %v1195 = vunpack.c.l.b16 %v1067
      %v1196 = vunpack.c.l.b16 %v1068
      %v1197 = vunpack.c.l.b16 %v1069
      %v1198 = vunpack.c.l.b16 %v1070
      %v1199 = vunpack.c.l.b16 %v1071
      %v1200 = vunpack.c.l.b16 %v1072
      %v1201 = vunpack.c.l.b16 %v1073
      %v1202 = vunpack.c.l.b16 %v1074
      %v1203 = vunpack.c.l.b16 %v1075
      %v1204 = vunpack.c.l.b16 %v1076
      %v1205 = vunpack.c.l.b16 %v1077
      %v1206 = vunpack.c.l.b16 %v1078
      %v1207 = vunpack.c.l.b16 %v1079
      %v1208 = vunpack.c.l.b16 %v1080
      %v1209 = vunpack.c.l.b16 %v1081
      %v1210 = vunpack.c.l.b16 %v1082
      %v1211 = vunpack.c.l.b16 %v1083
      %v1212 = vunpack.c.l.b16 %v1084
      %v1213 = vunpack.c.l.b16 %v1085
      %v1214 = vunpack.c.l.b16 %v1086
      %v1215 = vunpack.c.l.b16 %v1087
      %v1216 = vunpack.c.l.b16 %v1088
      %v1217 = vunpack.c.l.b16 %v1089
      %v1218 = vunpack.c.l.b16 %v1090
      %v1219 = vunpack.c.l.b16 %v1091
      %v1220 = vunpack.c.l.b16 %v1092
      %v1221 = vunpack.c.l.b16 %v1093
      %v1222 = vunpack.c.l.b16 %v1094
      %v1223 = vunpack.c.l.b16 %v1095
      %v1224 = vunpack.c.l.b16 %v1096
      %v1225 = vunpack.c.l.b16 %v1097
      %v1226 = vunpack.c.l.b16 %v1098
      %v1227 = vunpack.c.l.b16 %v1099
      %v1228 = vunpack.c.l.b16 %v1100
      %v1229 = vunpack.c.l.b16 %v1101
      %v1230 = vunpack.c.l.b16 %v1102
      %v1231 = vunpack.c.l.b16 %v1103
      %v1232 = vunpack.c.l.b16 %v1104
      %v1233 = vunpack.c.l.b16 %v1105
      %v1234 = vunpack.c.l.b16 %v1106
      %v1235 = vunpack.c.l.b16 %v1107
      %v1236 = vunpack.c.l.b16 %v1108
      %v1237 = vunpack.c.l.b16 %v1109
      %v1238 = vunpack.c.l.b16 %v1110
      %v1239 = vunpack.c.l.b16 %v1111
      %v1240 = vunpack.c.l.b16 %v1112
      %v1241 = vunpack.c.l.b16 %v1113
      %v1242 = vunpack.c.l.b16 %v1114
      %v1243 = vsel %vm282, %v1180, %v1179
      %v1244 = vsel %vm286, %v1181, %v1243
      %v1245 = vsel %vm290, %v1182, %v1244
      %vm1246 = vcmask 1044484
      %v1247 = vsel %vm1246, %v1183, %v1245
      %vm1248 = vcmask 1045509
      %v1249 = vsel %vm1248, %v1184, %v1247
      %vm1250 = vcmask 1046534
      %v1251 = vsel %vm1250, %v1185, %v1249
      %vm1252 = vcmask 1047559
      %v1253 = vsel %vm1252, %v1186, %v1251
      %v1254 = vsel %vm282, %v1188, %v1187
      %v1255 = vsel %vm286, %v1189, %v1254
      %v1256 = vsel %vm290, %v1190, %v1255
      %v1257 = vsel %vm1246, %v1191, %v1256
      %v1258 = vsel %vm1248, %v1192, %v1257
      %v1259 = vsel %vm1250, %v1193, %v1258
      %v1260 = vsel %vm1252, %v1194, %v1259
      %v1261 = vsel %vm282, %v1196, %v1195
      %v1262 = vsel %vm286, %v1197, %v1261
      %v1263 = vsel %vm290, %v1198, %v1262
      %v1264 = vsel %vm1246, %v1199, %v1263
      %v1265 = vsel %vm1248, %v1200, %v1264
      %v1266 = vsel %vm1250, %v1201, %v1265
      %v1267 = vsel %vm1252, %v1202, %v1266
      %v1268 = vsel %vm282, %v1204, %v1203
      %v1269 = vsel %vm286, %v1205, %v1268
      %v1270 = vsel %vm290, %v1206, %v1269
      %v1271 = vsel %vm1246, %v1207, %v1270
      %v1272 = vsel %vm1248, %v1208, %v1271
      %v1273 = vsel %vm1250, %v1209, %v1272
      %v1274 = vsel %vm1252, %v1210, %v1273
      %v1275 = vsel %vm282, %v1212, %v1211
      %v1276 = vsel %vm286, %v1213, %v1275
      %v1277 = vsel %vm290, %v1214, %v1276
      %v1278 = vsel %vm1246, %v1215, %v1277
      %v1279 = vsel %vm1248, %v1216, %v1278
      %v1280 = vsel %vm1250, %v1217, %v1279
      %v1281 = vsel %vm1252, %v1218, %v1280
      %v1282 = vsel %vm282, %v1220, %v1219
      %v1283 = vsel %vm286, %v1221, %v1282
      %v1284 = vsel %vm290, %v1222, %v1283
      %v1285 = vsel %vm1246, %v1223, %v1284
      %v1286 = vsel %vm1248, %v1224, %v1285
      %v1287 = vsel %vm1250, %v1225, %v1286
      %v1288 = vsel %vm1252, %v1226, %v1287
      %v1289 = vsel %vm282, %v1228, %v1227
      %v1290 = vsel %vm286, %v1229, %v1289
      %v1291 = vsel %vm290, %v1230, %v1290
      %v1292 = vsel %vm1246, %v1231, %v1291
      %v1293 = vsel %vm1248, %v1232, %v1292
      %v1294 = vsel %vm1250, %v1233, %v1293
      %v1295 = vsel %vm1252, %v1234, %v1294
      %v1296 = vsel %vm282, %v1236, %v1235
      %v1297 = vsel %vm286, %v1237, %v1296
      %v1298 = vsel %vm290, %v1238, %v1297
      %v1299 = vsel %vm1246, %v1239, %v1298
      %v1300 = vsel %vm1248, %v1240, %v1299
      %v1301 = vsel %vm1250, %v1241, %v1300
      %v1302 = vsel %vm1252, %v1242, %v1301
      %v1303 = vpack.c.b16 %v1253, %v1253
      %v1304 = vpack.c.b16 %v1260, %v1260
      %v1305 = vpack.c.b16 %v1267, %v1267
      %v1306 = vpack.c.b16 %v1274, %v1274
      %v1307 = vpack.c.b16 %v1281, %v1281
      %v1308 = vpack.c.b16 %v1288, %v1288
      %v1309 = vpack.c.b16 %v1295, %v1295
      %v1310 = vpack.c.b16 %v1302, %v1302
      %vm1319 = vcmask 60416
      %1320 = vst.msk [vmem:[%s116] sm:$0xf] %vm1319, %v1303
      %1321 = vst.msk [vmem:[%s116 + $0x4] sm:$0xf] %vm1319, %v1304
      %1322 = vst.msk [vmem:[%s116 + $0x8] sm:$0xf] %vm1319, %v1305
      %1323 = vst.msk [vmem:[%s116 + $0xc] sm:$0xf] %vm1319, %v1306
      %1324 = vst.msk [vmem:[%s116 + $0x10] sm:$0xf] %vm1319, %v1307
      %1325 = vst.msk [vmem:[%s116 + $0x14] sm:$0xf] %vm1319, %v1308
      %1326 = vst.msk [vmem:[%s116 + $0x18] sm:$0xf] %vm1319, %v1309
      %1327 = vst.msk [vmem:[%s116 + $0x1c] sm:$0xf] %vm1319, %v1310
      %p1328 = scmp.lt.s32.totalorder %s12, 1
      %s1329 = scalar_select %p1328, %s12, 1
      %s1330 = smul.addr %s1329, 8
      %s1331 = smul.addr %s1330, 4
      %s1332 = scalar_lea.vmem %s1, %s1331
      // Predicated region
      $region25: #{forward.9} parent=23 // pred_check
        %p1333 = pneg %p56
      $region26: #{forward.9} parent=23 // pred_check_branch
        %1335 = sbr.rel (%p1333) target = $region28
      $region27: #{forward.9} parent=23 // pred_region
        _
      $region28: #{forward.9} parent=23 // pred_fallthru
        _
    $region24: #{forward.9} parent=5 // pred_fallthru
      _
    %p1336 = scmp.le.s32.totalorder 2, %s7
    // Predicated region
    $region29: #{forward.9} parent=5 // pred_check
      %p1337 = pneg %p1336
    $region30: #{forward.9} parent=5 // pred_check_branch
      %1339 = sbr.rel (%p1337) target = $region32
    $region31: #{forward.9} parent=5 // pred_region
      %s1340 = ssub.s32 %s7, 2
      // Predicated region
      $region33: #{forward.9} parent=31 // pred_check
        %p1341 = pneg %p62
      $region34: #{forward.9} parent=31 // pred_check_branch
        %1343 = sbr.rel (%p1341) target = $region36
      $region35: #{forward.9} parent=31 // pred_region
        %p1344 = scmp.lt.s32.totalorder %s13, 1
        %s1345 = scalar_select %p1344, %s13, 1
        %s1346 = smul.addr %s1345, 8
        %s1347 = smul.addr %s1346, 4
        %s1348 = scalar_lea.vmem %s1, %s1347
      $region36: #{forward.9} parent=31 // pred_fallthru
        _
    $region32: #{forward.9} parent=5 // pred_fallthru
      _
  $region6: #{forward.9} parent=0 // loop_footer
    %s11 = sadd.s32 1, %s7
  $region7: #{forward.9} parent=0 // loop_footer_branch
    %6 = sbr.rel target = $region3
  $region8: #{forward.9} parent=0 // loop_exit
    _

// kernel: forward.10
$region0: #{forward.10}
  #allocation0 [shape = 'u32[]', space=smem, size = 0x4, offset = 0x4, fixed_abs, tag = 'smem constant byte address 0x4 - core index']
  #allocation1 [shape = 'u32[72,128]{1,0:T(1,128)}', space=vmem, size = 0x9000, scoped, tag = 'internal scratch']
  %s0 = inlined_call_operand.vmem [shape: bf16[2,10,10,8], index: 0, kind: input, shape index: {}]
  %s1 = inlined_call_operand.vmem [shape: bf16[9,8,16], index: 1, kind: input, shape index: {}]
  %s2 = inlined_call_operand.vmem [shape: f32[1,16], index: 2, kind: input, shape index: {}]
  %s3 = inlined_call_operand.vmem [shape: f32[1,16], index: 3, kind: input, shape index: {}]
  %s4 = inlined_call_operand.vmem [shape: bf16[2,8,8,16], index: 4, kind: output, shape index: {}]
  %s5 = sld [smem:[#allocation0]]
  $region49: #{forward.10} parent=0
    _
  %s7 = ssub.s32 1, %s5
  %s8 = scalar_select 0, %s7, %s5
  loop: start=0, step=1, limit=4
  $region2: #{forward.10} parent=0 // loop_pre_header
    _
  $region3: #{forward.10} parent=0 // loop_header
    %s10 = sphi 0, %s14
    %p11 = scmp.ge.s32.totalorder %s10, 4
    %s20 = sphi 0, %s22
    %s23 = sphi 0, %s20
    %s24 = sphi 0, %s23
    %s40 = sphi 0, %s24
    %s44 = sphi 0, %s44
    %s46 = sphi 0, %s44
    %s47 = sphi 0, %s46
    %s61 = sphi 0, %s47
    %s65 = sphi 0, %s65
    %s67 = sphi 0, %s65
    %s68 = sphi 0, %s67
    %s82 = sphi 0, %s68
    %s86 = sphi 0, %s86
    %s88 = sphi 0, %s86
    %s89 = sphi 0, %s88
    %s103 = sphi 0, %s89
    %s109 = sphi 0, %s111
    %s112 = sphi 0, %s109
    %s113 = sphi 0, %s112
    %s129 = sphi 0, %s113
  $region4: #{forward.10} parent=0 // loop_header_branch
    %13 = sbr.rel (%p11) target = $region8
  $region5: #{forward.10} parent=0 // loop_body
    %s15 = ssub.s32 %s10, 1
    %s16 = ssub.s32 %s10, 2
    %s17 = sadd.s32 %s10, 1
    %s18 = ssub.s32 %s10, %s17
    %p19 = scmp.eq.s32.totalorder %s18, 0
    %s21 = sadd.s32 %s20, 1
    %s22 = scalar_select %p19, %s20, %s21
    %p25 = pneg %p19
    %p26 = scmp.eq.s32.totalorder %s10, 1
    %p27 = por %p25, %p26
    %p28 = scmp.ne.s32.totalorder %s20, %s23
    %p29 = scmp.eq.s32.totalorder %s10, 0
    %p30 = por %p28, %p29
    %p31 = scmp.ne.s32.totalorder %s20, %s23
    %p32 = scmp.eq.s32.totalorder %s15, 1
    %p33 = por %p31, %p32
    %p34 = scmp.ne.s32.totalorder %s23, %s24
    %p35 = scmp.eq.s32.totalorder %s15, 0
    %p36 = por %p34, %p35
    %p37 = scmp.ne.s32.totalorder %s23, %s24
    %p38 = scmp.eq.s32.totalorder %s16, 1
    %p39 = por %p37, %p38
    %p41 = scmp.ne.s32.totalorder %s24, %s40
    %p42 = scmp.eq.s32.totalorder %s16, 0
    %p43 = por %p41, %p42
    %s45 = sadd.s32 %s44, 1
    %p48 = scmp.eq.s32.totalorder %s10, 1
    %p49 = scmp.ne.s32.totalorder %s44, %s46
    %p50 = scmp.eq.s32.totalorder %s10, 0
    %p51 = por %p49, %p50
    %p52 = scmp.ne.s32.totalorder %s44, %s46
    %p53 = scmp.eq.s32.totalorder %s15, 1
    %p54 = por %p52, %p53
    %p55 = scmp.ne.s32.totalorder %s46, %s47
    %p56 = scmp.eq.s32.totalorder %s15, 0
    %p57 = por %p55, %p56
    %p58 = scmp.ne.s32.totalorder %s46, %s47
    %p59 = scmp.eq.s32.totalorder %s16, 1
    %p60 = por %p58, %p59
    %p62 = scmp.ne.s32.totalorder %s47, %s61
    %p63 = scmp.eq.s32.totalorder %s16, 0
    %p64 = por %p62, %p63
    %s66 = sadd.s32 %s65, 1
    %p69 = scmp.eq.s32.totalorder %s10, 1
    %p70 = scmp.ne.s32.totalorder %s65, %s67
    %p71 = scmp.eq.s32.totalorder %s10, 0
    %p72 = por %p70, %p71
    %p73 = scmp.ne.s32.totalorder %s65, %s67
    %p74 = scmp.eq.s32.totalorder %s15, 1
    %p75 = por %p73, %p74
    %p76 = scmp.ne.s32.totalorder %s67, %s68
    %p77 = scmp.eq.s32.totalorder %s15, 0
    %p78 = por %p76, %p77
    %p79 = scmp.ne.s32.totalorder %s67, %s68
    %p80 = scmp.eq.s32.totalorder %s16, 1
    %p81 = por %p79, %p80
    %p83 = scmp.ne.s32.totalorder %s68, %s82
    %p84 = scmp.eq.s32.totalorder %s16, 0
    %p85 = por %p83, %p84
    %s87 = sadd.s32 %s86, 1
    %p90 = scmp.eq.s32.totalorder %s10, 1
    %p91 = scmp.ne.s32.totalorder %s86, %s88
    %p92 = scmp.eq.s32.totalorder %s10, 0
    %p93 = por %p91, %p92
    %p94 = scmp.ne.s32.totalorder %s86, %s88
    %p95 = scmp.eq.s32.totalorder %s15, 1
    %p96 = por %p94, %p95
    %p97 = scmp.ne.s32.totalorder %s88, %s89
    %p98 = scmp.eq.s32.totalorder %s15, 0
    %p99 = por %p97, %p98
    %p100 = scmp.ne.s32.totalorder %s88, %s89
    %p101 = scmp.eq.s32.totalorder %s16, 1
    %p102 = por %p100, %p101
    %p104 = scmp.ne.s32.totalorder %s89, %s103
    %p105 = scmp.eq.s32.totalorder %s16, 0
    %p106 = por %p104, %p105
    %s107 = ssub.s32 %s10, %s17
    %p108 = scmp.eq.s32.totalorder %s107, 0
    %s110 = sadd.s32 %s109, 1
    %s111 = scalar_select %p108, %s109, %s110
    %p114 = pneg %p108
    %p115 = scmp.eq.s32.totalorder %s10, 1
    %p116 = por %p114, %p115
    %p117 = scmp.ne.s32.totalorder %s109, %s112
    %p118 = scmp.eq.s32.totalorder %s10, 0
    %p119 = por %p117, %p118
    %p120 = scmp.ne.s32.totalorder %s109, %s112
    %p121 = scmp.eq.s32.totalorder %s15, 1
    %p122 = por %p120, %p121
    %p123 = scmp.ne.s32.totalorder %s112, %s113
    %p124 = scmp.eq.s32.totalorder %s15, 0
    %p125 = por %p123, %p124
    %p126 = scmp.ne.s32.totalorder %s112, %s113
    %p127 = scmp.eq.s32.totalorder %s16, 1
    %p128 = por %p126, %p127
    %p130 = scmp.ne.s32.totalorder %s113, %s129
    %p131 = scmp.eq.s32.totalorder %s16, 0
    %p132 = por %p130, %p131
    %p133 = scmp.le.s32.totalorder 1, %s10
    %p134 = scmp.lt.s32.totalorder %s10, 3
    %p135 = pnand %p133, %p134
    %p136 = pneg %p135
    // Predicated region
    $region9: #{forward.10} parent=5 // pred_check
      _
    $region10: #{forward.10} parent=5 // pred_check_branch
      %138 = sbr.rel (%p135) target = $region12
    $region11: #{forward.10} parent=5 // pred_region
      %s139 = ssub.s32 %s10, 1
      // Predicated region
      $region13: #{forward.10} parent=11 // pred_check
        %p140 = pneg %p57
      $region14: #{forward.10} parent=11 // pred_check_branch
        %142 = sbr.rel (%p140) target = $region16
      $region15: #{forward.10} parent=11 // pred_region
        _
      $region16: #{forward.10} parent=11 // pred_fallthru
        _
      // Predicated region
      $region17: #{forward.10} parent=11 // pred_check
        %p143 = pneg %p78
      $region18: #{forward.10} parent=11 // pred_check_branch
        %145 = sbr.rel (%p143) target = $region20
      $region19: #{forward.10} parent=11 // pred_region
        _
      $region20: #{forward.10} parent=11 // pred_fallthru
        _
      // Predicated region
      $region21: #{forward.10} parent=11 // pred_check
        %p146 = pneg %p99
      $region22: #{forward.10} parent=11 // pred_check_branch
        %148 = sbr.rel (%p146) target = $region24
      $region23: #{forward.10} parent=11 // pred_region
        _
      $region24: #{forward.10} parent=11 // pred_fallthru
        _
    $region12: #{forward.10} parent=5 // pred_fallthru
      _
    %p149 = scmp.lt.s32.totalorder %s10, 2
    // Predicated region
    $region25: #{forward.10} parent=5 // pred_check
      %p150 = pneg %p149
    $region26: #{forward.10} parent=5 // pred_check_branch
      %152 = sbr.rel (%p150) target = $region28
    $region27: #{forward.10} parent=5 // pred_region
      // Predicated region
      $region29: #{forward.10} parent=27 // pred_check
        %p153 = pneg %p30
      $region30: #{forward.10} parent=27 // pred_check_branch
        %155 = sbr.rel (%p153) target = $region32
      $region31: #{forward.10} parent=27 // pred_region
        %p156 = scmp.lt.s32.totalorder %s10, 1
        %s157 = scalar_select %p156, %s10, 1
        %s158 = smul.addr %s157, 20
        %s159 = smul.addr %s158, 4
        %s160 = scalar_lea.vmem %s0, %s159
      $region32: #{forward.10} parent=27 // pred_fallthru
        _
    $region28: #{forward.10} parent=5 // pred_fallthru
      _
    %p161 = scmp.le.s32.totalorder 1, %s10
    %p162 = scmp.lt.s32.totalorder %s10, 3
    %p163 = pnand %p161, %p162
    %p164 = pneg %p163
    // Predicated region
    $region33: #{forward.10} parent=5 // pred_check
      _
    $region34: #{forward.10} parent=5 // pred_check_branch
      %166 = sbr.rel (%p163) target = $region36
    $region35: #{forward.10} parent=5 // pred_region
      %s167 = ssub.s32 %s10, 1
      %p168 = scmp.lt.s32.totalorder %s15, 1
      %s169 = scalar_select %p168, %s15, 1
      %s170 = smul.addr %s169, 20
      %s171 = smul.addr %s170, 4
      %s172 = scalar_lea.vmem %s0, %s171
      %p173 = pneg %p36
      %p174 = pneg %p33
      %p175 = pneg %p57
      %p176 = pneg %p54
      %p177 = pneg %p78
      %p178 = pneg %p75
      %p179 = pneg %p99
      %p180 = pneg %p96
      %p181 = pneg %p125
      %p182 = pneg %p122
      %p183 = scmp.lt.s32.totalorder %s15, 1
      %s184 = scalar_select %p183, %s15, 1
      %s185 = smul.addr %s184, 8
      %s186 = smul.addr %s185, 4
      %s187 = scalar_lea.vmem %s4, %s186
      %p188 = scmp.lt.s32.totalorder %s15, 1
      %s189 = scalar_select %p188, %s15, 1
      %s190 = smul.addr %s189, 20
      %s191 = smul.addr %s190, 4
      %s192 = scalar_lea.vmem %s0, %s191
      %p193 = scmp.lt.s32.totalorder %s15, 1
      %s194 = scalar_select %p193, %s15, 1
      %s195 = smul.addr %s194, 8
      %s196 = smul.addr %s195, 4
      %s197 = scalar_lea.vmem %s4, %s196
      %v199 = vld [vmem:[%s192] sm:$0xf]
      %v200 = vld [vmem:[%s192 + $0x8] sm:$0xf]
      %v201 = vld [vmem:[%s192 + $0x10] sm:$0xf]
      %v202 = vld [vmem:[%s192 + $0x18] sm:$0xf]
      %v203 = vld [vmem:[%s192 + $0x20] sm:$0xf]
      %v204 = vld [vmem:[%s192 + $0x28] sm:$0xf]
      %v205 = vld [vmem:[%s192 + $0x30] sm:$0xf]
      %v206 = vld [vmem:[%s192 + $0x38] sm:$0xf]
      %v207 = vld [vmem:[%s1] sm:$0xf]
      %v208 = vld [vmem:[%s192 + $0x4] sm:$0x1]
      %v209 = vld [vmem:[%s192 + $0xc] sm:$0x1]
      %v210 = vld [vmem:[%s192 + $0x14] sm:$0x1]
      %v211 = vld [vmem:[%s192 + $0x1c] sm:$0x1]
      %v212 = vld [vmem:[%s192 + $0x24] sm:$0x1]
      %v213 = vld [vmem:[%s192 + $0x2c] sm:$0x1]
      %v214 = vld [vmem:[%s192 + $0x34] sm:$0x1]
      %v215 = vld [vmem:[%s192 + $0x3c] sm:$0x1]
      %vm216 = vsmask.f32 3328
      %vm217 = vsmask.f32 7440
      %vm218 = vmor %vm216, %vm217
      %v220 = vshrl.u32 %v199, 16
      %v222 = vrot.slane %v220, 4
      %v223 = vshll.u32 %v199, 16
      %v225 = vrot.slane %v223, 5
      %v226 = vor.u32 %v222, %v225
      %v227 = vrot.slane %v226, 4
      %v229 = vshll.u32 %v208, 16
      %v231 = vrot.slane %v229, 5
      %v232 = vsel %vm218, %v227, %v231
      %v234 = vshrl.u32 %v200, 16
      %v236 = vrot.slane %v234, 4
      %v237 = vshll.u32 %v200, 16
      %v239 = vrot.slane %v237, 5
      %v240 = vor.u32 %v236, %v239
      %v241 = vrot.slane %v240, 4
      %v243 = vshll.u32 %v209, 16
      %v245 = vrot.slane %v243, 5
      %v246 = vsel %vm218, %v241, %v245
      %v248 = vshrl.u32 %v201, 16
      %v250 = vrot.slane %v248, 4
      %v251 = vshll.u32 %v201, 16
      %v253 = vrot.slane %v251, 5
      %v254 = vor.u32 %v250, %v253
      %v255 = vrot.slane %v254, 4
      %v257 = vshll.u32 %v210, 16
      %v259 = vrot.slane %v257, 5
      %v260 = vsel %vm218, %v255, %v259
      %v262 = vshrl.u32 %v202, 16
      %v264 = vrot.slane %v262, 4
      %v265 = vshll.u32 %v202, 16
      %v267 = vrot.slane %v265, 5
      %v268 = vor.u32 %v264, %v267
      %v269 = vrot.slane %v268, 4
      %v271 = vshll.u32 %v211, 16
      %v273 = vrot.slane %v271, 5
      %v274 = vsel %vm218, %v269, %v273
      %v276 = vshrl.u32 %v203, 16
      %v278 = vrot.slane %v276, 4
      %v279 = vshll.u32 %v203, 16
      %v281 = vrot.slane %v279, 5
      %v282 = vor.u32 %v278, %v281
      %v283 = vrot.slane %v282, 4
      %v285 = vshll.u32 %v212, 16
      %v287 = vrot.slane %v285, 5
      %v288 = vsel %vm218, %v283, %v287
      %v290 = vshrl.u32 %v204, 16
      %v292 = vrot.slane %v290, 4
      %v293 = vshll.u32 %v204, 16
      %v295 = vrot.slane %v293, 5
      %v296 = vor.u32 %v292, %v295
      %v297 = vrot.slane %v296, 4
      %v299 = vshll.u32 %v213, 16
      %v301 = vrot.slane %v299, 5
      %v302 = vsel %vm218, %v297, %v301
      %v304 = vshrl.u32 %v205, 16
      %v306 = vrot.slane %v304, 4
      %v307 = vshll.u32 %v205, 16
      %v309 = vrot.slane %v307, 5
      %v310 = vor.u32 %v306, %v309
      %v311 = vrot.slane %v310, 4
      %v313 = vshll.u32 %v214, 16
      %v315 = vrot.slane %v313, 5
      %v316 = vsel %vm218, %v311, %v315
      %v318 = vshrl.u32 %v206, 16
      %v320 = vrot.slane %v318, 4
      %v321 = vshll.u32 %v206, 16
      %v323 = vrot.slane %v321, 5
      %v324 = vor.u32 %v320, %v323
      %v325 = vrot.slane %v324, 4
      %v327 = vshll.u32 %v215, 16
      %v329 = vrot.slane %v327, 5
      %v330 = vsel %vm218, %v325, %v329
      %s331 = scalar_lea.vmem %s1, 4
      %v332 = vld [vmem:[%s331] sm:$0xf]
      %v333 = vunpack.c.l.b16 %v232
      %v334 = vunpack.c.l.b16 %v246
      %v335 = vunpack.c.l.b16 %v260
      %v336 = vunpack.c.l.b16 %v274
      %v337 = vunpack.c.l.b16 %v288
      %v338 = vunpack.c.l.b16 %v302
      %v339 = vunpack.c.l.b16 %v316
      %v340 = vunpack.c.l.b16 %v330
      %v341 = vpack.c.b16 %v334, %v333
      %v342 = vpack.c.b16 %v336, %v335
      %v343 = vpack.c.b16 %v338, %v337
      %v344 = vpack.c.b16 %v340, %v339
      %vm345 = vcmask 64512
      %v347 = vsel %vm345, %v341, 0
      %v350 = vsel %vm345, %v342, 0
      %v353 = vsel %vm345, %v343, 0
      %v356 = vsel %vm345, %v344, 0
      %vm358 = vcmask 1043456
      %v360 = vsel %vm358, %v332, 0
      %362 = vmatpush.bf16.msra.mxu0 0
      %363 = vmatpush.bf16.msra.mxu0 0
      %364 = vmatpush.bf16.msra.mxu0 0
      %365 = vmatpush.bf16.msra.mxu0 0
      %366 = vmatpush.bf16.msra.mxu0 0
      %367 = vmatpush.bf16.msra.mxu0 0
      %368 = vmatpush.bf16.msra.mxu0 0
      %369 = vmatpush.bf16.msra.mxu0 %v360
      %370 = vmatmul.bf16.gmra.mxu0 %v347
      %v371 = vpop.f32.mrf.mxu0
      %v372 = vadd.f32 0.0, %v371
      %v373 = vpop.f32.mrf.mxu0
      %v374 = vadd.f32 0.0, %v373
      %375 = vmatmul.bf16.gmra.mxu0 %v350
      %v376 = vpop.f32.mrf.mxu0
      %v377 = vadd.f32 0.0, %v376
      %v378 = vpop.f32.mrf.mxu0
      %v379 = vadd.f32 0.0, %v378
      %380 = vmatmul.bf16.gmra.mxu0 %v353
      %v381 = vpop.f32.mrf.mxu0
      %v382 = vadd.f32 0.0, %v381
      %v383 = vpop.f32.mrf.mxu0
      %v384 = vadd.f32 0.0, %v383
      %385 = vmatmul.bf16.gmra.mxu0 %v356
      %v386 = vpop.f32.mrf.mxu0
      %v387 = vadd.f32 0.0, %v386
      %v388 = vpop.f32.mrf.mxu0
      %v389 = vadd.f32 0.0, %v388
      %390 = vdwg.mxu0
      %v399 = vunpack.c.l.b16 %v199
      %v400 = vunpack.c.l.b16 %v200
      %v401 = vunpack.c.l.b16 %v201
      %v402 = vunpack.c.l.b16 %v202
      %v403 = vunpack.c.l.b16 %v203
      %v404 = vunpack.c.l.b16 %v204
      %v405 = vunpack.c.l.b16 %v205
      %v406 = vunpack.c.l.b16 %v206
      %v407 = vpack.c.b16 %v400, %v399
      %v408 = vpack.c.b16 %v402, %v401
      %v409 = vpack.c.b16 %v404, %v403
      %v410 = vpack.c.b16 %v406, %v405
      %v412 = vsel %vm345, %v407, 0
      %v415 = vsel %vm345, %v408, 0
      %v418 = vsel %vm345, %v409, 0
      %v421 = vsel %vm345, %v410, 0
      %v424 = vsel %vm358, %v207, 0
      %426 = vmatpush.bf16.msra.mxu0 0
      %427 = vmatpush.bf16.msra.mxu0 0
      %428 = vmatpush.bf16.msra.mxu0 0
      %429 = vmatpush.bf16.msra.mxu0 0
      %430 = vmatpush.bf16.msra.mxu0 0
      %431 = vmatpush.bf16.msra.mxu0 0
      %432 = vmatpush.bf16.msra.mxu0 0
      %433 = vmatpush.bf16.msra.mxu0 %v424
      %434 = vmatmul.bf16.gmra.mxu0 %v412
      %v435 = vpop.f32.mrf.mxu0
      %v436 = vadd.f32 %v372, %v435
      %v437 = vpop.f32.mrf.mxu0
      %v438 = vadd.f32 %v374, %v437
      %439 = vmatmul.bf16.gmra.mxu0 %v415
      %v440 = vpop.f32.mrf.mxu0
      %v441 = vadd.f32 %v377, %v440
      %v442 = vpop.f32.mrf.mxu0
      %v443 = vadd.f32 %v379, %v442
      %444 = vmatmul.bf16.gmra.mxu0 %v418
      %v445 = vpop.f32.mrf.mxu0
      %v446 = vadd.f32 %v382, %v445
      %v447 = vpop.f32.mrf.mxu0
      %v448 = vadd.f32 %v384, %v447
      %449 = vmatmul.bf16.gmra.mxu0 %v421
      %v450 = vpop.f32.mrf.mxu0
      %v451 = vadd.f32 %v387, %v450
      %v452 = vpop.f32.mrf.mxu0
      %v453 = vadd.f32 %v389, %v452
      %454 = vdwg.mxu0
      %v455 = vld [vmem:[%s192] sm:$0xe]
      %v456 = vld [vmem:[%s192 + $0x8] sm:$0xe]
      %v457 = vld [vmem:[%s192 + $0x10] sm:$0xe]
      %v458 = vld [vmem:[%s192 + $0x18] sm:$0xe]
      %v459 = vld [vmem:[%s192 + $0x20] sm:$0xe]
      %v460 = vld [vmem:[%s192 + $0x28] sm:$0xe]
      %v461 = vld [vmem:[%s192 + $0x30] sm:$0xe]
      %v462 = vld [vmem:[%s192 + $0x38] sm:$0xe]
      %vm479 = vcmask 1042432
      %vm480 = vcmask 1046532
      %vm481 = vmor %vm479, %vm480
      %v482 = vrot.slane %v455, 5
      %v483 = vrot.slane %v482, 4
      %v484 = vrot.slane %v208, 5
      %v485 = vsel %vm481, %v483, %v484
      %v486 = vrot.slane %v456, 5
      %v487 = vrot.slane %v486, 4
      %v488 = vrot.slane %v209, 5
      %v489 = vsel %vm481, %v487, %v488
      %v490 = vrot.slane %v457, 5
      %v491 = vrot.slane %v490, 4
      %v492 = vrot.slane %v210, 5
      %v493 = vsel %vm481, %v491, %v492
      %v494 = vrot.slane %v458, 5
      %v495 = vrot.slane %v494, 4
      %v496 = vrot.slane %v211, 5
      %v497 = vsel %vm481, %v495, %v496
      %v498 = vrot.slane %v459, 5
      %v499 = vrot.slane %v498, 4
      %v500 = vrot.slane %v212, 5
      %v501 = vsel %vm481, %v499, %v500
      %v502 = vrot.slane %v460, 5
      %v503 = vrot.slane %v502, 4
      %v504 = vrot.slane %v213, 5
      %v505 = vsel %vm481, %v503, %v504
      %v506 = vrot.slane %v461, 5
      %v507 = vrot.slane %v506, 4
      %v508 = vrot.slane %v214, 5
      %v509 = vsel %vm481, %v507, %v508
      %v510 = vrot.slane %v462, 5
      %v511 = vrot.slane %v510, 4
      %v512 = vrot.slane %v215, 5
      %v513 = vsel %vm481, %v511, %v512
      %s514 = scalar_lea.vmem %s1, 8
      %v515 = vld [vmem:[%s514] sm:$0xf]
      %v516 = vunpack.c.l.b16 %v485
      %v517 = vunpack.c.l.b16 %v489
      %v518 = vunpack.c.l.b16 %v493
      %v519 = vunpack.c.l.b16 %v497
      %v520 = vunpack.c.l.b16 %v501
      %v521 = vunpack.c.l.b16 %v505
      %v522 = vunpack.c.l.b16 %v509
      %v523 = vunpack.c.l.b16 %v513
      %v524 = vpack.c.b16 %v517, %v516
      %v525 = vpack.c.b16 %v519, %v518
      %v526 = vpack.c.b16 %v521, %v520
      %v527 = vpack.c.b16 %v523, %v522
      %v529 = vsel %vm345, %v524, 0
      %v532 = vsel %vm345, %v525, 0
      %v535 = vsel %vm345, %v526, 0
      %v538 = vsel %vm345, %v527, 0
      %v541 = vsel %vm358, %v515, 0
      %543 = vmatpush.bf16.msra.mxu0 0
      %544 = vmatpush.bf16.msra.mxu0 0
      %545 = vmatpush.bf16.msra.mxu0 0
      %546 = vmatpush.bf16.msra.mxu0 0
      %547 = vmatpush.bf16.msra.mxu0 0
      %548 = vmatpush.bf16.msra.mxu0 0
      %549 = vmatpush.bf16.msra.mxu0 0
      %550 = vmatpush.bf16.msra.mxu0 %v541
      %551 = vmatmul.bf16.gmra.mxu0 %v529
      %v552 = vpop.f32.mrf.mxu0
      %v553 = vadd.f32 0.0, %v552
      %v554 = vpop.f32.mrf.mxu0
      %v555 = vadd.f32 0.0, %v554
      %556 = vmatmul.bf16.gmra.mxu0 %v532
      %v557 = vpop.f32.mrf.mxu0
      %v558 = vadd.f32 0.0, %v557
      %v559 = vpop.f32.mrf.mxu0
      %v560 = vadd.f32 0.0, %v559
      %561 = vmatmul.bf16.gmra.mxu0 %v535
      %v562 = vpop.f32.mrf.mxu0
      %v563 = vadd.f32 0.0, %v562
      %v564 = vpop.f32.mrf.mxu0
      %v565 = vadd.f32 0.0, %v564
      %566 = vmatmul.bf16.gmra.mxu0 %v538
      %v567 = vpop.f32.mrf.mxu0
      %v568 = vadd.f32 0.0, %v567
      %v569 = vpop.f32.mrf.mxu0
      %v570 = vadd.f32 0.0, %v569
      %571 = vdwg.mxu0
      %v572 = vadd.f32 %v436, %v553
      %v573 = vadd.f32 %v438, %v555
      %v574 = vadd.f32 %v441, %v558
      %v575 = vadd.f32 %v443, %v560
      %v576 = vadd.f32 %v446, %v563
      %v577 = vadd.f32 %v448, %v565
      %v578 = vadd.f32 %v451, %v568
      %v579 = vadd.f32 %v453, %v570
      %s580 = scalar_lea.vmem %s192, 8
      %v581 = vld [vmem:[%s580] sm:$0xf]
      %v582 = vld [vmem:[%s580 + $0x8] sm:$0xf]
      %v583 = vld [vmem:[%s580 + $0x10] sm:$0xf]
      %v584 = vld [vmem:[%s580 + $0x18] sm:$0xf]
      %v585 = vld [vmem:[%s580 + $0x20] sm:$0xf]
      %v586 = vld [vmem:[%s580 + $0x28] sm:$0xf]
      %v587 = vld [vmem:[%s580 + $0x30] sm:$0xf]
      %v588 = vld [vmem:[%s580 + $0x38] sm:$0xf]
      %s589 = scalar_lea.vmem %s1, 12
      %v590 = vld [vmem:[%s589] sm:$0xf]
      %v599 = vunpack.c.l.b16 %v581
      %v600 = vunpack.c.l.b16 %v582
      %v601 = vunpack.c.l.b16 %v583
      %v602 = vunpack.c.l.b16 %v584
      %v603 = vunpack.c.l.b16 %v585
      %v604 = vunpack.c.l.b16 %v586
      %v605 = vunpack.c.l.b16 %v587
      %v606 = vunpack.c.l.b16 %v588
      %v607 = vpack.c.b16 %v600, %v599
      %v608 = vpack.c.b16 %v602, %v601
      %v609 = vpack.c.b16 %v604, %v603
      %v610 = vpack.c.b16 %v606, %v605
      %v612 = vsel %vm345, %v607, 0
      %v615 = vsel %vm345, %v608, 0
      %v618 = vsel %vm345, %v609, 0
      %v621 = vsel %vm345, %v610, 0
      %v624 = vsel %vm358, %v590, 0
      %626 = vmatpush.bf16.msra.mxu0 0
      %627 = vmatpush.bf16.msra.mxu0 0
      %628 = vmatpush.bf16.msra.mxu0 0
      %629 = vmatpush.bf16.msra.mxu0 0
      %630 = vmatpush.bf16.msra.mxu0 0
      %631 = vmatpush.bf16.msra.mxu0 0
      %632 = vmatpush.bf16.msra.mxu0 0
      %633 = vmatpush.bf16.msra.mxu0 %v624
      %634 = vmatmul.bf16.gmra.mxu0 %v612
      %v635 = vpop.f32.mrf.mxu0
      %v636 = vadd.f32 0.0, %v635
      %v637 = vpop.f32.mrf.mxu0
      %v638 = vadd.f32 0.0, %v637
      %639 = vmatmul.bf16.gmra.mxu0 %v615
      %v640 = vpop.f32.mrf.mxu0
      %v641 = vadd.f32 0.0, %v640
      %v642 = vpop.f32.mrf.mxu0
      %v643 = vadd.f32 0.0, %v642
      %644 = vmatmul.bf16.gmra.mxu0 %v618
      %v645 = vpop.f32.mrf.mxu0
      %v646 = vadd.f32 0.0, %v645
      %v647 = vpop.f32.mrf.mxu0
      %v648 = vadd.f32 0.0, %v647
      %649 = vmatmul.bf16.gmra.mxu0 %v621
      %v650 = vpop.f32.mrf.mxu0
      %v651 = vadd.f32 0.0, %v650
      %v652 = vpop.f32.mrf.mxu0
      %v653 = vadd.f32 0.0, %v652
      %654 = vdwg.mxu0
      %v655 = vadd.f32 %v572, %v636
      %v656 = vadd.f32 %v573, %v638
      %v657 = vadd.f32 %v574, %v641
      %v658 = vadd.f32 %v575, %v643
      %v659 = vadd.f32 %v576, %v646
      %v660 = vadd.f32 %v577, %v648
      %v661 = vadd.f32 %v578, %v651
      %v662 = vadd.f32 %v579, %v653
      %v663 = vld [vmem:[%s580] sm:$0xf]
      %v664 = vld [vmem:[%s580 + $0x4] sm:$0x1]
      %v665 = vld [vmem:[%s580 + $0x8] sm:$0xf]
      %v666 = vld [vmem:[%s580 + $0xc] sm:$0x1]
      %v667 = vld [vmem:[%s580 + $0x10] sm:$0xf]
      %v668 = vld [vmem:[%s580 + $0x14] sm:$0x1]
      %v669 = vld [vmem:[%s580 + $0x18] sm:$0xf]
      %v670 = vld [vmem:[%s580 + $0x1c] sm:$0x1]
      %v671 = vld [vmem:[%s580 + $0x20] sm:$0xf]
      %v672 = vld [vmem:[%s580 + $0x24] sm:$0x1]
      %v673 = vld [vmem:[%s580 + $0x28] sm:$0xf]
      %v674 = vld [vmem:[%s580 + $0x2c] sm:$0x1]
      %v675 = vld [vmem:[%s580 + $0x30] sm:$0xf]
      %v676 = vld [vmem:[%s580 + $0x34] sm:$0x1]
      %v677 = vld [vmem:[%s580 + $0x38] sm:$0xf]
      %v678 = vld [vmem:[%s580 + $0x3c] sm:$0x1]
      %v680 = vshrl.u32 %v663, 16
      %v682 = vrot.slane %v680, 4
      %v683 = vshll.u32 %v663, 16
      %v685 = vrot.slane %v683, 5
      %v686 = vor.u32 %v682, %v685
      %v687 = vrot.slane %v686, 4
      %v689 = vshll.u32 %v664, 16
      %v691 = vrot.slane %v689, 5
      %v692 = vsel %vm218, %v687, %v691
      %v694 = vshrl.u32 %v665, 16
      %v696 = vrot.slane %v694, 4
      %v697 = vshll.u32 %v665, 16
      %v699 = vrot.slane %v697, 5
      %v700 = vor.u32 %v696, %v699
      %v701 = vrot.slane %v700, 4
      %v703 = vshll.u32 %v666, 16
      %v705 = vrot.slane %v703, 5
      %v706 = vsel %vm218, %v701, %v705
      %v708 = vshrl.u32 %v667, 16
      %v710 = vrot.slane %v708, 4
      %v711 = vshll.u32 %v667, 16
      %v713 = vrot.slane %v711, 5
      %v714 = vor.u32 %v710, %v713
      %v715 = vrot.slane %v714, 4
      %v717 = vshll.u32 %v668, 16
      %v719 = vrot.slane %v717, 5
      %v720 = vsel %vm218, %v715, %v719
      %v722 = vshrl.u32 %v669, 16
      %v724 = vrot.slane %v722, 4
      %v725 = vshll.u32 %v669, 16
      %v727 = vrot.slane %v725, 5
      %v728 = vor.u32 %v724, %v727
      %v729 = vrot.slane %v728, 4
      %v731 = vshll.u32 %v670, 16
      %v733 = vrot.slane %v731, 5
      %v734 = vsel %vm218, %v729, %v733
      %v736 = vshrl.u32 %v671, 16
      %v738 = vrot.slane %v736, 4
      %v739 = vshll.u32 %v671, 16
      %v741 = vrot.slane %v739, 5
      %v742 = vor.u32 %v738, %v741
      %v743 = vrot.slane %v742, 4
      %v745 = vshll.u32 %v672, 16
      %v747 = vrot.slane %v745, 5
      %v748 = vsel %vm218, %v743, %v747
      %v750 = vshrl.u32 %v673, 16
      %v752 = vrot.slane %v750, 4
      %v753 = vshll.u32 %v673, 16
      %v755 = vrot.slane %v753, 5
      %v756 = vor.u32 %v752, %v755
      %v757 = vrot.slane %v756, 4
      %v759 = vshll.u32 %v674, 16
      %v761 = vrot.slane %v759, 5
      %v762 = vsel %vm218, %v757, %v761
      %v764 = vshrl.u32 %v675, 16
      %v766 = vrot.slane %v764, 4
      %v767 = vshll.u32 %v675, 16
      %v769 = vrot.slane %v767, 5
      %v770 = vor.u32 %v766, %v769
      %v771 = vrot.slane %v770, 4
      %v773 = vshll.u32 %v676, 16
      %v775 = vrot.slane %v773, 5
      %v776 = vsel %vm218, %v771, %v775
      %v778 = vshrl.u32 %v677, 16
      %v780 = vrot.slane %v778, 4
      %v781 = vshll.u32 %v677, 16
      %v783 = vrot.slane %v781, 5
      %v784 = vor.u32 %v780, %v783
      %v785 = vrot.slane %v784, 4
      %v787 = vshll.u32 %v678, 16
      %v789 = vrot.slane %v787, 5
      %v790 = vsel %vm218, %v785, %v789
      %s791 = scalar_lea.vmem %s1, 16
      %v792 = vld [vmem:[%s791] sm:$0xf]
      %v793 = vunpack.c.l.b16 %v692
      %v794 = vunpack.c.l.b16 %v706
      %v795 = vunpack.c.l.b16 %v720
      %v796 = vunpack.c.l.b16 %v734
      %v797 = vunpack.c.l.b16 %v748
      %v798 = vunpack.c.l.b16 %v762
      %v799 = vunpack.c.l.b16 %v776
      %v800 = vunpack.c.l.b16 %v790
      %v801 = vpack.c.b16 %v794, %v793
      %v802 = vpack.c.b16 %v796, %v795
      %v803 = vpack.c.b16 %v798, %v797
      %v804 = vpack.c.b16 %v800, %v799
      %v806 = vsel %vm345, %v801, 0
      %v809 = vsel %vm345, %v802, 0
      %v812 = vsel %vm345, %v803, 0
      %v815 = vsel %vm345, %v804, 0
      %v818 = vsel %vm358, %v792, 0
      %820 = vmatpush.bf16.msra.mxu0 0
      %821 = vmatpush.bf16.msra.mxu0 0
      %822 = vmatpush.bf16.msra.mxu0 0
      %823 = vmatpush.bf16.msra.mxu0 0
      %824 = vmatpush.bf16.msra.mxu0 0
      %825 = vmatpush.bf16.msra.mxu0 0
      %826 = vmatpush.bf16.msra.mxu0 0
      %827 = vmatpush.bf16.msra.mxu0 %v818
      %828 = vmatmul.bf16.gmra.mxu0 %v806
      %v829 = vpop.f32.mrf.mxu0
      %v830 = vadd.f32 0.0, %v829
      %v831 = vpop.f32.mrf.mxu0
      %v832 = vadd.f32 0.0, %v831
      %833 = vmatmul.bf16.gmra.mxu0 %v809
      %v834 = vpop.f32.mrf.mxu0
      %v835 = vadd.f32 0.0, %v834
      %v836 = vpop.f32.mrf.mxu0
      %v837 = vadd.f32 0.0, %v836
      %838 = vmatmul.bf16.gmra.mxu0 %v812
      %v839 = vpop.f32.mrf.mxu0
      %v840 = vadd.f32 0.0, %v839
      %v841 = vpop.f32.mrf.mxu0
      %v842 = vadd.f32 0.0, %v841
      %843 = vmatmul.bf16.gmra.mxu0 %v815
      %v844 = vpop.f32.mrf.mxu0
      %v845 = vadd.f32 0.0, %v844
      %v846 = vpop.f32.mrf.mxu0
      %v847 = vadd.f32 0.0, %v846
      %848 = vdwg.mxu0
      %v849 = vadd.f32 %v655, %v830
      %v850 = vadd.f32 %v656, %v832
      %v851 = vadd.f32 %v657, %v835
      %v852 = vadd.f32 %v658, %v837
      %v853 = vadd.f32 %v659, %v840
      %v854 = vadd.f32 %v660, %v842
      %v855 = vadd.f32 %v661, %v845
      %v856 = vadd.f32 %v662, %v847
      %v857 = vld [vmem:[%s580] sm:$0xe]
      %v858 = vld [vmem:[%s580 + $0x8] sm:$0xe]
      %v859 = vld [vmem:[%s580 + $0x10] sm:$0xe]
      %v860 = vld [vmem:[%s580 + $0x18] sm:$0xe]
      %v861 = vld [vmem:[%s580 + $0x20] sm:$0xe]
      %v862 = vld [vmem:[%s580 + $0x28] sm:$0xe]
      %v863 = vld [vmem:[%s580 + $0x30] sm:$0xe]
      %v864 = vld [vmem:[%s580 + $0x38] sm:$0xe]
      %v881 = vrot.slane %v857, 5
      %v882 = vrot.slane %v881, 4
      %v883 = vrot.slane %v664, 5
      %v884 = vsel %vm481, %v882, %v883
      %v885 = vrot.slane %v858, 5
      %v886 = vrot.slane %v885, 4
      %v887 = vrot.slane %v666, 5
      %v888 = vsel %vm481, %v886, %v887
      %v889 = vrot.slane %v859, 5
      %v890 = vrot.slane %v889, 4
      %v891 = vrot.slane %v668, 5
      %v892 = vsel %vm481, %v890, %v891
      %v893 = vrot.slane %v860, 5
      %v894 = vrot.slane %v893, 4
      %v895 = vrot.slane %v670, 5
      %v896 = vsel %vm481, %v894, %v895
      %v897 = vrot.slane %v861, 5
      %v898 = vrot.slane %v897, 4
      %v899 = vrot.slane %v672, 5
      %v900 = vsel %vm481, %v898, %v899
      %v901 = vrot.slane %v862, 5
      %v902 = vrot.slane %v901, 4
      %v903 = vrot.slane %v674, 5
      %v904 = vsel %vm481, %v902, %v903
      %v905 = vrot.slane %v863, 5
      %v906 = vrot.slane %v905, 4
      %v907 = vrot.slane %v676, 5
      %v908 = vsel %vm481, %v906, %v907
      %v909 = vrot.slane %v864, 5
      %v910 = vrot.slane %v909, 4
      %v911 = vrot.slane %v678, 5
      %v912 = vsel %vm481, %v910, %v911
      %s913 = scalar_lea.vmem %s1, 20
      %v914 = vld [vmem:[%s913] sm:$0xf]
      %v915 = vunpack.c.l.b16 %v884
      %v916 = vunpack.c.l.b16 %v888
      %v917 = vunpack.c.l.b16 %v892
      %v918 = vunpack.c.l.b16 %v896
      %v919 = vunpack.c.l.b16 %v900
      %v920 = vunpack.c.l.b16 %v904
      %v921 = vunpack.c.l.b16 %v908
      %v922 = vunpack.c.l.b16 %v912
      %v923 = vpack.c.b16 %v916, %v915
      %v924 = vpack.c.b16 %v918, %v917
      %v925 = vpack.c.b16 %v920, %v919
      %v926 = vpack.c.b16 %v922, %v921
      %v928 = vsel %vm345, %v923, 0
      %v931 = vsel %vm345, %v924, 0
      %v934 = vsel %vm345, %v925, 0
      %v937 = vsel %vm345, %v926, 0
      %v940 = vsel %vm358, %v914, 0
      %942 = vmatpush.bf16.msra.mxu0 0
      %943 = vmatpush.bf16.msra.mxu0 0
      %944 = vmatpush.bf16.msra.mxu0 0
      %945 = vmatpush.bf16.msra.mxu0 0
      %946 = vmatpush.bf16.msra.mxu0 0
      %947 = vmatpush.bf16.msra.mxu0 0
      %948 = vmatpush.bf16.msra.mxu0 0
      %949 = vmatpush.bf16.msra.mxu0 %v940
      %950 = vmatmul.bf16.gmra.mxu0 %v928
      %v951 = vpop.f32.mrf.mxu0
      %v952 = vadd.f32 0.0, %v951
      %v953 = vpop.f32.mrf.mxu0
      %v954 = vadd.f32 0.0, %v953
      %955 = vmatmul.bf16.gmra.mxu0 %v931
      %v956 = vpop.f32.mrf.mxu0
      %v957 = vadd.f32 0.0, %v956
      %v958 = vpop.f32.mrf.mxu0
      %v959 = vadd.f32 0.0, %v958
      %960 = vmatmul.bf16.gmra.mxu0 %v934
      %v961 = vpop.f32.mrf.mxu0
      %v962 = vadd.f32 0.0, %v961
      %v963 = vpop.f32.mrf.mxu0
      %v964 = vadd.f32 0.0, %v963
      %965 = vmatmul.bf16.gmra.mxu0 %v937
      %v966 = vpop.f32.mrf.mxu0
      %v967 = vadd.f32 0.0, %v966
      %v968 = vpop.f32.mrf.mxu0
      %v969 = vadd.f32 0.0, %v968
      %970 = vdwg.mxu0
      %v971 = vadd.f32 %v849, %v952
      %v972 = vadd.f32 %v850, %v954
      %v973 = vadd.f32 %v851, %v957
      %v974 = vadd.f32 %v852, %v959
      %v975 = vadd.f32 %v853, %v962
      %v976 = vadd.f32 %v854, %v964
      %v977 = vadd.f32 %v855, %v967
      %v978 = vadd.f32 %v856, %v969
      %s979 = scalar_lea.vmem %s192, 16
      %v980 = vld [vmem:[%s979] sm:$0xf]
      %v981 = vld [vmem:[%s979 + $0x8] sm:$0xf]
      %v982 = vld [vmem:[%s979 + $0x10] sm:$0xf]
      %v983 = vld [vmem:[%s979 + $0x18] sm:$0xf]
      %v984 = vld [vmem:[%s979 + $0x20] sm:$0xf]
      %v985 = vld [vmem:[%s979 + $0x28] sm:$0xf]
      %v986 = vld [vmem:[%s979 + $0x30] sm:$0xf]
      %v987 = vld [vmem:[%s979 + $0x38] sm:$0xf]
      %s988 = scalar_lea.vmem %s1, 24
      %v989 = vld [vmem:[%s988] sm:$0xf]
      %v998 = vunpack.c.l.b16 %v980
      %v999 = vunpack.c.l.b16 %v981
      %v1000 = vunpack.c.l.b16 %v982
      %v1001 = vunpack.c.l.b16 %v983
      %v1002 = vunpack.c.l.b16 %v984
      %v1003 = vunpack.c.l.b16 %v985
      %v1004 = vunpack.c.l.b16 %v986
      %v1005 = vunpack.c.l.b16 %v987
      %v1006 = vpack.c.b16 %v999, %v998
      %v1007 = vpack.c.b16 %v1001, %v1000
      %v1008 = vpack.c.b16 %v1003, %v1002
      %v1009 = vpack.c.b16 %v1005, %v1004
      %v1011 = vsel %vm345, %v1006, 0
      %v1014 = vsel %vm345, %v1007, 0
      %v1017 = vsel %vm345, %v1008, 0
      %v1020 = vsel %vm345, %v1009, 0
      %v1023 = vsel %vm358, %v989, 0
      %1025 = vmatpush.bf16.msra.mxu0 0
      %1026 = vmatpush.bf16.msra.mxu0 0
      %1027 = vmatpush.bf16.msra.mxu0 0
      %1028 = vmatpush.bf16.msra.mxu0 0
      %1029 = vmatpush.bf16.msra.mxu0 0
      %1030 = vmatpush.bf16.msra.mxu0 0
      %1031 = vmatpush.bf16.msra.mxu0 0
      %1032 = vmatpush.bf16.msra.mxu0 %v1023
      %1033 = vmatmul.bf16.gmra.mxu0 %v1011
      %v1034 = vpop.f32.mrf.mxu0
      %v1035 = vadd.f32 0.0, %v1034
      %v1036 = vpop.f32.mrf.mxu0
      %v1037 = vadd.f32 0.0, %v1036
      %1038 = vmatmul.bf16.gmra.mxu0 %v1014
      %v1039 = vpop.f32.mrf.mxu0
      %v1040 = vadd.f32 0.0, %v1039
      %v1041 = vpop.f32.mrf.mxu0
      %v1042 = vadd.f32 0.0, %v1041
      %1043 = vmatmul.bf16.gmra.mxu0 %v1017
      %v1044 = vpop.f32.mrf.mxu0
      %v1045 = vadd.f32 0.0, %v1044
      %v1046 = vpop.f32.mrf.mxu0
      %v1047 = vadd.f32 0.0, %v1046
      %1048 = vmatmul.bf16.gmra.mxu0 %v1020
      %v1049 = vpop.f32.mrf.mxu0
      %v1050 = vadd.f32 0.0, %v1049
      %v1051 = vpop.f32.mrf.mxu0
      %v1052 = vadd.f32 0.0, %v1051
      %1053 = vdwg.mxu0
      %v1054 = vadd.f32 %v971, %v1035
      %v1055 = vadd.f32 %v972, %v1037
      %v1056 = vadd.f32 %v973, %v1040
      %v1057 = vadd.f32 %v974, %v1042
      %v1058 = vadd.f32 %v975, %v1045
      %v1059 = vadd.f32 %v976, %v1047
      %v1060 = vadd.f32 %v977, %v1050
      %v1061 = vadd.f32 %v978, %v1052
      %v1062 = vld [vmem:[%s979] sm:$0xf]
      %v1063 = vld [vmem:[%s979 + $0x4] sm:$0x1]
      %v1064 = vld [vmem:[%s979 + $0x8] sm:$0xf]
      %v1065 = vld [vmem:[%s979 + $0xc] sm:$0x1]
      %v1066 = vld [vmem:[%s979 + $0x10] sm:$0xf]
      %v1067 = vld [vmem:[%s979 + $0x14] sm:$0x1]
      %v1068 = vld [vmem:[%s979 + $0x18] sm:$0xf]
      %v1069 = vld [vmem:[%s979 + $0x1c] sm:$0x1]
      %v1070 = vld [vmem:[%s979 + $0x20] sm:$0xf]
      %v1071 = vld [vmem:[%s979 + $0x24] sm:$0x1]
      %v1072 = vld [vmem:[%s979 + $0x28] sm:$0xf]
      %v1073 = vld [vmem:[%s979 + $0x2c] sm:$0x1]
      %v1074 = vld [vmem:[%s979 + $0x30] sm:$0xf]
      %v1075 = vld [vmem:[%s979 + $0x34] sm:$0x1]
      %v1076 = vld [vmem:[%s979 + $0x38] sm:$0xf]
      %v1077 = vld [vmem:[%s979 + $0x3c] sm:$0x1]
      %v1079 = vshrl.u32 %v1062, 16
      %v1081 = vrot.slane %v1079, 4
      %v1082 = vshll.u32 %v1062, 16
      %v1084 = vrot.slane %v1082, 5
      %v1085 = vor.u32 %v1081, %v1084
      %v1086 = vrot.slane %v1085, 4
      %v1088 = vshll.u32 %v1063, 16
      %v1090 = vrot.slane %v1088, 5
      %v1091 = vsel %vm218, %v1086, %v1090
      %v1093 = vshrl.u32 %v1064, 16
      %v1095 = vrot.slane %v1093, 4
      %v1096 = vshll.u32 %v1064, 16
      %v1098 = vrot.slane %v1096, 5
      %v1099 = vor.u32 %v1095, %v1098
      %v1100 = vrot.slane %v1099, 4
      %v1102 = vshll.u32 %v1065, 16
      %v1104 = vrot.slane %v1102, 5
      %v1105 = vsel %vm218, %v1100, %v1104
      %v1107 = vshrl.u32 %v1066, 16
      %v1109 = vrot.slane %v1107, 4
      %v1110 = vshll.u32 %v1066, 16
      %v1112 = vrot.slane %v1110, 5
      %v1113 = vor.u32 %v1109, %v1112
      %v1114 = vrot.slane %v1113, 4
      %v1116 = vshll.u32 %v1067, 16
      %v1118 = vrot.slane %v1116, 5
      %v1119 = vsel %vm218, %v1114, %v1118
      %v1121 = vshrl.u32 %v1068, 16
      %v1123 = vrot.slane %v1121, 4
      %v1124 = vshll.u32 %v1068, 16
      %v1126 = vrot.slane %v1124, 5
      %v1127 = vor.u32 %v1123, %v1126
      %v1128 = vrot.slane %v1127, 4
      %v1130 = vshll.u32 %v1069, 16
      %v1132 = vrot.slane %v1130, 5
      %v1133 = vsel %vm218, %v1128, %v1132
      %v1135 = vshrl.u32 %v1070, 16
      %v1137 = vrot.slane %v1135, 4
      %v1138 = vshll.u32 %v1070, 16
      %v1140 = vrot.slane %v1138, 5
      %v1141 = vor.u32 %v1137, %v1140
      %v1142 = vrot.slane %v1141, 4
      %v1144 = vshll.u32 %v1071, 16
      %v1146 = vrot.slane %v1144, 5
      %v1147 = vsel %vm218, %v1142, %v1146
      %v1149 = vshrl.u32 %v1072, 16
      %v1151 = vrot.slane %v1149, 4
      %v1152 = vshll.u32 %v1072, 16
      %v1154 = vrot.slane %v1152, 5
      %v1155 = vor.u32 %v1151, %v1154
      %v1156 = vrot.slane %v1155, 4
      %v1158 = vshll.u32 %v1073, 16
      %v1160 = vrot.slane %v1158, 5
      %v1161 = vsel %vm218, %v1156, %v1160
      %v1163 = vshrl.u32 %v1074, 16
      %v1165 = vrot.slane %v1163, 4
      %v1166 = vshll.u32 %v1074, 16
      %v1168 = vrot.slane %v1166, 5
      %v1169 = vor.u32 %v1165, %v1168
      %v1170 = vrot.slane %v1169, 4
      %v1172 = vshll.u32 %v1075, 16
      %v1174 = vrot.slane %v1172, 5
      %v1175 = vsel %vm218, %v1170, %v1174
      %v1177 = vshrl.u32 %v1076, 16
      %v1179 = vrot.slane %v1177, 4
      %v1180 = vshll.u32 %v1076, 16
      %v1182 = vrot.slane %v1180, 5
      %v1183 = vor.u32 %v1179, %v1182
      %v1184 = vrot.slane %v1183, 4
      %v1186 = vshll.u32 %v1077, 16
      %v1188 = vrot.slane %v1186, 5
      %v1189 = vsel %vm218, %v1184, %v1188
      %s1190 = scalar_lea.vmem %s1, 28
      %v1191 = vld [vmem:[%s1190] sm:$0xf]
      %v1192 = vunpack.c.l.b16 %v1091
      %v1193 = vunpack.c.l.b16 %v1105
      %v1194 = vunpack.c.l.b16 %v1119
      %v1195 = vunpack.c.l.b16 %v1133
      %v1196 = vunpack.c.l.b16 %v1147
      %v1197 = vunpack.c.l.b16 %v1161
      %v1198 = vunpack.c.l.b16 %v1175
      %v1199 = vunpack.c.l.b16 %v1189
      %v1200 = vpack.c.b16 %v1193, %v1192
      %v1201 = vpack.c.b16 %v1195, %v1194
      %v1202 = vpack.c.b16 %v1197, %v1196
      %v1203 = vpack.c.b16 %v1199, %v1198
      %v1205 = vsel %vm345, %v1200, 0
      %v1208 = vsel %vm345, %v1201, 0
      %v1211 = vsel %vm345, %v1202, 0
      %v1214 = vsel %vm345, %v1203, 0
      %v1217 = vsel %vm358, %v1191, 0
      %1219 = vmatpush.bf16.msra.mxu0 0
      %1220 = vmatpush.bf16.msra.mxu0 0
      %1221 = vmatpush.bf16.msra.mxu0 0
      %1222 = vmatpush.bf16.msra.mxu0 0
      %1223 = vmatpush.bf16.msra.mxu0 0
      %1224 = vmatpush.bf16.msra.mxu0 0
      %1225 = vmatpush.bf16.msra.mxu0 0
      %1226 = vmatpush.bf16.msra.mxu0 %v1217
      %1227 = vmatmul.bf16.gmra.mxu0 %v1205
      %v1228 = vpop.f32.mrf.mxu0
      %v1229 = vadd.f32 0.0, %v1228
      %v1230 = vpop.f32.mrf.mxu0
      %v1231 = vadd.f32 0.0, %v1230
      %1232 = vmatmul.bf16.gmra.mxu0 %v1208
      %v1233 = vpop.f32.mrf.mxu0
      %v1234 = vadd.f32 0.0, %v1233
      %v1235 = vpop.f32.mrf.mxu0
      %v1236 = vadd.f32 0.0, %v1235
      %1237 = vmatmul.bf16.gmra.mxu0 %v1211
      %v1238 = vpop.f32.mrf.mxu0
      %v1239 = vadd.f32 0.0, %v1238
      %v1240 = vpop.f32.mrf.mxu0
      %v1241 = vadd.f32 0.0, %v1240
      %1242 = vmatmul.bf16.gmra.mxu0 %v1214
      %v1243 = vpop.f32.mrf.mxu0
      %v1244 = vadd.f32 0.0, %v1243
      %v1245 = vpop.f32.mrf.mxu0
      %v1246 = vadd.f32 0.0, %v1245
      %1247 = vdwg.mxu0
      %v1248 = vadd.f32 %v1054, %v1229
      %v1249 = vadd.f32 %v1055, %v1231
      %v1250 = vadd.f32 %v1056, %v1234
      %v1251 = vadd.f32 %v1057, %v1236
      %v1252 = vadd.f32 %v1058, %v1239
      %v1253 = vadd.f32 %v1059, %v1241
      %v1254 = vadd.f32 %v1060, %v1244
      %v1255 = vadd.f32 %v1061, %v1246
      %v1256 = vld [vmem:[%s979] sm:$0xe]
      %v1257 = vld [vmem:[%s979 + $0x8] sm:$0xe]
      %v1258 = vld [vmem:[%s979 + $0x10] sm:$0xe]
      %v1259 = vld [vmem:[%s979 + $0x18] sm:$0xe]
      %v1260 = vld [vmem:[%s979 + $0x20] sm:$0xe]
      %v1261 = vld [vmem:[%s979 + $0x28] sm:$0xe]
      %v1262 = vld [vmem:[%s979 + $0x30] sm:$0xe]
      %v1263 = vld [vmem:[%s979 + $0x38] sm:$0xe]
      %v1280 = vrot.slane %v1256, 5
      %v1281 = vrot.slane %v1280, 4
      %v1282 = vrot.slane %v1063, 5
      %v1283 = vsel %vm481, %v1281, %v1282
      %v1284 = vrot.slane %v1257, 5
      %v1285 = vrot.slane %v1284, 4
      %v1286 = vrot.slane %v1065, 5
      %v1287 = vsel %vm481, %v1285, %v1286
      %v1288 = vrot.slane %v1258, 5
      %v1289 = vrot.slane %v1288, 4
      %v1290 = vrot.slane %v1067, 5
      %v1291 = vsel %vm481, %v1289, %v1290
      %v1292 = vrot.slane %v1259, 5
      %v1293 = vrot.slane %v1292, 4
      %v1294 = vrot.slane %v1069, 5
      %v1295 = vsel %vm481, %v1293, %v1294
      %v1296 = vrot.slane %v1260, 5
      %v1297 = vrot.slane %v1296, 4
      %v1298 = vrot.slane %v1071, 5
      %v1299 = vsel %vm481, %v1297, %v1298
      %v1300 = vrot.slane %v1261, 5
      %v1301 = vrot.slane %v1300, 4
      %v1302 = vrot.slane %v1073, 5
      %v1303 = vsel %vm481, %v1301, %v1302
      %v1304 = vrot.slane %v1262, 5
      %v1305 = vrot.slane %v1304, 4
      %v1306 = vrot.slane %v1075, 5
      %v1307 = vsel %vm481, %v1305, %v1306
      %v1308 = vrot.slane %v1263, 5
      %v1309 = vrot.slane %v1308, 4
      %v1310 = vrot.slane %v1077, 5
      %v1311 = vsel %vm481, %v1309, %v1310
      %s1312 = scalar_lea.vmem %s1, 32
      %v1313 = vld [vmem:[%s1312] sm:$0xf]
      %v1314 = vunpack.c.l.b16 %v1283
      %v1315 = vunpack.c.l.b16 %v1287
      %v1316 = vunpack.c.l.b16 %v1291
      %v1317 = vunpack.c.l.b16 %v1295
      %v1318 = vunpack.c.l.b16 %v1299
      %v1319 = vunpack.c.l.b16 %v1303
      %v1320 = vunpack.c.l.b16 %v1307
      %v1321 = vunpack.c.l.b16 %v1311
      %v1322 = vpack.c.b16 %v1315, %v1314
      %v1323 = vpack.c.b16 %v1317, %v1316
      %v1324 = vpack.c.b16 %v1319, %v1318
      %v1325 = vpack.c.b16 %v1321, %v1320
      %v1327 = vsel %vm345, %v1322, 0
      %v1330 = vsel %vm345, %v1323, 0
      %v1333 = vsel %vm345, %v1324, 0
      %v1336 = vsel %vm345, %v1325, 0
      %v1339 = vsel %vm358, %v1313, 0
      %1341 = vmatpush.bf16.msra.mxu0 0
      %1342 = vmatpush.bf16.msra.mxu0 0
      %1343 = vmatpush.bf16.msra.mxu0 0
      %1344 = vmatpush.bf16.msra.mxu0 0
      %1345 = vmatpush.bf16.msra.mxu0 0
      %1346 = vmatpush.bf16.msra.mxu0 0
      %1347 = vmatpush.bf16.msra.mxu0 0
      %1348 = vmatpush.bf16.msra.mxu0 %v1339
      %1349 = vmatmul.bf16.gmra.mxu0 %v1327
      %v1350 = vpop.f32.mrf.mxu0
      %v1351 = vadd.f32 0.0, %v1350
      %v1352 = vpop.f32.mrf.mxu0
      %v1353 = vadd.f32 0.0, %v1352
      %1354 = vmatmul.bf16.gmra.mxu0 %v1330
      %v1355 = vpop.f32.mrf.mxu0
      %v1356 = vadd.f32 0.0, %v1355
      %v1357 = vpop.f32.mrf.mxu0
      %v1358 = vadd.f32 0.0, %v1357
      %1359 = vmatmul.bf16.gmra.mxu0 %v1333
      %v1360 = vpop.f32.mrf.mxu0
      %v1361 = vadd.f32 0.0, %v1360
      %v1362 = vpop.f32.mrf.mxu0
      %v1363 = vadd.f32 0.0, %v1362
      %1364 = vmatmul.bf16.gmra.mxu0 %v1336
      %v1365 = vpop.f32.mrf.mxu0
      %v1366 = vadd.f32 0.0, %v1365
      %v1367 = vpop.f32.mrf.mxu0
      %v1368 = vadd.f32 0.0, %v1367
      %1369 = vdwg.mxu0
      %v1370 = vadd.f32 %v1248, %v1351
      %v1371 = vadd.f32 %v1249, %v1353
      %v1372 = vadd.f32 %v1250, %v1356
      %v1373 = vadd.f32 %v1251, %v1358
      %v1374 = vadd.f32 %v1252, %v1361
      %v1375 = vadd.f32 %v1253, %v1363
      %v1376 = vadd.f32 %v1254, %v1366
      %v1377 = vadd.f32 %v1255, %v1368
      %v1378 = vld [vmem:[%s2] sm:$0x1]
      %v1380 = vperm.slane %v1378, 0
      %v1382 = vmul.f32 %v1370, %v1380
      %v1383 = vmul.f32 %v1371, %v1380
      %v1384 = vmul.f32 %v1372, %v1380
      %v1385 = vmul.f32 %v1373, %v1380
      %v1386 = vmul.f32 %v1374, %v1380
      %v1387 = vmul.f32 %v1375, %v1380
      %v1388 = vmul.f32 %v1376, %v1380
      %v1389 = vmul.f32 %v1377, %v1380
      %v1390 = vld [vmem:[%s3] sm:$0x1]
      %v1392 = vperm.slane %v1390, 0
      %v1394 = vadd.f32 %v1382, %v1392
      %v1395 = vadd.f32 %v1383, %v1392
      %v1396 = vadd.f32 %v1384, %v1392
      %v1397 = vadd.f32 %v1385, %v1392
      %v1398 = vadd.f32 %v1386, %v1392
      %v1399 = vadd.f32 %v1387, %v1392
      %v1400 = vadd.f32 %v1388, %v1392
      %v1401 = vadd.f32 %v1389, %v1392
      %v1402 = vmul.f32 %v1394, 0.1
      %v1403 = vmul.f32 %v1395, 0.1
      %v1404 = vmul.f32 %v1396, 0.1
      %v1405 = vmul.f32 %v1397, 0.1
      %v1406 = vmul.f32 %v1398, 0.1
      %v1407 = vmul.f32 %v1399, 0.1
      %v1408 = vmul.f32 %v1400, 0.1
      %v1409 = vmul.f32 %v1401, 0.1
      %v1410 = vmax.f32 %v1394, %v1402
      %v1411 = vmax.f32 %v1395, %v1403
      %v1412 = vmax.f32 %v1396, %v1404
      %v1413 = vmax.f32 %v1397, %v1405
      %v1414 = vmax.f32 %v1398, %v1406
      %v1415 = vmax.f32 %v1399, %v1407
      %v1416 = vmax.f32 %v1400, %v1408
      %v1417 = vmax.f32 %v1401, %v1409
      %v1418 = vpack.c.bf16 %v1410, %v1410
      %v1419 = vpack.c.bf16 %v1411, %v1411
      %v1420 = vpack.c.bf16 %v1412, %v1412
      %v1421 = vpack.c.bf16 %v1413, %v1413
      %v1422 = vpack.c.bf16 %v1414, %v1414
      %v1423 = vpack.c.bf16 %v1415, %v1415
      %v1424 = vpack.c.bf16 %v1416, %v1416
      %v1425 = vpack.c.bf16 %v1417, %v1417
      %vm1426 = vcmask 125952
      %1427 = vst.msk [vmem:[%s197] sm:$0xf] %vm1426, %v1418
      %1428 = vst.msk [vmem:[%s197 + $0x4] sm:$0xf] %vm1426, %v1419
      %1429 = vst.msk [vmem:[%s197 + $0x8] sm:$0xf] %vm1426, %v1420
      %1430 = vst.msk [vmem:[%s197 + $0xc] sm:$0xf] %vm1426, %v1421
      %1431 = vst.msk [vmem:[%s197 + $0x10] sm:$0xf] %vm1426, %v1422
      %1432 = vst.msk [vmem:[%s197 + $0x14] sm:$0xf] %vm1426, %v1423
      %1433 = vst.msk [vmem:[%s197 + $0x18] sm:$0xf] %vm1426, %v1424
      %1434 = vst.msk [vmem:[%s197 + $0x1c] sm:$0xf] %vm1426, %v1425
      %p1435 = scmp.lt.s32.totalorder %s15, 1
      %s1436 = scalar_select %p1435, %s15, 1
      %s1437 = smul.addr %s1436, 8
      %s1438 = smul.addr %s1437, 4
      %s1439 = scalar_lea.vmem %s4, %s1438
      // Predicated region
      $region37: #{forward.10} parent=35 // pred_check
        %p1440 = pneg %p122
      $region38: #{forward.10} parent=35 // pred_check_branch
        %1442 = sbr.rel (%p1440) target = $region40
      $region39: #{forward.10} parent=35 // pred_region
        _
      $region40: #{forward.10} parent=35 // pred_fallthru
        _
    $region36: #{forward.10} parent=5 // pred_fallthru
      _
    %p1443 = scmp.le.s32.totalorder 2, %s10
    // Predicated region
    $region41: #{forward.10} parent=5 // pred_check
      %p1444 = pneg %p1443
    $region42: #{forward.10} parent=5 // pred_check_branch
      %1446 = sbr.rel (%p1444) target = $region44
    $region43: #{forward.10} parent=5 // pred_region
      %s1447 = ssub.s32 %s10, 2
      // Predicated region
      $region45: #{forward.10} parent=43 // pred_check
        %p1448 = pneg %p128
      $region46: #{forward.10} parent=43 // pred_check_branch
        %1450 = sbr.rel (%p1448) target = $region48
      $region47: #{forward.10} parent=43 // pred_region
        %p1451 = scmp.lt.s32.totalorder %s16, 1
        %s1452 = scalar_select %p1451, %s16, 1
        %s1453 = smul.addr %s1452, 8
        %s1454 = smul.addr %s1453, 4
        %s1455 = scalar_lea.vmem %s4, %s1454
      $region48: #{forward.10} parent=43 // pred_fallthru
        _
    $region44: #{forward.10} parent=5 // pred_fallthru
      _
  $region6: #{forward.10} parent=0 // loop_footer
    %s14 = sadd.s32 1, %s10
  $region7: #{forward.10} parent=0 // loop_footer_branch
    %9 = sbr.rel target = $region3
  $region8: #{forward.10} parent=0 // loop_exit
    _

// kernel: forward.12
$region0: #{forward.12}
  #allocation0 [shape = 'u32[]', space=smem, size = 0x4, offset = 0x4, fixed_abs, tag = 'smem constant byte address 0x4 - core index']
  #allocation1 [shape = 'u32[72,128]{1,0:T(1,128)}', space=vmem, size = 0x9000, scoped, tag = 'internal scratch']
  %s0 = inlined_call_operand.vmem [shape: bf16[16,128], index: 0, kind: input, shape index: {}]
  %s1 = inlined_call_operand.vmem [shape: bf16[16,128], index: 1, kind: input, shape index: {}]
  %s2 = inlined_call_operand.vmem [shape: bf16[16,128], index: 2, kind: output, shape index: {}]
  %s3 = sld [smem:[#allocation0]]
  $region18: #{forward.12} parent=0
    _
  %s5 = ssub.s32 1, %s3
  %s6 = scalar_select 0, %s5, %s3
  // Predicated region
  $region2: #{forward.12} parent=0 // pred_check
    _
  $region3: #{forward.12} parent=0 // pred_check_branch
    %8 = sbr.rel (0) target = $region5
  $region4: #{forward.12} parent=0 // pred_region
    _
  $region5: #{forward.12} parent=0 // pred_fallthru
    _
  // Predicated region
  $region6: #{forward.12} parent=0 // pred_check
    _
  $region7: #{forward.12} parent=0 // pred_check_branch
    %10 = sbr.rel (0) target = $region9
  $region8: #{forward.12} parent=0 // pred_region
    _
  $region9: #{forward.12} parent=0 // pred_fallthru
    _
  %v11 = vld [vmem:[%s0] sm:$0xf]
  %v12 = vld [vmem:[%s0 + $0x4] sm:$0xf]
  %v13 = vld [vmem:[%s1] sm:$0xf]
  %v14 = vld [vmem:[%s1 + $0x4] sm:$0xf]
  %v15 = vunpack.c.l.bf16 %v11
  %v16 = vunpack.c.l.bf16 %v12
  %v17 = vunpack.c.l.bf16 %v13
  %v18 = vunpack.c.l.bf16 %v14
  %v19 = vadd.f32 %v15, %v17
  %v20 = vadd.f32 %v16, %v18
  %v21 = vpack.c.bf16 %v19, %v19
  %v22 = vpack.c.bf16 %v20, %v20
  %v23 = vunpack.c.l.bf16 %v21
  %v24 = vunpack.c.l.bf16 %v22
  %v25 = vmul.f32 %v23, 0.100097656
  %v26 = vmul.f32 %v24, 0.100097656
  %v27 = vpack.c.bf16 %v25, %v25
  %v28 = vpack.c.bf16 %v26, %v26
  %v29 = vunpack.c.l.bf16 %v27
  %v30 = vunpack.c.l.bf16 %v28
  %v31 = vmax.f32 %v23, %v29
  %v32 = vmax.f32 %v24, %v30
  %v33 = vpack.c.bf16 %v31, %v31
  %v34 = vpack.c.bf16 %v32, %v32
  %35 = vst [vmem:[%s2] sm:$0xf] %v33
  %36 = vst [vmem:[%s2 + $0x4] sm:$0xf] %v34
  // Predicated region
  $region10: #{forward.12} parent=0 // pred_check
    _
  $region11: #{forward.12} parent=0 // pred_check_branch
    %38 = sbr.rel (0) target = $region13
  $region12: #{forward.12} parent=0 // pred_region
    _
  $region13: #{forward.12} parent=0 // pred_fallthru
    _
  // Predicated region
  $region14: #{forward.12} parent=0 // pred_check
    _
  $region15: #{forward.12} parent=0 // pred_check_branch
    %40 = sbr.rel (0) target = $region17
  $region16: #{forward.12} parent=0 // pred_region
    _
  $region17: #{forward.12} parent=0 // pred_fallthru
    _

// kernel: forward.14
$region0: #{forward.14}
  #allocation0 [shape = 'u32[]', space=smem, size = 0x4, offset = 0x4, fixed_abs, tag = 'smem constant byte address 0x4 - core index']
  #allocation1 [shape = 'u32[72,128]{1,0:T(1,128)}', space=vmem, size = 0x9000, scoped, tag = 'internal scratch']
  %s0 = inlined_call_operand.vmem [shape: bf16[2,8,8,16], index: 0, kind: input, shape index: {}]
  %s1 = inlined_call_operand.vmem [shape: bf16[1,16,8], index: 1, kind: input, shape index: {}]
  %s2 = inlined_call_operand.vmem [shape: f32[1,8], index: 2, kind: input, shape index: {}]
  %s3 = inlined_call_operand.vmem [shape: f32[1,8], index: 3, kind: input, shape index: {}]
  %s4 = inlined_call_operand.vmem [shape: bf16[2,8,8,8], index: 4, kind: output, shape index: {}]
  %s5 = sld [smem:[#allocation0]]
  $region49: #{forward.14} parent=0
    _
  %s7 = ssub.s32 1, %s5
  %s8 = scalar_select 0, %s7, %s5
  loop: start=0, step=1, limit=4
  $region2: #{forward.14} parent=0 // loop_pre_header
    _
  $region3: #{forward.14} parent=0 // loop_header
    %s10 = sphi 0, %s14
    %p11 = scmp.ge.s32.totalorder %s10, 4
    %s20 = sphi 0, %s22
    %s23 = sphi 0, %s20
    %s24 = sphi 0, %s23
    %s40 = sphi 0, %s24
    %s44 = sphi 0, %s44
    %s46 = sphi 0, %s44
    %s47 = sphi 0, %s46
    %s61 = sphi 0, %s47
    %s65 = sphi 0, %s65
    %s67 = sphi 0, %s65
    %s68 = sphi 0, %s67
    %s82 = sphi 0, %s68
    %s86 = sphi 0, %s86
    %s88 = sphi 0, %s86
    %s89 = sphi 0, %s88
    %s103 = sphi 0, %s89
    %s109 = sphi 0, %s111
    %s112 = sphi 0, %s109
    %s113 = sphi 0, %s112
    %s129 = sphi 0, %s113
  $region4: #{forward.14} parent=0 // loop_header_branch
    %13 = sbr.rel (%p11) target = $region8
  $region5: #{forward.14} parent=0 // loop_body
    %s15 = ssub.s32 %s10, 1
    %s16 = ssub.s32 %s10, 2
    %s17 = sadd.s32 %s10, 1
    %s18 = ssub.s32 %s10, %s17
    %p19 = scmp.eq.s32.totalorder %s18, 0
    %s21 = sadd.s32 %s20, 1
    %s22 = scalar_select %p19, %s20, %s21
    %p25 = pneg %p19
    %p26 = scmp.eq.s32.totalorder %s10, 1
    %p27 = por %p25, %p26
    %p28 = scmp.ne.s32.totalorder %s20, %s23
    %p29 = scmp.eq.s32.totalorder %s10, 0
    %p30 = por %p28, %p29
    %p31 = scmp.ne.s32.totalorder %s20, %s23
    %p32 = scmp.eq.s32.totalorder %s15, 1
    %p33 = por %p31, %p32
    %p34 = scmp.ne.s32.totalorder %s23, %s24
    %p35 = scmp.eq.s32.totalorder %s15, 0
    %p36 = por %p34, %p35
    %p37 = scmp.ne.s32.totalorder %s23, %s24
    %p38 = scmp.eq.s32.totalorder %s16, 1
    %p39 = por %p37, %p38
    %p41 = scmp.ne.s32.totalorder %s24, %s40
    %p42 = scmp.eq.s32.totalorder %s16, 0
    %p43 = por %p41, %p42
    %s45 = sadd.s32 %s44, 1
    %p48 = scmp.eq.s32.totalorder %s10, 1
    %p49 = scmp.ne.s32.totalorder %s44, %s46
    %p50 = scmp.eq.s32.totalorder %s10, 0
    %p51 = por %p49, %p50
    %p52 = scmp.ne.s32.totalorder %s44, %s46
    %p53 = scmp.eq.s32.totalorder %s15, 1
    %p54 = por %p52, %p53
    %p55 = scmp.ne.s32.totalorder %s46, %s47
    %p56 = scmp.eq.s32.totalorder %s15, 0
    %p57 = por %p55, %p56
    %p58 = scmp.ne.s32.totalorder %s46, %s47
    %p59 = scmp.eq.s32.totalorder %s16, 1
    %p60 = por %p58, %p59
    %p62 = scmp.ne.s32.totalorder %s47, %s61
    %p63 = scmp.eq.s32.totalorder %s16, 0
    %p64 = por %p62, %p63
    %s66 = sadd.s32 %s65, 1
    %p69 = scmp.eq.s32.totalorder %s10, 1
    %p70 = scmp.ne.s32.totalorder %s65, %s67
    %p71 = scmp.eq.s32.totalorder %s10, 0
    %p72 = por %p70, %p71
    %p73 = scmp.ne.s32.totalorder %s65, %s67
    %p74 = scmp.eq.s32.totalorder %s15, 1
    %p75 = por %p73, %p74
    %p76 = scmp.ne.s32.totalorder %s67, %s68
    %p77 = scmp.eq.s32.totalorder %s15, 0
    %p78 = por %p76, %p77
    %p79 = scmp.ne.s32.totalorder %s67, %s68
    %p80 = scmp.eq.s32.totalorder %s16, 1
    %p81 = por %p79, %p80
    %p83 = scmp.ne.s32.totalorder %s68, %s82
    %p84 = scmp.eq.s32.totalorder %s16, 0
    %p85 = por %p83, %p84
    %s87 = sadd.s32 %s86, 1
    %p90 = scmp.eq.s32.totalorder %s10, 1
    %p91 = scmp.ne.s32.totalorder %s86, %s88
    %p92 = scmp.eq.s32.totalorder %s10, 0
    %p93 = por %p91, %p92
    %p94 = scmp.ne.s32.totalorder %s86, %s88
    %p95 = scmp.eq.s32.totalorder %s15, 1
    %p96 = por %p94, %p95
    %p97 = scmp.ne.s32.totalorder %s88, %s89
    %p98 = scmp.eq.s32.totalorder %s15, 0
    %p99 = por %p97, %p98
    %p100 = scmp.ne.s32.totalorder %s88, %s89
    %p101 = scmp.eq.s32.totalorder %s16, 1
    %p102 = por %p100, %p101
    %p104 = scmp.ne.s32.totalorder %s89, %s103
    %p105 = scmp.eq.s32.totalorder %s16, 0
    %p106 = por %p104, %p105
    %s107 = ssub.s32 %s10, %s17
    %p108 = scmp.eq.s32.totalorder %s107, 0
    %s110 = sadd.s32 %s109, 1
    %s111 = scalar_select %p108, %s109, %s110
    %p114 = pneg %p108
    %p115 = scmp.eq.s32.totalorder %s10, 1
    %p116 = por %p114, %p115
    %p117 = scmp.ne.s32.totalorder %s109, %s112
    %p118 = scmp.eq.s32.totalorder %s10, 0
    %p119 = por %p117, %p118
    %p120 = scmp.ne.s32.totalorder %s109, %s112
    %p121 = scmp.eq.s32.totalorder %s15, 1
    %p122 = por %p120, %p121
    %p123 = scmp.ne.s32.totalorder %s112, %s113
    %p124 = scmp.eq.s32.totalorder %s15, 0
    %p125 = por %p123, %p124
    %p126 = scmp.ne.s32.totalorder %s112, %s113
    %p127 = scmp.eq.s32.totalorder %s16, 1
    %p128 = por %p126, %p127
    %p130 = scmp.ne.s32.totalorder %s113, %s129
    %p131 = scmp.eq.s32.totalorder %s16, 0
    %p132 = por %p130, %p131
    %p133 = scmp.le.s32.totalorder 1, %s10
    %p134 = scmp.lt.s32.totalorder %s10, 3
    %p135 = pnand %p133, %p134
    %p136 = pneg %p135
    // Predicated region
    $region9: #{forward.14} parent=5 // pred_check
      _
    $region10: #{forward.14} parent=5 // pred_check_branch
      %138 = sbr.rel (%p135) target = $region12
    $region11: #{forward.14} parent=5 // pred_region
      %s139 = ssub.s32 %s10, 1
      // Predicated region
      $region13: #{forward.14} parent=11 // pred_check
        %p140 = pneg %p57
      $region14: #{forward.14} parent=11 // pred_check_branch
        %142 = sbr.rel (%p140) target = $region16
      $region15: #{forward.14} parent=11 // pred_region
        _
      $region16: #{forward.14} parent=11 // pred_fallthru
        _
      // Predicated region
      $region17: #{forward.14} parent=11 // pred_check
        %p143 = pneg %p78
      $region18: #{forward.14} parent=11 // pred_check_branch
        %145 = sbr.rel (%p143) target = $region20
      $region19: #{forward.14} parent=11 // pred_region
        _
      $region20: #{forward.14} parent=11 // pred_fallthru
        _
      // Predicated region
      $region21: #{forward.14} parent=11 // pred_check
        %p146 = pneg %p99
      $region22: #{forward.14} parent=11 // pred_check_branch
        %148 = sbr.rel (%p146) target = $region24
      $region23: #{forward.14} parent=11 // pred_region
        _
      $region24: #{forward.14} parent=11 // pred_fallthru
        _
    $region12: #{forward.14} parent=5 // pred_fallthru
      _
    %p149 = scmp.lt.s32.totalorder %s10, 2
    // Predicated region
    $region25: #{forward.14} parent=5 // pred_check
      %p150 = pneg %p149
    $region26: #{forward.14} parent=5 // pred_check_branch
      %152 = sbr.rel (%p150) target = $region28
    $region27: #{forward.14} parent=5 // pred_region
      // Predicated region
      $region29: #{forward.14} parent=27 // pred_check
        %p153 = pneg %p30
      $region30: #{forward.14} parent=27 // pred_check_branch
        %155 = sbr.rel (%p153) target = $region32
      $region31: #{forward.14} parent=27 // pred_region
        %p156 = scmp.lt.s32.totalorder %s10, 1
        %s157 = scalar_select %p156, %s10, 1
        %s158 = smul.addr %s157, 8
        %s159 = smul.addr %s158, 4
        %s160 = scalar_lea.vmem %s0, %s159
      $region32: #{forward.14} parent=27 // pred_fallthru
        _
    $region28: #{forward.14} parent=5 // pred_fallthru
      _
    %p161 = scmp.le.s32.totalorder 1, %s10
    %p162 = scmp.lt.s32.totalorder %s10, 3
    %p163 = pnand %p161, %p162
    %p164 = pneg %p163
    // Predicated region
    $region33: #{forward.14} parent=5 // pred_check
      _
    $region34: #{forward.14} parent=5 // pred_check_branch
      %166 = sbr.rel (%p163) target = $region36
    $region35: #{forward.14} parent=5 // pred_region
      %s167 = ssub.s32 %s10, 1
      %p168 = scmp.lt.s32.totalorder %s15, 1
      %s169 = scalar_select %p168, %s15, 1
      %s170 = smul.addr %s169, 8
      %s171 = smul.addr %s170, 4
      %s172 = scalar_lea.vmem %s0, %s171
      %p173 = pneg %p36
      %p174 = pneg %p33
      %p175 = pneg %p57
      %p176 = pneg %p54
      %p177 = pneg %p78
      %p178 = pneg %p75
      %p179 = pneg %p99
      %p180 = pneg %p96
      %p181 = pneg %p125
      %p182 = pneg %p122
      %p183 = scmp.lt.s32.totalorder %s15, 1
      %s184 = scalar_select %p183, %s15, 1
      %s185 = smul.addr %s184, 8
      %s186 = smul.addr %s185, 4
      %s187 = scalar_lea.vmem %s4, %s186
      %p188 = scmp.lt.s32.totalorder %s15, 1
      %s189 = scalar_select %p188, %s15, 1
      %s190 = smul.addr %s189, 8
      %s191 = smul.addr %s190, 4
      %s192 = scalar_lea.vmem %s0, %s191
      %p193 = scmp.lt.s32.totalorder %s15, 1
      %s194 = scalar_select %p193, %s15, 1
      %s195 = smul.addr %s194, 8
      %s196 = smul.addr %s195, 4
      %s197 = scalar_lea.vmem %s4, %s196
      %v199 = vld [vmem:[%s192] sm:$0xf]
      %v200 = vld [vmem:[%s192 + $0x4] sm:$0xf]
      %v201 = vld [vmem:[%s192 + $0x8] sm:$0xf]
      %v202 = vld [vmem:[%s192 + $0xc] sm:$0xf]
      %v203 = vld [vmem:[%s192 + $0x10] sm:$0xf]
      %v204 = vld [vmem:[%s192 + $0x14] sm:$0xf]
      %v205 = vld [vmem:[%s192 + $0x18] sm:$0xf]
      %v206 = vld [vmem:[%s192 + $0x1c] sm:$0xf]
      %v207 = vld [vmem:[%s1] sm:$0xf]
      %v208 = vld [vmem:[%s1 + $0x4] sm:$0xf]
      %v217 = vunpack.c.l.b16 %v199
      %v218 = vunpack.c.l.b16 %v200
      %v219 = vunpack.c.l.b16 %v201
      %v220 = vunpack.c.l.b16 %v202
      %v221 = vunpack.c.l.b16 %v203
      %v222 = vunpack.c.l.b16 %v204
      %v223 = vunpack.c.l.b16 %v205
      %v224 = vunpack.c.l.b16 %v206
      %v225 = vpack.c.b16 %v218, %v217
      %v226 = vpack.c.b16 %v220, %v219
      %v227 = vpack.c.b16 %v222, %v221
      %v228 = vpack.c.b16 %v224, %v223
      %v231 = vunpack.c.l.b16 %v207
      %v232 = vunpack.c.l.b16 %v208
      %v233 = vpack.c.b16 %v232, %v231
      %vm235 = vcmask 130048
      %v237 = vsel %vm235, %v225, 0
      %v240 = vsel %vm235, %v226, 0
      %v243 = vsel %vm235, %v227, 0
      %v246 = vsel %vm235, %v228, 0
      %248 = vmatpush.bf16.msra.mxu0 0
      %249 = vmatpush.bf16.msra.mxu0 0
      %250 = vmatpush.bf16.msra.mxu0 0
      %251 = vmatpush.bf16.msra.mxu0 0
      %252 = vmatpush.bf16.msra.mxu0 0
      %253 = vmatpush.bf16.msra.mxu0 0
      %254 = vmatpush.bf16.msra.mxu0 0
      %255 = vmatpush.bf16.msra.mxu0 %v233
      %256 = vmatmul.bf16.gmra.mxu0 %v237
      %v257 = vpop.f32.mrf.mxu0
      %v258 = vadd.f32 0.0, %v257
      %v259 = vpop.f32.mrf.mxu0
      %v260 = vadd.f32 0.0, %v259
      %261 = vmatmul.bf16.gmra.mxu0 %v240
      %v262 = vpop.f32.mrf.mxu0
      %v263 = vadd.f32 0.0, %v262
      %v264 = vpop.f32.mrf.mxu0
      %v265 = vadd.f32 0.0, %v264
      %266 = vmatmul.bf16.gmra.mxu0 %v243
      %v267 = vpop.f32.mrf.mxu0
      %v268 = vadd.f32 0.0, %v267
      %v269 = vpop.f32.mrf.mxu0
      %v270 = vadd.f32 0.0, %v269
      %271 = vmatmul.bf16.gmra.mxu0 %v246
      %v272 = vpop.f32.mrf.mxu0
      %v273 = vadd.f32 0.0, %v272
      %v274 = vpop.f32.mrf.mxu0
      %v275 = vadd.f32 0.0, %v274
      %276 = vdwg.mxu0
      %v277 = vld [vmem:[%s2] sm:$0x1]
      %v279 = vperm.slane %v277, 0
      %v281 = vmul.f32 %v258, %v279
      %v282 = vmul.f32 %v260, %v279
      %v283 = vmul.f32 %v263, %v279
      %v284 = vmul.f32 %v265, %v279
      %v285 = vmul.f32 %v268, %v279
      %v286 = vmul.f32 %v270, %v279
      %v287 = vmul.f32 %v273, %v279
      %v288 = vmul.f32 %v275, %v279
      %v289 = vld [vmem:[%s3] sm:$0x1]
      %v291 = vperm.slane %v289, 0
      %v293 = vadd.f32 %v281, %v291
      %v294 = vadd.f32 %v282, %v291
      %v295 = vadd.f32 %v283, %v291
      %v296 = vadd.f32 %v284, %v291
      %v297 = vadd.f32 %v285, %v291
      %v298 = vadd.f32 %v286, %v291
      %v299 = vadd.f32 %v287, %v291
      %v300 = vadd.f32 %v288, %v291
      %v301 = vmul.f32 %v293, 0.1
      %v302 = vmul.f32 %v294, 0.1
      %v303 = vmul.f32 %v295, 0.1
      %v304 = vmul.f32 %v296, 0.1
      %v305 = vmul.f32 %v297, 0.1
      %v306 = vmul.f32 %v298, 0.1
      %v307 = vmul.f32 %v299, 0.1
      %v308 = vmul.f32 %v300, 0.1
      %v309 = vmax.f32 %v293, %v301
      %v310 = vmax.f32 %v294, %v302
      %v311 = vmax.f32 %v295, %v303
      %v312 = vmax.f32 %v296, %v304
      %v313 = vmax.f32 %v297, %v305
      %v314 = vmax.f32 %v298, %v306
      %v315 = vmax.f32 %v299, %v307
      %v316 = vmax.f32 %v300, %v308
      %v317 = vpack.c.bf16 %v309, %v309
      %v318 = vpack.c.bf16 %v310, %v310
      %v319 = vpack.c.bf16 %v311, %v311
      %v320 = vpack.c.bf16 %v312, %v312
      %v321 = vpack.c.bf16 %v313, %v313
      %v322 = vpack.c.bf16 %v314, %v314
      %v323 = vpack.c.bf16 %v315, %v315
      %v324 = vpack.c.bf16 %v316, %v316
      %vm325 = vcmask 60416
      %326 = vst.msk [vmem:[%s197] sm:$0xf] %vm325, %v317
      %327 = vst.msk [vmem:[%s197 + $0x4] sm:$0xf] %vm325, %v318
      %328 = vst.msk [vmem:[%s197 + $0x8] sm:$0xf] %vm325, %v319
      %329 = vst.msk [vmem:[%s197 + $0xc] sm:$0xf] %vm325, %v320
      %330 = vst.msk [vmem:[%s197 + $0x10] sm:$0xf] %vm325, %v321
      %331 = vst.msk [vmem:[%s197 + $0x14] sm:$0xf] %vm325, %v322
      %332 = vst.msk [vmem:[%s197 + $0x18] sm:$0xf] %vm325, %v323
      %333 = vst.msk [vmem:[%s197 + $0x1c] sm:$0xf] %vm325, %v324
      %p334 = scmp.lt.s32.totalorder %s15, 1
      %s335 = scalar_select %p334, %s15, 1
      %s336 = smul.addr %s335, 8
      %s337 = smul.addr %s336, 4
      %s338 = scalar_lea.vmem %s4, %s337
      // Predicated region
      $region37: #{forward.14} parent=35 // pred_check
        %p339 = pneg %p122
      $region38: #{forward.14} parent=35 // pred_check_branch
        %341 = sbr.rel (%p339) target = $region40
      $region39: #{forward.14} parent=35 // pred_region
        _
      $region40: #{forward.14} parent=35 // pred_fallthru
        _
    $region36: #{forward.14} parent=5 // pred_fallthru
      _
    %p342 = scmp.le.s32.totalorder 2, %s10
    // Predicated region
    $region41: #{forward.14} parent=5 // pred_check
      %p343 = pneg %p342
    $region42: #{forward.14} parent=5 // pred_check_branch
      %345 = sbr.rel (%p343) target = $region44
    $region43: #{forward.14} parent=5 // pred_region
      %s346 = ssub.s32 %s10, 2
      // Predicated region
      $region45: #{forward.14} parent=43 // pred_check
        %p347 = pneg %p128
      $region46: #{forward.14} parent=43 // pred_check_branch
        %349 = sbr.rel (%p347) target = $region48
      $region47: #{forward.14} parent=43 // pred_region
        %p350 = scmp.lt.s32.totalorder %s16, 1
        %s351 = scalar_select %p350, %s16, 1
        %s352 = smul.addr %s351, 8
        %s353 = smul.addr %s352, 4
        %s354 = scalar_lea.vmem %s4, %s353
      $region48: #{forward.14} parent=43 // pred_fallthru
        _
    $region44: #{forward.14} parent=5 // pred_fallthru
      _
  $region6: #{forward.14} parent=0 // loop_footer
    %s14 = sadd.s32 1, %s10
  $region7: #{forward.14} parent=0 // loop_footer_branch
    %9 = sbr.rel target = $region3
  $region8: #{forward.14} parent=0 // loop_exit
    _

// kernel: forward.13
$region0: #{forward.13}
  #allocation0 [shape = 'u32[]', space=smem, size = 0x4, offset = 0x4, fixed_abs, tag = 'smem constant byte address 0x4 - core index']
  #allocation1 [shape = 'u32[72,128]{1,0:T(1,128)}', space=vmem, size = 0x9000, scoped, tag = 'internal scratch']
  %s0 = inlined_call_operand.vmem [shape: bf16[2,9,9,16], index: 0, kind: input, shape index: {}]
  %s1 = inlined_call_operand.vmem [shape: bf16[2,8,8,16], index: 1, kind: output, shape index: {}]
  %s2 = sld [smem:[#allocation0]]
  $region37: #{forward.13} parent=0
    _
  %s4 = ssub.s32 1, %s2
  %s5 = scalar_select 0, %s4, %s2
  loop: start=0, step=1, limit=4
  $region2: #{forward.13} parent=0 // loop_pre_header
    _
  $region3: #{forward.13} parent=0 // loop_header
    %s7 = sphi 0, %s11
    %p8 = scmp.ge.s32.totalorder %s7, 4
    %s17 = sphi 0, %s19
    %s20 = sphi 0, %s17
    %s21 = sphi 0, %s20
    %s37 = sphi 0, %s21
    %s43 = sphi 0, %s45
    %s46 = sphi 0, %s43
    %s47 = sphi 0, %s46
    %s63 = sphi 0, %s47
  $region4: #{forward.13} parent=0 // loop_header_branch
    %10 = sbr.rel (%p8) target = $region8
  $region5: #{forward.13} parent=0 // loop_body
    %s12 = ssub.s32 %s7, 1
    %s13 = ssub.s32 %s7, 2
    %s14 = sadd.s32 %s7, 1
    %s15 = ssub.s32 %s7, %s14
    %p16 = scmp.eq.s32.totalorder %s15, 0
    %s18 = sadd.s32 %s17, 1
    %s19 = scalar_select %p16, %s17, %s18
    %p22 = pneg %p16
    %p23 = scmp.eq.s32.totalorder %s7, 1
    %p24 = por %p22, %p23
    %p25 = scmp.ne.s32.totalorder %s17, %s20
    %p26 = scmp.eq.s32.totalorder %s7, 0
    %p27 = por %p25, %p26
    %p28 = scmp.ne.s32.totalorder %s17, %s20
    %p29 = scmp.eq.s32.totalorder %s12, 1
    %p30 = por %p28, %p29
    %p31 = scmp.ne.s32.totalorder %s20, %s21
    %p32 = scmp.eq.s32.totalorder %s12, 0
    %p33 = por %p31, %p32
    %p34 = scmp.ne.s32.totalorder %s20, %s21
    %p35 = scmp.eq.s32.totalorder %s13, 1
    %p36 = por %p34, %p35
    %p38 = scmp.ne.s32.totalorder %s21, %s37
    %p39 = scmp.eq.s32.totalorder %s13, 0
    %p40 = por %p38, %p39
    %s41 = ssub.s32 %s7, %s14
    %p42 = scmp.eq.s32.totalorder %s41, 0
    %s44 = sadd.s32 %s43, 1
    %s45 = scalar_select %p42, %s43, %s44
    %p48 = pneg %p42
    %p49 = scmp.eq.s32.totalorder %s7, 1
    %p50 = por %p48, %p49
    %p51 = scmp.ne.s32.totalorder %s43, %s46
    %p52 = scmp.eq.s32.totalorder %s7, 0
    %p53 = por %p51, %p52
    %p54 = scmp.ne.s32.totalorder %s43, %s46
    %p55 = scmp.eq.s32.totalorder %s12, 1
    %p56 = por %p54, %p55
    %p57 = scmp.ne.s32.totalorder %s46, %s47
    %p58 = scmp.eq.s32.totalorder %s12, 0
    %p59 = por %p57, %p58
    %p60 = scmp.ne.s32.totalorder %s46, %s47
    %p61 = scmp.eq.s32.totalorder %s13, 1
    %p62 = por %p60, %p61
    %p64 = scmp.ne.s32.totalorder %s47, %s63
    %p65 = scmp.eq.s32.totalorder %s13, 0
    %p66 = por %p64, %p65
    %p67 = scmp.le.s32.totalorder 1, %s7
    %p68 = scmp.lt.s32.totalorder %s7, 3
    %p69 = pnand %p67, %p68
    %p70 = pneg %p69
    // Predicated region
    $region9: #{forward.13} parent=5 // pred_check
      _
    $region10: #{forward.13} parent=5 // pred_check_branch
      %72 = sbr.rel (%p69) target = $region12
    $region11: #{forward.13} parent=5 // pred_region
      %s73 = ssub.s32 %s7, 1
    $region12: #{forward.13} parent=5 // pred_fallthru
      _
    %p74 = scmp.lt.s32.totalorder %s7, 2
    // Predicated region
    $region13: #{forward.13} parent=5 // pred_check
      %p75 = pneg %p74
    $region14: #{forward.13} parent=5 // pred_check_branch
      %77 = sbr.rel (%p75) target = $region16
    $region15: #{forward.13} parent=5 // pred_region
      // Predicated region
      $region17: #{forward.13} parent=15 // pred_check
        %p78 = pneg %p27
      $region18: #{forward.13} parent=15 // pred_check_branch
        %80 = sbr.rel (%p78) target = $region20
      $region19: #{forward.13} parent=15 // pred_region
        %p81 = scmp.lt.s32.totalorder %s7, 1
        %s82 = scalar_select %p81, %s7, 1
        %s83 = smul.addr %s82, 18
        %s84 = smul.addr %s83, 4
        %s85 = scalar_lea.vmem %s0, %s84
      $region20: #{forward.13} parent=15 // pred_fallthru
        _
    $region16: #{forward.13} parent=5 // pred_fallthru
      _
    %p86 = scmp.le.s32.totalorder 1, %s7
    %p87 = scmp.lt.s32.totalorder %s7, 3
    %p88 = pnand %p86, %p87
    %p89 = pneg %p88
    // Predicated region
    $region21: #{forward.13} parent=5 // pred_check
      _
    $region22: #{forward.13} parent=5 // pred_check_branch
      %91 = sbr.rel (%p88) target = $region24
    $region23: #{forward.13} parent=5 // pred_region
      %s92 = ssub.s32 %s7, 1
      %p93 = scmp.lt.s32.totalorder %s12, 1
      %s94 = scalar_select %p93, %s12, 1
      %s95 = smul.addr %s94, 18
      %s96 = smul.addr %s95, 4
      %s97 = scalar_lea.vmem %s0, %s96
      %p98 = pneg %p33
      %p99 = pneg %p30
      %p100 = pneg %p59
      %p101 = pneg %p56
      %p102 = scmp.lt.s32.totalorder %s12, 1
      %s103 = scalar_select %p102, %s12, 1
      %s104 = smul.addr %s103, 8
      %s105 = smul.addr %s104, 4
      %s106 = scalar_lea.vmem %s1, %s105
      %p107 = scmp.lt.s32.totalorder %s12, 1
      %s108 = scalar_select %p107, %s12, 1
      %s109 = smul.addr %s108, 18
      %s110 = smul.addr %s109, 4
      %s111 = scalar_lea.vmem %s0, %s110
      %p112 = scmp.lt.s32.totalorder %s12, 1
      %s113 = scalar_select %p112, %s12, 1
      %s114 = smul.addr %s113, 8
      %s115 = smul.addr %s114, 4
      %s116 = scalar_lea.vmem %s1, %s115
      %v117 = vld [vmem:[%s111] sm:$0xf]
      %v118 = vld [vmem:[%s111 + $0x8] sm:$0xf]
      %v119 = vld [vmem:[%s111 + $0x10] sm:$0xf]
      %v120 = vld [vmem:[%s111 + $0x18] sm:$0xf]
      %v121 = vld [vmem:[%s111 + $0x20] sm:$0xf]
      %v122 = vld [vmem:[%s111 + $0x28] sm:$0xf]
      %v123 = vld [vmem:[%s111 + $0x30] sm:$0xf]
      %v124 = vld [vmem:[%s111 + $0x38] sm:$0xf]
      %v125 = vld [vmem:[%s111 + $0x4] sm:$0x1]
      %v126 = vld [vmem:[%s111 + $0xc] sm:$0x1]
      %v127 = vld [vmem:[%s111 + $0x14] sm:$0x1]
      %v128 = vld [vmem:[%s111 + $0x1c] sm:$0x1]
      %v129 = vld [vmem:[%s111 + $0x24] sm:$0x1]
      %v130 = vld [vmem:[%s111 + $0x2c] sm:$0x1]
      %v131 = vld [vmem:[%s111 + $0x34] sm:$0x1]
      %v132 = vld [vmem:[%s111 + $0x3c] sm:$0x1]
      %v133 = vunpack.c.l.bf16 %v117
      %v134 = vunpack.c.l.bf16 %v118
      %v135 = vunpack.c.l.bf16 %v119
      %v136 = vunpack.c.l.bf16 %v120
      %v137 = vunpack.c.l.bf16 %v121
      %v138 = vunpack.c.l.bf16 %v122
      %v139 = vunpack.c.l.bf16 %v123
      %v140 = vunpack.c.l.bf16 %v124
      %v141 = vunpack.c.l.bf16 %v125
      %v142 = vunpack.c.l.bf16 %v126
      %v143 = vunpack.c.l.bf16 %v127
      %v144 = vunpack.c.l.bf16 %v128
      %v145 = vunpack.c.l.bf16 %v129
      %v146 = vunpack.c.l.bf16 %v130
      %v147 = vunpack.c.l.bf16 %v131
      %v148 = vunpack.c.l.bf16 %v132
      %vm165 = vcmask 1046528
      %v166 = vrot.slane %v133, 1
      %v167 = vrot.slane %v141, 1
      %v168 = vsel %vm165, %v166, %v167
      %v169 = vrot.slane %v134, 1
      %v170 = vrot.slane %v142, 1
      %v171 = vsel %vm165, %v169, %v170
      %v172 = vrot.slane %v135, 1
      %v173 = vrot.slane %v143, 1
      %v174 = vsel %vm165, %v172, %v173
      %v175 = vrot.slane %v136, 1
      %v176 = vrot.slane %v144, 1
      %v177 = vsel %vm165, %v175, %v176
      %v178 = vrot.slane %v137, 1
      %v179 = vrot.slane %v145, 1
      %v180 = vsel %vm165, %v178, %v179
      %v181 = vrot.slane %v138, 1
      %v182 = vrot.slane %v146, 1
      %v183 = vsel %vm165, %v181, %v182
      %v184 = vrot.slane %v139, 1
      %v185 = vrot.slane %v147, 1
      %v186 = vsel %vm165, %v184, %v185
      %v187 = vrot.slane %v140, 1
      %v188 = vrot.slane %v148, 1
      %v189 = vsel %vm165, %v187, %v188
      %v198 = vmax.f32 %v133, %v168
      %v199 = vmax.f32 %v134, %v171
      %v200 = vmax.f32 %v135, %v174
      %v201 = vmax.f32 %v136, %v177
      %v202 = vmax.f32 %v137, %v180
      %v203 = vmax.f32 %v138, %v183
      %v204 = vmax.f32 %v139, %v186
      %v205 = vmax.f32 %v140, %v189
      %v206 = vpack.c.bf16 %v198, %v198
      %v207 = vpack.c.bf16 %v199, %v199
      %v208 = vpack.c.bf16 %v200, %v200
      %v209 = vpack.c.bf16 %v201, %v201
      %v210 = vpack.c.bf16 %v202, %v202
      %v211 = vpack.c.bf16 %v203, %v203
      %v212 = vpack.c.bf16 %v204, %v204
      %v213 = vpack.c.bf16 %v205, %v205
      %s214 = scalar_lea.vmem %s111, 8
      %v215 = vld [vmem:[%s214] sm:$0xf]
      %v216 = vld [vmem:[%s214 + $0x8] sm:$0xf]
      %v217 = vld [vmem:[%s214 + $0x10] sm:$0xf]
      %v218 = vld [vmem:[%s214 + $0x18] sm:$0xf]
      %v219 = vld [vmem:[%s214 + $0x20] sm:$0xf]
      %v220 = vld [vmem:[%s214 + $0x28] sm:$0xf]
      %v221 = vld [vmem:[%s214 + $0x30] sm:$0xf]
      %v222 = vld [vmem:[%s214 + $0x38] sm:$0xf]
      %v223 = vunpack.c.l.bf16 %v206
      %v224 = vunpack.c.l.bf16 %v207
      %v225 = vunpack.c.l.bf16 %v208
      %v226 = vunpack.c.l.bf16 %v209
      %v227 = vunpack.c.l.bf16 %v210
      %v228 = vunpack.c.l.bf16 %v211
      %v229 = vunpack.c.l.bf16 %v212
      %v230 = vunpack.c.l.bf16 %v213
      %v231 = vunpack.c.l.bf16 %v215
      %v232 = vunpack.c.l.bf16 %v216
      %v233 = vunpack.c.l.bf16 %v217
      %v234 = vunpack.c.l.bf16 %v218
      %v235 = vunpack.c.l.bf16 %v219
      %v236 = vunpack.c.l.bf16 %v220
      %v237 = vunpack.c.l.bf16 %v221
      %v238 = vunpack.c.l.bf16 %v222
      %v239 = vmax.f32 %v223, %v231
      %v240 = vmax.f32 %v224, %v232
      %v241 = vmax.f32 %v225, %v233
      %v242 = vmax.f32 %v226, %v234
      %v243 = vmax.f32 %v227, %v235
      %v244 = vmax.f32 %v228, %v236
      %v245 = vmax.f32 %v229, %v237
      %v246 = vmax.f32 %v230, %v238
      %v247 = vpack.c.bf16 %v239, %v239
      %v248 = vpack.c.bf16 %v240, %v240
      %v249 = vpack.c.bf16 %v241, %v241
      %v250 = vpack.c.bf16 %v242, %v242
      %v251 = vpack.c.bf16 %v243, %v243
      %v252 = vpack.c.bf16 %v244, %v244
      %v253 = vpack.c.bf16 %v245, %v245
      %v254 = vpack.c.bf16 %v246, %v246
      %v255 = vld [vmem:[%s214 + $0x4] sm:$0x1]
      %v256 = vld [vmem:[%s214 + $0xc] sm:$0x1]
      %v257 = vld [vmem:[%s214 + $0x14] sm:$0x1]
      %v258 = vld [vmem:[%s214 + $0x1c] sm:$0x1]
      %v259 = vld [vmem:[%s214 + $0x24] sm:$0x1]
      %v260 = vld [vmem:[%s214 + $0x2c] sm:$0x1]
      %v261 = vld [vmem:[%s214 + $0x34] sm:$0x1]
      %v262 = vld [vmem:[%s214 + $0x3c] sm:$0x1]
      %v263 = vunpack.c.l.bf16 %v247
      %v264 = vunpack.c.l.bf16 %v248
      %v265 = vunpack.c.l.bf16 %v249
      %v266 = vunpack.c.l.bf16 %v250
      %v267 = vunpack.c.l.bf16 %v251
      %v268 = vunpack.c.l.bf16 %v252
      %v269 = vunpack.c.l.bf16 %v253
      %v270 = vunpack.c.l.bf16 %v254
      %v271 = vunpack.c.l.bf16 %v255
      %v272 = vunpack.c.l.bf16 %v256
      %v273 = vunpack.c.l.bf16 %v257
      %v274 = vunpack.c.l.bf16 %v258
      %v275 = vunpack.c.l.bf16 %v259
      %v276 = vunpack.c.l.bf16 %v260
      %v277 = vunpack.c.l.bf16 %v261
      %v278 = vunpack.c.l.bf16 %v262
      %v295 = vrot.slane %v231, 1
      %v296 = vrot.slane %v271, 1
      %v297 = vsel %vm165, %v295, %v296
      %v298 = vrot.slane %v232, 1
      %v299 = vrot.slane %v272, 1
      %v300 = vsel %vm165, %v298, %v299
      %v301 = vrot.slane %v233, 1
      %v302 = vrot.slane %v273, 1
      %v303 = vsel %vm165, %v301, %v302
      %v304 = vrot.slane %v234, 1
      %v305 = vrot.slane %v274, 1
      %v306 = vsel %vm165, %v304, %v305
      %v307 = vrot.slane %v235, 1
      %v308 = vrot.slane %v275, 1
      %v309 = vsel %vm165, %v307, %v308
      %v310 = vrot.slane %v236, 1
      %v311 = vrot.slane %v276, 1
      %v312 = vsel %vm165, %v310, %v311
      %v313 = vrot.slane %v237, 1
      %v314 = vrot.slane %v277, 1
      %v315 = vsel %vm165, %v313, %v314
      %v316 = vrot.slane %v238, 1
      %v317 = vrot.slane %v278, 1
      %v318 = vsel %vm165, %v316, %v317
      %v327 = vmax.f32 %v263, %v297
      %v328 = vmax.f32 %v264, %v300
      %v329 = vmax.f32 %v265, %v303
      %v330 = vmax.f32 %v266, %v306
      %v331 = vmax.f32 %v267, %v309
      %v332 = vmax.f32 %v268, %v312
      %v333 = vmax.f32 %v269, %v315
      %v334 = vmax.f32 %v270, %v318
      %v335 = vpack.c.bf16 %v327, %v327
      %v336 = vpack.c.bf16 %v328, %v328
      %v337 = vpack.c.bf16 %v329, %v329
      %v338 = vpack.c.bf16 %v330, %v330
      %v339 = vpack.c.bf16 %v331, %v331
      %v340 = vpack.c.bf16 %v332, %v332
      %v341 = vpack.c.bf16 %v333, %v333
      %v342 = vpack.c.bf16 %v334, %v334
      %vm343 = vcmask 125952
      %344 = vst.msk [vmem:[%s116] sm:$0xf] %vm343, %v335
      %345 = vst.msk [vmem:[%s116 + $0x4] sm:$0xf] %vm343, %v336
      %346 = vst.msk [vmem:[%s116 + $0x8] sm:$0xf] %vm343, %v337
      %347 = vst.msk [vmem:[%s116 + $0xc] sm:$0xf] %vm343, %v338
      %348 = vst.msk [vmem:[%s116 + $0x10] sm:$0xf] %vm343, %v339
      %349 = vst.msk [vmem:[%s116 + $0x14] sm:$0xf] %vm343, %v340
      %350 = vst.msk [vmem:[%s116 + $0x18] sm:$0xf] %vm343, %v341
      %351 = vst.msk [vmem:[%s116 + $0x1c] sm:$0xf] %vm343, %v342
      %p352 = scmp.lt.s32.totalorder %s12, 1
      %s353 = scalar_select %p352, %s12, 1
      %s354 = smul.addr %s353, 8
      %s355 = smul.addr %s354, 4
      %s356 = scalar_lea.vmem %s1, %s355
      // Predicated region
      $region25: #{forward.13} parent=23 // pred_check
        %p357 = pneg %p56
      $region26: #{forward.13} parent=23 // pred_check_branch
        %359 = sbr.rel (%p357) target = $region28
      $region27: #{forward.13} parent=23 // pred_region
        _
      $region28: #{forward.13} parent=23 // pred_fallthru
        _
    $region24: #{forward.13} parent=5 // pred_fallthru
      _
    %p360 = scmp.le.s32.totalorder 2, %s7
    // Predicated region
    $region29: #{forward.13} parent=5 // pred_check
      %p361 = pneg %p360
    $region30: #{forward.13} parent=5 // pred_check_branch
      %363 = sbr.rel (%p361) target = $region32
    $region31: #{forward.13} parent=5 // pred_region
      %s364 = ssub.s32 %s7, 2
      // Predicated region
      $region33: #{forward.13} parent=31 // pred_check
        %p365 = pneg %p62
      $region34: #{forward.13} parent=31 // pred_check_branch
        %367 = sbr.rel (%p365) target = $region36
      $region35: #{forward.13} parent=31 // pred_region
        %p368 = scmp.lt.s32.totalorder %s13, 1
        %s369 = scalar_select %p368, %s13, 1
        %s370 = smul.addr %s369, 8
        %s371 = smul.addr %s370, 4
        %s372 = scalar_lea.vmem %s1, %s371
      $region36: #{forward.13} parent=31 // pred_fallthru
        _
    $region32: #{forward.13} parent=5 // pred_fallthru
      _
  $region6: #{forward.13} parent=0 // loop_footer
    %s11 = sadd.s32 1, %s7
  $region7: #{forward.13} parent=0 // loop_footer_branch
    %6 = sbr.rel target = $region3
  $region8: #{forward.13} parent=0 // loop_exit
    _

// kernel: forward.8
$region0: #{forward.8}
  #allocation0 [shape = 'u32[]', space=smem, size = 0x4, offset = 0x4, fixed_abs, tag = 'smem constant byte address 0x4 - core index']
  #allocation1 [shape = 'u32[72,128]{1,0:T(1,128)}', space=vmem, size = 0x9000, scoped, tag = 'internal scratch']
  %s0 = inlined_call_operand.vmem [shape: bf16[2,18,18,4], index: 0, kind: input, shape index: {}]
  %s1 = inlined_call_operand.vmem [shape: bf16[9,4,8], index: 1, kind: input, shape index: {}]
  %s2 = inlined_call_operand.vmem [shape: f32[1,8], index: 2, kind: input, shape index: {}]
  %s3 = inlined_call_operand.vmem [shape: f32[1,8], index: 3, kind: input, shape index: {}]
  %s4 = inlined_call_operand.vmem [shape: bf16[2,16,16,8], index: 4, kind: output, shape index: {}]
  %s5 = sld [smem:[#allocation0]]
  $region49: #{forward.8} parent=0
    _
  %s7 = ssub.s32 1, %s5
  %s8 = scalar_select 0, %s7, %s5
  loop: start=0, step=1, limit=4
  $region2: #{forward.8} parent=0 // loop_pre_header
    _
  $region3: #{forward.8} parent=0 // loop_header
    %s10 = sphi 0, %s14
    %p11 = scmp.ge.s32.totalorder %s10, 4
    %s20 = sphi 0, %s22
    %s23 = sphi 0, %s20
    %s24 = sphi 0, %s23
    %s40 = sphi 0, %s24
    %s44 = sphi 0, %s44
    %s46 = sphi 0, %s44
    %s47 = sphi 0, %s46
    %s61 = sphi 0, %s47
    %s65 = sphi 0, %s65
    %s67 = sphi 0, %s65
    %s68 = sphi 0, %s67
    %s82 = sphi 0, %s68
    %s86 = sphi 0, %s86
    %s88 = sphi 0, %s86
    %s89 = sphi 0, %s88
    %s103 = sphi 0, %s89
    %s109 = sphi 0, %s111
    %s112 = sphi 0, %s109
    %s113 = sphi 0, %s112
    %s129 = sphi 0, %s113
  $region4: #{forward.8} parent=0 // loop_header_branch
    %13 = sbr.rel (%p11) target = $region8
  $region5: #{forward.8} parent=0 // loop_body
    %s15 = ssub.s32 %s10, 1
    %s16 = ssub.s32 %s10, 2
    %s17 = sadd.s32 %s10, 1
    %s18 = ssub.s32 %s10, %s17
    %p19 = scmp.eq.s32.totalorder %s18, 0
    %s21 = sadd.s32 %s20, 1
    %s22 = scalar_select %p19, %s20, %s21
    %p25 = pneg %p19
    %p26 = scmp.eq.s32.totalorder %s10, 1
    %p27 = por %p25, %p26
    %p28 = scmp.ne.s32.totalorder %s20, %s23
    %p29 = scmp.eq.s32.totalorder %s10, 0
    %p30 = por %p28, %p29
    %p31 = scmp.ne.s32.totalorder %s20, %s23
    %p32 = scmp.eq.s32.totalorder %s15, 1
    %p33 = por %p31, %p32
    %p34 = scmp.ne.s32.totalorder %s23, %s24
    %p35 = scmp.eq.s32.totalorder %s15, 0
    %p36 = por %p34, %p35
    %p37 = scmp.ne.s32.totalorder %s23, %s24
    %p38 = scmp.eq.s32.totalorder %s16, 1
    %p39 = por %p37, %p38
    %p41 = scmp.ne.s32.totalorder %s24, %s40
    %p42 = scmp.eq.s32.totalorder %s16, 0
    %p43 = por %p41, %p42
    %s45 = sadd.s32 %s44, 1
    %p48 = scmp.eq.s32.totalorder %s10, 1
    %p49 = scmp.ne.s32.totalorder %s44, %s46
    %p50 = scmp.eq.s32.totalorder %s10, 0
    %p51 = por %p49, %p50
    %p52 = scmp.ne.s32.totalorder %s44, %s46
    %p53 = scmp.eq.s32.totalorder %s15, 1
    %p54 = por %p52, %p53
    %p55 = scmp.ne.s32.totalorder %s46, %s47
    %p56 = scmp.eq.s32.totalorder %s15, 0
    %p57 = por %p55, %p56
    %p58 = scmp.ne.s32.totalorder %s46, %s47
    %p59 = scmp.eq.s32.totalorder %s16, 1
    %p60 = por %p58, %p59
    %p62 = scmp.ne.s32.totalorder %s47, %s61
    %p63 = scmp.eq.s32.totalorder %s16, 0
    %p64 = por %p62, %p63
    %s66 = sadd.s32 %s65, 1
    %p69 = scmp.eq.s32.totalorder %s10, 1
    %p70 = scmp.ne.s32.totalorder %s65, %s67
    %p71 = scmp.eq.s32.totalorder %s10, 0
    %p72 = por %p70, %p71
    %p73 = scmp.ne.s32.totalorder %s65, %s67
    %p74 = scmp.eq.s32.totalorder %s15, 1
    %p75 = por %p73, %p74
    %p76 = scmp.ne.s32.totalorder %s67, %s68
    %p77 = scmp.eq.s32.totalorder %s15, 0
    %p78 = por %p76, %p77
    %p79 = scmp.ne.s32.totalorder %s67, %s68
    %p80 = scmp.eq.s32.totalorder %s16, 1
    %p81 = por %p79, %p80
    %p83 = scmp.ne.s32.totalorder %s68, %s82
    %p84 = scmp.eq.s32.totalorder %s16, 0
    %p85 = por %p83, %p84
    %s87 = sadd.s32 %s86, 1
    %p90 = scmp.eq.s32.totalorder %s10, 1
    %p91 = scmp.ne.s32.totalorder %s86, %s88
    %p92 = scmp.eq.s32.totalorder %s10, 0
    %p93 = por %p91, %p92
    %p94 = scmp.ne.s32.totalorder %s86, %s88
    %p95 = scmp.eq.s32.totalorder %s15, 1
    %p96 = por %p94, %p95
    %p97 = scmp.ne.s32.totalorder %s88, %s89
    %p98 = scmp.eq.s32.totalorder %s15, 0
    %p99 = por %p97, %p98
    %p100 = scmp.ne.s32.totalorder %s88, %s89
    %p101 = scmp.eq.s32.totalorder %s16, 1
    %p102 = por %p100, %p101
    %p104 = scmp.ne.s32.totalorder %s89, %s103
    %p105 = scmp.eq.s32.totalorder %s16, 0
    %p106 = por %p104, %p105
    %s107 = ssub.s32 %s10, %s17
    %p108 = scmp.eq.s32.totalorder %s107, 0
    %s110 = sadd.s32 %s109, 1
    %s111 = scalar_select %p108, %s109, %s110
    %p114 = pneg %p108
    %p115 = scmp.eq.s32.totalorder %s10, 1
    %p116 = por %p114, %p115
    %p117 = scmp.ne.s32.totalorder %s109, %s112
    %p118 = scmp.eq.s32.totalorder %s10, 0
    %p119 = por %p117, %p118
    %p120 = scmp.ne.s32.totalorder %s109, %s112
    %p121 = scmp.eq.s32.totalorder %s15, 1
    %p122 = por %p120, %p121
    %p123 = scmp.ne.s32.totalorder %s112, %s113
    %p124 = scmp.eq.s32.totalorder %s15, 0
    %p125 = por %p123, %p124
    %p126 = scmp.ne.s32.totalorder %s112, %s113
    %p127 = scmp.eq.s32.totalorder %s16, 1
    %p128 = por %p126, %p127
    %p130 = scmp.ne.s32.totalorder %s113, %s129
    %p131 = scmp.eq.s32.totalorder %s16, 0
    %p132 = por %p130, %p131
    %p133 = scmp.le.s32.totalorder 1, %s10
    %p134 = scmp.lt.s32.totalorder %s10, 3
    %p135 = pnand %p133, %p134
    %p136 = pneg %p135
    // Predicated region
    $region9: #{forward.8} parent=5 // pred_check
      _
    $region10: #{forward.8} parent=5 // pred_check_branch
      %138 = sbr.rel (%p135) target = $region12
    $region11: #{forward.8} parent=5 // pred_region
      %s139 = ssub.s32 %s10, 1
      // Predicated region
      $region13: #{forward.8} parent=11 // pred_check
        %p140 = pneg %p57
      $region14: #{forward.8} parent=11 // pred_check_branch
        %142 = sbr.rel (%p140) target = $region16
      $region15: #{forward.8} parent=11 // pred_region
        _
      $region16: #{forward.8} parent=11 // pred_fallthru
        _
      // Predicated region
      $region17: #{forward.8} parent=11 // pred_check
        %p143 = pneg %p78
      $region18: #{forward.8} parent=11 // pred_check_branch
        %145 = sbr.rel (%p143) target = $region20
      $region19: #{forward.8} parent=11 // pred_region
        _
      $region20: #{forward.8} parent=11 // pred_fallthru
        _
      // Predicated region
      $region21: #{forward.8} parent=11 // pred_check
        %p146 = pneg %p99
      $region22: #{forward.8} parent=11 // pred_check_branch
        %148 = sbr.rel (%p146) target = $region24
      $region23: #{forward.8} parent=11 // pred_region
        _
      $region24: #{forward.8} parent=11 // pred_fallthru
        _
    $region12: #{forward.8} parent=5 // pred_fallthru
      _
    %p149 = scmp.lt.s32.totalorder %s10, 2
    // Predicated region
    $region25: #{forward.8} parent=5 // pred_check
      %p150 = pneg %p149
    $region26: #{forward.8} parent=5 // pred_check_branch
      %152 = sbr.rel (%p150) target = $region28
    $region27: #{forward.8} parent=5 // pred_region
      // Predicated region
      $region29: #{forward.8} parent=27 // pred_check
        %p153 = pneg %p30
      $region30: #{forward.8} parent=27 // pred_check_branch
        %155 = sbr.rel (%p153) target = $region32
      $region31: #{forward.8} parent=27 // pred_region
        %p156 = scmp.lt.s32.totalorder %s10, 1
        %s157 = scalar_select %p156, %s10, 1
        %s158 = smul.addr %s157, 54
        %s159 = smul.addr %s158, 4
        %s160 = scalar_lea.vmem %s0, %s159
      $region32: #{forward.8} parent=27 // pred_fallthru
        _
    $region28: #{forward.8} parent=5 // pred_fallthru
      _
    %p161 = scmp.le.s32.totalorder 1, %s10
    %p162 = scmp.lt.s32.totalorder %s10, 3
    %p163 = pnand %p161, %p162
    %p164 = pneg %p163
    // Predicated region
    $region33: #{forward.8} parent=5 // pred_check
      _
    $region34: #{forward.8} parent=5 // pred_check_branch
      %166 = sbr.rel (%p163) target = $region36
    $region35: #{forward.8} parent=5 // pred_region
      %s167 = ssub.s32 %s10, 1
      %p168 = scmp.lt.s32.totalorder %s15, 1
      %s169 = scalar_select %p168, %s15, 1
      %s170 = smul.addr %s169, 54
      %s171 = smul.addr %s170, 4
      %s172 = scalar_lea.vmem %s0, %s171
      %p173 = pneg %p36
      %p174 = pneg %p33
      %p175 = pneg %p57
      %p176 = pneg %p54
      %p177 = pneg %p78
      %p178 = pneg %p75
      %p179 = pneg %p99
      %p180 = pneg %p96
      %p181 = pneg %p125
      %p182 = pneg %p122
      %p183 = scmp.lt.s32.totalorder %s15, 1
      %s184 = scalar_select %p183, %s15, 1
      %s185 = smul.addr %s184, 32
      %s186 = smul.addr %s185, 4
      %s187 = scalar_lea.vmem %s4, %s186
      %p188 = scmp.lt.s32.totalorder %s15, 1
      %s189 = scalar_select %p188, %s15, 1
      %s190 = smul.addr %s189, 54
      %s191 = smul.addr %s190, 4
      %s192 = scalar_lea.vmem %s0, %s191
      %p193 = scmp.lt.s32.totalorder %s15, 1
      %s194 = scalar_select %p193, %s15, 1
      %s195 = smul.addr %s194, 32
      %s196 = smul.addr %s195, 4
      %s197 = scalar_lea.vmem %s4, %s196
      %v199 = vld [vmem:[%s192] sm:$0xf]
      %v200 = vld [vmem:[%s192 + $0x4] sm:$0xf]
      %v201 = vld [vmem:[%s192 + $0xc] sm:$0xf]
      %v202 = vld [vmem:[%s192 + $0x10] sm:$0xf]
      %v203 = vld [vmem:[%s192 + $0x18] sm:$0xf]
      %v204 = vld [vmem:[%s192 + $0x1c] sm:$0xf]
      %v205 = vld [vmem:[%s192 + $0x24] sm:$0xf]
      %v206 = vld [vmem:[%s192 + $0x28] sm:$0xf]
      %v207 = vld [vmem:[%s192 + $0x30] sm:$0xf]
      %v208 = vld [vmem:[%s192 + $0x34] sm:$0xf]
      %v209 = vld [vmem:[%s192 + $0x3c] sm:$0xf]
      %v210 = vld [vmem:[%s192 + $0x40] sm:$0xf]
      %v211 = vld [vmem:[%s192 + $0x48] sm:$0xf]
      %v212 = vld [vmem:[%s192 + $0x4c] sm:$0xf]
      %v213 = vld [vmem:[%s192 + $0x54] sm:$0xf]
      %v214 = vld [vmem:[%s192 + $0x58] sm:$0xf]
      %v215 = vld [vmem:[%s192 + $0x60] sm:$0xf]
      %v216 = vld [vmem:[%s192 + $0x64] sm:$0xf]
      %v217 = vld [vmem:[%s192 + $0x6c] sm:$0xf]
      %v218 = vld [vmem:[%s192 + $0x70] sm:$0xf]
      %v219 = vld [vmem:[%s192 + $0x78] sm:$0xf]
      %v220 = vld [vmem:[%s192 + $0x7c] sm:$0xf]
      %v221 = vld [vmem:[%s192 + $0x84] sm:$0xf]
      %v222 = vld [vmem:[%s192 + $0x88] sm:$0xf]
      %v223 = vld [vmem:[%s192 + $0x90] sm:$0xf]
      %v224 = vld [vmem:[%s192 + $0x94] sm:$0xf]
      %v225 = vld [vmem:[%s192 + $0x9c] sm:$0xf]
      %v226 = vld [vmem:[%s192 + $0xa0] sm:$0xf]
      %v227 = vld [vmem:[%s192 + $0xa8] sm:$0xf]
      %v228 = vld [vmem:[%s192 + $0xac] sm:$0xf]
      %v229 = vld [vmem:[%s192 + $0xb4] sm:$0xf]
      %v230 = vld [vmem:[%s192 + $0xb8] sm:$0xf]
      %v231 = vld [vmem:[%s1] sm:$0x3]
      %v232 = vld [vmem:[%s192 + $0x8] sm:$0x1]
      %v233 = vld [vmem:[%s192 + $0x14] sm:$0x1]
      %v234 = vld [vmem:[%s192 + $0x20] sm:$0x1]
      %v235 = vld [vmem:[%s192 + $0x2c] sm:$0x1]
      %v236 = vld [vmem:[%s192 + $0x38] sm:$0x1]
      %v237 = vld [vmem:[%s192 + $0x44] sm:$0x1]
      %v238 = vld [vmem:[%s192 + $0x50] sm:$0x1]
      %v239 = vld [vmem:[%s192 + $0x5c] sm:$0x1]
      %v240 = vld [vmem:[%s192 + $0x68] sm:$0x1]
      %v241 = vld [vmem:[%s192 + $0x74] sm:$0x1]
      %v242 = vld [vmem:[%s192 + $0x80] sm:$0x1]
      %v243 = vld [vmem:[%s192 + $0x8c] sm:$0x1]
      %v244 = vld [vmem:[%s192 + $0x98] sm:$0x1]
      %v245 = vld [vmem:[%s192 + $0xa4] sm:$0x1]
      %v246 = vld [vmem:[%s192 + $0xb0] sm:$0x1]
      %v247 = vld [vmem:[%s192 + $0xbc] sm:$0x1]
      %vm248 = vsmask.f32 3328
      %vm249 = vsmask.f32 7440
      %vm250 = vmor %vm248, %vm249
      %v252 = vshrl.u32 %v199, 16
      %v254 = vrot.slane %v252, 4
      %v255 = vshll.u32 %v199, 16
      %v257 = vrot.slane %v255, 5
      %v258 = vor.u32 %v254, %v257
      %v259 = vrot.slane %v258, 4
      %v261 = vshll.u32 %v200, 16
      %v263 = vrot.slane %v261, 5
      %v264 = vsel %vm250, %v259, %v263
      %v265 = vshrl.u32 %v200, 16
      %v267 = vrot.slane %v265, 4
      %v268 = vor.u32 %v267, %v263
      %v269 = vrot.slane %v268, 4
      %v271 = vshll.u32 %v232, 16
      %v273 = vrot.slane %v271, 5
      %v274 = vsel %vm250, %v269, %v273
      %v276 = vshrl.u32 %v201, 16
      %v278 = vrot.slane %v276, 4
      %v279 = vshll.u32 %v201, 16
      %v281 = vrot.slane %v279, 5
      %v282 = vor.u32 %v278, %v281
      %v283 = vrot.slane %v282, 4
      %v285 = vshll.u32 %v202, 16
      %v287 = vrot.slane %v285, 5
      %v288 = vsel %vm250, %v283, %v287
      %v289 = vshrl.u32 %v202, 16
      %v291 = vrot.slane %v289, 4
      %v292 = vor.u32 %v291, %v287
      %v293 = vrot.slane %v292, 4
      %v295 = vshll.u32 %v233, 16
      %v297 = vrot.slane %v295, 5
      %v298 = vsel %vm250, %v293, %v297
      %v300 = vshrl.u32 %v203, 16
      %v302 = vrot.slane %v300, 4
      %v303 = vshll.u32 %v203, 16
      %v305 = vrot.slane %v303, 5
      %v306 = vor.u32 %v302, %v305
      %v307 = vrot.slane %v306, 4
      %v309 = vshll.u32 %v204, 16
      %v311 = vrot.slane %v309, 5
      %v312 = vsel %vm250, %v307, %v311
      %v313 = vshrl.u32 %v204, 16
      %v315 = vrot.slane %v313, 4
      %v316 = vor.u32 %v315, %v311
      %v317 = vrot.slane %v316, 4
      %v319 = vshll.u32 %v234, 16
      %v321 = vrot.slane %v319, 5
      %v322 = vsel %vm250, %v317, %v321
      %v324 = vshrl.u32 %v205, 16
      %v326 = vrot.slane %v324, 4
      %v327 = vshll.u32 %v205, 16
      %v329 = vrot.slane %v327, 5
      %v330 = vor.u32 %v326, %v329
      %v331 = vrot.slane %v330, 4
      %v333 = vshll.u32 %v206, 16
      %v335 = vrot.slane %v333, 5
      %v336 = vsel %vm250, %v331, %v335
      %v337 = vshrl.u32 %v206, 16
      %v339 = vrot.slane %v337, 4
      %v340 = vor.u32 %v339, %v335
      %v341 = vrot.slane %v340, 4
      %v343 = vshll.u32 %v235, 16
      %v345 = vrot.slane %v343, 5
      %v346 = vsel %vm250, %v341, %v345
      %v348 = vshrl.u32 %v207, 16
      %v350 = vrot.slane %v348, 4
      %v351 = vshll.u32 %v207, 16
      %v353 = vrot.slane %v351, 5
      %v354 = vor.u32 %v350, %v353
      %v355 = vrot.slane %v354, 4
      %v357 = vshll.u32 %v208, 16
      %v359 = vrot.slane %v357, 5
      %v360 = vsel %vm250, %v355, %v359
      %v361 = vshrl.u32 %v208, 16
      %v363 = vrot.slane %v361, 4
      %v364 = vor.u32 %v363, %v359
      %v365 = vrot.slane %v364, 4
      %v367 = vshll.u32 %v236, 16
      %v369 = vrot.slane %v367, 5
      %v370 = vsel %vm250, %v365, %v369
      %v372 = vshrl.u32 %v209, 16
      %v374 = vrot.slane %v372, 4
      %v375 = vshll.u32 %v209, 16
      %v377 = vrot.slane %v375, 5
      %v378 = vor.u32 %v374, %v377
      %v379 = vrot.slane %v378, 4
      %v381 = vshll.u32 %v210, 16
      %v383 = vrot.slane %v381, 5
      %v384 = vsel %vm250, %v379, %v383
      %v385 = vshrl.u32 %v210, 16
      %v387 = vrot.slane %v385, 4
      %v388 = vor.u32 %v387, %v383
      %v389 = vrot.slane %v388, 4
      %v391 = vshll.u32 %v237, 16
      %v393 = vrot.slane %v391, 5
      %v394 = vsel %vm250, %v389, %v393
      %v396 = vshrl.u32 %v211, 16
      %v398 = vrot.slane %v396, 4
      %v399 = vshll.u32 %v211, 16
      %v401 = vrot.slane %v399, 5
      %v402 = vor.u32 %v398, %v401
      %v403 = vrot.slane %v402, 4
      %v405 = vshll.u32 %v212, 16
      %v407 = vrot.slane %v405, 5
      %v408 = vsel %vm250, %v403, %v407
      %v409 = vshrl.u32 %v212, 16
      %v411 = vrot.slane %v409, 4
      %v412 = vor.u32 %v411, %v407
      %v413 = vrot.slane %v412, 4
      %v415 = vshll.u32 %v238, 16
      %v417 = vrot.slane %v415, 5
      %v418 = vsel %vm250, %v413, %v417
      %v420 = vshrl.u32 %v213, 16
      %v422 = vrot.slane %v420, 4
      %v423 = vshll.u32 %v213, 16
      %v425 = vrot.slane %v423, 5
      %v426 = vor.u32 %v422, %v425
      %v427 = vrot.slane %v426, 4
      %v429 = vshll.u32 %v214, 16
      %v431 = vrot.slane %v429, 5
      %v432 = vsel %vm250, %v427, %v431
      %v433 = vshrl.u32 %v214, 16
      %v435 = vrot.slane %v433, 4
      %v436 = vor.u32 %v435, %v431
      %v437 = vrot.slane %v436, 4
      %v439 = vshll.u32 %v239, 16
      %v441 = vrot.slane %v439, 5
      %v442 = vsel %vm250, %v437, %v441
      %v444 = vshrl.u32 %v215, 16
      %v446 = vrot.slane %v444, 4
      %v447 = vshll.u32 %v215, 16
      %v449 = vrot.slane %v447, 5
      %v450 = vor.u32 %v446, %v449
      %v451 = vrot.slane %v450, 4
      %v453 = vshll.u32 %v216, 16
      %v455 = vrot.slane %v453, 5
      %v456 = vsel %vm250, %v451, %v455
      %v457 = vshrl.u32 %v216, 16
      %v459 = vrot.slane %v457, 4
      %v460 = vor.u32 %v459, %v455
      %v461 = vrot.slane %v460, 4
      %v463 = vshll.u32 %v240, 16
      %v465 = vrot.slane %v463, 5
      %v466 = vsel %vm250, %v461, %v465
      %v468 = vshrl.u32 %v217, 16
      %v470 = vrot.slane %v468, 4
      %v471 = vshll.u32 %v217, 16
      %v473 = vrot.slane %v471, 5
      %v474 = vor.u32 %v470, %v473
      %v475 = vrot.slane %v474, 4
      %v477 = vshll.u32 %v218, 16
      %v479 = vrot.slane %v477, 5
      %v480 = vsel %vm250, %v475, %v479
      %v481 = vshrl.u32 %v218, 16
      %v483 = vrot.slane %v481, 4
      %v484 = vor.u32 %v483, %v479
      %v485 = vrot.slane %v484, 4
      %v487 = vshll.u32 %v241, 16
      %v489 = vrot.slane %v487, 5
      %v490 = vsel %vm250, %v485, %v489
      %v492 = vshrl.u32 %v219, 16
      %v494 = vrot.slane %v492, 4
      %v495 = vshll.u32 %v219, 16
      %v497 = vrot.slane %v495, 5
      %v498 = vor.u32 %v494, %v497
      %v499 = vrot.slane %v498, 4
      %v501 = vshll.u32 %v220, 16
      %v503 = vrot.slane %v501, 5
      %v504 = vsel %vm250, %v499, %v503
      %v505 = vshrl.u32 %v220, 16
      %v507 = vrot.slane %v505, 4
      %v508 = vor.u32 %v507, %v503
      %v509 = vrot.slane %v508, 4
      %v511 = vshll.u32 %v242, 16
      %v513 = vrot.slane %v511, 5
      %v514 = vsel %vm250, %v509, %v513
      %v516 = vshrl.u32 %v221, 16
      %v518 = vrot.slane %v516, 4
      %v519 = vshll.u32 %v221, 16
      %v521 = vrot.slane %v519, 5
      %v522 = vor.u32 %v518, %v521
      %v523 = vrot.slane %v522, 4
      %v525 = vshll.u32 %v222, 16
      %v527 = vrot.slane %v525, 5
      %v528 = vsel %vm250, %v523, %v527
      %v529 = vshrl.u32 %v222, 16
      %v531 = vrot.slane %v529, 4
      %v532 = vor.u32 %v531, %v527
      %v533 = vrot.slane %v532, 4
      %v535 = vshll.u32 %v243, 16
      %v537 = vrot.slane %v535, 5
      %v538 = vsel %vm250, %v533, %v537
      %v540 = vshrl.u32 %v223, 16
      %v542 = vrot.slane %v540, 4
      %v543 = vshll.u32 %v223, 16
      %v545 = vrot.slane %v543, 5
      %v546 = vor.u32 %v542, %v545
      %v547 = vrot.slane %v546, 4
      %v549 = vshll.u32 %v224, 16
      %v551 = vrot.slane %v549, 5
      %v552 = vsel %vm250, %v547, %v551
      %v553 = vshrl.u32 %v224, 16
      %v555 = vrot.slane %v553, 4
      %v556 = vor.u32 %v555, %v551
      %v557 = vrot.slane %v556, 4
      %v559 = vshll.u32 %v244, 16
      %v561 = vrot.slane %v559, 5
      %v562 = vsel %vm250, %v557, %v561
      %v564 = vshrl.u32 %v225, 16
      %v566 = vrot.slane %v564, 4
      %v567 = vshll.u32 %v225, 16
      %v569 = vrot.slane %v567, 5
      %v570 = vor.u32 %v566, %v569
      %v571 = vrot.slane %v570, 4
      %v573 = vshll.u32 %v226, 16
      %v575 = vrot.slane %v573, 5
      %v576 = vsel %vm250, %v571, %v575
      %v577 = vshrl.u32 %v226, 16
      %v579 = vrot.slane %v577, 4
      %v580 = vor.u32 %v579, %v575
      %v581 = vrot.slane %v580, 4
      %v583 = vshll.u32 %v245, 16
      %v585 = vrot.slane %v583, 5
      %v586 = vsel %vm250, %v581, %v585
      %v588 = vshrl.u32 %v227, 16
      %v590 = vrot.slane %v588, 4
      %v591 = vshll.u32 %v227, 16
      %v593 = vrot.slane %v591, 5
      %v594 = vor.u32 %v590, %v593
      %v595 = vrot.slane %v594, 4
      %v597 = vshll.u32 %v228, 16
      %v599 = vrot.slane %v597, 5
      %v600 = vsel %vm250, %v595, %v599
      %v601 = vshrl.u32 %v228, 16
      %v603 = vrot.slane %v601, 4
      %v604 = vor.u32 %v603, %v599
      %v605 = vrot.slane %v604, 4
      %v607 = vshll.u32 %v246, 16
      %v609 = vrot.slane %v607, 5
      %v610 = vsel %vm250, %v605, %v609
      %v612 = vshrl.u32 %v229, 16
      %v614 = vrot.slane %v612, 4
      %v615 = vshll.u32 %v229, 16
      %v617 = vrot.slane %v615, 5
      %v618 = vor.u32 %v614, %v617
      %v619 = vrot.slane %v618, 4
      %v621 = vshll.u32 %v230, 16
      %v623 = vrot.slane %v621, 5
      %v624 = vsel %vm250, %v619, %v623
      %v625 = vshrl.u32 %v230, 16
      %v627 = vrot.slane %v625, 4
      %v628 = vor.u32 %v627, %v623
      %v629 = vrot.slane %v628, 4
      %v631 = vshll.u32 %v247, 16
      %v633 = vrot.slane %v631, 5
      %v634 = vsel %vm250, %v629, %v633
      %s635 = scalar_lea.vmem %s1, 2
      %v636 = vld [vmem:[%s635] sm:$0x3]
      %v637 = vunpack.c.l.b16 %v264
      %v638 = vunpack.c.l.b16 %v274
      %v639 = vunpack.c.l.b16 %v288
      %v640 = vunpack.c.l.b16 %v298
      %v641 = vunpack.c.l.b16 %v312
      %v642 = vunpack.c.l.b16 %v322
      %v643 = vunpack.c.l.b16 %v336
      %v644 = vunpack.c.l.b16 %v346
      %v645 = vunpack.c.l.b16 %v360
      %v646 = vunpack.c.l.b16 %v370
      %v647 = vunpack.c.l.b16 %v384
      %v648 = vunpack.c.l.b16 %v394
      %v649 = vunpack.c.l.b16 %v408
      %v650 = vunpack.c.l.b16 %v418
      %v651 = vunpack.c.l.b16 %v432
      %v652 = vunpack.c.l.b16 %v442
      %v653 = vunpack.c.l.b16 %v456
      %v654 = vunpack.c.l.b16 %v466
      %v655 = vunpack.c.l.b16 %v480
      %v656 = vunpack.c.l.b16 %v490
      %v657 = vunpack.c.l.b16 %v504
      %v658 = vunpack.c.l.b16 %v514
      %v659 = vunpack.c.l.b16 %v528
      %v660 = vunpack.c.l.b16 %v538
      %v661 = vunpack.c.l.b16 %v552
      %v662 = vunpack.c.l.b16 %v562
      %v663 = vunpack.c.l.b16 %v576
      %v664 = vunpack.c.l.b16 %v586
      %v665 = vunpack.c.l.b16 %v600
      %v666 = vunpack.c.l.b16 %v610
      %v667 = vunpack.c.l.b16 %v624
      %v668 = vunpack.c.l.b16 %v634
      %v669 = vpack.c.b16 %v638, %v637
      %v670 = vpack.c.b16 %v640, %v639
      %v671 = vpack.c.b16 %v642, %v641
      %v672 = vpack.c.b16 %v644, %v643
      %v673 = vpack.c.b16 %v646, %v645
      %v674 = vpack.c.b16 %v648, %v647
      %v675 = vpack.c.b16 %v650, %v649
      %v676 = vpack.c.b16 %v652, %v651
      %v677 = vpack.c.b16 %v654, %v653
      %v678 = vpack.c.b16 %v656, %v655
      %v679 = vpack.c.b16 %v658, %v657
      %v680 = vpack.c.b16 %v660, %v659
      %v681 = vpack.c.b16 %v662, %v661
      %v682 = vpack.c.b16 %v664, %v663
      %v683 = vpack.c.b16 %v666, %v665
      %v684 = vpack.c.b16 %v668, %v667
      %vm685 = vcmask 31744
      %v687 = vsel %vm685, %v669, 0
      %v690 = vsel %vm685, %v670, 0
      %v693 = vsel %vm685, %v671, 0
      %v696 = vsel %vm685, %v672, 0
      %v699 = vsel %vm685, %v673, 0
      %v702 = vsel %vm685, %v674, 0
      %v705 = vsel %vm685, %v675, 0
      %v708 = vsel %vm685, %v676, 0
      %v711 = vsel %vm685, %v677, 0
      %v714 = vsel %vm685, %v678, 0
      %v717 = vsel %vm685, %v679, 0
      %v720 = vsel %vm685, %v680, 0
      %v723 = vsel %vm685, %v681, 0
      %v726 = vsel %vm685, %v682, 0
      %v729 = vsel %vm685, %v683, 0
      %v732 = vsel %vm685, %v684, 0
      %vm734 = vcmask 1041408
      %v736 = vsel %vm734, %v636, 0
      %738 = vmatpush.bf16.msra.mxu0 0
      %739 = vmatpush.bf16.msra.mxu0 0
      %740 = vmatpush.bf16.msra.mxu0 0
      %741 = vmatpush.bf16.msra.mxu0 0
      %742 = vmatpush.bf16.msra.mxu0 0
      %743 = vmatpush.bf16.msra.mxu0 0
      %744 = vmatpush.bf16.msra.mxu0 0
      %745 = vmatpush.bf16.msra.mxu0 %v736
      %746 = vmatmul.bf16.gmra.mxu0 %v687
      %v747 = vpop.f32.mrf.mxu0
      %v748 = vadd.f32 0.0, %v747
      %v749 = vpop.f32.mrf.mxu0
      %v750 = vadd.f32 0.0, %v749
      %751 = vmatmul.bf16.gmra.mxu0 %v690
      %v752 = vpop.f32.mrf.mxu0
      %v753 = vadd.f32 0.0, %v752
      %v754 = vpop.f32.mrf.mxu0
      %v755 = vadd.f32 0.0, %v754
      %756 = vmatmul.bf16.gmra.mxu0 %v693
      %v757 = vpop.f32.mrf.mxu0
      %v758 = vadd.f32 0.0, %v757
      %v759 = vpop.f32.mrf.mxu0
      %v760 = vadd.f32 0.0, %v759
      %761 = vmatmul.bf16.gmra.mxu0 %v696
      %v762 = vpop.f32.mrf.mxu0
      %v763 = vadd.f32 0.0, %v762
      %v764 = vpop.f32.mrf.mxu0
      %v765 = vadd.f32 0.0, %v764
      %766 = vmatmul.bf16.gmra.mxu0 %v699
      %v767 = vpop.f32.mrf.mxu0
      %v768 = vadd.f32 0.0, %v767
      %v769 = vpop.f32.mrf.mxu0
      %v770 = vadd.f32 0.0, %v769
      %771 = vmatmul.bf16.gmra.mxu0 %v702
      %v772 = vpop.f32.mrf.mxu0
      %v773 = vadd.f32 0.0, %v772
      %v774 = vpop.f32.mrf.mxu0
      %v775 = vadd.f32 0.0, %v774
      %776 = vmatmul.bf16.gmra.mxu0 %v705
      %v777 = vpop.f32.mrf.mxu0
      %v778 = vadd.f32 0.0, %v777
      %v779 = vpop.f32.mrf.mxu0
      %v780 = vadd.f32 0.0, %v779
      %781 = vmatmul.bf16.gmra.mxu0 %v708
      %v782 = vpop.f32.mrf.mxu0
      %v783 = vadd.f32 0.0, %v782
      %v784 = vpop.f32.mrf.mxu0
      %v785 = vadd.f32 0.0, %v784
      %786 = vmatmul.bf16.gmra.mxu0 %v711
      %v787 = vpop.f32.mrf.mxu0
      %v788 = vadd.f32 0.0, %v787
      %v789 = vpop.f32.mrf.mxu0
      %v790 = vadd.f32 0.0, %v789
      %791 = vmatmul.bf16.gmra.mxu0 %v714
      %v792 = vpop.f32.mrf.mxu0
      %v793 = vadd.f32 0.0, %v792
      %v794 = vpop.f32.mrf.mxu0
      %v795 = vadd.f32 0.0, %v794
      %796 = vmatmul.bf16.gmra.mxu0 %v717
      %v797 = vpop.f32.mrf.mxu0
      %v798 = vadd.f32 0.0, %v797
      %v799 = vpop.f32.mrf.mxu0
      %v800 = vadd.f32 0.0, %v799
      %801 = vmatmul.bf16.gmra.mxu0 %v720
      %v802 = vpop.f32.mrf.mxu0
      %v803 = vadd.f32 0.0, %v802
      %v804 = vpop.f32.mrf.mxu0
      %v805 = vadd.f32 0.0, %v804
      %806 = vmatmul.bf16.gmra.mxu0 %v723
      %v807 = vpop.f32.mrf.mxu0
      %v808 = vadd.f32 0.0, %v807
      %v809 = vpop.f32.mrf.mxu0
      %v810 = vadd.f32 0.0, %v809
      %811 = vmatmul.bf16.gmra.mxu0 %v726
      %v812 = vpop.f32.mrf.mxu0
      %v813 = vadd.f32 0.0, %v812
      %v814 = vpop.f32.mrf.mxu0
      %v815 = vadd.f32 0.0, %v814
      %816 = vmatmul.bf16.gmra.mxu0 %v729
      %v817 = vpop.f32.mrf.mxu0
      %v818 = vadd.f32 0.0, %v817
      %v819 = vpop.f32.mrf.mxu0
      %v820 = vadd.f32 0.0, %v819
      %821 = vmatmul.bf16.gmra.mxu0 %v732
      %v822 = vpop.f32.mrf.mxu0
      %v823 = vadd.f32 0.0, %v822
      %v824 = vpop.f32.mrf.mxu0
      %v825 = vadd.f32 0.0, %v824
      %826 = vdwg.mxu0
      %v859 = vunpack.c.l.b16 %v199
      %v860 = vunpack.c.l.b16 %v200
      %v861 = vunpack.c.l.b16 %v201
      %v862 = vunpack.c.l.b16 %v202
      %v863 = vunpack.c.l.b16 %v203
      %v864 = vunpack.c.l.b16 %v204
      %v865 = vunpack.c.l.b16 %v205
      %v866 = vunpack.c.l.b16 %v206
      %v867 = vunpack.c.l.b16 %v207
      %v868 = vunpack.c.l.b16 %v208
      %v869 = vunpack.c.l.b16 %v209
      %v870 = vunpack.c.l.b16 %v210
      %v871 = vunpack.c.l.b16 %v211
      %v872 = vunpack.c.l.b16 %v212
      %v873 = vunpack.c.l.b16 %v213
      %v874 = vunpack.c.l.b16 %v214
      %v875 = vunpack.c.l.b16 %v215
      %v876 = vunpack.c.l.b16 %v216
      %v877 = vunpack.c.l.b16 %v217
      %v878 = vunpack.c.l.b16 %v218
      %v879 = vunpack.c.l.b16 %v219
      %v880 = vunpack.c.l.b16 %v220
      %v881 = vunpack.c.l.b16 %v221
      %v882 = vunpack.c.l.b16 %v222
      %v883 = vunpack.c.l.b16 %v223
      %v884 = vunpack.c.l.b16 %v224
      %v885 = vunpack.c.l.b16 %v225
      %v886 = vunpack.c.l.b16 %v226
      %v887 = vunpack.c.l.b16 %v227
      %v888 = vunpack.c.l.b16 %v228
      %v889 = vunpack.c.l.b16 %v229
      %v890 = vunpack.c.l.b16 %v230
      %v891 = vpack.c.b16 %v860, %v859
      %v892 = vpack.c.b16 %v862, %v861
      %v893 = vpack.c.b16 %v864, %v863
      %v894 = vpack.c.b16 %v866, %v865
      %v895 = vpack.c.b16 %v868, %v867
      %v896 = vpack.c.b16 %v870, %v869
      %v897 = vpack.c.b16 %v872, %v871
      %v898 = vpack.c.b16 %v874, %v873
      %v899 = vpack.c.b16 %v876, %v875
      %v900 = vpack.c.b16 %v878, %v877
      %v901 = vpack.c.b16 %v880, %v879
      %v902 = vpack.c.b16 %v882, %v881
      %v903 = vpack.c.b16 %v884, %v883
      %v904 = vpack.c.b16 %v886, %v885
      %v905 = vpack.c.b16 %v888, %v887
      %v906 = vpack.c.b16 %v890, %v889
      %v908 = vsel %vm685, %v891, 0
      %v911 = vsel %vm685, %v892, 0
      %v914 = vsel %vm685, %v893, 0
      %v917 = vsel %vm685, %v894, 0
      %v920 = vsel %vm685, %v895, 0
      %v923 = vsel %vm685, %v896, 0
      %v926 = vsel %vm685, %v897, 0
      %v929 = vsel %vm685, %v898, 0
      %v932 = vsel %vm685, %v899, 0
      %v935 = vsel %vm685, %v900, 0
      %v938 = vsel %vm685, %v901, 0
      %v941 = vsel %vm685, %v902, 0
      %v944 = vsel %vm685, %v903, 0
      %v947 = vsel %vm685, %v904, 0
      %v950 = vsel %vm685, %v905, 0
      %v953 = vsel %vm685, %v906, 0
      %v956 = vsel %vm734, %v231, 0
      %958 = vmatpush.bf16.msra.mxu0 0
      %959 = vmatpush.bf16.msra.mxu0 0
      %960 = vmatpush.bf16.msra.mxu0 0
      %961 = vmatpush.bf16.msra.mxu0 0
      %962 = vmatpush.bf16.msra.mxu0 0
      %963 = vmatpush.bf16.msra.mxu0 0
      %964 = vmatpush.bf16.msra.mxu0 0
      %965 = vmatpush.bf16.msra.mxu0 %v956
      %966 = vmatmul.bf16.gmra.mxu0 %v908
      %v967 = vpop.f32.mrf.mxu0
      %v968 = vadd.f32 %v748, %v967
      %v969 = vpop.f32.mrf.mxu0
      %v970 = vadd.f32 %v750, %v969
      %971 = vmatmul.bf16.gmra.mxu0 %v911
      %v972 = vpop.f32.mrf.mxu0
      %v973 = vadd.f32 %v753, %v972
      %v974 = vpop.f32.mrf.mxu0
      %v975 = vadd.f32 %v755, %v974
      %976 = vmatmul.bf16.gmra.mxu0 %v914
      %v977 = vpop.f32.mrf.mxu0
      %v978 = vadd.f32 %v758, %v977
      %v979 = vpop.f32.mrf.mxu0
      %v980 = vadd.f32 %v760, %v979
      %981 = vmatmul.bf16.gmra.mxu0 %v917
      %v982 = vpop.f32.mrf.mxu0
      %v983 = vadd.f32 %v763, %v982
      %v984 = vpop.f32.mrf.mxu0
      %v985 = vadd.f32 %v765, %v984
      %986 = vmatmul.bf16.gmra.mxu0 %v920
      %v987 = vpop.f32.mrf.mxu0
      %v988 = vadd.f32 %v768, %v987
      %v989 = vpop.f32.mrf.mxu0
      %v990 = vadd.f32 %v770, %v989
      %991 = vmatmul.bf16.gmra.mxu0 %v923
      %v992 = vpop.f32.mrf.mxu0
      %v993 = vadd.f32 %v773, %v992
      %v994 = vpop.f32.mrf.mxu0
      %v995 = vadd.f32 %v775, %v994
      %996 = vmatmul.bf16.gmra.mxu0 %v926
      %v997 = vpop.f32.mrf.mxu0
      %v998 = vadd.f32 %v778, %v997
      %v999 = vpop.f32.mrf.mxu0
      %v1000 = vadd.f32 %v780, %v999
      %1001 = vmatmul.bf16.gmra.mxu0 %v929
      %v1002 = vpop.f32.mrf.mxu0
      %v1003 = vadd.f32 %v783, %v1002
      %v1004 = vpop.f32.mrf.mxu0
      %v1005 = vadd.f32 %v785, %v1004
      %1006 = vmatmul.bf16.gmra.mxu0 %v932
      %v1007 = vpop.f32.mrf.mxu0
      %v1008 = vadd.f32 %v788, %v1007
      %v1009 = vpop.f32.mrf.mxu0
      %v1010 = vadd.f32 %v790, %v1009
      %1011 = vmatmul.bf16.gmra.mxu0 %v935
      %v1012 = vpop.f32.mrf.mxu0
      %v1013 = vadd.f32 %v793, %v1012
      %v1014 = vpop.f32.mrf.mxu0
      %v1015 = vadd.f32 %v795, %v1014
      %1016 = vmatmul.bf16.gmra.mxu0 %v938
      %v1017 = vpop.f32.mrf.mxu0
      %v1018 = vadd.f32 %v798, %v1017
      %v1019 = vpop.f32.mrf.mxu0
      %v1020 = vadd.f32 %v800, %v1019
      %1021 = vmatmul.bf16.gmra.mxu0 %v941
      %v1022 = vpop.f32.mrf.mxu0
      %v1023 = vadd.f32 %v803, %v1022
      %v1024 = vpop.f32.mrf.mxu0
      %v1025 = vadd.f32 %v805, %v1024
      %1026 = vmatmul.bf16.gmra.mxu0 %v944
      %v1027 = vpop.f32.mrf.mxu0
      %v1028 = vadd.f32 %v808, %v1027
      %v1029 = vpop.f32.mrf.mxu0
      %v1030 = vadd.f32 %v810, %v1029
      %1031 = vmatmul.bf16.gmra.mxu0 %v947
      %v1032 = vpop.f32.mrf.mxu0
      %v1033 = vadd.f32 %v813, %v1032
      %v1034 = vpop.f32.mrf.mxu0
      %v1035 = vadd.f32 %v815, %v1034
      %1036 = vmatmul.bf16.gmra.mxu0 %v950
      %v1037 = vpop.f32.mrf.mxu0
      %v1038 = vadd.f32 %v818, %v1037
      %v1039 = vpop.f32.mrf.mxu0
      %v1040 = vadd.f32 %v820, %v1039
      %1041 = vmatmul.bf16.gmra.mxu0 %v953
      %v1042 = vpop.f32.mrf.mxu0
      %v1043 = vadd.f32 %v823, %v1042
      %v1044 = vpop.f32.mrf.mxu0
      %v1045 = vadd.f32 %v825, %v1044
      %1046 = vdwg.mxu0
      %v1047 = vld [vmem:[%s192] sm:$0xe]
      %v1048 = vld [vmem:[%s192 + $0xc] sm:$0xe]
      %v1049 = vld [vmem:[%s192 + $0x18] sm:$0xe]
      %v1050 = vld [vmem:[%s192 + $0x24] sm:$0xe]
      %v1051 = vld [vmem:[%s192 + $0x30] sm:$0xe]
      %v1052 = vld [vmem:[%s192 + $0x3c] sm:$0xe]
      %v1053 = vld [vmem:[%s192 + $0x48] sm:$0xe]
      %v1054 = vld [vmem:[%s192 + $0x54] sm:$0xe]
      %v1055 = vld [vmem:[%s192 + $0x60] sm:$0xe]
      %v1056 = vld [vmem:[%s192 + $0x6c] sm:$0xe]
      %v1057 = vld [vmem:[%s192 + $0x78] sm:$0xe]
      %v1058 = vld [vmem:[%s192 + $0x84] sm:$0xe]
      %v1059 = vld [vmem:[%s192 + $0x90] sm:$0xe]
      %v1060 = vld [vmem:[%s192 + $0x9c] sm:$0xe]
      %v1061 = vld [vmem:[%s192 + $0xa8] sm:$0xe]
      %v1062 = vld [vmem:[%s192 + $0xb4] sm:$0xe]
      %vm1095 = vcmask 1042432
      %vm1096 = vcmask 1046532
      %vm1097 = vmor %vm1095, %vm1096
      %v1098 = vrot.slane %v1047, 5
      %v1099 = vrot.slane %v1098, 4
      %v1100 = vrot.slane %v200, 5
      %v1101 = vsel %vm1097, %v1099, %v1100
      %v1102 = vrot.slane %v1100, 4
      %v1103 = vrot.slane %v232, 5
      %v1104 = vsel %vm1097, %v1102, %v1103
      %v1105 = vrot.slane %v1048, 5
      %v1106 = vrot.slane %v1105, 4
      %v1107 = vrot.slane %v202, 5
      %v1108 = vsel %vm1097, %v1106, %v1107
      %v1109 = vrot.slane %v1107, 4
      %v1110 = vrot.slane %v233, 5
      %v1111 = vsel %vm1097, %v1109, %v1110
      %v1112 = vrot.slane %v1049, 5
      %v1113 = vrot.slane %v1112, 4
      %v1114 = vrot.slane %v204, 5
      %v1115 = vsel %vm1097, %v1113, %v1114
      %v1116 = vrot.slane %v1114, 4
      %v1117 = vrot.slane %v234, 5
      %v1118 = vsel %vm1097, %v1116, %v1117
      %v1119 = vrot.slane %v1050, 5
      %v1120 = vrot.slane %v1119, 4
      %v1121 = vrot.slane %v206, 5
      %v1122 = vsel %vm1097, %v1120, %v1121
      %v1123 = vrot.slane %v1121, 4
      %v1124 = vrot.slane %v235, 5
      %v1125 = vsel %vm1097, %v1123, %v1124
      %v1126 = vrot.slane %v1051, 5
      %v1127 = vrot.slane %v1126, 4
      %v1128 = vrot.slane %v208, 5
      %v1129 = vsel %vm1097, %v1127, %v1128
      %v1130 = vrot.slane %v1128, 4
      %v1131 = vrot.slane %v236, 5
      %v1132 = vsel %vm1097, %v1130, %v1131
      %v1133 = vrot.slane %v1052, 5
      %v1134 = vrot.slane %v1133, 4
      %v1135 = vrot.slane %v210, 5
      %v1136 = vsel %vm1097, %v1134, %v1135
      %v1137 = vrot.slane %v1135, 4
      %v1138 = vrot.slane %v237, 5
      %v1139 = vsel %vm1097, %v1137, %v1138
      %v1140 = vrot.slane %v1053, 5
      %v1141 = vrot.slane %v1140, 4
      %v1142 = vrot.slane %v212, 5
      %v1143 = vsel %vm1097, %v1141, %v1142
      %v1144 = vrot.slane %v1142, 4
      %v1145 = vrot.slane %v238, 5
      %v1146 = vsel %vm1097, %v1144, %v1145
      %v1147 = vrot.slane %v1054, 5
      %v1148 = vrot.slane %v1147, 4
      %v1149 = vrot.slane %v214, 5
      %v1150 = vsel %vm1097, %v1148, %v1149
      %v1151 = vrot.slane %v1149, 4
      %v1152 = vrot.slane %v239, 5
      %v1153 = vsel %vm1097, %v1151, %v1152
      %v1154 = vrot.slane %v1055, 5
      %v1155 = vrot.slane %v1154, 4
      %v1156 = vrot.slane %v216, 5
      %v1157 = vsel %vm1097, %v1155, %v1156
      %v1158 = vrot.slane %v1156, 4
      %v1159 = vrot.slane %v240, 5
      %v1160 = vsel %vm1097, %v1158, %v1159
      %v1161 = vrot.slane %v1056, 5
      %v1162 = vrot.slane %v1161, 4
      %v1163 = vrot.slane %v218, 5
      %v1164 = vsel %vm1097, %v1162, %v1163
      %v1165 = vrot.slane %v1163, 4
      %v1166 = vrot.slane %v241, 5
      %v1167 = vsel %vm1097, %v1165, %v1166
      %v1168 = vrot.slane %v1057, 5
      %v1169 = vrot.slane %v1168, 4
      %v1170 = vrot.slane %v220, 5
      %v1171 = vsel %vm1097, %v1169, %v1170
      %v1172 = vrot.slane %v1170, 4
      %v1173 = vrot.slane %v242, 5
      %v1174 = vsel %vm1097, %v1172, %v1173
      %v1175 = vrot.slane %v1058, 5
      %v1176 = vrot.slane %v1175, 4
      %v1177 = vrot.slane %v222, 5
      %v1178 = vsel %vm1097, %v1176, %v1177
      %v1179 = vrot.slane %v1177, 4
      %v1180 = vrot.slane %v243, 5
      %v1181 = vsel %vm1097, %v1179, %v1180
      %v1182 = vrot.slane %v1059, 5
      %v1183 = vrot.slane %v1182, 4
      %v1184 = vrot.slane %v224, 5
      %v1185 = vsel %vm1097, %v1183, %v1184
      %v1186 = vrot.slane %v1184, 4
      %v1187 = vrot.slane %v244, 5
      %v1188 = vsel %vm1097, %v1186, %v1187
      %v1189 = vrot.slane %v1060, 5
      %v1190 = vrot.slane %v1189, 4
      %v1191 = vrot.slane %v226, 5
      %v1192 = vsel %vm1097, %v1190, %v1191
      %v1193 = vrot.slane %v1191, 4
      %v1194 = vrot.slane %v245, 5
      %v1195 = vsel %vm1097, %v1193, %v1194
      %v1196 = vrot.slane %v1061, 5
      %v1197 = vrot.slane %v1196, 4
      %v1198 = vrot.slane %v228, 5
      %v1199 = vsel %vm1097, %v1197, %v1198
      %v1200 = vrot.slane %v1198, 4
      %v1201 = vrot.slane %v246, 5
      %v1202 = vsel %vm1097, %v1200, %v1201
      %v1203 = vrot.slane %v1062, 5
      %v1204 = vrot.slane %v1203, 4
      %v1205 = vrot.slane %v230, 5
      %v1206 = vsel %vm1097, %v1204, %v1205
      %v1207 = vrot.slane %v1205, 4
      %v1208 = vrot.slane %v247, 5
      %v1209 = vsel %vm1097, %v1207, %v1208
      %s1210 = scalar_lea.vmem %s1, 4
      %v1211 = vld [vmem:[%s1210] sm:$0x3]
      %v1212 = vunpack.c.l.b16 %v1101
      %v1213 = vunpack.c.l.b16 %v1104
      %v1214 = vunpack.c.l.b16 %v1108
      %v1215 = vunpack.c.l.b16 %v1111
      %v1216 = vunpack.c.l.b16 %v1115
      %v1217 = vunpack.c.l.b16 %v1118
      %v1218 = vunpack.c.l.b16 %v1122
      %v1219 = vunpack.c.l.b16 %v1125
      %v1220 = vunpack.c.l.b16 %v1129
      %v1221 = vunpack.c.l.b16 %v1132
      %v1222 = vunpack.c.l.b16 %v1136
      %v1223 = vunpack.c.l.b16 %v1139
      %v1224 = vunpack.c.l.b16 %v1143
      %v1225 = vunpack.c.l.b16 %v1146
      %v1226 = vunpack.c.l.b16 %v1150
      %v1227 = vunpack.c.l.b16 %v1153
      %v1228 = vunpack.c.l.b16 %v1157
      %v1229 = vunpack.c.l.b16 %v1160
      %v1230 = vunpack.c.l.b16 %v1164
      %v1231 = vunpack.c.l.b16 %v1167
      %v1232 = vunpack.c.l.b16 %v1171
      %v1233 = vunpack.c.l.b16 %v1174
      %v1234 = vunpack.c.l.b16 %v1178
      %v1235 = vunpack.c.l.b16 %v1181
      %v1236 = vunpack.c.l.b16 %v1185
      %v1237 = vunpack.c.l.b16 %v1188
      %v1238 = vunpack.c.l.b16 %v1192
      %v1239 = vunpack.c.l.b16 %v1195
      %v1240 = vunpack.c.l.b16 %v1199
      %v1241 = vunpack.c.l.b16 %v1202
      %v1242 = vunpack.c.l.b16 %v1206
      %v1243 = vunpack.c.l.b16 %v1209
      %v1244 = vpack.c.b16 %v1213, %v1212
      %v1245 = vpack.c.b16 %v1215, %v1214
      %v1246 = vpack.c.b16 %v1217, %v1216
      %v1247 = vpack.c.b16 %v1219, %v1218
      %v1248 = vpack.c.b16 %v1221, %v1220
      %v1249 = vpack.c.b16 %v1223, %v1222
      %v1250 = vpack.c.b16 %v1225, %v1224
      %v1251 = vpack.c.b16 %v1227, %v1226
      %v1252 = vpack.c.b16 %v1229, %v1228
      %v1253 = vpack.c.b16 %v1231, %v1230
      %v1254 = vpack.c.b16 %v1233, %v1232
      %v1255 = vpack.c.b16 %v1235, %v1234
      %v1256 = vpack.c.b16 %v1237, %v1236
      %v1257 = vpack.c.b16 %v1239, %v1238
      %v1258 = vpack.c.b16 %v1241, %v1240
      %v1259 = vpack.c.b16 %v1243, %v1242
      %v1261 = vsel %vm685, %v1244, 0
      %v1264 = vsel %vm685, %v1245, 0
      %v1267 = vsel %vm685, %v1246, 0
      %v1270 = vsel %vm685, %v1247, 0
      %v1273 = vsel %vm685, %v1248, 0
      %v1276 = vsel %vm685, %v1249, 0
      %v1279 = vsel %vm685, %v1250, 0
      %v1282 = vsel %vm685, %v1251, 0
      %v1285 = vsel %vm685, %v1252, 0
      %v1288 = vsel %vm685, %v1253, 0
      %v1291 = vsel %vm685, %v1254, 0
      %v1294 = vsel %vm685, %v1255, 0
      %v1297 = vsel %vm685, %v1256, 0
      %v1300 = vsel %vm685, %v1257, 0
      %v1303 = vsel %vm685, %v1258, 0
      %v1306 = vsel %vm685, %v1259, 0
      %v1309 = vsel %vm734, %v1211, 0
      %1311 = vmatpush.bf16.msra.mxu0 0
      %1312 = vmatpush.bf16.msra.mxu0 0
      %1313 = vmatpush.bf16.msra.mxu0 0
      %1314 = vmatpush.bf16.msra.mxu0 0
      %1315 = vmatpush.bf16.msra.mxu0 0
      %1316 = vmatpush.bf16.msra.mxu0 0
      %1317 = vmatpush.bf16.msra.mxu0 0
      %1318 = vmatpush.bf16.msra.mxu0 %v1309
      %1319 = vmatmul.bf16.gmra.mxu0 %v1261
      %v1320 = vpop.f32.mrf.mxu0
      %v1321 = vadd.f32 0.0, %v1320
      %v1322 = vpop.f32.mrf.mxu0
      %v1323 = vadd.f32 0.0, %v1322
      %1324 = vmatmul.bf16.gmra.mxu0 %v1264
      %v1325 = vpop.f32.mrf.mxu0
      %v1326 = vadd.f32 0.0, %v1325
      %v1327 = vpop.f32.mrf.mxu0
      %v1328 = vadd.f32 0.0, %v1327
      %1329 = vmatmul.bf16.gmra.mxu0 %v1267
      %v1330 = vpop.f32.mrf.mxu0
      %v1331 = vadd.f32 0.0, %v1330
      %v1332 = vpop.f32.mrf.mxu0
      %v1333 = vadd.f32 0.0, %v1332
      %1334 = vmatmul.bf16.gmra.mxu0 %v1270
      %v1335 = vpop.f32.mrf.mxu0
      %v1336 = vadd.f32 0.0, %v1335
      %v1337 = vpop.f32.mrf.mxu0
      %v1338 = vadd.f32 0.0, %v1337
      %1339 = vmatmul.bf16.gmra.mxu0 %v1273
      %v1340 = vpop.f32.mrf.mxu0
      %v1341 = vadd.f32 0.0, %v1340
      %v1342 = vpop.f32.mrf.mxu0
      %v1343 = vadd.f32 0.0, %v1342
      %1344 = vmatmul.bf16.gmra.mxu0 %v1276
      %v1345 = vpop.f32.mrf.mxu0
      %v1346 = vadd.f32 0.0, %v1345
      %v1347 = vpop.f32.mrf.mxu0
      %v1348 = vadd.f32 0.0, %v1347
      %1349 = vmatmul.bf16.gmra.mxu0 %v1279
      %v1350 = vpop.f32.mrf.mxu0
      %v1351 = vadd.f32 0.0, %v1350
      %v1352 = vpop.f32.mrf.mxu0
      %v1353 = vadd.f32 0.0, %v1352
      %1354 = vmatmul.bf16.gmra.mxu0 %v1282
      %v1355 = vpop.f32.mrf.mxu0
      %v1356 = vadd.f32 0.0, %v1355
      %v1357 = vpop.f32.mrf.mxu0
      %v1358 = vadd.f32 0.0, %v1357
      %1359 = vmatmul.bf16.gmra.mxu0 %v1285
      %v1360 = vpop.f32.mrf.mxu0
      %v1361 = vadd.f32 0.0, %v1360
      %v1362 = vpop.f32.mrf.mxu0
      %v1363 = vadd.f32 0.0, %v1362
      %1364 = vmatmul.bf16.gmra.mxu0 %v1288
      %v1365 = vpop.f32.mrf.mxu0
      %v1366 = vadd.f32 0.0, %v1365
      %v1367 = vpop.f32.mrf.mxu0
      %v1368 = vadd.f32 0.0, %v1367
      %1369 = vmatmul.bf16.gmra.mxu0 %v1291
      %v1370 = vpop.f32.mrf.mxu0
      %v1371 = vadd.f32 0.0, %v1370
      %v1372 = vpop.f32.mrf.mxu0
      %v1373 = vadd.f32 0.0, %v1372
      %1374 = vmatmul.bf16.gmra.mxu0 %v1294
      %v1375 = vpop.f32.mrf.mxu0
      %v1376 = vadd.f32 0.0, %v1375
      %v1377 = vpop.f32.mrf.mxu0
      %v1378 = vadd.f32 0.0, %v1377
      %1379 = vmatmul.bf16.gmra.mxu0 %v1297
      %v1380 = vpop.f32.mrf.mxu0
      %v1381 = vadd.f32 0.0, %v1380
      %v1382 = vpop.f32.mrf.mxu0
      %v1383 = vadd.f32 0.0, %v1382
      %1384 = vmatmul.bf16.gmra.mxu0 %v1300
      %v1385 = vpop.f32.mrf.mxu0
      %v1386 = vadd.f32 0.0, %v1385
      %v1387 = vpop.f32.mrf.mxu0
      %v1388 = vadd.f32 0.0, %v1387
      %1389 = vmatmul.bf16.gmra.mxu0 %v1303
      %v1390 = vpop.f32.mrf.mxu0
      %v1391 = vadd.f32 0.0, %v1390
      %v1392 = vpop.f32.mrf.mxu0
      %v1393 = vadd.f32 0.0, %v1392
      %1394 = vmatmul.bf16.gmra.mxu0 %v1306
      %v1395 = vpop.f32.mrf.mxu0
      %v1396 = vadd.f32 0.0, %v1395
      %v1397 = vpop.f32.mrf.mxu0
      %v1398 = vadd.f32 0.0, %v1397
      %1399 = vdwg.mxu0
      %v1400 = vadd.f32 %v968, %v1321
      %v1401 = vadd.f32 %v970, %v1323
      %v1402 = vadd.f32 %v973, %v1326
      %v1403 = vadd.f32 %v975, %v1328
      %v1404 = vadd.f32 %v978, %v1331
      %v1405 = vadd.f32 %v980, %v1333
      %v1406 = vadd.f32 %v983, %v1336
      %v1407 = vadd.f32 %v985, %v1338
      %v1408 = vadd.f32 %v988, %v1341
      %v1409 = vadd.f32 %v990, %v1343
      %v1410 = vadd.f32 %v993, %v1346
      %v1411 = vadd.f32 %v995, %v1348
      %v1412 = vadd.f32 %v998, %v1351
      %v1413 = vadd.f32 %v1000, %v1353
      %v1414 = vadd.f32 %v1003, %v1356
      %v1415 = vadd.f32 %v1005, %v1358
      %v1416 = vadd.f32 %v1008, %v1361
      %v1417 = vadd.f32 %v1010, %v1363
      %v1418 = vadd.f32 %v1013, %v1366
      %v1419 = vadd.f32 %v1015, %v1368
      %v1420 = vadd.f32 %v1018, %v1371
      %v1421 = vadd.f32 %v1020, %v1373
      %v1422 = vadd.f32 %v1023, %v1376
      %v1423 = vadd.f32 %v1025, %v1378
      %v1424 = vadd.f32 %v1028, %v1381
      %v1425 = vadd.f32 %v1030, %v1383
      %v1426 = vadd.f32 %v1033, %v1386
      %v1427 = vadd.f32 %v1035, %v1388
      %v1428 = vadd.f32 %v1038, %v1391
      %v1429 = vadd.f32 %v1040, %v1393
      %v1430 = vadd.f32 %v1043, %v1396
      %v1431 = vadd.f32 %v1045, %v1398
      %s1432 = scalar_lea.vmem %s192, 12
      %v1433 = vld [vmem:[%s1432] sm:$0xf]
      %v1434 = vld [vmem:[%s1432 + $0x4] sm:$0xf]
      %v1435 = vld [vmem:[%s1432 + $0xc] sm:$0xf]
      %v1436 = vld [vmem:[%s1432 + $0x10] sm:$0xf]
      %v1437 = vld [vmem:[%s1432 + $0x18] sm:$0xf]
      %v1438 = vld [vmem:[%s1432 + $0x1c] sm:$0xf]
      %v1439 = vld [vmem:[%s1432 + $0x24] sm:$0xf]
      %v1440 = vld [vmem:[%s1432 + $0x28] sm:$0xf]
      %v1441 = vld [vmem:[%s1432 + $0x30] sm:$0xf]
      %v1442 = vld [vmem:[%s1432 + $0x34] sm:$0xf]
      %v1443 = vld [vmem:[%s1432 + $0x3c] sm:$0xf]
      %v1444 = vld [vmem:[%s1432 + $0x40] sm:$0xf]
      %v1445 = vld [vmem:[%s1432 + $0x48] sm:$0xf]
      %v1446 = vld [vmem:[%s1432 + $0x4c] sm:$0xf]
      %v1447 = vld [vmem:[%s1432 + $0x54] sm:$0xf]
      %v1448 = vld [vmem:[%s1432 + $0x58] sm:$0xf]
      %v1449 = vld [vmem:[%s1432 + $0x60] sm:$0xf]
      %v1450 = vld [vmem:[%s1432 + $0x64] sm:$0xf]
      %v1451 = vld [vmem:[%s1432 + $0x6c] sm:$0xf]
      %v1452 = vld [vmem:[%s1432 + $0x70] sm:$0xf]
      %v1453 = vld [vmem:[%s1432 + $0x78] sm:$0xf]
      %v1454 = vld [vmem:[%s1432 + $0x7c] sm:$0xf]
      %v1455 = vld [vmem:[%s1432 + $0x84] sm:$0xf]
      %v1456 = vld [vmem:[%s1432 + $0x88] sm:$0xf]
      %v1457 = vld [vmem:[%s1432 + $0x90] sm:$0xf]
      %v1458 = vld [vmem:[%s1432 + $0x94] sm:$0xf]
      %v1459 = vld [vmem:[%s1432 + $0x9c] sm:$0xf]
      %v1460 = vld [vmem:[%s1432 + $0xa0] sm:$0xf]
      %v1461 = vld [vmem:[%s1432 + $0xa8] sm:$0xf]
      %v1462 = vld [vmem:[%s1432 + $0xac] sm:$0xf]
      %v1463 = vld [vmem:[%s1432 + $0xb4] sm:$0xf]
      %v1464 = vld [vmem:[%s1432 + $0xb8] sm:$0xf]
      %s1465 = scalar_lea.vmem %s1, 6
      %v1466 = vld [vmem:[%s1465] sm:$0x3]
      %v1499 = vunpack.c.l.b16 %v1433
      %v1500 = vunpack.c.l.b16 %v1434
      %v1501 = vunpack.c.l.b16 %v1435
      %v1502 = vunpack.c.l.b16 %v1436
      %v1503 = vunpack.c.l.b16 %v1437
      %v1504 = vunpack.c.l.b16 %v1438
      %v1505 = vunpack.c.l.b16 %v1439
      %v1506 = vunpack.c.l.b16 %v1440
      %v1507 = vunpack.c.l.b16 %v1441
      %v1508 = vunpack.c.l.b16 %v1442
      %v1509 = vunpack.c.l.b16 %v1443
      %v1510 = vunpack.c.l.b16 %v1444
      %v1511 = vunpack.c.l.b16 %v1445
      %v1512 = vunpack.c.l.b16 %v1446
      %v1513 = vunpack.c.l.b16 %v1447
      %v1514 = vunpack.c.l.b16 %v1448
      %v1515 = vunpack.c.l.b16 %v1449
      %v1516 = vunpack.c.l.b16 %v1450
      %v1517 = vunpack.c.l.b16 %v1451
      %v1518 = vunpack.c.l.b16 %v1452
      %v1519 = vunpack.c.l.b16 %v1453
      %v1520 = vunpack.c.l.b16 %v1454
      %v1521 = vunpack.c.l.b16 %v1455
      %v1522 = vunpack.c.l.b16 %v1456
      %v1523 = vunpack.c.l.b16 %v1457
      %v1524 = vunpack.c.l.b16 %v1458
      %v1525 = vunpack.c.l.b16 %v1459
      %v1526 = vunpack.c.l.b16 %v1460
      %v1527 = vunpack.c.l.b16 %v1461
      %v1528 = vunpack.c.l.b16 %v1462
      %v1529 = vunpack.c.l.b16 %v1463
      %v1530 = vunpack.c.l.b16 %v1464
      %v1531 = vpack.c.b16 %v1500, %v1499
      %v1532 = vpack.c.b16 %v1502, %v1501
      %v1533 = vpack.c.b16 %v1504, %v1503
      %v1534 = vpack.c.b16 %v1506, %v1505
      %v1535 = vpack.c.b16 %v1508, %v1507
      %v1536 = vpack.c.b16 %v1510, %v1509
      %v1537 = vpack.c.b16 %v1512, %v1511
      %v1538 = vpack.c.b16 %v1514, %v1513
      %v1539 = vpack.c.b16 %v1516, %v1515
      %v1540 = vpack.c.b16 %v1518, %v1517
      %v1541 = vpack.c.b16 %v1520, %v1519
      %v1542 = vpack.c.b16 %v1522, %v1521
      %v1543 = vpack.c.b16 %v1524, %v1523
      %v1544 = vpack.c.b16 %v1526, %v1525
      %v1545 = vpack.c.b16 %v1528, %v1527
      %v1546 = vpack.c.b16 %v1530, %v1529
      %v1548 = vsel %vm685, %v1531, 0
      %v1551 = vsel %vm685, %v1532, 0
      %v1554 = vsel %vm685, %v1533, 0
      %v1557 = vsel %vm685, %v1534, 0
      %v1560 = vsel %vm685, %v1535, 0
      %v1563 = vsel %vm685, %v1536, 0
      %v1566 = vsel %vm685, %v1537, 0
      %v1569 = vsel %vm685, %v1538, 0
      %v1572 = vsel %vm685, %v1539, 0
      %v1575 = vsel %vm685, %v1540, 0
      %v1578 = vsel %vm685, %v1541, 0
      %v1581 = vsel %vm685, %v1542, 0
      %v1584 = vsel %vm685, %v1543, 0
      %v1587 = vsel %vm685, %v1544, 0
      %v1590 = vsel %vm685, %v1545, 0
      %v1593 = vsel %vm685, %v1546, 0
      %v1596 = vsel %vm734, %v1466, 0
      %1598 = vmatpush.bf16.msra.mxu0 0
      %1599 = vmatpush.bf16.msra.mxu0 0
      %1600 = vmatpush.bf16.msra.mxu0 0
      %1601 = vmatpush.bf16.msra.mxu0 0
      %1602 = vmatpush.bf16.msra.mxu0 0
      %1603 = vmatpush.bf16.msra.mxu0 0
      %1604 = vmatpush.bf16.msra.mxu0 0
      %1605 = vmatpush.bf16.msra.mxu0 %v1596
      %1606 = vmatmul.bf16.gmra.mxu0 %v1548
      %v1607 = vpop.f32.mrf.mxu0
      %v1608 = vadd.f32 0.0, %v1607
      %v1609 = vpop.f32.mrf.mxu0
      %v1610 = vadd.f32 0.0, %v1609
      %1611 = vmatmul.bf16.gmra.mxu0 %v1551
      %v1612 = vpop.f32.mrf.mxu0
      %v1613 = vadd.f32 0.0, %v1612
      %v1614 = vpop.f32.mrf.mxu0
      %v1615 = vadd.f32 0.0, %v1614
      %1616 = vmatmul.bf16.gmra.mxu0 %v1554
      %v1617 = vpop.f32.mrf.mxu0
      %v1618 = vadd.f32 0.0, %v1617
      %v1619 = vpop.f32.mrf.mxu0
      %v1620 = vadd.f32 0.0, %v1619
      %1621 = vmatmul.bf16.gmra.mxu0 %v1557
      %v1622 = vpop.f32.mrf.mxu0
      %v1623 = vadd.f32 0.0, %v1622
      %v1624 = vpop.f32.mrf.mxu0
      %v1625 = vadd.f32 0.0, %v1624
      %1626 = vmatmul.bf16.gmra.mxu0 %v1560
      %v1627 = vpop.f32.mrf.mxu0
      %v1628 = vadd.f32 0.0, %v1627
      %v1629 = vpop.f32.mrf.mxu0
      %v1630 = vadd.f32 0.0, %v1629
      %1631 = vmatmul.bf16.gmra.mxu0 %v1563
      %v1632 = vpop.f32.mrf.mxu0
      %v1633 = vadd.f32 0.0, %v1632
      %v1634 = vpop.f32.mrf.mxu0
      %v1635 = vadd.f32 0.0, %v1634
      %1636 = vmatmul.bf16.gmra.mxu0 %v1566
      %v1637 = vpop.f32.mrf.mxu0
      %v1638 = vadd.f32 0.0, %v1637
      %v1639 = vpop.f32.mrf.mxu0
      %v1640 = vadd.f32 0.0, %v1639
      %1641 = vmatmul.bf16.gmra.mxu0 %v1569
      %v1642 = vpop.f32.mrf.mxu0
      %v1643 = vadd.f32 0.0, %v1642
      %v1644 = vpop.f32.mrf.mxu0
      %v1645 = vadd.f32 0.0, %v1644
      %1646 = vmatmul.bf16.gmra.mxu0 %v1572
      %v1647 = vpop.f32.mrf.mxu0
      %v1648 = vadd.f32 0.0, %v1647
      %v1649 = vpop.f32.mrf.mxu0
      %v1650 = vadd.f32 0.0, %v1649
      %1651 = vmatmul.bf16.gmra.mxu0 %v1575
      %v1652 = vpop.f32.mrf.mxu0
      %v1653 = vadd.f32 0.0, %v1652
      %v1654 = vpop.f32.mrf.mxu0
      %v1655 = vadd.f32 0.0, %v1654
      %1656 = vmatmul.bf16.gmra.mxu0 %v1578
      %v1657 = vpop.f32.mrf.mxu0
      %v1658 = vadd.f32 0.0, %v1657
      %v1659 = vpop.f32.mrf.mxu0
      %v1660 = vadd.f32 0.0, %v1659
      %1661 = vmatmul.bf16.gmra.mxu0 %v1581
      %v1662 = vpop.f32.mrf.mxu0
      %v1663 = vadd.f32 0.0, %v1662
      %v1664 = vpop.f32.mrf.mxu0
      %v1665 = vadd.f32 0.0, %v1664
      %1666 = vmatmul.bf16.gmra.mxu0 %v1584
      %v1667 = vpop.f32.mrf.mxu0
      %v1668 = vadd.f32 0.0, %v1667
      %v1669 = vpop.f32.mrf.mxu0
      %v1670 = vadd.f32 0.0, %v1669
      %1671 = vmatmul.bf16.gmra.mxu0 %v1587
      %v1672 = vpop.f32.mrf.mxu0
      %v1673 = vadd.f32 0.0, %v1672
      %v1674 = vpop.f32.mrf.mxu0
      %v1675 = vadd.f32 0.0, %v1674
      %1676 = vmatmul.bf16.gmra.mxu0 %v1590
      %v1677 = vpop.f32.mrf.mxu0
      %v1678 = vadd.f32 0.0, %v1677
      %v1679 = vpop.f32.mrf.mxu0
      %v1680 = vadd.f32 0.0, %v1679
      %1681 = vmatmul.bf16.gmra.mxu0 %v1593
      %v1682 = vpop.f32.mrf.mxu0
      %v1683 = vadd.f32 0.0, %v1682
      %v1684 = vpop.f32.mrf.mxu0
      %v1685 = vadd.f32 0.0, %v1684
      %1686 = vdwg.mxu0
      %v1687 = vadd.f32 %v1400, %v1608
      %v1688 = vadd.f32 %v1401, %v1610
      %v1689 = vadd.f32 %v1402, %v1613
      %v1690 = vadd.f32 %v1403, %v1615
      %v1691 = vadd.f32 %v1404, %v1618
      %v1692 = vadd.f32 %v1405, %v1620
      %v1693 = vadd.f32 %v1406, %v1623
      %v1694 = vadd.f32 %v1407, %v1625
      %v1695 = vadd.f32 %v1408, %v1628
      %v1696 = vadd.f32 %v1409, %v1630
      %v1697 = vadd.f32 %v1410, %v1633
      %v1698 = vadd.f32 %v1411, %v1635
      %v1699 = vadd.f32 %v1412, %v1638
      %v1700 = vadd.f32 %v1413, %v1640
      %v1701 = vadd.f32 %v1414, %v1643
      %v1702 = vadd.f32 %v1415, %v1645
      %v1703 = vadd.f32 %v1416, %v1648
      %v1704 = vadd.f32 %v1417, %v1650
      %v1705 = vadd.f32 %v1418, %v1653
      %v1706 = vadd.f32 %v1419, %v1655
      %v1707 = vadd.f32 %v1420, %v1658
      %v1708 = vadd.f32 %v1421, %v1660
      %v1709 = vadd.f32 %v1422, %v1663
      %v1710 = vadd.f32 %v1423, %v1665
      %v1711 = vadd.f32 %v1424, %v1668
      %v1712 = vadd.f32 %v1425, %v1670
      %v1713 = vadd.f32 %v1426, %v1673
      %v1714 = vadd.f32 %v1427, %v1675
      %v1715 = vadd.f32 %v1428, %v1678
      %v1716 = vadd.f32 %v1429, %v1680
      %v1717 = vadd.f32 %v1430, %v1683
      %v1718 = vadd.f32 %v1431, %v1685
      %v1719 = vld [vmem:[%s1432] sm:$0xf]
      %v1720 = vld [vmem:[%s1432 + $0x4] sm:$0xf]
      %v1721 = vld [vmem:[%s1432 + $0x8] sm:$0x1]
      %v1722 = vld [vmem:[%s1432 + $0xc] sm:$0xf]
      %v1723 = vld [vmem:[%s1432 + $0x10] sm:$0xf]
      %v1724 = vld [vmem:[%s1432 + $0x14] sm:$0x1]
      %v1725 = vld [vmem:[%s1432 + $0x18] sm:$0xf]
      %v1726 = vld [vmem:[%s1432 + $0x1c] sm:$0xf]
      %v1727 = vld [vmem:[%s1432 + $0x20] sm:$0x1]
      %v1728 = vld [vmem:[%s1432 + $0x24] sm:$0xf]
      %v1729 = vld [vmem:[%s1432 + $0x28] sm:$0xf]
      %v1730 = vld [vmem:[%s1432 + $0x2c] sm:$0x1]
      %v1731 = vld [vmem:[%s1432 + $0x30] sm:$0xf]
      %v1732 = vld [vmem:[%s1432 + $0x34] sm:$0xf]
      %v1733 = vld [vmem:[%s1432 + $0x38] sm:$0x1]
      %v1734 = vld [vmem:[%s1432 + $0x3c] sm:$0xf]
      %v1735 = vld [vmem:[%s1432 + $0x40] sm:$0xf]
      %v1736 = vld [vmem:[%s1432 + $0x44] sm:$0x1]
      %v1737 = vld [vmem:[%s1432 + $0x48] sm:$0xf]
      %v1738 = vld [vmem:[%s1432 + $0x4c] sm:$0xf]
      %v1739 = vld [vmem:[%s1432 + $0x50] sm:$0x1]
      %v1740 = vld [vmem:[%s1432 + $0x54] sm:$0xf]
      %v1741 = vld [vmem:[%s1432 + $0x58] sm:$0xf]
      %v1742 = vld [vmem:[%s1432 + $0x5c] sm:$0x1]
      %v1743 = vld [vmem:[%s1432 + $0x60] sm:$0xf]
      %v1744 = vld [vmem:[%s1432 + $0x64] sm:$0xf]
      %v1745 = vld [vmem:[%s1432 + $0x68] sm:$0x1]
      %v1746 = vld [vmem:[%s1432 + $0x6c] sm:$0xf]
      %v1747 = vld [vmem:[%s1432 + $0x70] sm:$0xf]
      %v1748 = vld [vmem:[%s1432 + $0x74] sm:$0x1]
      %v1749 = vld [vmem:[%s1432 + $0x78] sm:$0xf]
      %v1750 = vld [vmem:[%s1432 + $0x7c] sm:$0xf]
      %v1751 = vld [vmem:[%s1432 + $0x80] sm:$0x1]
      %v1752 = vld [vmem:[%s1432 + $0x84] sm:$0xf]
      %v1753 = vld [vmem:[%s1432 + $0x88] sm:$0xf]
      %v1754 = vld [vmem:[%s1432 + $0x8c] sm:$0x1]
      %v1755 = vld [vmem:[%s1432 + $0x90] sm:$0xf]
      %v1756 = vld [vmem:[%s1432 + $0x94] sm:$0xf]
      %v1757 = vld [vmem:[%s1432 + $0x98] sm:$0x1]
      %v1758 = vld [vmem:[%s1432 + $0x9c] sm:$0xf]
      %v1759 = vld [vmem:[%s1432 + $0xa0] sm:$0xf]
      %v1760 = vld [vmem:[%s1432 + $0xa4] sm:$0x1]
      %v1761 = vld [vmem:[%s1432 + $0xa8] sm:$0xf]
      %v1762 = vld [vmem:[%s1432 + $0xac] sm:$0xf]
      %v1763 = vld [vmem:[%s1432 + $0xb0] sm:$0x1]
      %v1764 = vld [vmem:[%s1432 + $0xb4] sm:$0xf]
      %v1765 = vld [vmem:[%s1432 + $0xb8] sm:$0xf]
      %v1766 = vld [vmem:[%s1432 + $0xbc] sm:$0x1]
      %v1768 = vshrl.u32 %v1719, 16
      %v1770 = vrot.slane %v1768, 4
      %v1771 = vshll.u32 %v1719, 16
      %v1773 = vrot.slane %v1771, 5
      %v1774 = vor.u32 %v1770, %v1773
      %v1775 = vrot.slane %v1774, 4
      %v1777 = vshll.u32 %v1720, 16
      %v1779 = vrot.slane %v1777, 5
      %v1780 = vsel %vm250, %v1775, %v1779
      %v1781 = vshrl.u32 %v1720, 16
      %v1783 = vrot.slane %v1781, 4
      %v1784 = vor.u32 %v1783, %v1779
      %v1785 = vrot.slane %v1784, 4
      %v1787 = vshll.u32 %v1721, 16
      %v1789 = vrot.slane %v1787, 5
      %v1790 = vsel %vm250, %v1785, %v1789
      %v1792 = vshrl.u32 %v1722, 16
      %v1794 = vrot.slane %v1792, 4
      %v1795 = vshll.u32 %v1722, 16
      %v1797 = vrot.slane %v1795, 5
      %v1798 = vor.u32 %v1794, %v1797
      %v1799 = vrot.slane %v1798, 4
      %v1801 = vshll.u32 %v1723, 16
      %v1803 = vrot.slane %v1801, 5
      %v1804 = vsel %vm250, %v1799, %v1803
      %v1805 = vshrl.u32 %v1723, 16
      %v1807 = vrot.slane %v1805, 4
      %v1808 = vor.u32 %v1807, %v1803
      %v1809 = vrot.slane %v1808, 4
      %v1811 = vshll.u32 %v1724, 16
      %v1813 = vrot.slane %v1811, 5
      %v1814 = vsel %vm250, %v1809, %v1813
      %v1816 = vshrl.u32 %v1725, 16
      %v1818 = vrot.slane %v1816, 4
      %v1819 = vshll.u32 %v1725, 16
      %v1821 = vrot.slane %v1819, 5
      %v1822 = vor.u32 %v1818, %v1821
      %v1823 = vrot.slane %v1822, 4
      %v1825 = vshll.u32 %v1726, 16
      %v1827 = vrot.slane %v1825, 5
      %v1828 = vsel %vm250, %v1823, %v1827
      %v1829 = vshrl.u32 %v1726, 16
      %v1831 = vrot.slane %v1829, 4
      %v1832 = vor.u32 %v1831, %v1827
      %v1833 = vrot.slane %v1832, 4
      %v1835 = vshll.u32 %v1727, 16
      %v1837 = vrot.slane %v1835, 5
      %v1838 = vsel %vm250, %v1833, %v1837
      %v1840 = vshrl.u32 %v1728, 16
      %v1842 = vrot.slane %v1840, 4
      %v1843 = vshll.u32 %v1728, 16
      %v1845 = vrot.slane %v1843, 5
      %v1846 = vor.u32 %v1842, %v1845
      %v1847 = vrot.slane %v1846, 4
      %v1849 = vshll.u32 %v1729, 16
      %v1851 = vrot.slane %v1849, 5
      %v1852 = vsel %vm250, %v1847, %v1851
      %v1853 = vshrl.u32 %v1729, 16
      %v1855 = vrot.slane %v1853, 4
      %v1856 = vor.u32 %v1855, %v1851
      %v1857 = vrot.slane %v1856, 4
      %v1859 = vshll.u32 %v1730, 16
      %v1861 = vrot.slane %v1859, 5
      %v1862 = vsel %vm250, %v1857, %v1861
      %v1864 = vshrl.u32 %v1731, 16
      %v1866 = vrot.slane %v1864, 4
      %v1867 = vshll.u32 %v1731, 16
      %v1869 = vrot.slane %v1867, 5
      %v1870 = vor.u32 %v1866, %v1869
      %v1871 = vrot.slane %v1870, 4
      %v1873 = vshll.u32 %v1732, 16
      %v1875 = vrot.slane %v1873, 5
      %v1876 = vsel %vm250, %v1871, %v1875
      %v1877 = vshrl.u32 %v1732, 16
      %v1879 = vrot.slane %v1877, 4
      %v1880 = vor.u32 %v1879, %v1875
      %v1881 = vrot.slane %v1880, 4
      %v1883 = vshll.u32 %v1733, 16
      %v1885 = vrot.slane %v1883, 5
      %v1886 = vsel %vm250, %v1881, %v1885
      %v1888 = vshrl.u32 %v1734, 16
      %v1890 = vrot.slane %v1888, 4
      %v1891 = vshll.u32 %v1734, 16
      %v1893 = vrot.slane %v1891, 5
      %v1894 = vor.u32 %v1890, %v1893
      %v1895 = vrot.slane %v1894, 4
      %v1897 = vshll.u32 %v1735, 16
      %v1899 = vrot.slane %v1897, 5
      %v1900 = vsel %vm250, %v1895, %v1899
      %v1901 = vshrl.u32 %v1735, 16
      %v1903 = vrot.slane %v1901, 4
      %v1904 = vor.u32 %v1903, %v1899
      %v1905 = vrot.slane %v1904, 4
      %v1907 = vshll.u32 %v1736, 16
      %v1909 = vrot.slane %v1907, 5
      %v1910 = vsel %vm250, %v1905, %v1909
      %v1912 = vshrl.u32 %v1737, 16
      %v1914 = vrot.slane %v1912, 4
      %v1915 = vshll.u32 %v1737, 16
      %v1917 = vrot.slane %v1915, 5
      %v1918 = vor.u32 %v1914, %v1917
      %v1919 = vrot.slane %v1918, 4
      %v1921 = vshll.u32 %v1738, 16
      %v1923 = vrot.slane %v1921, 5
      %v1924 = vsel %vm250, %v1919, %v1923
      %v1925 = vshrl.u32 %v1738, 16
      %v1927 = vrot.slane %v1925, 4
      %v1928 = vor.u32 %v1927, %v1923
      %v1929 = vrot.slane %v1928, 4
      %v1931 = vshll.u32 %v1739, 16
      %v1933 = vrot.slane %v1931, 5
      %v1934 = vsel %vm250, %v1929, %v1933
      %v1936 = vshrl.u32 %v1740, 16
      %v1938 = vrot.slane %v1936, 4
      %v1939 = vshll.u32 %v1740, 16
      %v1941 = vrot.slane %v1939, 5
      %v1942 = vor.u32 %v1938, %v1941
      %v1943 = vrot.slane %v1942, 4
      %v1945 = vshll.u32 %v1741, 16
      %v1947 = vrot.slane %v1945, 5
      %v1948 = vsel %vm250, %v1943, %v1947
      %v1949 = vshrl.u32 %v1741, 16
      %v1951 = vrot.slane %v1949, 4
      %v1952 = vor.u32 %v1951, %v1947
      %v1953 = vrot.slane %v1952, 4
      %v1955 = vshll.u32 %v1742, 16
      %v1957 = vrot.slane %v1955, 5
      %v1958 = vsel %vm250, %v1953, %v1957
      %v1960 = vshrl.u32 %v1743, 16
      %v1962 = vrot.slane %v1960, 4
      %v1963 = vshll.u32 %v1743, 16
      %v1965 = vrot.slane %v1963, 5
      %v1966 = vor.u32 %v1962, %v1965
      %v1967 = vrot.slane %v1966, 4
      %v1969 = vshll.u32 %v1744, 16
      %v1971 = vrot.slane %v1969, 5
      %v1972 = vsel %vm250, %v1967, %v1971
      %v1973 = vshrl.u32 %v1744, 16
      %v1975 = vrot.slane %v1973, 4
      %v1976 = vor.u32 %v1975, %v1971
      %v1977 = vrot.slane %v1976, 4
      %v1979 = vshll.u32 %v1745, 16
      %v1981 = vrot.slane %v1979, 5
      %v1982 = vsel %vm250, %v1977, %v1981
      %v1984 = vshrl.u32 %v1746, 16
      %v1986 = vrot.slane %v1984, 4
      %v1987 = vshll.u32 %v1746, 16
      %v1989 = vrot.slane %v1987, 5
      %v1990 = vor.u32 %v1986, %v1989
      %v1991 = vrot.slane %v1990, 4
      %v1993 = vshll.u32 %v1747, 16
      %v1995 = vrot.slane %v1993, 5
      %v1996 = vsel %vm250, %v1991, %v1995
      %v1997 = vshrl.u32 %v1747, 16
      %v1999 = vrot.slane %v1997, 4
      %v2000 = vor.u32 %v1999, %v1995
      %v2001 = vrot.slane %v2000, 4
      %v2003 = vshll.u32 %v1748, 16
      %v2005 = vrot.slane %v2003, 5
      %v2006 = vsel %vm250, %v2001, %v2005
      %v2008 = vshrl.u32 %v1749, 16
      %v2010 = vrot.slane %v2008, 4
      %v2011 = vshll.u32 %v1749, 16
      %v2013 = vrot.slane %v2011, 5
      %v2014 = vor.u32 %v2010, %v2013
      %v2015 = vrot.slane %v2014, 4
      %v2017 = vshll.u32 %v1750, 16
      %v2019 = vrot.slane %v2017, 5
      %v2020 = vsel %vm250, %v2015, %v2019
      %v2021 = vshrl.u32 %v1750, 16
      %v2023 = vrot.slane %v2021, 4
      %v2024 = vor.u32 %v2023, %v2019
      %v2025 = vrot.slane %v2024, 4
      %v2027 = vshll.u32 %v1751, 16
      %v2029 = vrot.slane %v2027, 5
      %v2030 = vsel %vm250, %v2025, %v2029
      %v2032 = vshrl.u32 %v1752, 16
      %v2034 = vrot.slane %v2032, 4
      %v2035 = vshll.u32 %v1752, 16
      %v2037 = vrot.slane %v2035, 5
      %v2038 = vor.u32 %v2034, %v2037
      %v2039 = vrot.slane %v2038, 4
      %v2041 = vshll.u32 %v1753, 16
      %v2043 = vrot.slane %v2041, 5
      %v2044 = vsel %vm250, %v2039, %v2043
      %v2045 = vshrl.u32 %v1753, 16
      %v2047 = vrot.slane %v2045, 4
      %v2048 = vor.u32 %v2047, %v2043
      %v2049 = vrot.slane %v2048, 4
      %v2051 = vshll.u32 %v1754, 16
      %v2053 = vrot.slane %v2051, 5
      %v2054 = vsel %vm250, %v2049, %v2053
      %v2056 = vshrl.u32 %v1755, 16
      %v2058 = vrot.slane %v2056, 4
      %v2059 = vshll.u32 %v1755, 16
      %v2061 = vrot.slane %v2059, 5
      %v2062 = vor.u32 %v2058, %v2061
      %v2063 = vrot.slane %v2062, 4
      %v2065 = vshll.u32 %v1756, 16
      %v2067 = vrot.slane %v2065, 5
      %v2068 = vsel %vm250, %v2063, %v2067
      %v2069 = vshrl.u32 %v1756, 16
      %v2071 = vrot.slane %v2069, 4
      %v2072 = vor.u32 %v2071, %v2067
      %v2073 = vrot.slane %v2072, 4
      %v2075 = vshll.u32 %v1757, 16
      %v2077 = vrot.slane %v2075, 5
      %v2078 = vsel %vm250, %v2073, %v2077
      %v2080 = vshrl.u32 %v1758, 16
      %v2082 = vrot.slane %v2080, 4
      %v2083 = vshll.u32 %v1758, 16
      %v2085 = vrot.slane %v2083, 5
      %v2086 = vor.u32 %v2082, %v2085
      %v2087 = vrot.slane %v2086, 4
      %v2089 = vshll.u32 %v1759, 16
      %v2091 = vrot.slane %v2089, 5
      %v2092 = vsel %vm250, %v2087, %v2091
      %v2093 = vshrl.u32 %v1759, 16
      %v2095 = vrot.slane %v2093, 4
      %v2096 = vor.u32 %v2095, %v2091
      %v2097 = vrot.slane %v2096, 4
      %v2099 = vshll.u32 %v1760, 16
      %v2101 = vrot.slane %v2099, 5
      %v2102 = vsel %vm250, %v2097, %v2101
      %v2104 = vshrl.u32 %v1761, 16
      %v2106 = vrot.slane %v2104, 4
      %v2107 = vshll.u32 %v1761, 16
      %v2109 = vrot.slane %v2107, 5
      %v2110 = vor.u32 %v2106, %v2109
      %v2111 = vrot.slane %v2110, 4
      %v2113 = vshll.u32 %v1762, 16
      %v2115 = vrot.slane %v2113, 5
      %v2116 = vsel %vm250, %v2111, %v2115
      %v2117 = vshrl.u32 %v1762, 16
      %v2119 = vrot.slane %v2117, 4
      %v2120 = vor.u32 %v2119, %v2115
      %v2121 = vrot.slane %v2120, 4
      %v2123 = vshll.u32 %v1763, 16
      %v2125 = vrot.slane %v2123, 5
      %v2126 = vsel %vm250, %v2121, %v2125
      %v2128 = vshrl.u32 %v1764, 16
      %v2130 = vrot.slane %v2128, 4
      %v2131 = vshll.u32 %v1764, 16
      %v2133 = vrot.slane %v2131, 5
      %v2134 = vor.u32 %v2130, %v2133
      %v2135 = vrot.slane %v2134, 4
      %v2137 = vshll.u32 %v1765, 16
      %v2139 = vrot.slane %v2137, 5
      %v2140 = vsel %vm250, %v2135, %v2139
      %v2141 = vshrl.u32 %v1765, 16
      %v2143 = vrot.slane %v2141, 4
      %v2144 = vor.u32 %v2143, %v2139
      %v2145 = vrot.slane %v2144, 4
      %v2147 = vshll.u32 %v1766, 16
      %v2149 = vrot.slane %v2147, 5
      %v2150 = vsel %vm250, %v2145, %v2149
      %s2151 = scalar_lea.vmem %s1, 8
      %v2152 = vld [vmem:[%s2151] sm:$0x3]
      %v2153 = vunpack.c.l.b16 %v1780
      %v2154 = vunpack.c.l.b16 %v1790
      %v2155 = vunpack.c.l.b16 %v1804
      %v2156 = vunpack.c.l.b16 %v1814
      %v2157 = vunpack.c.l.b16 %v1828
      %v2158 = vunpack.c.l.b16 %v1838
      %v2159 = vunpack.c.l.b16 %v1852
      %v2160 = vunpack.c.l.b16 %v1862
      %v2161 = vunpack.c.l.b16 %v1876
      %v2162 = vunpack.c.l.b16 %v1886
      %v2163 = vunpack.c.l.b16 %v1900
      %v2164 = vunpack.c.l.b16 %v1910
      %v2165 = vunpack.c.l.b16 %v1924
      %v2166 = vunpack.c.l.b16 %v1934
      %v2167 = vunpack.c.l.b16 %v1948
      %v2168 = vunpack.c.l.b16 %v1958
      %v2169 = vunpack.c.l.b16 %v1972
      %v2170 = vunpack.c.l.b16 %v1982
      %v2171 = vunpack.c.l.b16 %v1996
      %v2172 = vunpack.c.l.b16 %v2006
      %v2173 = vunpack.c.l.b16 %v2020
      %v2174 = vunpack.c.l.b16 %v2030
      %v2175 = vunpack.c.l.b16 %v2044
      %v2176 = vunpack.c.l.b16 %v2054
      %v2177 = vunpack.c.l.b16 %v2068
      %v2178 = vunpack.c.l.b16 %v2078
      %v2179 = vunpack.c.l.b16 %v2092
      %v2180 = vunpack.c.l.b16 %v2102
      %v2181 = vunpack.c.l.b16 %v2116
      %v2182 = vunpack.c.l.b16 %v2126
      %v2183 = vunpack.c.l.b16 %v2140
      %v2184 = vunpack.c.l.b16 %v2150
      %v2185 = vpack.c.b16 %v2154, %v2153
      %v2186 = vpack.c.b16 %v2156, %v2155
      %v2187 = vpack.c.b16 %v2158, %v2157
      %v2188 = vpack.c.b16 %v2160, %v2159
      %v2189 = vpack.c.b16 %v2162, %v2161
      %v2190 = vpack.c.b16 %v2164, %v2163
      %v2191 = vpack.c.b16 %v2166, %v2165
      %v2192 = vpack.c.b16 %v2168, %v2167
      %v2193 = vpack.c.b16 %v2170, %v2169
      %v2194 = vpack.c.b16 %v2172, %v2171
      %v2195 = vpack.c.b16 %v2174, %v2173
      %v2196 = vpack.c.b16 %v2176, %v2175
      %v2197 = vpack.c.b16 %v2178, %v2177
      %v2198 = vpack.c.b16 %v2180, %v2179
      %v2199 = vpack.c.b16 %v2182, %v2181
      %v2200 = vpack.c.b16 %v2184, %v2183
      %v2202 = vsel %vm685, %v2185, 0
      %v2205 = vsel %vm685, %v2186, 0
      %v2208 = vsel %vm685, %v2187, 0
      %v2211 = vsel %vm685, %v2188, 0
      %v2214 = vsel %vm685, %v2189, 0
      %v2217 = vsel %vm685, %v2190, 0
      %v2220 = vsel %vm685, %v2191, 0
      %v2223 = vsel %vm685, %v2192, 0
      %v2226 = vsel %vm685, %v2193, 0
      %v2229 = vsel %vm685, %v2194, 0
      %v2232 = vsel %vm685, %v2195, 0
      %v2235 = vsel %vm685, %v2196, 0
      %v2238 = vsel %vm685, %v2197, 0
      %v2241 = vsel %vm685, %v2198, 0
      %v2244 = vsel %vm685, %v2199, 0
      %v2247 = vsel %vm685, %v2200, 0
      %v2250 = vsel %vm734, %v2152, 0
      %2252 = vmatpush.bf16.msra.mxu0 0
      %2253 = vmatpush.bf16.msra.mxu0 0
      %2254 = vmatpush.bf16.msra.mxu0 0
      %2255 = vmatpush.bf16.msra.mxu0 0
      %2256 = vmatpush.bf16.msra.mxu0 0
      %2257 = vmatpush.bf16.msra.mxu0 0
      %2258 = vmatpush.bf16.msra.mxu0 0
      %2259 = vmatpush.bf16.msra.mxu0 %v2250
      %2260 = vmatmul.bf16.gmra.mxu0 %v2202
      %v2261 = vpop.f32.mrf.mxu0
      %v2262 = vadd.f32 0.0, %v2261
      %v2263 = vpop.f32.mrf.mxu0
      %v2264 = vadd.f32 0.0, %v2263
      %2265 = vmatmul.bf16.gmra.mxu0 %v2205
      %v2266 = vpop.f32.mrf.mxu0
      %v2267 = vadd.f32 0.0, %v2266
      %v2268 = vpop.f32.mrf.mxu0
      %v2269 = vadd.f32 0.0, %v2268
      %2270 = vmatmul.bf16.gmra.mxu0 %v2208
      %v2271 = vpop.f32.mrf.mxu0
      %v2272 = vadd.f32 0.0, %v2271
      %v2273 = vpop.f32.mrf.mxu0
      %v2274 = vadd.f32 0.0, %v2273
      %2275 = vmatmul.bf16.gmra.mxu0 %v2211
      %v2276 = vpop.f32.mrf.mxu0
      %v2277 = vadd.f32 0.0, %v2276
      %v2278 = vpop.f32.mrf.mxu0
      %v2279 = vadd.f32 0.0, %v2278
      %2280 = vmatmul.bf16.gmra.mxu0 %v2214
      %v2281 = vpop.f32.mrf.mxu0
      %v2282 = vadd.f32 0.0, %v2281
      %v2283 = vpop.f32.mrf.mxu0
      %v2284 = vadd.f32 0.0, %v2283
      %2285 = vmatmul.bf16.gmra.mxu0 %v2217
      %v2286 = vpop.f32.mrf.mxu0
      %v2287 = vadd.f32 0.0, %v2286
      %v2288 = vpop.f32.mrf.mxu0
      %v2289 = vadd.f32 0.0, %v2288
      %2290 = vmatmul.bf16.gmra.mxu0 %v2220
      %v2291 = vpop.f32.mrf.mxu0
      %v2292 = vadd.f32 0.0, %v2291
      %v2293 = vpop.f32.mrf.mxu0
      %v2294 = vadd.f32 0.0, %v2293
      %2295 = vmatmul.bf16.gmra.mxu0 %v2223
      %v2296 = vpop.f32.mrf.mxu0
      %v2297 = vadd.f32 0.0, %v2296
      %v2298 = vpop.f32.mrf.mxu0
      %v2299 = vadd.f32 0.0, %v2298
      %2300 = vmatmul.bf16.gmra.mxu0 %v2226
      %v2301 = vpop.f32.mrf.mxu0
      %v2302 = vadd.f32 0.0, %v2301
      %v2303 = vpop.f32.mrf.mxu0
      %v2304 = vadd.f32 0.0, %v2303
      %2305 = vmatmul.bf16.gmra.mxu0 %v2229
      %v2306 = vpop.f32.mrf.mxu0
      %v2307 = vadd.f32 0.0, %v2306
      %v2308 = vpop.f32.mrf.mxu0
      %v2309 = vadd.f32 0.0, %v2308
      %2310 = vmatmul.bf16.gmra.mxu0 %v2232
      %v2311 = vpop.f32.mrf.mxu0
      %v2312 = vadd.f32 0.0, %v2311
      %v2313 = vpop.f32.mrf.mxu0
      %v2314 = vadd.f32 0.0, %v2313
      %2315 = vmatmul.bf16.gmra.mxu0 %v2235
      %v2316 = vpop.f32.mrf.mxu0
      %v2317 = vadd.f32 0.0, %v2316
      %v2318 = vpop.f32.mrf.mxu0
      %v2319 = vadd.f32 0.0, %v2318
      %2320 = vmatmul.bf16.gmra.mxu0 %v2238
      %v2321 = vpop.f32.mrf.mxu0
      %v2322 = vadd.f32 0.0, %v2321
      %v2323 = vpop.f32.mrf.mxu0
      %v2324 = vadd.f32 0.0, %v2323
      %2325 = vmatmul.bf16.gmra.mxu0 %v2241
      %v2326 = vpop.f32.mrf.mxu0
      %v2327 = vadd.f32 0.0, %v2326
      %v2328 = vpop.f32.mrf.mxu0
      %v2329 = vadd.f32 0.0, %v2328
      %2330 = vmatmul.bf16.gmra.mxu0 %v2244
      %v2331 = vpop.f32.mrf.mxu0
      %v2332 = vadd.f32 0.0, %v2331
      %v2333 = vpop.f32.mrf.mxu0
      %v2334 = vadd.f32 0.0, %v2333
      %2335 = vmatmul.bf16.gmra.mxu0 %v2247
      %v2336 = vpop.f32.mrf.mxu0
      %v2337 = vadd.f32 0.0, %v2336
      %v2338 = vpop.f32.mrf.mxu0
      %v2339 = vadd.f32 0.0, %v2338
      %2340 = vdwg.mxu0
      %v2341 = vadd.f32 %v1687, %v2262
      %v2342 = vadd.f32 %v1688, %v2264
      %v2343 = vadd.f32 %v1689, %v2267
      %v2344 = vadd.f32 %v1690, %v2269
      %v2345 = vadd.f32 %v1691, %v2272
      %v2346 = vadd.f32 %v1692, %v2274
      %v2347 = vadd.f32 %v1693, %v2277
      %v2348 = vadd.f32 %v1694, %v2279
      %v2349 = vadd.f32 %v1695, %v2282
      %v2350 = vadd.f32 %v1696, %v2284
      %v2351 = vadd.f32 %v1697, %v2287
      %v2352 = vadd.f32 %v1698, %v2289
      %v2353 = vadd.f32 %v1699, %v2292
      %v2354 = vadd.f32 %v1700, %v2294
      %v2355 = vadd.f32 %v1701, %v2297
      %v2356 = vadd.f32 %v1702, %v2299
      %v2357 = vadd.f32 %v1703, %v2302
      %v2358 = vadd.f32 %v1704, %v2304
      %v2359 = vadd.f32 %v1705, %v2307
      %v2360 = vadd.f32 %v1706, %v2309
      %v2361 = vadd.f32 %v1707, %v2312
      %v2362 = vadd.f32 %v1708, %v2314
      %v2363 = vadd.f32 %v1709, %v2317
      %v2364 = vadd.f32 %v1710, %v2319
      %v2365 = vadd.f32 %v1711, %v2322
      %v2366 = vadd.f32 %v1712, %v2324
      %v2367 = vadd.f32 %v1713, %v2327
      %v2368 = vadd.f32 %v1714, %v2329
      %v2369 = vadd.f32 %v1715, %v2332
      %v2370 = vadd.f32 %v1716, %v2334
      %v2371 = vadd.f32 %v1717, %v2337
      %v2372 = vadd.f32 %v1718, %v2339
      %v2373 = vld [vmem:[%s1432] sm:$0xe]
      %v2374 = vld [vmem:[%s1432 + $0xc] sm:$0xe]
      %v2375 = vld [vmem:[%s1432 + $0x18] sm:$0xe]
      %v2376 = vld [vmem:[%s1432 + $0x24] sm:$0xe]
      %v2377 = vld [vmem:[%s1432 + $0x30] sm:$0xe]
      %v2378 = vld [vmem:[%s1432 + $0x3c] sm:$0xe]
      %v2379 = vld [vmem:[%s1432 + $0x48] sm:$0xe]
      %v2380 = vld [vmem:[%s1432 + $0x54] sm:$0xe]
      %v2381 = vld [vmem:[%s1432 + $0x60] sm:$0xe]
      %v2382 = vld [vmem:[%s1432 + $0x6c] sm:$0xe]
      %v2383 = vld [vmem:[%s1432 + $0x78] sm:$0xe]
      %v2384 = vld [vmem:[%s1432 + $0x84] sm:$0xe]
      %v2385 = vld [vmem:[%s1432 + $0x90] sm:$0xe]
      %v2386 = vld [vmem:[%s1432 + $0x9c] sm:$0xe]
      %v2387 = vld [vmem:[%s1432 + $0xa8] sm:$0xe]
      %v2388 = vld [vmem:[%s1432 + $0xb4] sm:$0xe]
      %v2437 = vrot.slane %v2373, 5
      %v2438 = vrot.slane %v2437, 4
      %v2439 = vrot.slane %v1720, 5
      %v2440 = vsel %vm1097, %v2438, %v2439
      %v2441 = vrot.slane %v2439, 4
      %v2442 = vrot.slane %v1721, 5
      %v2443 = vsel %vm1097, %v2441, %v2442
      %v2444 = vrot.slane %v2374, 5
      %v2445 = vrot.slane %v2444, 4
      %v2446 = vrot.slane %v1723, 5
      %v2447 = vsel %vm1097, %v2445, %v2446
      %v2448 = vrot.slane %v2446, 4
      %v2449 = vrot.slane %v1724, 5
      %v2450 = vsel %vm1097, %v2448, %v2449
      %v2451 = vrot.slane %v2375, 5
      %v2452 = vrot.slane %v2451, 4
      %v2453 = vrot.slane %v1726, 5
      %v2454 = vsel %vm1097, %v2452, %v2453
      %v2455 = vrot.slane %v2453, 4
      %v2456 = vrot.slane %v1727, 5
      %v2457 = vsel %vm1097, %v2455, %v2456
      %v2458 = vrot.slane %v2376, 5
      %v2459 = vrot.slane %v2458, 4
      %v2460 = vrot.slane %v1729, 5
      %v2461 = vsel %vm1097, %v2459, %v2460
      %v2462 = vrot.slane %v2460, 4
      %v2463 = vrot.slane %v1730, 5
      %v2464 = vsel %vm1097, %v2462, %v2463
      %v2465 = vrot.slane %v2377, 5
      %v2466 = vrot.slane %v2465, 4
      %v2467 = vrot.slane %v1732, 5
      %v2468 = vsel %vm1097, %v2466, %v2467
      %v2469 = vrot.slane %v2467, 4
      %v2470 = vrot.slane %v1733, 5
      %v2471 = vsel %vm1097, %v2469, %v2470
      %v2472 = vrot.slane %v2378, 5
      %v2473 = vrot.slane %v2472, 4
      %v2474 = vrot.slane %v1735, 5
      %v2475 = vsel %vm1097, %v2473, %v2474
      %v2476 = vrot.slane %v2474, 4
      %v2477 = vrot.slane %v1736, 5
      %v2478 = vsel %vm1097, %v2476, %v2477
      %v2479 = vrot.slane %v2379, 5
      %v2480 = vrot.slane %v2479, 4
      %v2481 = vrot.slane %v1738, 5
      %v2482 = vsel %vm1097, %v2480, %v2481
      %v2483 = vrot.slane %v2481, 4
      %v2484 = vrot.slane %v1739, 5
      %v2485 = vsel %vm1097, %v2483, %v2484
      %v2486 = vrot.slane %v2380, 5
      %v2487 = vrot.slane %v2486, 4
      %v2488 = vrot.slane %v1741, 5
      %v2489 = vsel %vm1097, %v2487, %v2488
      %v2490 = vrot.slane %v2488, 4
      %v2491 = vrot.slane %v1742, 5
      %v2492 = vsel %vm1097, %v2490, %v2491
      %v2493 = vrot.slane %v2381, 5
      %v2494 = vrot.slane %v2493, 4
      %v2495 = vrot.slane %v1744, 5
      %v2496 = vsel %vm1097, %v2494, %v2495
      %v2497 = vrot.slane %v2495, 4
      %v2498 = vrot.slane %v1745, 5
      %v2499 = vsel %vm1097, %v2497, %v2498
      %v2500 = vrot.slane %v2382, 5
      %v2501 = vrot.slane %v2500, 4
      %v2502 = vrot.slane %v1747, 5
      %v2503 = vsel %vm1097, %v2501, %v2502
      %v2504 = vrot.slane %v2502, 4
      %v2505 = vrot.slane %v1748, 5
      %v2506 = vsel %vm1097, %v2504, %v2505
      %v2507 = vrot.slane %v2383, 5
      %v2508 = vrot.slane %v2507, 4
      %v2509 = vrot.slane %v1750, 5
      %v2510 = vsel %vm1097, %v2508, %v2509
      %v2511 = vrot.slane %v2509, 4
      %v2512 = vrot.slane %v1751, 5
      %v2513 = vsel %vm1097, %v2511, %v2512
      %v2514 = vrot.slane %v2384, 5
      %v2515 = vrot.slane %v2514, 4
      %v2516 = vrot.slane %v1753, 5
      %v2517 = vsel %vm1097, %v2515, %v2516
      %v2518 = vrot.slane %v2516, 4
      %v2519 = vrot.slane %v1754, 5
      %v2520 = vsel %vm1097, %v2518, %v2519
      %v2521 = vrot.slane %v2385, 5
      %v2522 = vrot.slane %v2521, 4
      %v2523 = vrot.slane %v1756, 5
      %v2524 = vsel %vm1097, %v2522, %v2523
      %v2525 = vrot.slane %v2523, 4
      %v2526 = vrot.slane %v1757, 5
      %v2527 = vsel %vm1097, %v2525, %v2526
      %v2528 = vrot.slane %v2386, 5
      %v2529 = vrot.slane %v2528, 4
      %v2530 = vrot.slane %v1759, 5
      %v2531 = vsel %vm1097, %v2529, %v2530
      %v2532 = vrot.slane %v2530, 4
      %v2533 = vrot.slane %v1760, 5
      %v2534 = vsel %vm1097, %v2532, %v2533
      %v2535 = vrot.slane %v2387, 5
      %v2536 = vrot.slane %v2535, 4
      %v2537 = vrot.slane %v1762, 5
      %v2538 = vsel %vm1097, %v2536, %v2537
      %v2539 = vrot.slane %v2537, 4
      %v2540 = vrot.slane %v1763, 5
      %v2541 = vsel %vm1097, %v2539, %v2540
      %v2542 = vrot.slane %v2388, 5
      %v2543 = vrot.slane %v2542, 4
      %v2544 = vrot.slane %v1765, 5
      %v2545 = vsel %vm1097, %v2543, %v2544
      %v2546 = vrot.slane %v2544, 4
      %v2547 = vrot.slane %v1766, 5
      %v2548 = vsel %vm1097, %v2546, %v2547
      %s2549 = scalar_lea.vmem %s1, 10
      %v2550 = vld [vmem:[%s2549] sm:$0x3]
      %v2551 = vunpack.c.l.b16 %v2440
      %v2552 = vunpack.c.l.b16 %v2443
      %v2553 = vunpack.c.l.b16 %v2447
      %v2554 = vunpack.c.l.b16 %v2450
      %v2555 = vunpack.c.l.b16 %v2454
      %v2556 = vunpack.c.l.b16 %v2457
      %v2557 = vunpack.c.l.b16 %v2461
      %v2558 = vunpack.c.l.b16 %v2464
      %v2559 = vunpack.c.l.b16 %v2468
      %v2560 = vunpack.c.l.b16 %v2471
      %v2561 = vunpack.c.l.b16 %v2475
      %v2562 = vunpack.c.l.b16 %v2478
      %v2563 = vunpack.c.l.b16 %v2482
      %v2564 = vunpack.c.l.b16 %v2485
      %v2565 = vunpack.c.l.b16 %v2489
      %v2566 = vunpack.c.l.b16 %v2492
      %v2567 = vunpack.c.l.b16 %v2496
      %v2568 = vunpack.c.l.b16 %v2499
      %v2569 = vunpack.c.l.b16 %v2503
      %v2570 = vunpack.c.l.b16 %v2506
      %v2571 = vunpack.c.l.b16 %v2510
      %v2572 = vunpack.c.l.b16 %v2513
      %v2573 = vunpack.c.l.b16 %v2517
      %v2574 = vunpack.c.l.b16 %v2520
      %v2575 = vunpack.c.l.b16 %v2524
      %v2576 = vunpack.c.l.b16 %v2527
      %v2577 = vunpack.c.l.b16 %v2531
      %v2578 = vunpack.c.l.b16 %v2534
      %v2579 = vunpack.c.l.b16 %v2538
      %v2580 = vunpack.c.l.b16 %v2541
      %v2581 = vunpack.c.l.b16 %v2545
      %v2582 = vunpack.c.l.b16 %v2548
      %v2583 = vpack.c.b16 %v2552, %v2551
      %v2584 = vpack.c.b16 %v2554, %v2553
      %v2585 = vpack.c.b16 %v2556, %v2555
      %v2586 = vpack.c.b16 %v2558, %v2557
      %v2587 = vpack.c.b16 %v2560, %v2559
      %v2588 = vpack.c.b16 %v2562, %v2561
      %v2589 = vpack.c.b16 %v2564, %v2563
      %v2590 = vpack.c.b16 %v2566, %v2565
      %v2591 = vpack.c.b16 %v2568, %v2567
      %v2592 = vpack.c.b16 %v2570, %v2569
      %v2593 = vpack.c.b16 %v2572, %v2571
      %v2594 = vpack.c.b16 %v2574, %v2573
      %v2595 = vpack.c.b16 %v2576, %v2575
      %v2596 = vpack.c.b16 %v2578, %v2577
      %v2597 = vpack.c.b16 %v2580, %v2579
      %v2598 = vpack.c.b16 %v2582, %v2581
      %v2600 = vsel %vm685, %v2583, 0
      %v2603 = vsel %vm685, %v2584, 0
      %v2606 = vsel %vm685, %v2585, 0
      %v2609 = vsel %vm685, %v2586, 0
      %v2612 = vsel %vm685, %v2587, 0
      %v2615 = vsel %vm685, %v2588, 0
      %v2618 = vsel %vm685, %v2589, 0
      %v2621 = vsel %vm685, %v2590, 0
      %v2624 = vsel %vm685, %v2591, 0
      %v2627 = vsel %vm685, %v2592, 0
      %v2630 = vsel %vm685, %v2593, 0
      %v2633 = vsel %vm685, %v2594, 0
      %v2636 = vsel %vm685, %v2595, 0
      %v2639 = vsel %vm685, %v2596, 0
      %v2642 = vsel %vm685, %v2597, 0
      %v2645 = vsel %vm685, %v2598, 0
      %v2648 = vsel %vm734, %v2550, 0
      %2650 = vmatpush.bf16.msra.mxu0 0
      %2651 = vmatpush.bf16.msra.mxu0 0
      %2652 = vmatpush.bf16.msra.mxu0 0
      %2653 = vmatpush.bf16.msra.mxu0 0
      %2654 = vmatpush.bf16.msra.mxu0 0
      %2655 = vmatpush.bf16.msra.mxu0 0
      %2656 = vmatpush.bf16.msra.mxu0 0
      %2657 = vmatpush.bf16.msra.mxu0 %v2648
      %2658 = vmatmul.bf16.gmra.mxu0 %v2600
      %v2659 = vpop.f32.mrf.mxu0
      %v2660 = vadd.f32 0.0, %v2659
      %v2661 = vpop.f32.mrf.mxu0
      %v2662 = vadd.f32 0.0, %v2661
      %2663 = vmatmul.bf16.gmra.mxu0 %v2603
      %v2664 = vpop.f32.mrf.mxu0
      %v2665 = vadd.f32 0.0, %v2664
      %v2666 = vpop.f32.mrf.mxu0
      %v2667 = vadd.f32 0.0, %v2666
      %2668 = vmatmul.bf16.gmra.mxu0 %v2606
      %v2669 = vpop.f32.mrf.mxu0
      %v2670 = vadd.f32 0.0, %v2669
      %v2671 = vpop.f32.mrf.mxu0
      %v2672 = vadd.f32 0.0, %v2671
      %2673 = vmatmul.bf16.gmra.mxu0 %v2609
      %v2674 = vpop.f32.mrf.mxu0
      %v2675 = vadd.f32 0.0, %v2674
      %v2676 = vpop.f32.mrf.mxu0
      %v2677 = vadd.f32 0.0, %v2676
      %2678 = vmatmul.bf16.gmra.mxu0 %v2612
      %v2679 = vpop.f32.mrf.mxu0
      %v2680 = vadd.f32 0.0, %v2679
      %v2681 = vpop.f32.mrf.mxu0
      %v2682 = vadd.f32 0.0, %v2681
      %2683 = vmatmul.bf16.gmra.mxu0 %v2615
      %v2684 = vpop.f32.mrf.mxu0
      %v2685 = vadd.f32 0.0, %v2684
      %v2686 = vpop.f32.mrf.mxu0
      %v2687 = vadd.f32 0.0, %v2686
      %2688 = vmatmul.bf16.gmra.mxu0 %v2618
      %v2689 = vpop.f32.mrf.mxu0
      %v2690 = vadd.f32 0.0, %v2689
      %v2691 = vpop.f32.mrf.mxu0
      %v2692 = vadd.f32 0.0, %v2691
      %2693 = vmatmul.bf16.gmra.mxu0 %v2621
      %v2694 = vpop.f32.mrf.mxu0
      %v2695 = vadd.f32 0.0, %v2694
      %v2696 = vpop.f32.mrf.mxu0
      %v2697 = vadd.f32 0.0, %v2696
      %2698 = vmatmul.bf16.gmra.mxu0 %v2624
      %v2699 = vpop.f32.mrf.mxu0
      %v2700 = vadd.f32 0.0, %v2699
      %v2701 = vpop.f32.mrf.mxu0
      %v2702 = vadd.f32 0.0, %v2701
      %2703 = vmatmul.bf16.gmra.mxu0 %v2627
      %v2704 = vpop.f32.mrf.mxu0
      %v2705 = vadd.f32 0.0, %v2704
      %v2706 = vpop.f32.mrf.mxu0
      %v2707 = vadd.f32 0.0, %v2706
      %2708 = vmatmul.bf16.gmra.mxu0 %v2630
      %v2709 = vpop.f32.mrf.mxu0
      %v2710 = vadd.f32 0.0, %v2709
      %v2711 = vpop.f32.mrf.mxu0
      %v2712 = vadd.f32 0.0, %v2711
      %2713 = vmatmul.bf16.gmra.mxu0 %v2633
      %v2714 = vpop.f32.mrf.mxu0
      %v2715 = vadd.f32 0.0, %v2714
      %v2716 = vpop.f32.mrf.mxu0
      %v2717 = vadd.f32 0.0, %v2716
      %2718 = vmatmul.bf16.gmra.mxu0 %v2636
      %v2719 = vpop.f32.mrf.mxu0
      %v2720 = vadd.f32 0.0, %v2719
      %v2721 = vpop.f32.mrf.mxu0
      %v2722 = vadd.f32 0.0, %v2721
      %2723 = vmatmul.bf16.gmra.mxu0 %v2639
      %v2724 = vpop.f32.mrf.mxu0
      %v2725 = vadd.f32 0.0, %v2724
      %v2726 = vpop.f32.mrf.mxu0
      %v2727 = vadd.f32 0.0, %v2726
      %2728 = vmatmul.bf16.gmra.mxu0 %v2642
      %v2729 = vpop.f32.mrf.mxu0
      %v2730 = vadd.f32 0.0, %v2729
      %v2731 = vpop.f32.mrf.mxu0
      %v2732 = vadd.f32 0.0, %v2731
      %2733 = vmatmul.bf16.gmra.mxu0 %v2645
      %v2734 = vpop.f32.mrf.mxu0
      %v2735 = vadd.f32 0.0, %v2734
      %v2736 = vpop.f32.mrf.mxu0
      %v2737 = vadd.f32 0.0, %v2736
      %2738 = vdwg.mxu0
      %v2739 = vadd.f32 %v2341, %v2660
      %v2740 = vadd.f32 %v2342, %v2662
      %v2741 = vadd.f32 %v2343, %v2665
      %v2742 = vadd.f32 %v2344, %v2667
      %v2743 = vadd.f32 %v2345, %v2670
      %v2744 = vadd.f32 %v2346, %v2672
      %v2745 = vadd.f32 %v2347, %v2675
      %v2746 = vadd.f32 %v2348, %v2677
      %v2747 = vadd.f32 %v2349, %v2680
      %v2748 = vadd.f32 %v2350, %v2682
      %v2749 = vadd.f32 %v2351, %v2685
      %v2750 = vadd.f32 %v2352, %v2687
      %v2751 = vadd.f32 %v2353, %v2690
      %v2752 = vadd.f32 %v2354, %v2692
      %v2753 = vadd.f32 %v2355, %v2695
      %v2754 = vadd.f32 %v2356, %v2697
      %v2755 = vadd.f32 %v2357, %v2700
      %v2756 = vadd.f32 %v2358, %v2702
      %v2757 = vadd.f32 %v2359, %v2705
      %v2758 = vadd.f32 %v2360, %v2707
      %v2759 = vadd.f32 %v2361, %v2710
      %v2760 = vadd.f32 %v2362, %v2712
      %v2761 = vadd.f32 %v2363, %v2715
      %v2762 = vadd.f32 %v2364, %v2717
      %v2763 = vadd.f32 %v2365, %v2720
      %v2764 = vadd.f32 %v2366, %v2722
      %v2765 = vadd.f32 %v2367, %v2725
      %v2766 = vadd.f32 %v2368, %v2727
      %v2767 = vadd.f32 %v2369, %v2730
      %v2768 = vadd.f32 %v2370, %v2732
      %v2769 = vadd.f32 %v2371, %v2735
      %v2770 = vadd.f32 %v2372, %v2737
      %s2771 = scalar_lea.vmem %s192, 24
      %v2772 = vld [vmem:[%s2771] sm:$0xf]
      %v2773 = vld [vmem:[%s2771 + $0x4] sm:$0xf]
      %v2774 = vld [vmem:[%s2771 + $0xc] sm:$0xf]
      %v2775 = vld [vmem:[%s2771 + $0x10] sm:$0xf]
      %v2776 = vld [vmem:[%s2771 + $0x18] sm:$0xf]
      %v2777 = vld [vmem:[%s2771 + $0x1c] sm:$0xf]
      %v2778 = vld [vmem:[%s2771 + $0x24] sm:$0xf]
      %v2779 = vld [vmem:[%s2771 + $0x28] sm:$0xf]
      %v2780 = vld [vmem:[%s2771 + $0x30] sm:$0xf]
      %v2781 = vld [vmem:[%s2771 + $0x34] sm:$0xf]
      %v2782 = vld [vmem:[%s2771 + $0x3c] sm:$0xf]
      %v2783 = vld [vmem:[%s2771 + $0x40] sm:$0xf]
      %v2784 = vld [vmem:[%s2771 + $0x48] sm:$0xf]
      %v2785 = vld [vmem:[%s2771 + $0x4c] sm:$0xf]
      %v2786 = vld [vmem:[%s2771 + $0x54] sm:$0xf]
      %v2787 = vld [vmem:[%s2771 + $0x58] sm:$0xf]
      %v2788 = vld [vmem:[%s2771 + $0x60] sm:$0xf]
      %v2789 = vld [vmem:[%s2771 + $0x64] sm:$0xf]
      %v2790 = vld [vmem:[%s2771 + $0x6c] sm:$0xf]
      %v2791 = vld [vmem:[%s2771 + $0x70] sm:$0xf]
      %v2792 = vld [vmem:[%s2771 + $0x78] sm:$0xf]
      %v2793 = vld [vmem:[%s2771 + $0x7c] sm:$0xf]
      %v2794 = vld [vmem:[%s2771 + $0x84] sm:$0xf]
      %v2795 = vld [vmem:[%s2771 + $0x88] sm:$0xf]
      %v2796 = vld [vmem:[%s2771 + $0x90] sm:$0xf]
      %v2797 = vld [vmem:[%s2771 + $0x94] sm:$0xf]
      %v2798 = vld [vmem:[%s2771 + $0x9c] sm:$0xf]
      %v2799 = vld [vmem:[%s2771 + $0xa0] sm:$0xf]
      %v2800 = vld [vmem:[%s2771 + $0xa8] sm:$0xf]
      %v2801 = vld [vmem:[%s2771 + $0xac] sm:$0xf]
      %v2802 = vld [vmem:[%s2771 + $0xb4] sm:$0xf]
      %v2803 = vld [vmem:[%s2771 + $0xb8] sm:$0xf]
      %s2804 = scalar_lea.vmem %s1, 12
      %v2805 = vld [vmem:[%s2804] sm:$0x3]
      %v2838 = vunpack.c.l.b16 %v2772
      %v2839 = vunpack.c.l.b16 %v2773
      %v2840 = vunpack.c.l.b16 %v2774
      %v2841 = vunpack.c.l.b16 %v2775
      %v2842 = vunpack.c.l.b16 %v2776
      %v2843 = vunpack.c.l.b16 %v2777
      %v2844 = vunpack.c.l.b16 %v2778
      %v2845 = vunpack.c.l.b16 %v2779
      %v2846 = vunpack.c.l.b16 %v2780
      %v2847 = vunpack.c.l.b16 %v2781
      %v2848 = vunpack.c.l.b16 %v2782
      %v2849 = vunpack.c.l.b16 %v2783
      %v2850 = vunpack.c.l.b16 %v2784
      %v2851 = vunpack.c.l.b16 %v2785
      %v2852 = vunpack.c.l.b16 %v2786
      %v2853 = vunpack.c.l.b16 %v2787
      %v2854 = vunpack.c.l.b16 %v2788
      %v2855 = vunpack.c.l.b16 %v2789
      %v2856 = vunpack.c.l.b16 %v2790
      %v2857 = vunpack.c.l.b16 %v2791
      %v2858 = vunpack.c.l.b16 %v2792
      %v2859 = vunpack.c.l.b16 %v2793
      %v2860 = vunpack.c.l.b16 %v2794
      %v2861 = vunpack.c.l.b16 %v2795
      %v2862 = vunpack.c.l.b16 %v2796
      %v2863 = vunpack.c.l.b16 %v2797
      %v2864 = vunpack.c.l.b16 %v2798
      %v2865 = vunpack.c.l.b16 %v2799
      %v2866 = vunpack.c.l.b16 %v2800
      %v2867 = vunpack.c.l.b16 %v2801
      %v2868 = vunpack.c.l.b16 %v2802
      %v2869 = vunpack.c.l.b16 %v2803
      %v2870 = vpack.c.b16 %v2839, %v2838
      %v2871 = vpack.c.b16 %v2841, %v2840
      %v2872 = vpack.c.b16 %v2843, %v2842
      %v2873 = vpack.c.b16 %v2845, %v2844
      %v2874 = vpack.c.b16 %v2847, %v2846
      %v2875 = vpack.c.b16 %v2849, %v2848
      %v2876 = vpack.c.b16 %v2851, %v2850
      %v2877 = vpack.c.b16 %v2853, %v2852
      %v2878 = vpack.c.b16 %v2855, %v2854
      %v2879 = vpack.c.b16 %v2857, %v2856
      %v2880 = vpack.c.b16 %v2859, %v2858
      %v2881 = vpack.c.b16 %v2861, %v2860
      %v2882 = vpack.c.b16 %v2863, %v2862
      %v2883 = vpack.c.b16 %v2865, %v2864
      %v2884 = vpack.c.b16 %v2867, %v2866
      %v2885 = vpack.c.b16 %v2869, %v2868
      %v2887 = vsel %vm685, %v2870, 0
      %v2890 = vsel %vm685, %v2871, 0
      %v2893 = vsel %vm685, %v2872, 0
      %v2896 = vsel %vm685, %v2873, 0
      %v2899 = vsel %vm685, %v2874, 0
      %v2902 = vsel %vm685, %v2875, 0
      %v2905 = vsel %vm685, %v2876, 0
      %v2908 = vsel %vm685, %v2877, 0
      %v2911 = vsel %vm685, %v2878, 0
      %v2914 = vsel %vm685, %v2879, 0
      %v2917 = vsel %vm685, %v2880, 0
      %v2920 = vsel %vm685, %v2881, 0
      %v2923 = vsel %vm685, %v2882, 0
      %v2926 = vsel %vm685, %v2883, 0
      %v2929 = vsel %vm685, %v2884, 0
      %v2932 = vsel %vm685, %v2885, 0
      %v2935 = vsel %vm734, %v2805, 0
      %2937 = vmatpush.bf16.msra.mxu0 0
      %2938 = vmatpush.bf16.msra.mxu0 0
      %2939 = vmatpush.bf16.msra.mxu0 0
      %2940 = vmatpush.bf16.msra.mxu0 0
      %2941 = vmatpush.bf16.msra.mxu0 0
      %2942 = vmatpush.bf16.msra.mxu0 0
      %2943 = vmatpush.bf16.msra.mxu0 0
      %2944 = vmatpush.bf16.msra.mxu0 %v2935
      %2945 = vmatmul.bf16.gmra.mxu0 %v2887
      %v2946 = vpop.f32.mrf.mxu0
      %v2947 = vadd.f32 0.0, %v2946
      %v2948 = vpop.f32.mrf.mxu0
      %v2949 = vadd.f32 0.0, %v2948
      %2950 = vmatmul.bf16.gmra.mxu0 %v2890
      %v2951 = vpop.f32.mrf.mxu0
      %v2952 = vadd.f32 0.0, %v2951
      %v2953 = vpop.f32.mrf.mxu0
      %v2954 = vadd.f32 0.0, %v2953
      %2955 = vmatmul.bf16.gmra.mxu0 %v2893
      %v2956 = vpop.f32.mrf.mxu0
      %v2957 = vadd.f32 0.0, %v2956
      %v2958 = vpop.f32.mrf.mxu0
      %v2959 = vadd.f32 0.0, %v2958
      %2960 = vmatmul.bf16.gmra.mxu0 %v2896
      %v2961 = vpop.f32.mrf.mxu0
      %v2962 = vadd.f32 0.0, %v2961
      %v2963 = vpop.f32.mrf.mxu0
      %v2964 = vadd.f32 0.0, %v2963
      %2965 = vmatmul.bf16.gmra.mxu0 %v2899
      %v2966 = vpop.f32.mrf.mxu0
      %v2967 = vadd.f32 0.0, %v2966
      %v2968 = vpop.f32.mrf.mxu0
      %v2969 = vadd.f32 0.0, %v2968
      %2970 = vmatmul.bf16.gmra.mxu0 %v2902
      %v2971 = vpop.f32.mrf.mxu0
      %v2972 = vadd.f32 0.0, %v2971
      %v2973 = vpop.f32.mrf.mxu0
      %v2974 = vadd.f32 0.0, %v2973
      %2975 = vmatmul.bf16.gmra.mxu0 %v2905
      %v2976 = vpop.f32.mrf.mxu0
      %v2977 = vadd.f32 0.0, %v2976
      %v2978 = vpop.f32.mrf.mxu0
      %v2979 = vadd.f32 0.0, %v2978
      %2980 = vmatmul.bf16.gmra.mxu0 %v2908
      %v2981 = vpop.f32.mrf.mxu0
      %v2982 = vadd.f32 0.0, %v2981
      %v2983 = vpop.f32.mrf.mxu0
      %v2984 = vadd.f32 0.0, %v2983
      %2985 = vmatmul.bf16.gmra.mxu0 %v2911
      %v2986 = vpop.f32.mrf.mxu0
      %v2987 = vadd.f32 0.0, %v2986
      %v2988 = vpop.f32.mrf.mxu0
      %v2989 = vadd.f32 0.0, %v2988
      %2990 = vmatmul.bf16.gmra.mxu0 %v2914
      %v2991 = vpop.f32.mrf.mxu0
      %v2992 = vadd.f32 0.0, %v2991
      %v2993 = vpop.f32.mrf.mxu0
      %v2994 = vadd.f32 0.0, %v2993
      %2995 = vmatmul.bf16.gmra.mxu0 %v2917
      %v2996 = vpop.f32.mrf.mxu0
      %v2997 = vadd.f32 0.0, %v2996
      %v2998 = vpop.f32.mrf.mxu0
      %v2999 = vadd.f32 0.0, %v2998
      %3000 = vmatmul.bf16.gmra.mxu0 %v2920
      %v3001 = vpop.f32.mrf.mxu0
      %v3002 = vadd.f32 0.0, %v3001
      %v3003 = vpop.f32.mrf.mxu0
      %v3004 = vadd.f32 0.0, %v3003
      %3005 = vmatmul.bf16.gmra.mxu0 %v2923
      %v3006 = vpop.f32.mrf.mxu0
      %v3007 = vadd.f32 0.0, %v3006
      %v3008 = vpop.f32.mrf.mxu0
      %v3009 = vadd.f32 0.0, %v3008
      %3010 = vmatmul.bf16.gmra.mxu0 %v2926
      %v3011 = vpop.f32.mrf.mxu0
      %v3012 = vadd.f32 0.0, %v3011
      %v3013 = vpop.f32.mrf.mxu0
      %v3014 = vadd.f32 0.0, %v3013
      %3015 = vmatmul.bf16.gmra.mxu0 %v2929
      %v3016 = vpop.f32.mrf.mxu0
      %v3017 = vadd.f32 0.0, %v3016
      %v3018 = vpop.f32.mrf.mxu0
      %v3019 = vadd.f32 0.0, %v3018
      %3020 = vmatmul.bf16.gmra.mxu0 %v2932
      %v3021 = vpop.f32.mrf.mxu0
      %v3022 = vadd.f32 0.0, %v3021
      %v3023 = vpop.f32.mrf.mxu0
      %v3024 = vadd.f32 0.0, %v3023
      %3025 = vdwg.mxu0
      %v3026 = vadd.f32 %v2739, %v2947
      %v3027 = vadd.f32 %v2740, %v2949
      %v3028 = vadd.f32 %v2741, %v2952
      %v3029 = vadd.f32 %v2742, %v2954
      %v3030 = vadd.f32 %v2743, %v2957
      %v3031 = vadd.f32 %v2744, %v2959
      %v3032 = vadd.f32 %v2745, %v2962
      %v3033 = vadd.f32 %v2746, %v2964
      %v3034 = vadd.f32 %v2747, %v2967
      %v3035 = vadd.f32 %v2748, %v2969
      %v3036 = vadd.f32 %v2749, %v2972
      %v3037 = vadd.f32 %v2750, %v2974
      %v3038 = vadd.f32 %v2751, %v2977
      %v3039 = vadd.f32 %v2752, %v2979
      %v3040 = vadd.f32 %v2753, %v2982
      %v3041 = vadd.f32 %v2754, %v2984
      %v3042 = vadd.f32 %v2755, %v2987
      %v3043 = vadd.f32 %v2756, %v2989
      %v3044 = vadd.f32 %v2757, %v2992
      %v3045 = vadd.f32 %v2758, %v2994
      %v3046 = vadd.f32 %v2759, %v2997
      %v3047 = vadd.f32 %v2760, %v2999
      %v3048 = vadd.f32 %v2761, %v3002
      %v3049 = vadd.f32 %v2762, %v3004
      %v3050 = vadd.f32 %v2763, %v3007
      %v3051 = vadd.f32 %v2764, %v3009
      %v3052 = vadd.f32 %v2765, %v3012
      %v3053 = vadd.f32 %v2766, %v3014
      %v3054 = vadd.f32 %v2767, %v3017
      %v3055 = vadd.f32 %v2768, %v3019
      %v3056 = vadd.f32 %v2769, %v3022
      %v3057 = vadd.f32 %v2770, %v3024
      %v3058 = vld [vmem:[%s2771] sm:$0xf]
      %v3059 = vld [vmem:[%s2771 + $0x4] sm:$0xf]
      %v3060 = vld [vmem:[%s2771 + $0x8] sm:$0x1]
      %v3061 = vld [vmem:[%s2771 + $0xc] sm:$0xf]
      %v3062 = vld [vmem:[%s2771 + $0x10] sm:$0xf]
      %v3063 = vld [vmem:[%s2771 + $0x14] sm:$0x1]
      %v3064 = vld [vmem:[%s2771 + $0x18] sm:$0xf]
      %v3065 = vld [vmem:[%s2771 + $0x1c] sm:$0xf]
      %v3066 = vld [vmem:[%s2771 + $0x20] sm:$0x1]
      %v3067 = vld [vmem:[%s2771 + $0x24] sm:$0xf]
      %v3068 = vld [vmem:[%s2771 + $0x28] sm:$0xf]
      %v3069 = vld [vmem:[%s2771 + $0x2c] sm:$0x1]
      %v3070 = vld [vmem:[%s2771 + $0x30] sm:$0xf]
      %v3071 = vld [vmem:[%s2771 + $0x34] sm:$0xf]
      %v3072 = vld [vmem:[%s2771 + $0x38] sm:$0x1]
      %v3073 = vld [vmem:[%s2771 + $0x3c] sm:$0xf]
      %v3074 = vld [vmem:[%s2771 + $0x40] sm:$0xf]
      %v3075 = vld [vmem:[%s2771 + $0x44] sm:$0x1]
      %v3076 = vld [vmem:[%s2771 + $0x48] sm:$0xf]
      %v3077 = vld [vmem:[%s2771 + $0x4c] sm:$0xf]
      %v3078 = vld [vmem:[%s2771 + $0x50] sm:$0x1]
      %v3079 = vld [vmem:[%s2771 + $0x54] sm:$0xf]
      %v3080 = vld [vmem:[%s2771 + $0x58] sm:$0xf]
      %v3081 = vld [vmem:[%s2771 + $0x5c] sm:$0x1]
      %v3082 = vld [vmem:[%s2771 + $0x60] sm:$0xf]
      %v3083 = vld [vmem:[%s2771 + $0x64] sm:$0xf]
      %v3084 = vld [vmem:[%s2771 + $0x68] sm:$0x1]
      %v3085 = vld [vmem:[%s2771 + $0x6c] sm:$0xf]
      %v3086 = vld [vmem:[%s2771 + $0x70] sm:$0xf]
      %v3087 = vld [vmem:[%s2771 + $0x74] sm:$0x1]
      %v3088 = vld [vmem:[%s2771 + $0x78] sm:$0xf]
      %v3089 = vld [vmem:[%s2771 + $0x7c] sm:$0xf]
      %v3090 = vld [vmem:[%s2771 + $0x80] sm:$0x1]
      %v3091 = vld [vmem:[%s2771 + $0x84] sm:$0xf]
      %v3092 = vld [vmem:[%s2771 + $0x88] sm:$0xf]
      %v3093 = vld [vmem:[%s2771 + $0x8c] sm:$0x1]
      %v3094 = vld [vmem:[%s2771 + $0x90] sm:$0xf]
      %v3095 = vld [vmem:[%s2771 + $0x94] sm:$0xf]
      %v3096 = vld [vmem:[%s2771 + $0x98] sm:$0x1]
      %v3097 = vld [vmem:[%s2771 + $0x9c] sm:$0xf]
      %v3098 = vld [vmem:[%s2771 + $0xa0] sm:$0xf]
      %v3099 = vld [vmem:[%s2771 + $0xa4] sm:$0x1]
      %v3100 = vld [vmem:[%s2771 + $0xa8] sm:$0xf]
      %v3101 = vld [vmem:[%s2771 + $0xac] sm:$0xf]
      %v3102 = vld [vmem:[%s2771 + $0xb0] sm:$0x1]
      %v3103 = vld [vmem:[%s2771 + $0xb4] sm:$0xf]
      %v3104 = vld [vmem:[%s2771 + $0xb8] sm:$0xf]
      %v3105 = vld [vmem:[%s2771 + $0xbc] sm:$0x1]
      %v3107 = vshrl.u32 %v3058, 16
      %v3109 = vrot.slane %v3107, 4
      %v3110 = vshll.u32 %v3058, 16
      %v3112 = vrot.slane %v3110, 5
      %v3113 = vor.u32 %v3109, %v3112
      %v3114 = vrot.slane %v3113, 4
      %v3116 = vshll.u32 %v3059, 16
      %v3118 = vrot.slane %v3116, 5
      %v3119 = vsel %vm250, %v3114, %v3118
      %v3120 = vshrl.u32 %v3059, 16
      %v3122 = vrot.slane %v3120, 4
      %v3123 = vor.u32 %v3122, %v3118
      %v3124 = vrot.slane %v3123, 4
      %v3126 = vshll.u32 %v3060, 16
      %v3128 = vrot.slane %v3126, 5
      %v3129 = vsel %vm250, %v3124, %v3128
      %v3131 = vshrl.u32 %v3061, 16
      %v3133 = vrot.slane %v3131, 4
      %v3134 = vshll.u32 %v3061, 16
      %v3136 = vrot.slane %v3134, 5
      %v3137 = vor.u32 %v3133, %v3136
      %v3138 = vrot.slane %v3137, 4
      %v3140 = vshll.u32 %v3062, 16
      %v3142 = vrot.slane %v3140, 5
      %v3143 = vsel %vm250, %v3138, %v3142
      %v3144 = vshrl.u32 %v3062, 16
      %v3146 = vrot.slane %v3144, 4
      %v3147 = vor.u32 %v3146, %v3142
      %v3148 = vrot.slane %v3147, 4
      %v3150 = vshll.u32 %v3063, 16
      %v3152 = vrot.slane %v3150, 5
      %v3153 = vsel %vm250, %v3148, %v3152
      %v3155 = vshrl.u32 %v3064, 16
      %v3157 = vrot.slane %v3155, 4
      %v3158 = vshll.u32 %v3064, 16
      %v3160 = vrot.slane %v3158, 5
      %v3161 = vor.u32 %v3157, %v3160
      %v3162 = vrot.slane %v3161, 4
      %v3164 = vshll.u32 %v3065, 16
      %v3166 = vrot.slane %v3164, 5
      %v3167 = vsel %vm250, %v3162, %v3166
      %v3168 = vshrl.u32 %v3065, 16
      %v3170 = vrot.slane %v3168, 4
      %v3171 = vor.u32 %v3170, %v3166
      %v3172 = vrot.slane %v3171, 4
      %v3174 = vshll.u32 %v3066, 16
      %v3176 = vrot.slane %v3174, 5
      %v3177 = vsel %vm250, %v3172, %v3176
      %v3179 = vshrl.u32 %v3067, 16
      %v3181 = vrot.slane %v3179, 4
      %v3182 = vshll.u32 %v3067, 16
      %v3184 = vrot.slane %v3182, 5
      %v3185 = vor.u32 %v3181, %v3184
      %v3186 = vrot.slane %v3185, 4
      %v3188 = vshll.u32 %v3068, 16
      %v3190 = vrot.slane %v3188, 5
      %v3191 = vsel %vm250, %v3186, %v3190
      %v3192 = vshrl.u32 %v3068, 16
      %v3194 = vrot.slane %v3192, 4
      %v3195 = vor.u32 %v3194, %v3190
      %v3196 = vrot.slane %v3195, 4
      %v3198 = vshll.u32 %v3069, 16
      %v3200 = vrot.slane %v3198, 5
      %v3201 = vsel %vm250, %v3196, %v3200
      %v3203 = vshrl.u32 %v3070, 16
      %v3205 = vrot.slane %v3203, 4
      %v3206 = vshll.u32 %v3070, 16
      %v3208 = vrot.slane %v3206, 5
      %v3209 = vor.u32 %v3205, %v3208
      %v3210 = vrot.slane %v3209, 4
      %v3212 = vshll.u32 %v3071, 16
      %v3214 = vrot.slane %v3212, 5
      %v3215 = vsel %vm250, %v3210, %v3214
      %v3216 = vshrl.u32 %v3071, 16
      %v3218 = vrot.slane %v3216, 4
      %v3219 = vor.u32 %v3218, %v3214
      %v3220 = vrot.slane %v3219, 4
      %v3222 = vshll.u32 %v3072, 16
      %v3224 = vrot.slane %v3222, 5
      %v3225 = vsel %vm250, %v3220, %v3224
      %v3227 = vshrl.u32 %v3073, 16
      %v3229 = vrot.slane %v3227, 4
      %v3230 = vshll.u32 %v3073, 16
      %v3232 = vrot.slane %v3230, 5
      %v3233 = vor.u32 %v3229, %v3232
      %v3234 = vrot.slane %v3233, 4
      %v3236 = vshll.u32 %v3074, 16
      %v3238 = vrot.slane %v3236, 5
      %v3239 = vsel %vm250, %v3234, %v3238
      %v3240 = vshrl.u32 %v3074, 16
      %v3242 = vrot.slane %v3240, 4
      %v3243 = vor.u32 %v3242, %v3238
      %v3244 = vrot.slane %v3243, 4
      %v3246 = vshll.u32 %v3075, 16
      %v3248 = vrot.slane %v3246, 5
      %v3249 = vsel %vm250, %v3244, %v3248
      %v3251 = vshrl.u32 %v3076, 16
      %v3253 = vrot.slane %v3251, 4
      %v3254 = vshll.u32 %v3076, 16
      %v3256 = vrot.slane %v3254, 5
      %v3257 = vor.u32 %v3253, %v3256
      %v3258 = vrot.slane %v3257, 4
      %v3260 = vshll.u32 %v3077, 16
      %v3262 = vrot.slane %v3260, 5
      %v3263 = vsel %vm250, %v3258, %v3262
      %v3264 = vshrl.u32 %v3077, 16
      %v3266 = vrot.slane %v3264, 4
      %v3267 = vor.u32 %v3266, %v3262
      %v3268 = vrot.slane %v3267, 4
      %v3270 = vshll.u32 %v3078, 16
      %v3272 = vrot.slane %v3270, 5
      %v3273 = vsel %vm250, %v3268, %v3272
      %v3275 = vshrl.u32 %v3079, 16
      %v3277 = vrot.slane %v3275, 4
      %v3278 = vshll.u32 %v3079, 16
      %v3280 = vrot.slane %v3278, 5
      %v3281 = vor.u32 %v3277, %v3280
      %v3282 = vrot.slane %v3281, 4
      %v3284 = vshll.u32 %v3080, 16
      %v3286 = vrot.slane %v3284, 5
      %v3287 = vsel %vm250, %v3282, %v3286
      %v3288 = vshrl.u32 %v3080, 16
      %v3290 = vrot.slane %v3288, 4
      %v3291 = vor.u32 %v3290, %v3286
      %v3292 = vrot.slane %v3291, 4
      %v3294 = vshll.u32 %v3081, 16
      %v3296 = vrot.slane %v3294, 5
      %v3297 = vsel %vm250, %v3292, %v3296
      %v3299 = vshrl.u32 %v3082, 16
      %v3301 = vrot.slane %v3299, 4
      %v3302 = vshll.u32 %v3082, 16
      %v3304 = vrot.slane %v3302, 5
      %v3305 = vor.u32 %v3301, %v3304
      %v3306 = vrot.slane %v3305, 4
      %v3308 = vshll.u32 %v3083, 16
      %v3310 = vrot.slane %v3308, 5
      %v3311 = vsel %vm250, %v3306, %v3310
      %v3312 = vshrl.u32 %v3083, 16
      %v3314 = vrot.slane %v3312, 4
      %v3315 = vor.u32 %v3314, %v3310
      %v3316 = vrot.slane %v3315, 4
      %v3318 = vshll.u32 %v3084, 16
      %v3320 = vrot.slane %v3318, 5
      %v3321 = vsel %vm250, %v3316, %v3320
      %v3323 = vshrl.u32 %v3085, 16
      %v3325 = vrot.slane %v3323, 4
      %v3326 = vshll.u32 %v3085, 16
      %v3328 = vrot.slane %v3326, 5
      %v3329 = vor.u32 %v3325, %v3328
      %v3330 = vrot.slane %v3329, 4
      %v3332 = vshll.u32 %v3086, 16
      %v3334 = vrot.slane %v3332, 5
      %v3335 = vsel %vm250, %v3330, %v3334
      %v3336 = vshrl.u32 %v3086, 16
      %v3338 = vrot.slane %v3336, 4
      %v3339 = vor.u32 %v3338, %v3334
      %v3340 = vrot.slane %v3339, 4
      %v3342 = vshll.u32 %v3087, 16
      %v3344 = vrot.slane %v3342, 5
      %v3345 = vsel %vm250, %v3340, %v3344
      %v3347 = vshrl.u32 %v3088, 16
      %v3349 = vrot.slane %v3347, 4
      %v3350 = vshll.u32 %v3088, 16
      %v3352 = vrot.slane %v3350, 5
      %v3353 = vor.u32 %v3349, %v3352
      %v3354 = vrot.slane %v3353, 4
      %v3356 = vshll.u32 %v3089, 16
      %v3358 = vrot.slane %v3356, 5
      %v3359 = vsel %vm250, %v3354, %v3358
      %v3360 = vshrl.u32 %v3089, 16
      %v3362 = vrot.slane %v3360, 4
      %v3363 = vor.u32 %v3362, %v3358
      %v3364 = vrot.slane %v3363, 4
      %v3366 = vshll.u32 %v3090, 16
      %v3368 = vrot.slane %v3366, 5
      %v3369 = vsel %vm250, %v3364, %v3368
      %v3371 = vshrl.u32 %v3091, 16
      %v3373 = vrot.slane %v3371, 4
      %v3374 = vshll.u32 %v3091, 16
      %v3376 = vrot.slane %v3374, 5
      %v3377 = vor.u32 %v3373, %v3376
      %v3378 = vrot.slane %v3377, 4
      %v3380 = vshll.u32 %v3092, 16
      %v3382 = vrot.slane %v3380, 5
      %v3383 = vsel %vm250, %v3378, %v3382
      %v3384 = vshrl.u32 %v3092, 16
      %v3386 = vrot.slane %v3384, 4
      %v3387 = vor.u32 %v3386, %v3382
      %v3388 = vrot.slane %v3387, 4
      %v3390 = vshll.u32 %v3093, 16
      %v3392 = vrot.slane %v3390, 5
      %v3393 = vsel %vm250, %v3388, %v3392
      %v3395 = vshrl.u32 %v3094, 16
      %v3397 = vrot.slane %v3395, 4
      %v3398 = vshll.u32 %v3094, 16
      %v3400 = vrot.slane %v3398, 5
      %v3401 = vor.u32 %v3397, %v3400
      %v3402 = vrot.slane %v3401, 4
      %v3404 = vshll.u32 %v3095, 16
      %v3406 = vrot.slane %v3404, 5
      %v3407 = vsel %vm250, %v3402, %v3406
      %v3408 = vshrl.u32 %v3095, 16
      %v3410 = vrot.slane %v3408, 4
      %v3411 = vor.u32 %v3410, %v3406
      %v3412 = vrot.slane %v3411, 4
      %v3414 = vshll.u32 %v3096, 16
      %v3416 = vrot.slane %v3414, 5
      %v3417 = vsel %vm250, %v3412, %v3416
      %v3419 = vshrl.u32 %v3097, 16
      %v3421 = vrot.slane %v3419, 4
      %v3422 = vshll.u32 %v3097, 16
      %v3424 = vrot.slane %v3422, 5
      %v3425 = vor.u32 %v3421, %v3424
      %v3426 = vrot.slane %v3425, 4
      %v3428 = vshll.u32 %v3098, 16
      %v3430 = vrot.slane %v3428, 5
      %v3431 = vsel %vm250, %v3426, %v3430
      %v3432 = vshrl.u32 %v3098, 16
      %v3434 = vrot.slane %v3432, 4
      %v3435 = vor.u32 %v3434, %v3430
      %v3436 = vrot.slane %v3435, 4
      %v3438 = vshll.u32 %v3099, 16
      %v3440 = vrot.slane %v3438, 5
      %v3441 = vsel %vm250, %v3436, %v3440
      %v3443 = vshrl.u32 %v3100, 16
      %v3445 = vrot.slane %v3443, 4
      %v3446 = vshll.u32 %v3100, 16
      %v3448 = vrot.slane %v3446, 5
      %v3449 = vor.u32 %v3445, %v3448
      %v3450 = vrot.slane %v3449, 4
      %v3452 = vshll.u32 %v3101, 16
      %v3454 = vrot.slane %v3452, 5
      %v3455 = vsel %vm250, %v3450, %v3454
      %v3456 = vshrl.u32 %v3101, 16
      %v3458 = vrot.slane %v3456, 4
      %v3459 = vor.u32 %v3458, %v3454
      %v3460 = vrot.slane %v3459, 4
      %v3462 = vshll.u32 %v3102, 16
      %v3464 = vrot.slane %v3462, 5
      %v3465 = vsel %vm250, %v3460, %v3464
      %v3467 = vshrl.u32 %v3103, 16
      %v3469 = vrot.slane %v3467, 4
      %v3470 = vshll.u32 %v3103, 16
      %v3472 = vrot.slane %v3470, 5
      %v3473 = vor.u32 %v3469, %v3472
      %v3474 = vrot.slane %v3473, 4
      %v3476 = vshll.u32 %v3104, 16
      %v3478 = vrot.slane %v3476, 5
      %v3479 = vsel %vm250, %v3474, %v3478
      %v3480 = vshrl.u32 %v3104, 16
      %v3482 = vrot.slane %v3480, 4
      %v3483 = vor.u32 %v3482, %v3478
      %v3484 = vrot.slane %v3483, 4
      %v3486 = vshll.u32 %v3105, 16
      %v3488 = vrot.slane %v3486, 5
      %v3489 = vsel %vm250, %v3484, %v3488
      %s3490 = scalar_lea.vmem %s1, 14
      %v3491 = vld [vmem:[%s3490] sm:$0x3]
      %v3492 = vunpack.c.l.b16 %v3119
      %v3493 = vunpack.c.l.b16 %v3129
      %v3494 = vunpack.c.l.b16 %v3143
      %v3495 = vunpack.c.l.b16 %v3153
      %v3496 = vunpack.c.l.b16 %v3167
      %v3497 = vunpack.c.l.b16 %v3177
      %v3498 = vunpack.c.l.b16 %v3191
      %v3499 = vunpack.c.l.b16 %v3201
      %v3500 = vunpack.c.l.b16 %v3215
      %v3501 = vunpack.c.l.b16 %v3225
      %v3502 = vunpack.c.l.b16 %v3239
      %v3503 = vunpack.c.l.b16 %v3249
      %v3504 = vunpack.c.l.b16 %v3263
      %v3505 = vunpack.c.l.b16 %v3273
      %v3506 = vunpack.c.l.b16 %v3287
      %v3507 = vunpack.c.l.b16 %v3297
      %v3508 = vunpack.c.l.b16 %v3311
      %v3509 = vunpack.c.l.b16 %v3321
      %v3510 = vunpack.c.l.b16 %v3335
      %v3511 = vunpack.c.l.b16 %v3345
      %v3512 = vunpack.c.l.b16 %v3359
      %v3513 = vunpack.c.l.b16 %v3369
      %v3514 = vunpack.c.l.b16 %v3383
      %v3515 = vunpack.c.l.b16 %v3393
      %v3516 = vunpack.c.l.b16 %v3407
      %v3517 = vunpack.c.l.b16 %v3417
      %v3518 = vunpack.c.l.b16 %v3431
      %v3519 = vunpack.c.l.b16 %v3441
      %v3520 = vunpack.c.l.b16 %v3455
      %v3521 = vunpack.c.l.b16 %v3465
      %v3522 = vunpack.c.l.b16 %v3479
      %v3523 = vunpack.c.l.b16 %v3489
      %v3524 = vpack.c.b16 %v3493, %v3492
      %v3525 = vpack.c.b16 %v3495, %v3494
      %v3526 = vpack.c.b16 %v3497, %v3496
      %v3527 = vpack.c.b16 %v3499, %v3498
      %v3528 = vpack.c.b16 %v3501, %v3500
      %v3529 = vpack.c.b16 %v3503, %v3502
      %v3530 = vpack.c.b16 %v3505, %v3504
      %v3531 = vpack.c.b16 %v3507, %v3506
      %v3532 = vpack.c.b16 %v3509, %v3508
      %v3533 = vpack.c.b16 %v3511, %v3510
      %v3534 = vpack.c.b16 %v3513, %v3512
      %v3535 = vpack.c.b16 %v3515, %v3514
      %v3536 = vpack.c.b16 %v3517, %v3516
      %v3537 = vpack.c.b16 %v3519, %v3518
      %v3538 = vpack.c.b16 %v3521, %v3520
      %v3539 = vpack.c.b16 %v3523, %v3522
      %v3541 = vsel %vm685, %v3524, 0
      %v3544 = vsel %vm685, %v3525, 0
      %v3547 = vsel %vm685, %v3526, 0
      %v3550 = vsel %vm685, %v3527, 0
      %v3553 = vsel %vm685, %v3528, 0
      %v3556 = vsel %vm685, %v3529, 0
      %v3559 = vsel %vm685, %v3530, 0
      %v3562 = vsel %vm685, %v3531, 0
      %v3565 = vsel %vm685, %v3532, 0
      %v3568 = vsel %vm685, %v3533, 0
      %v3571 = vsel %vm685, %v3534, 0
      %v3574 = vsel %vm685, %v3535, 0
      %v3577 = vsel %vm685, %v3536, 0
      %v3580 = vsel %vm685, %v3537, 0
      %v3583 = vsel %vm685, %v3538, 0
      %v3586 = vsel %vm685, %v3539, 0
      %v3589 = vsel %vm734, %v3491, 0
      %3591 = vmatpush.bf16.msra.mxu0 0
      %3592 = vmatpush.bf16.msra.mxu0 0
      %3593 = vmatpush.bf16.msra.mxu0 0
      %3594 = vmatpush.bf16.msra.mxu0 0
      %3595 = vmatpush.bf16.msra.mxu0 0
      %3596 = vmatpush.bf16.msra.mxu0 0
      %3597 = vmatpush.bf16.msra.mxu0 0
      %3598 = vmatpush.bf16.msra.mxu0 %v3589
      %3599 = vmatmul.bf16.gmra.mxu0 %v3541
      %v3600 = vpop.f32.mrf.mxu0
      %v3601 = vadd.f32 0.0, %v3600
      %v3602 = vpop.f32.mrf.mxu0
      %v3603 = vadd.f32 0.0, %v3602
      %3604 = vmatmul.bf16.gmra.mxu0 %v3544
      %v3605 = vpop.f32.mrf.mxu0
      %v3606 = vadd.f32 0.0, %v3605
      %v3607 = vpop.f32.mrf.mxu0
      %v3608 = vadd.f32 0.0, %v3607
      %3609 = vmatmul.bf16.gmra.mxu0 %v3547
      %v3610 = vpop.f32.mrf.mxu0
      %v3611 = vadd.f32 0.0, %v3610
      %v3612 = vpop.f32.mrf.mxu0
      %v3613 = vadd.f32 0.0, %v3612
      %3614 = vmatmul.bf16.gmra.mxu0 %v3550
      %v3615 = vpop.f32.mrf.mxu0
      %v3616 = vadd.f32 0.0, %v3615
      %v3617 = vpop.f32.mrf.mxu0
      %v3618 = vadd.f32 0.0, %v3617
      %3619 = vmatmul.bf16.gmra.mxu0 %v3553
      %v3620 = vpop.f32.mrf.mxu0
      %v3621 = vadd.f32 0.0, %v3620
      %v3622 = vpop.f32.mrf.mxu0
      %v3623 = vadd.f32 0.0, %v3622
      %3624 = vmatmul.bf16.gmra.mxu0 %v3556
      %v3625 = vpop.f32.mrf.mxu0
      %v3626 = vadd.f32 0.0, %v3625
      %v3627 = vpop.f32.mrf.mxu0
      %v3628 = vadd.f32 0.0, %v3627
      %3629 = vmatmul.bf16.gmra.mxu0 %v3559
      %v3630 = vpop.f32.mrf.mxu0
      %v3631 = vadd.f32 0.0, %v3630
      %v3632 = vpop.f32.mrf.mxu0
      %v3633 = vadd.f32 0.0, %v3632
      %3634 = vmatmul.bf16.gmra.mxu0 %v3562
      %v3635 = vpop.f32.mrf.mxu0
      %v3636 = vadd.f32 0.0, %v3635
      %v3637 = vpop.f32.mrf.mxu0
      %v3638 = vadd.f32 0.0, %v3637
      %3639 = vmatmul.bf16.gmra.mxu0 %v3565
      %v3640 = vpop.f32.mrf.mxu0
      %v3641 = vadd.f32 0.0, %v3640
      %v3642 = vpop.f32.mrf.mxu0
      %v3643 = vadd.f32 0.0, %v3642
      %3644 = vmatmul.bf16.gmra.mxu0 %v3568
      %v3645 = vpop.f32.mrf.mxu0
      %v3646 = vadd.f32 0.0, %v3645
      %v3647 = vpop.f32.mrf.mxu0
      %v3648 = vadd.f32 0.0, %v3647
      %3649 = vmatmul.bf16.gmra.mxu0 %v3571
      %v3650 = vpop.f32.mrf.mxu0
      %v3651 = vadd.f32 0.0, %v3650
      %v3652 = vpop.f32.mrf.mxu0
      %v3653 = vadd.f32 0.0, %v3652
      %3654 = vmatmul.bf16.gmra.mxu0 %v3574
      %v3655 = vpop.f32.mrf.mxu0
      %v3656 = vadd.f32 0.0, %v3655
      %v3657 = vpop.f32.mrf.mxu0
      %v3658 = vadd.f32 0.0, %v3657
      %3659 = vmatmul.bf16.gmra.mxu0 %v3577
      %v3660 = vpop.f32.mrf.mxu0
      %v3661 = vadd.f32 0.0, %v3660
      %v3662 = vpop.f32.mrf.mxu0
      %v3663 = vadd.f32 0.0, %v3662
      %3664 = vmatmul.bf16.gmra.mxu0 %v3580
      %v3665 = vpop.f32.mrf.mxu0
      %v3666 = vadd.f32 0.0, %v3665
      %v3667 = vpop.f32.mrf.mxu0
      %v3668 = vadd.f32 0.0, %v3667
      %3669 = vmatmul.bf16.gmra.mxu0 %v3583
      %v3670 = vpop.f32.mrf.mxu0
      %v3671 = vadd.f32 0.0, %v3670
      %v3672 = vpop.f32.mrf.mxu0
      %v3673 = vadd.f32 0.0, %v3672
      %3674 = vmatmul.bf16.gmra.mxu0 %v3586
      %v3675 = vpop.f32.mrf.mxu0
      %v3676 = vadd.f32 0.0, %v3675
      %v3677 = vpop.f32.mrf.mxu0
      %v3678 = vadd.f32 0.0, %v3677
      %3679 = vdwg.mxu0
      %v3680 = vadd.f32 %v3026, %v3601
      %v3681 = vadd.f32 %v3027, %v3603
      %v3682 = vadd.f32 %v3028, %v3606
      %v3683 = vadd.f32 %v3029, %v3608
      %v3684 = vadd.f32 %v3030, %v3611
      %v3685 = vadd.f32 %v3031, %v3613
      %v3686 = vadd.f32 %v3032, %v3616
      %v3687 = vadd.f32 %v3033, %v3618
      %v3688 = vadd.f32 %v3034, %v3621
      %v3689 = vadd.f32 %v3035, %v3623
      %v3690 = vadd.f32 %v3036, %v3626
      %v3691 = vadd.f32 %v3037, %v3628
      %v3692 = vadd.f32 %v3038, %v3631
      %v3693 = vadd.f32 %v3039, %v3633
      %v3694 = vadd.f32 %v3040, %v3636
      %v3695 = vadd.f32 %v3041, %v3638
      %v3696 = vadd.f32 %v3042, %v3641
      %v3697 = vadd.f32 %v3043, %v3643
      %v3698 = vadd.f32 %v3044, %v3646
      %v3699 = vadd.f32 %v3045, %v3648
      %v3700 = vadd.f32 %v3046, %v3651
      %v3701 = vadd.f32 %v3047, %v3653
      %v3702 = vadd.f32 %v3048, %v3656
      %v3703 = vadd.f32 %v3049, %v3658
      %v3704 = vadd.f32 %v3050, %v3661
      %v3705 = vadd.f32 %v3051, %v3663
      %v3706 = vadd.f32 %v3052, %v3666
      %v3707 = vadd.f32 %v3053, %v3668
      %v3708 = vadd.f32 %v3054, %v3671
      %v3709 = vadd.f32 %v3055, %v3673
      %v3710 = vadd.f32 %v3056, %v3676
      %v3711 = vadd.f32 %v3057, %v3678
      %v3712 = vld [vmem:[%s2771] sm:$0xe]
      %v3713 = vld [vmem:[%s2771 + $0xc] sm:$0xe]
      %v3714 = vld [vmem:[%s2771 + $0x18] sm:$0xe]
      %v3715 = vld [vmem:[%s2771 + $0x24] sm:$0xe]
      %v3716 = vld [vmem:[%s2771 + $0x30] sm:$0xe]
      %v3717 = vld [vmem:[%s2771 + $0x3c] sm:$0xe]
      %v3718 = vld [vmem:[%s2771 + $0x48] sm:$0xe]
      %v3719 = vld [vmem:[%s2771 + $0x54] sm:$0xe]
      %v3720 = vld [vmem:[%s2771 + $0x60] sm:$0xe]
      %v3721 = vld [vmem:[%s2771 + $0x6c] sm:$0xe]
      %v3722 = vld [vmem:[%s2771 + $0x78] sm:$0xe]
      %v3723 = vld [vmem:[%s2771 + $0x84] sm:$0xe]
      %v3724 = vld [vmem:[%s2771 + $0x90] sm:$0xe]
      %v3725 = vld [vmem:[%s2771 + $0x9c] sm:$0xe]
      %v3726 = vld [vmem:[%s2771 + $0xa8] sm:$0xe]
      %v3727 = vld [vmem:[%s2771 + $0xb4] sm:$0xe]
      %v3776 = vrot.slane %v3712, 5
      %v3777 = vrot.slane %v3776, 4
      %v3778 = vrot.slane %v3059, 5
      %v3779 = vsel %vm1097, %v3777, %v3778
      %v3780 = vrot.slane %v3778, 4
      %v3781 = vrot.slane %v3060, 5
      %v3782 = vsel %vm1097, %v3780, %v3781
      %v3783 = vrot.slane %v3713, 5
      %v3784 = vrot.slane %v3783, 4
      %v3785 = vrot.slane %v3062, 5
      %v3786 = vsel %vm1097, %v3784, %v3785
      %v3787 = vrot.slane %v3785, 4
      %v3788 = vrot.slane %v3063, 5
      %v3789 = vsel %vm1097, %v3787, %v3788
      %v3790 = vrot.slane %v3714, 5
      %v3791 = vrot.slane %v3790, 4
      %v3792 = vrot.slane %v3065, 5
      %v3793 = vsel %vm1097, %v3791, %v3792
      %v3794 = vrot.slane %v3792, 4
      %v3795 = vrot.slane %v3066, 5
      %v3796 = vsel %vm1097, %v3794, %v3795
      %v3797 = vrot.slane %v3715, 5
      %v3798 = vrot.slane %v3797, 4
      %v3799 = vrot.slane %v3068, 5
      %v3800 = vsel %vm1097, %v3798, %v3799
      %v3801 = vrot.slane %v3799, 4
      %v3802 = vrot.slane %v3069, 5
      %v3803 = vsel %vm1097, %v3801, %v3802
      %v3804 = vrot.slane %v3716, 5
      %v3805 = vrot.slane %v3804, 4
      %v3806 = vrot.slane %v3071, 5
      %v3807 = vsel %vm1097, %v3805, %v3806
      %v3808 = vrot.slane %v3806, 4
      %v3809 = vrot.slane %v3072, 5
      %v3810 = vsel %vm1097, %v3808, %v3809
      %v3811 = vrot.slane %v3717, 5
      %v3812 = vrot.slane %v3811, 4
      %v3813 = vrot.slane %v3074, 5
      %v3814 = vsel %vm1097, %v3812, %v3813
      %v3815 = vrot.slane %v3813, 4
      %v3816 = vrot.slane %v3075, 5
      %v3817 = vsel %vm1097, %v3815, %v3816
      %v3818 = vrot.slane %v3718, 5
      %v3819 = vrot.slane %v3818, 4
      %v3820 = vrot.slane %v3077, 5
      %v3821 = vsel %vm1097, %v3819, %v3820
      %v3822 = vrot.slane %v3820, 4
      %v3823 = vrot.slane %v3078, 5
      %v3824 = vsel %vm1097, %v3822, %v3823
      %v3825 = vrot.slane %v3719, 5
      %v3826 = vrot.slane %v3825, 4
      %v3827 = vrot.slane %v3080, 5
      %v3828 = vsel %vm1097, %v3826, %v3827
      %v3829 = vrot.slane %v3827, 4
      %v3830 = vrot.slane %v3081, 5
      %v3831 = vsel %vm1097, %v3829, %v3830
      %v3832 = vrot.slane %v3720, 5
      %v3833 = vrot.slane %v3832, 4
      %v3834 = vrot.slane %v3083, 5
      %v3835 = vsel %vm1097, %v3833, %v3834
      %v3836 = vrot.slane %v3834, 4
      %v3837 = vrot.slane %v3084, 5
      %v3838 = vsel %vm1097, %v3836, %v3837
      %v3839 = vrot.slane %v3721, 5
      %v3840 = vrot.slane %v3839, 4
      %v3841 = vrot.slane %v3086, 5
      %v3842 = vsel %vm1097, %v3840, %v3841
      %v3843 = vrot.slane %v3841, 4
      %v3844 = vrot.slane %v3087, 5
      %v3845 = vsel %vm1097, %v3843, %v3844
      %v3846 = vrot.slane %v3722, 5
      %v3847 = vrot.slane %v3846, 4
      %v3848 = vrot.slane %v3089, 5
      %v3849 = vsel %vm1097, %v3847, %v3848
      %v3850 = vrot.slane %v3848, 4
      %v3851 = vrot.slane %v3090, 5
      %v3852 = vsel %vm1097, %v3850, %v3851
      %v3853 = vrot.slane %v3723, 5
      %v3854 = vrot.slane %v3853, 4
      %v3855 = vrot.slane %v3092, 5
      %v3856 = vsel %vm1097, %v3854, %v3855
      %v3857 = vrot.slane %v3855, 4
      %v3858 = vrot.slane %v3093, 5
      %v3859 = vsel %vm1097, %v3857, %v3858
      %v3860 = vrot.slane %v3724, 5
      %v3861 = vrot.slane %v3860, 4
      %v3862 = vrot.slane %v3095, 5
      %v3863 = vsel %vm1097, %v3861, %v3862
      %v3864 = vrot.slane %v3862, 4
      %v3865 = vrot.slane %v3096, 5
      %v3866 = vsel %vm1097, %v3864, %v3865
      %v3867 = vrot.slane %v3725, 5
      %v3868 = vrot.slane %v3867, 4
      %v3869 = vrot.slane %v3098, 5
      %v3870 = vsel %vm1097, %v3868, %v3869
      %v3871 = vrot.slane %v3869, 4
      %v3872 = vrot.slane %v3099, 5
      %v3873 = vsel %vm1097, %v3871, %v3872
      %v3874 = vrot.slane %v3726, 5
      %v3875 = vrot.slane %v3874, 4
      %v3876 = vrot.slane %v3101, 5
      %v3877 = vsel %vm1097, %v3875, %v3876
      %v3878 = vrot.slane %v3876, 4
      %v3879 = vrot.slane %v3102, 5
      %v3880 = vsel %vm1097, %v3878, %v3879
      %v3881 = vrot.slane %v3727, 5
      %v3882 = vrot.slane %v3881, 4
      %v3883 = vrot.slane %v3104, 5
      %v3884 = vsel %vm1097, %v3882, %v3883
      %v3885 = vrot.slane %v3883, 4
      %v3886 = vrot.slane %v3105, 5
      %v3887 = vsel %vm1097, %v3885, %v3886
      %s3888 = scalar_lea.vmem %s1, 16
      %v3889 = vld [vmem:[%s3888] sm:$0x3]
      %v3890 = vunpack.c.l.b16 %v3779
      %v3891 = vunpack.c.l.b16 %v3782
      %v3892 = vunpack.c.l.b16 %v3786
      %v3893 = vunpack.c.l.b16 %v3789
      %v3894 = vunpack.c.l.b16 %v3793
      %v3895 = vunpack.c.l.b16 %v3796
      %v3896 = vunpack.c.l.b16 %v3800
      %v3897 = vunpack.c.l.b16 %v3803
      %v3898 = vunpack.c.l.b16 %v3807
      %v3899 = vunpack.c.l.b16 %v3810
      %v3900 = vunpack.c.l.b16 %v3814
      %v3901 = vunpack.c.l.b16 %v3817
      %v3902 = vunpack.c.l.b16 %v3821
      %v3903 = vunpack.c.l.b16 %v3824
      %v3904 = vunpack.c.l.b16 %v3828
      %v3905 = vunpack.c.l.b16 %v3831
      %v3906 = vunpack.c.l.b16 %v3835
      %v3907 = vunpack.c.l.b16 %v3838
      %v3908 = vunpack.c.l.b16 %v3842
      %v3909 = vunpack.c.l.b16 %v3845
      %v3910 = vunpack.c.l.b16 %v3849
      %v3911 = vunpack.c.l.b16 %v3852
      %v3912 = vunpack.c.l.b16 %v3856
      %v3913 = vunpack.c.l.b16 %v3859
      %v3914 = vunpack.c.l.b16 %v3863
      %v3915 = vunpack.c.l.b16 %v3866
      %v3916 = vunpack.c.l.b16 %v3870
      %v3917 = vunpack.c.l.b16 %v3873
      %v3918 = vunpack.c.l.b16 %v3877
      %v3919 = vunpack.c.l.b16 %v3880
      %v3920 = vunpack.c.l.b16 %v3884
      %v3921 = vunpack.c.l.b16 %v3887
      %v3922 = vpack.c.b16 %v3891, %v3890
      %v3923 = vpack.c.b16 %v3893, %v3892
      %v3924 = vpack.c.b16 %v3895, %v3894
      %v3925 = vpack.c.b16 %v3897, %v3896
      %v3926 = vpack.c.b16 %v3899, %v3898
      %v3927 = vpack.c.b16 %v3901, %v3900
      %v3928 = vpack.c.b16 %v3903, %v3902
      %v3929 = vpack.c.b16 %v3905, %v3904
      %v3930 = vpack.c.b16 %v3907, %v3906
      %v3931 = vpack.c.b16 %v3909, %v3908
      %v3932 = vpack.c.b16 %v3911, %v3910
      %v3933 = vpack.c.b16 %v3913, %v3912
      %v3934 = vpack.c.b16 %v3915, %v3914
      %v3935 = vpack.c.b16 %v3917, %v3916
      %v3936 = vpack.c.b16 %v3919, %v3918
      %v3937 = vpack.c.b16 %v3921, %v3920
      %v3939 = vsel %vm685, %v3922, 0
      %v3942 = vsel %vm685, %v3923, 0
      %v3945 = vsel %vm685, %v3924, 0
      %v3948 = vsel %vm685, %v3925, 0
      %v3951 = vsel %vm685, %v3926, 0
      %v3954 = vsel %vm685, %v3927, 0
      %v3957 = vsel %vm685, %v3928, 0
      %v3960 = vsel %vm685, %v3929, 0
      %v3963 = vsel %vm685, %v3930, 0
      %v3966 = vsel %vm685, %v3931, 0
      %v3969 = vsel %vm685, %v3932, 0
      %v3972 = vsel %vm685, %v3933, 0
      %v3975 = vsel %vm685, %v3934, 0
      %v3978 = vsel %vm685, %v3935, 0
      %v3981 = vsel %vm685, %v3936, 0
      %v3984 = vsel %vm685, %v3937, 0
      %v3987 = vsel %vm734, %v3889, 0
      %3989 = vmatpush.bf16.msra.mxu0 0
      %3990 = vmatpush.bf16.msra.mxu0 0
      %3991 = vmatpush.bf16.msra.mxu0 0
      %3992 = vmatpush.bf16.msra.mxu0 0
      %3993 = vmatpush.bf16.msra.mxu0 0
      %3994 = vmatpush.bf16.msra.mxu0 0
      %3995 = vmatpush.bf16.msra.mxu0 0
      %3996 = vmatpush.bf16.msra.mxu0 %v3987
      %3997 = vmatmul.bf16.gmra.mxu0 %v3939
      %v3998 = vpop.f32.mrf.mxu0
      %v3999 = vadd.f32 0.0, %v3998
      %v4000 = vpop.f32.mrf.mxu0
      %v4001 = vadd.f32 0.0, %v4000
      %4002 = vmatmul.bf16.gmra.mxu0 %v3942
      %v4003 = vpop.f32.mrf.mxu0
      %v4004 = vadd.f32 0.0, %v4003
      %v4005 = vpop.f32.mrf.mxu0
      %v4006 = vadd.f32 0.0, %v4005
      %4007 = vmatmul.bf16.gmra.mxu0 %v3945
      %v4008 = vpop.f32.mrf.mxu0
      %v4009 = vadd.f32 0.0, %v4008
      %v4010 = vpop.f32.mrf.mxu0
      %v4011 = vadd.f32 0.0, %v4010
      %4012 = vmatmul.bf16.gmra.mxu0 %v3948
      %v4013 = vpop.f32.mrf.mxu0
      %v4014 = vadd.f32 0.0, %v4013
      %v4015 = vpop.f32.mrf.mxu0
      %v4016 = vadd.f32 0.0, %v4015
      %4017 = vmatmul.bf16.gmra.mxu0 %v3951
      %v4018 = vpop.f32.mrf.mxu0
      %v4019 = vadd.f32 0.0, %v4018
      %v4020 = vpop.f32.mrf.mxu0
      %v4021 = vadd.f32 0.0, %v4020
      %4022 = vmatmul.bf16.gmra.mxu0 %v3954
      %v4023 = vpop.f32.mrf.mxu0
      %v4024 = vadd.f32 0.0, %v4023
      %v4025 = vpop.f32.mrf.mxu0
      %v4026 = vadd.f32 0.0, %v4025
      %4027 = vmatmul.bf16.gmra.mxu0 %v3957
      %v4028 = vpop.f32.mrf.mxu0
      %v4029 = vadd.f32 0.0, %v4028
      %v4030 = vpop.f32.mrf.mxu0
      %v4031 = vadd.f32 0.0, %v4030
      %4032 = vmatmul.bf16.gmra.mxu0 %v3960
      %v4033 = vpop.f32.mrf.mxu0
      %v4034 = vadd.f32 0.0, %v4033
      %v4035 = vpop.f32.mrf.mxu0
      %v4036 = vadd.f32 0.0, %v4035
      %4037 = vmatmul.bf16.gmra.mxu0 %v3963
      %v4038 = vpop.f32.mrf.mxu0
      %v4039 = vadd.f32 0.0, %v4038
      %v4040 = vpop.f32.mrf.mxu0
      %v4041 = vadd.f32 0.0, %v4040
      %4042 = vmatmul.bf16.gmra.mxu0 %v3966
      %v4043 = vpop.f32.mrf.mxu0
      %v4044 = vadd.f32 0.0, %v4043
      %v4045 = vpop.f32.mrf.mxu0
      %v4046 = vadd.f32 0.0, %v4045
      %4047 = vmatmul.bf16.gmra.mxu0 %v3969
      %v4048 = vpop.f32.mrf.mxu0
      %v4049 = vadd.f32 0.0, %v4048
      %v4050 = vpop.f32.mrf.mxu0
      %v4051 = vadd.f32 0.0, %v4050
      %4052 = vmatmul.bf16.gmra.mxu0 %v3972
      %v4053 = vpop.f32.mrf.mxu0
      %v4054 = vadd.f32 0.0, %v4053
      %v4055 = vpop.f32.mrf.mxu0
      %v4056 = vadd.f32 0.0, %v4055
      %4057 = vmatmul.bf16.gmra.mxu0 %v3975
      %v4058 = vpop.f32.mrf.mxu0
      %v4059 = vadd.f32 0.0, %v4058
      %v4060 = vpop.f32.mrf.mxu0
      %v4061 = vadd.f32 0.0, %v4060
      %4062 = vmatmul.bf16.gmra.mxu0 %v3978
      %v4063 = vpop.f32.mrf.mxu0
      %v4064 = vadd.f32 0.0, %v4063
      %v4065 = vpop.f32.mrf.mxu0
      %v4066 = vadd.f32 0.0, %v4065
      %4067 = vmatmul.bf16.gmra.mxu0 %v3981
      %v4068 = vpop.f32.mrf.mxu0
      %v4069 = vadd.f32 0.0, %v4068
      %v4070 = vpop.f32.mrf.mxu0
      %v4071 = vadd.f32 0.0, %v4070
      %4072 = vmatmul.bf16.gmra.mxu0 %v3984
      %v4073 = vpop.f32.mrf.mxu0
      %v4074 = vadd.f32 0.0, %v4073
      %v4075 = vpop.f32.mrf.mxu0
      %v4076 = vadd.f32 0.0, %v4075
      %4077 = vdwg.mxu0
      %v4078 = vadd.f32 %v3680, %v3999
      %v4079 = vadd.f32 %v3681, %v4001
      %v4080 = vadd.f32 %v3682, %v4004
      %v4081 = vadd.f32 %v3683, %v4006
      %v4082 = vadd.f32 %v3684, %v4009
      %v4083 = vadd.f32 %v3685, %v4011
      %v4084 = vadd.f32 %v3686, %v4014
      %v4085 = vadd.f32 %v3687, %v4016
      %v4086 = vadd.f32 %v3688, %v4019
      %v4087 = vadd.f32 %v3689, %v4021
      %v4088 = vadd.f32 %v3690, %v4024
      %v4089 = vadd.f32 %v3691, %v4026
      %v4090 = vadd.f32 %v3692, %v4029
      %v4091 = vadd.f32 %v3693, %v4031
      %v4092 = vadd.f32 %v3694, %v4034
      %v4093 = vadd.f32 %v3695, %v4036
      %v4094 = vadd.f32 %v3696, %v4039
      %v4095 = vadd.f32 %v3697, %v4041
      %v4096 = vadd.f32 %v3698, %v4044
      %v4097 = vadd.f32 %v3699, %v4046
      %v4098 = vadd.f32 %v3700, %v4049
      %v4099 = vadd.f32 %v3701, %v4051
      %v4100 = vadd.f32 %v3702, %v4054
      %v4101 = vadd.f32 %v3703, %v4056
      %v4102 = vadd.f32 %v3704, %v4059
      %v4103 = vadd.f32 %v3705, %v4061
      %v4104 = vadd.f32 %v3706, %v4064
      %v4105 = vadd.f32 %v3707, %v4066
      %v4106 = vadd.f32 %v3708, %v4069
      %v4107 = vadd.f32 %v3709, %v4071
      %v4108 = vadd.f32 %v3710, %v4074
      %v4109 = vadd.f32 %v3711, %v4076
      %v4110 = vld [vmem:[%s2] sm:$0x1]
      %v4112 = vperm.slane %v4110, 0
      %v4114 = vmul.f32 %v4078, %v4112
      %v4115 = vmul.f32 %v4079, %v4112
      %v4116 = vmul.f32 %v4080, %v4112
      %v4117 = vmul.f32 %v4081, %v4112
      %v4118 = vmul.f32 %v4082, %v4112
      %v4119 = vmul.f32 %v4083, %v4112
      %v4120 = vmul.f32 %v4084, %v4112
      %v4121 = vmul.f32 %v4085, %v4112
      %v4122 = vmul.f32 %v4086, %v4112
      %v4123 = vmul.f32 %v4087, %v4112
      %v4124 = vmul.f32 %v4088, %v4112
      %v4125 = vmul.f32 %v4089, %v4112
      %v4126 = vmul.f32 %v4090, %v4112
      %v4127 = vmul.f32 %v4091, %v4112
      %v4128 = vmul.f32 %v4092, %v4112
      %v4129 = vmul.f32 %v4093, %v4112
      %v4130 = vmul.f32 %v4094, %v4112
      %v4131 = vmul.f32 %v4095, %v4112
      %v4132 = vmul.f32 %v4096, %v4112
      %v4133 = vmul.f32 %v4097, %v4112
      %v4134 = vmul.f32 %v4098, %v4112
      %v4135 = vmul.f32 %v4099, %v4112
      %v4136 = vmul.f32 %v4100, %v4112
      %v4137 = vmul.f32 %v4101, %v4112
      %v4138 = vmul.f32 %v4102, %v4112
      %v4139 = vmul.f32 %v4103, %v4112
      %v4140 = vmul.f32 %v4104, %v4112
      %v4141 = vmul.f32 %v4105, %v4112
      %v4142 = vmul.f32 %v4106, %v4112
      %v4143 = vmul.f32 %v4107, %v4112
      %v4144 = vmul.f32 %v4108, %v4112
      %v4145 = vmul.f32 %v4109, %v4112
      %v4146 = vld [vmem:[%s3] sm:$0x1]
      %v4148 = vperm.slane %v4146, 0
      %v4150 = vadd.f32 %v4114, %v4148
      %v4151 = vadd.f32 %v4115, %v4148
      %v4152 = vadd.f32 %v4116, %v4148
      %v4153 = vadd.f32 %v4117, %v4148
      %v4154 = vadd.f32 %v4118, %v4148
      %v4155 = vadd.f32 %v4119, %v4148
      %v4156 = vadd.f32 %v4120, %v4148
      %v4157 = vadd.f32 %v4121, %v4148
      %v4158 = vadd.f32 %v4122, %v4148
      %v4159 = vadd.f32 %v4123, %v4148
      %v4160 = vadd.f32 %v4124, %v4148
      %v4161 = vadd.f32 %v4125, %v4148
      %v4162 = vadd.f32 %v4126, %v4148
      %v4163 = vadd.f32 %v4127, %v4148
      %v4164 = vadd.f32 %v4128, %v4148
      %v4165 = vadd.f32 %v4129, %v4148
      %v4166 = vadd.f32 %v4130, %v4148
      %v4167 = vadd.f32 %v4131, %v4148
      %v4168 = vadd.f32 %v4132, %v4148
      %v4169 = vadd.f32 %v4133, %v4148
      %v4170 = vadd.f32 %v4134, %v4148
      %v4171 = vadd.f32 %v4135, %v4148
      %v4172 = vadd.f32 %v4136, %v4148
      %v4173 = vadd.f32 %v4137, %v4148
      %v4174 = vadd.f32 %v4138, %v4148
      %v4175 = vadd.f32 %v4139, %v4148
      %v4176 = vadd.f32 %v4140, %v4148
      %v4177 = vadd.f32 %v4141, %v4148
      %v4178 = vadd.f32 %v4142, %v4148
      %v4179 = vadd.f32 %v4143, %v4148
      %v4180 = vadd.f32 %v4144, %v4148
      %v4181 = vadd.f32 %v4145, %v4148
      %v4182 = vmul.f32 %v4150, 0.1
      %v4183 = vmul.f32 %v4151, 0.1
      %v4184 = vmul.f32 %v4152, 0.1
      %v4185 = vmul.f32 %v4153, 0.1
      %v4186 = vmul.f32 %v4154, 0.1
      %v4187 = vmul.f32 %v4155, 0.1
      %v4188 = vmul.f32 %v4156, 0.1
      %v4189 = vmul.f32 %v4157, 0.1
      %v4190 = vmul.f32 %v4158, 0.1
      %v4191 = vmul.f32 %v4159, 0.1
      %v4192 = vmul.f32 %v4160, 0.1
      %v4193 = vmul.f32 %v4161, 0.1
      %v4194 = vmul.f32 %v4162, 0.1
      %v4195 = vmul.f32 %v4163, 0.1
      %v4196 = vmul.f32 %v4164, 0.1
      %v4197 = vmul.f32 %v4165, 0.1
      %v4198 = vmul.f32 %v4166, 0.1
      %v4199 = vmul.f32 %v4167, 0.1
      %v4200 = vmul.f32 %v4168, 0.1
      %v4201 = vmul.f32 %v4169, 0.1
      %v4202 = vmul.f32 %v4170, 0.1
      %v4203 = vmul.f32 %v4171, 0.1
      %v4204 = vmul.f32 %v4172, 0.1
      %v4205 = vmul.f32 %v4173, 0.1
      %v4206 = vmul.f32 %v4174, 0.1
      %v4207 = vmul.f32 %v4175, 0.1
      %v4208 = vmul.f32 %v4176, 0.1
      %v4209 = vmul.f32 %v4177, 0.1
      %v4210 = vmul.f32 %v4178, 0.1
      %v4211 = vmul.f32 %v4179, 0.1
      %v4212 = vmul.f32 %v4180, 0.1
      %v4213 = vmul.f32 %v4181, 0.1
      %v4214 = vmax.f32 %v4150, %v4182
      %v4215 = vmax.f32 %v4151, %v4183
      %v4216 = vmax.f32 %v4152, %v4184
      %v4217 = vmax.f32 %v4153, %v4185
      %v4218 = vmax.f32 %v4154, %v4186
      %v4219 = vmax.f32 %v4155, %v4187
      %v4220 = vmax.f32 %v4156, %v4188
      %v4221 = vmax.f32 %v4157, %v4189
      %v4222 = vmax.f32 %v4158, %v4190
      %v4223 = vmax.f32 %v4159, %v4191
      %v4224 = vmax.f32 %v4160, %v4192
      %v4225 = vmax.f32 %v4161, %v4193
      %v4226 = vmax.f32 %v4162, %v4194
      %v4227 = vmax.f32 %v4163, %v4195
      %v4228 = vmax.f32 %v4164, %v4196
      %v4229 = vmax.f32 %v4165, %v4197
      %v4230 = vmax.f32 %v4166, %v4198
      %v4231 = vmax.f32 %v4167, %v4199
      %v4232 = vmax.f32 %v4168, %v4200
      %v4233 = vmax.f32 %v4169, %v4201
      %v4234 = vmax.f32 %v4170, %v4202
      %v4235 = vmax.f32 %v4171, %v4203
      %v4236 = vmax.f32 %v4172, %v4204
      %v4237 = vmax.f32 %v4173, %v4205
      %v4238 = vmax.f32 %v4174, %v4206
      %v4239 = vmax.f32 %v4175, %v4207
      %v4240 = vmax.f32 %v4176, %v4208
      %v4241 = vmax.f32 %v4177, %v4209
      %v4242 = vmax.f32 %v4178, %v4210
      %v4243 = vmax.f32 %v4179, %v4211
      %v4244 = vmax.f32 %v4180, %v4212
      %v4245 = vmax.f32 %v4181, %v4213
      %v4246 = vpack.c.bf16 %v4214, %v4214
      %v4247 = vpack.c.bf16 %v4215, %v4215
      %v4248 = vpack.c.bf16 %v4216, %v4216
      %v4249 = vpack.c.bf16 %v4217, %v4217
      %v4250 = vpack.c.bf16 %v4218, %v4218
      %v4251 = vpack.c.bf16 %v4219, %v4219
      %v4252 = vpack.c.bf16 %v4220, %v4220
      %v4253 = vpack.c.bf16 %v4221, %v4221
      %v4254 = vpack.c.bf16 %v4222, %v4222
      %v4255 = vpack.c.bf16 %v4223, %v4223
      %v4256 = vpack.c.bf16 %v4224, %v4224
      %v4257 = vpack.c.bf16 %v4225, %v4225
      %v4258 = vpack.c.bf16 %v4226, %v4226
      %v4259 = vpack.c.bf16 %v4227, %v4227
      %v4260 = vpack.c.bf16 %v4228, %v4228
      %v4261 = vpack.c.bf16 %v4229, %v4229
      %v4262 = vpack.c.bf16 %v4230, %v4230
      %v4263 = vpack.c.bf16 %v4231, %v4231
      %v4264 = vpack.c.bf16 %v4232, %v4232
      %v4265 = vpack.c.bf16 %v4233, %v4233
      %v4266 = vpack.c.bf16 %v4234, %v4234
      %v4267 = vpack.c.bf16 %v4235, %v4235
      %v4268 = vpack.c.bf16 %v4236, %v4236
      %v4269 = vpack.c.bf16 %v4237, %v4237
      %v4270 = vpack.c.bf16 %v4238, %v4238
      %v4271 = vpack.c.bf16 %v4239, %v4239
      %v4272 = vpack.c.bf16 %v4240, %v4240
      %v4273 = vpack.c.bf16 %v4241, %v4241
      %v4274 = vpack.c.bf16 %v4242, %v4242
      %v4275 = vpack.c.bf16 %v4243, %v4243
      %v4276 = vpack.c.bf16 %v4244, %v4244
      %v4277 = vpack.c.bf16 %v4245, %v4245
      %vm4278 = vcmask 60416
      %4279 = vst.msk [vmem:[%s197] sm:$0xf] %vm4278, %v4246
      %4280 = vst.msk [vmem:[%s197 + $0x4] sm:$0xf] %vm4278, %v4247
      %4281 = vst.msk [vmem:[%s197 + $0x8] sm:$0xf] %vm4278, %v4248
      %4282 = vst.msk [vmem:[%s197 + $0xc] sm:$0xf] %vm4278, %v4249
      %4283 = vst.msk [vmem:[%s197 + $0x10] sm:$0xf] %vm4278, %v4250
      %4284 = vst.msk [vmem:[%s197 + $0x14] sm:$0xf] %vm4278, %v4251
      %4285 = vst.msk [vmem:[%s197 + $0x18] sm:$0xf] %vm4278, %v4252
      %4286 = vst.msk [vmem:[%s197 + $0x1c] sm:$0xf] %vm4278, %v4253
      %4287 = vst.msk [vmem:[%s197 + $0x20] sm:$0xf] %vm4278, %v4254
      %4288 = vst.msk [vmem:[%s197 + $0x24] sm:$0xf] %vm4278, %v4255
      %4289 = vst.msk [vmem:[%s197 + $0x28] sm:$0xf] %vm4278, %v4256
      %4290 = vst.msk [vmem:[%s197 + $0x2c] sm:$0xf] %vm4278, %v4257
      %4291 = vst.msk [vmem:[%s197 + $0x30] sm:$0xf] %vm4278, %v4258
      %4292 = vst.msk [vmem:[%s197 + $0x34] sm:$0xf] %vm4278, %v4259
      %4293 = vst.msk [vmem:[%s197 + $0x38] sm:$0xf] %vm4278, %v4260
      %4294 = vst.msk [vmem:[%s197 + $0x3c] sm:$0xf] %vm4278, %v4261
      %4295 = vst.msk [vmem:[%s197 + $0x40] sm:$0xf] %vm4278, %v4262
      %4296 = vst.msk [vmem:[%s197 + $0x44] sm:$0xf] %vm4278, %v4263
      %4297 = vst.msk [vmem:[%s197 + $0x48] sm:$0xf] %vm4278, %v4264
      %4298 = vst.msk [vmem:[%s197 + $0x4c] sm:$0xf] %vm4278, %v4265
      %4299 = vst.msk [vmem:[%s197 + $0x50] sm:$0xf] %vm4278, %v4266
      %4300 = vst.msk [vmem:[%s197 + $0x54] sm:$0xf] %vm4278, %v4267
      %4301 = vst.msk [vmem:[%s197 + $0x58] sm:$0xf] %vm4278, %v4268
      %4302 = vst.msk [vmem:[%s197 + $0x5c] sm:$0xf] %vm4278, %v4269
      %4303 = vst.msk [vmem:[%s197 + $0x60] sm:$0xf] %vm4278, %v4270
      %4304 = vst.msk [vmem:[%s197 + $0x64] sm:$0xf] %vm4278, %v4271
      %4305 = vst.msk [vmem:[%s197 + $0x68] sm:$0xf] %vm4278, %v4272
      %4306 = vst.msk [vmem:[%s197 + $0x6c] sm:$0xf] %vm4278, %v4273
      %4307 = vst.msk [vmem:[%s197 + $0x70] sm:$0xf] %vm4278, %v4274
      %4308 = vst.msk [vmem:[%s197 + $0x74] sm:$0xf] %vm4278, %v4275
      %4309 = vst.msk [vmem:[%s197 + $0x78] sm:$0xf] %vm4278, %v4276
      %4310 = vst.msk [vmem:[%s197 + $0x7c] sm:$0xf] %vm4278, %v4277
      %p4311 = scmp.lt.s32.totalorder %s15, 1
      %s4312 = scalar_select %p4311, %s15, 1
      %s4313 = smul.addr %s4312, 32
      %s4314 = smul.addr %s4313, 4
      %s4315 = scalar_lea.vmem %s4, %s4314
      // Predicated region
      $region37: #{forward.8} parent=35 // pred_check
        %p4316 = pneg %p122
      $region38: #{forward.8} parent=35 // pred_check_branch
        %4318 = sbr.rel (%p4316) target = $region40
      $region39: #{forward.8} parent=35 // pred_region
        _
      $region40: #{forward.8} parent=35 // pred_fallthru
        _
    $region36: #{forward.8} parent=5 // pred_fallthru
      _
    %p4319 = scmp.le.s32.totalorder 2, %s10
    // Predicated region
    $region41: #{forward.8} parent=5 // pred_check
      %p4320 = pneg %p4319
    $region42: #{forward.8} parent=5 // pred_check_branch
      %4322 = sbr.rel (%p4320) target = $region44
    $region43: #{forward.8} parent=5 // pred_region
      %s4323 = ssub.s32 %s10, 2
      // Predicated region
      $region45: #{forward.8} parent=43 // pred_check
        %p4324 = pneg %p128
      $region46: #{forward.8} parent=43 // pred_check_branch
        %4326 = sbr.rel (%p4324) target = $region48
      $region47: #{forward.8} parent=43 // pred_region
        %p4327 = scmp.lt.s32.totalorder %s16, 1
        %s4328 = scalar_select %p4327, %s16, 1
        %s4329 = smul.addr %s4328, 32
        %s4330 = smul.addr %s4329, 4
        %s4331 = scalar_lea.vmem %s4, %s4330
      $region48: #{forward.8} parent=43 // pred_fallthru
        _
    $region44: #{forward.8} parent=5 // pred_fallthru
      _
  $region6: #{forward.8} parent=0 // loop_footer
    %s14 = sadd.s32 1, %s10
  $region7: #{forward.8} parent=0 // loop_footer_branch
    %9 = sbr.rel target = $region3
  $region8: #{forward.8} parent=0 // loop_exit
    _

// kernel: forward.15
$region0: #{forward.15}
  #allocation0 [shape = 'u32[]', space=smem, size = 0x4, offset = 0x4, fixed_abs, tag = 'smem constant byte address 0x4 - core index']
  #allocation1 [shape = 'u32[72,128]{1,0:T(1,128)}', space=vmem, size = 0x9000, scoped, tag = 'internal scratch']
  %s0 = inlined_call_operand.vmem [shape: bf16[2,18,18,16], index: 0, kind: input, shape index: {}]
  %s1 = inlined_call_operand.vmem [shape: bf16[9,16,8], index: 1, kind: input, shape index: {}]
  %s2 = inlined_call_operand.vmem [shape: f32[1,8], index: 2, kind: input, shape index: {}]
  %s3 = inlined_call_operand.vmem [shape: f32[1,8], index: 3, kind: input, shape index: {}]
  %s4 = inlined_call_operand.vmem [shape: bf16[2,16,16,8], index: 4, kind: output, shape index: {}]
  %s5 = sld [smem:[#allocation0]]
  $region49: #{forward.15} parent=0
    _
  %s7 = ssub.s32 1, %s5
  %s8 = scalar_select 0, %s7, %s5
  loop: start=0, step=1, limit=4
  $region2: #{forward.15} parent=0 // loop_pre_header
    _
  $region3: #{forward.15} parent=0 // loop_header
    %s10 = sphi 0, %s14
    %p11 = scmp.ge.s32.totalorder %s10, 4
    %s20 = sphi 0, %s22
    %s23 = sphi 0, %s20
    %s24 = sphi 0, %s23
    %s40 = sphi 0, %s24
    %s44 = sphi 0, %s44
    %s46 = sphi 0, %s44
    %s47 = sphi 0, %s46
    %s61 = sphi 0, %s47
    %s65 = sphi 0, %s65
    %s67 = sphi 0, %s65
    %s68 = sphi 0, %s67
    %s82 = sphi 0, %s68
    %s86 = sphi 0, %s86
    %s88 = sphi 0, %s86
    %s89 = sphi 0, %s88
    %s103 = sphi 0, %s89
    %s109 = sphi 0, %s111
    %s112 = sphi 0, %s109
    %s113 = sphi 0, %s112
    %s129 = sphi 0, %s113
  $region4: #{forward.15} parent=0 // loop_header_branch
    %13 = sbr.rel (%p11) target = $region8
  $region5: #{forward.15} parent=0 // loop_body
    %s15 = ssub.s32 %s10, 1
    %s16 = ssub.s32 %s10, 2
    %s17 = sadd.s32 %s10, 1
    %s18 = ssub.s32 %s10, %s17
    %p19 = scmp.eq.s32.totalorder %s18, 0
    %s21 = sadd.s32 %s20, 1
    %s22 = scalar_select %p19, %s20, %s21
    %p25 = pneg %p19
    %p26 = scmp.eq.s32.totalorder %s10, 1
    %p27 = por %p25, %p26
    %p28 = scmp.ne.s32.totalorder %s20, %s23
    %p29 = scmp.eq.s32.totalorder %s10, 0
    %p30 = por %p28, %p29
    %p31 = scmp.ne.s32.totalorder %s20, %s23
    %p32 = scmp.eq.s32.totalorder %s15, 1
    %p33 = por %p31, %p32
    %p34 = scmp.ne.s32.totalorder %s23, %s24
    %p35 = scmp.eq.s32.totalorder %s15, 0
    %p36 = por %p34, %p35
    %p37 = scmp.ne.s32.totalorder %s23, %s24
    %p38 = scmp.eq.s32.totalorder %s16, 1
    %p39 = por %p37, %p38
    %p41 = scmp.ne.s32.totalorder %s24, %s40
    %p42 = scmp.eq.s32.totalorder %s16, 0
    %p43 = por %p41, %p42
    %s45 = sadd.s32 %s44, 1
    %p48 = scmp.eq.s32.totalorder %s10, 1
    %p49 = scmp.ne.s32.totalorder %s44, %s46
    %p50 = scmp.eq.s32.totalorder %s10, 0
    %p51 = por %p49, %p50
    %p52 = scmp.ne.s32.totalorder %s44, %s46
    %p53 = scmp.eq.s32.totalorder %s15, 1
    %p54 = por %p52, %p53
    %p55 = scmp.ne.s32.totalorder %s46, %s47
    %p56 = scmp.eq.s32.totalorder %s15, 0
    %p57 = por %p55, %p56
    %p58 = scmp.ne.s32.totalorder %s46, %s47
    %p59 = scmp.eq.s32.totalorder %s16, 1
    %p60 = por %p58, %p59
    %p62 = scmp.ne.s32.totalorder %s47, %s61
    %p63 = scmp.eq.s32.totalorder %s16, 0
    %p64 = por %p62, %p63
    %s66 = sadd.s32 %s65, 1
    %p69 = scmp.eq.s32.totalorder %s10, 1
    %p70 = scmp.ne.s32.totalorder %s65, %s67
    %p71 = scmp.eq.s32.totalorder %s10, 0
    %p72 = por %p70, %p71
    %p73 = scmp.ne.s32.totalorder %s65, %s67
    %p74 = scmp.eq.s32.totalorder %s15, 1
    %p75 = por %p73, %p74
    %p76 = scmp.ne.s32.totalorder %s67, %s68
    %p77 = scmp.eq.s32.totalorder %s15, 0
    %p78 = por %p76, %p77
    %p79 = scmp.ne.s32.totalorder %s67, %s68
    %p80 = scmp.eq.s32.totalorder %s16, 1
    %p81 = por %p79, %p80
    %p83 = scmp.ne.s32.totalorder %s68, %s82
    %p84 = scmp.eq.s32.totalorder %s16, 0
    %p85 = por %p83, %p84
    %s87 = sadd.s32 %s86, 1
    %p90 = scmp.eq.s32.totalorder %s10, 1
    %p91 = scmp.ne.s32.totalorder %s86, %s88
    %p92 = scmp.eq.s32.totalorder %s10, 0
    %p93 = por %p91, %p92
    %p94 = scmp.ne.s32.totalorder %s86, %s88
    %p95 = scmp.eq.s32.totalorder %s15, 1
    %p96 = por %p94, %p95
    %p97 = scmp.ne.s32.totalorder %s88, %s89
    %p98 = scmp.eq.s32.totalorder %s15, 0
    %p99 = por %p97, %p98
    %p100 = scmp.ne.s32.totalorder %s88, %s89
    %p101 = scmp.eq.s32.totalorder %s16, 1
    %p102 = por %p100, %p101
    %p104 = scmp.ne.s32.totalorder %s89, %s103
    %p105 = scmp.eq.s32.totalorder %s16, 0
    %p106 = por %p104, %p105
    %s107 = ssub.s32 %s10, %s17
    %p108 = scmp.eq.s32.totalorder %s107, 0
    %s110 = sadd.s32 %s109, 1
    %s111 = scalar_select %p108, %s109, %s110
    %p114 = pneg %p108
    %p115 = scmp.eq.s32.totalorder %s10, 1
    %p116 = por %p114, %p115
    %p117 = scmp.ne.s32.totalorder %s109, %s112
    %p118 = scmp.eq.s32.totalorder %s10, 0
    %p119 = por %p117, %p118
    %p120 = scmp.ne.s32.totalorder %s109, %s112
    %p121 = scmp.eq.s32.totalorder %s15, 1
    %p122 = por %p120, %p121
    %p123 = scmp.ne.s32.totalorder %s112, %s113
    %p124 = scmp.eq.s32.totalorder %s15, 0
    %p125 = por %p123, %p124
    %p126 = scmp.ne.s32.totalorder %s112, %s113
    %p127 = scmp.eq.s32.totalorder %s16, 1
    %p128 = por %p126, %p127
    %p130 = scmp.ne.s32.totalorder %s113, %s129
    %p131 = scmp.eq.s32.totalorder %s16, 0
    %p132 = por %p130, %p131
    %p133 = scmp.le.s32.totalorder 1, %s10
    %p134 = scmp.lt.s32.totalorder %s10, 3
    %p135 = pnand %p133, %p134
    %p136 = pneg %p135
    // Predicated region
    $region9: #{forward.15} parent=5 // pred_check
      _
    $region10: #{forward.15} parent=5 // pred_check_branch
      %138 = sbr.rel (%p135) target = $region12
    $region11: #{forward.15} parent=5 // pred_region
      %s139 = ssub.s32 %s10, 1
      // Predicated region
      $region13: #{forward.15} parent=11 // pred_check
        %p140 = pneg %p57
      $region14: #{forward.15} parent=11 // pred_check_branch
        %142 = sbr.rel (%p140) target = $region16
      $region15: #{forward.15} parent=11 // pred_region
        _
      $region16: #{forward.15} parent=11 // pred_fallthru
        _
      // Predicated region
      $region17: #{forward.15} parent=11 // pred_check
        %p143 = pneg %p78
      $region18: #{forward.15} parent=11 // pred_check_branch
        %145 = sbr.rel (%p143) target = $region20
      $region19: #{forward.15} parent=11 // pred_region
        _
      $region20: #{forward.15} parent=11 // pred_fallthru
        _
      // Predicated region
      $region21: #{forward.15} parent=11 // pred_check
        %p146 = pneg %p99
      $region22: #{forward.15} parent=11 // pred_check_branch
        %148 = sbr.rel (%p146) target = $region24
      $region23: #{forward.15} parent=11 // pred_region
        _
      $region24: #{forward.15} parent=11 // pred_fallthru
        _
    $region12: #{forward.15} parent=5 // pred_fallthru
      _
    %p149 = scmp.lt.s32.totalorder %s10, 2
    // Predicated region
    $region25: #{forward.15} parent=5 // pred_check
      %p150 = pneg %p149
    $region26: #{forward.15} parent=5 // pred_check_branch
      %152 = sbr.rel (%p150) target = $region28
    $region27: #{forward.15} parent=5 // pred_region
      // Predicated region
      $region29: #{forward.15} parent=27 // pred_check
        %p153 = pneg %p30
      $region30: #{forward.15} parent=27 // pred_check_branch
        %155 = sbr.rel (%p153) target = $region32
      $region31: #{forward.15} parent=27 // pred_region
        %p156 = scmp.lt.s32.totalorder %s10, 1
        %s157 = scalar_select %p156, %s10, 1
        %s158 = smul.addr %s157, 54
        %s159 = smul.addr %s158, 4
        %s160 = scalar_lea.vmem %s0, %s159
      $region32: #{forward.15} parent=27 // pred_fallthru
        _
    $region28: #{forward.15} parent=5 // pred_fallthru
      _
    %p161 = scmp.le.s32.totalorder 1, %s10
    %p162 = scmp.lt.s32.totalorder %s10, 3
    %p163 = pnand %p161, %p162
    %p164 = pneg %p163
    // Predicated region
    $region33: #{forward.15} parent=5 // pred_check
      _
    $region34: #{forward.15} parent=5 // pred_check_branch
      %166 = sbr.rel (%p163) target = $region36
    $region35: #{forward.15} parent=5 // pred_region
      %s167 = ssub.s32 %s10, 1
      %p168 = scmp.lt.s32.totalorder %s15, 1
      %s169 = scalar_select %p168, %s15, 1
      %s170 = smul.addr %s169, 54
      %s171 = smul.addr %s170, 4
      %s172 = scalar_lea.vmem %s0, %s171
      %p173 = pneg %p36
      %p174 = pneg %p33
      %p175 = pneg %p57
      %p176 = pneg %p54
      %p177 = pneg %p78
      %p178 = pneg %p75
      %p179 = pneg %p99
      %p180 = pneg %p96
      %p181 = pneg %p125
      %p182 = pneg %p122
      %p183 = scmp.lt.s32.totalorder %s15, 1
      %s184 = scalar_select %p183, %s15, 1
      %s185 = smul.addr %s184, 32
      %s186 = smul.addr %s185, 4
      %s187 = scalar_lea.vmem %s4, %s186
      %p188 = scmp.lt.s32.totalorder %s15, 1
      %s189 = scalar_select %p188, %s15, 1
      %s190 = smul.addr %s189, 54
      %s191 = smul.addr %s190, 4
      %s192 = scalar_lea.vmem %s0, %s191
      %p193 = scmp.lt.s32.totalorder %s15, 1
      %s194 = scalar_select %p193, %s15, 1
      %s195 = smul.addr %s194, 32
      %s196 = smul.addr %s195, 4
      %s197 = scalar_lea.vmem %s4, %s196
      %v199 = vld [vmem:[%s192] sm:$0xf]
      %v200 = vld [vmem:[%s192 + $0x4] sm:$0xf]
      %v201 = vld [vmem:[%s192 + $0xc] sm:$0xf]
      %v202 = vld [vmem:[%s192 + $0x10] sm:$0xf]
      %v203 = vld [vmem:[%s192 + $0x18] sm:$0xf]
      %v204 = vld [vmem:[%s192 + $0x1c] sm:$0xf]
      %v205 = vld [vmem:[%s192 + $0x24] sm:$0xf]
      %v206 = vld [vmem:[%s192 + $0x28] sm:$0xf]
      %v207 = vld [vmem:[%s192 + $0x30] sm:$0xf]
      %v208 = vld [vmem:[%s192 + $0x34] sm:$0xf]
      %v209 = vld [vmem:[%s192 + $0x3c] sm:$0xf]
      %v210 = vld [vmem:[%s192 + $0x40] sm:$0xf]
      %v211 = vld [vmem:[%s192 + $0x48] sm:$0xf]
      %v212 = vld [vmem:[%s192 + $0x4c] sm:$0xf]
      %v213 = vld [vmem:[%s192 + $0x54] sm:$0xf]
      %v214 = vld [vmem:[%s192 + $0x58] sm:$0xf]
      %v215 = vld [vmem:[%s192 + $0x60] sm:$0xf]
      %v216 = vld [vmem:[%s192 + $0x64] sm:$0xf]
      %v217 = vld [vmem:[%s192 + $0x6c] sm:$0xf]
      %v218 = vld [vmem:[%s192 + $0x70] sm:$0xf]
      %v219 = vld [vmem:[%s192 + $0x78] sm:$0xf]
      %v220 = vld [vmem:[%s192 + $0x7c] sm:$0xf]
      %v221 = vld [vmem:[%s192 + $0x84] sm:$0xf]
      %v222 = vld [vmem:[%s192 + $0x88] sm:$0xf]
      %v223 = vld [vmem:[%s192 + $0x90] sm:$0xf]
      %v224 = vld [vmem:[%s192 + $0x94] sm:$0xf]
      %v225 = vld [vmem:[%s192 + $0x9c] sm:$0xf]
      %v226 = vld [vmem:[%s192 + $0xa0] sm:$0xf]
      %v227 = vld [vmem:[%s192 + $0xa8] sm:$0xf]
      %v228 = vld [vmem:[%s192 + $0xac] sm:$0xf]
      %v229 = vld [vmem:[%s192 + $0xb4] sm:$0xf]
      %v230 = vld [vmem:[%s192 + $0xb8] sm:$0xf]
      %v231 = vld [vmem:[%s1] sm:$0xf]
      %v232 = vld [vmem:[%s1 + $0x4] sm:$0xf]
      %v233 = vld [vmem:[%s192 + $0x8] sm:$0x1]
      %v234 = vld [vmem:[%s192 + $0x14] sm:$0x1]
      %v235 = vld [vmem:[%s192 + $0x20] sm:$0x1]
      %v236 = vld [vmem:[%s192 + $0x2c] sm:$0x1]
      %v237 = vld [vmem:[%s192 + $0x38] sm:$0x1]
      %v238 = vld [vmem:[%s192 + $0x44] sm:$0x1]
      %v239 = vld [vmem:[%s192 + $0x50] sm:$0x1]
      %v240 = vld [vmem:[%s192 + $0x5c] sm:$0x1]
      %v241 = vld [vmem:[%s192 + $0x68] sm:$0x1]
      %v242 = vld [vmem:[%s192 + $0x74] sm:$0x1]
      %v243 = vld [vmem:[%s192 + $0x80] sm:$0x1]
      %v244 = vld [vmem:[%s192 + $0x8c] sm:$0x1]
      %v245 = vld [vmem:[%s192 + $0x98] sm:$0x1]
      %v246 = vld [vmem:[%s192 + $0xa4] sm:$0x1]
      %v247 = vld [vmem:[%s192 + $0xb0] sm:$0x1]
      %v248 = vld [vmem:[%s192 + $0xbc] sm:$0x1]
      %vm249 = vsmask.f32 3328
      %vm250 = vsmask.f32 7440
      %vm251 = vmor %vm249, %vm250
      %v253 = vshrl.u32 %v199, 16
      %v255 = vrot.slane %v253, 4
      %v256 = vshll.u32 %v199, 16
      %v258 = vrot.slane %v256, 5
      %v259 = vor.u32 %v255, %v258
      %v260 = vrot.slane %v259, 4
      %v262 = vshll.u32 %v200, 16
      %v264 = vrot.slane %v262, 5
      %v265 = vsel %vm251, %v260, %v264
      %v266 = vshrl.u32 %v200, 16
      %v268 = vrot.slane %v266, 4
      %v269 = vor.u32 %v268, %v264
      %v270 = vrot.slane %v269, 4
      %v272 = vshll.u32 %v233, 16
      %v274 = vrot.slane %v272, 5
      %v275 = vsel %vm251, %v270, %v274
      %v277 = vshrl.u32 %v201, 16
      %v279 = vrot.slane %v277, 4
      %v280 = vshll.u32 %v201, 16
      %v282 = vrot.slane %v280, 5
      %v283 = vor.u32 %v279, %v282
      %v284 = vrot.slane %v283, 4
      %v286 = vshll.u32 %v202, 16
      %v288 = vrot.slane %v286, 5
      %v289 = vsel %vm251, %v284, %v288
      %v290 = vshrl.u32 %v202, 16
      %v292 = vrot.slane %v290, 4
      %v293 = vor.u32 %v292, %v288
      %v294 = vrot.slane %v293, 4
      %v296 = vshll.u32 %v234, 16
      %v298 = vrot.slane %v296, 5
      %v299 = vsel %vm251, %v294, %v298
      %v301 = vshrl.u32 %v203, 16
      %v303 = vrot.slane %v301, 4
      %v304 = vshll.u32 %v203, 16
      %v306 = vrot.slane %v304, 5
      %v307 = vor.u32 %v303, %v306
      %v308 = vrot.slane %v307, 4
      %v310 = vshll.u32 %v204, 16
      %v312 = vrot.slane %v310, 5
      %v313 = vsel %vm251, %v308, %v312
      %v314 = vshrl.u32 %v204, 16
      %v316 = vrot.slane %v314, 4
      %v317 = vor.u32 %v316, %v312
      %v318 = vrot.slane %v317, 4
      %v320 = vshll.u32 %v235, 16
      %v322 = vrot.slane %v320, 5
      %v323 = vsel %vm251, %v318, %v322
      %v325 = vshrl.u32 %v205, 16
      %v327 = vrot.slane %v325, 4
      %v328 = vshll.u32 %v205, 16
      %v330 = vrot.slane %v328, 5
      %v331 = vor.u32 %v327, %v330
      %v332 = vrot.slane %v331, 4
      %v334 = vshll.u32 %v206, 16
      %v336 = vrot.slane %v334, 5
      %v337 = vsel %vm251, %v332, %v336
      %v338 = vshrl.u32 %v206, 16
      %v340 = vrot.slane %v338, 4
      %v341 = vor.u32 %v340, %v336
      %v342 = vrot.slane %v341, 4
      %v344 = vshll.u32 %v236, 16
      %v346 = vrot.slane %v344, 5
      %v347 = vsel %vm251, %v342, %v346
      %v349 = vshrl.u32 %v207, 16
      %v351 = vrot.slane %v349, 4
      %v352 = vshll.u32 %v207, 16
      %v354 = vrot.slane %v352, 5
      %v355 = vor.u32 %v351, %v354
      %v356 = vrot.slane %v355, 4
      %v358 = vshll.u32 %v208, 16
      %v360 = vrot.slane %v358, 5
      %v361 = vsel %vm251, %v356, %v360
      %v362 = vshrl.u32 %v208, 16
      %v364 = vrot.slane %v362, 4
      %v365 = vor.u32 %v364, %v360
      %v366 = vrot.slane %v365, 4
      %v368 = vshll.u32 %v237, 16
      %v370 = vrot.slane %v368, 5
      %v371 = vsel %vm251, %v366, %v370
      %v373 = vshrl.u32 %v209, 16
      %v375 = vrot.slane %v373, 4
      %v376 = vshll.u32 %v209, 16
      %v378 = vrot.slane %v376, 5
      %v379 = vor.u32 %v375, %v378
      %v380 = vrot.slane %v379, 4
      %v382 = vshll.u32 %v210, 16
      %v384 = vrot.slane %v382, 5
      %v385 = vsel %vm251, %v380, %v384
      %v386 = vshrl.u32 %v210, 16
      %v388 = vrot.slane %v386, 4
      %v389 = vor.u32 %v388, %v384
      %v390 = vrot.slane %v389, 4
      %v392 = vshll.u32 %v238, 16
      %v394 = vrot.slane %v392, 5
      %v395 = vsel %vm251, %v390, %v394
      %v397 = vshrl.u32 %v211, 16
      %v399 = vrot.slane %v397, 4
      %v400 = vshll.u32 %v211, 16
      %v402 = vrot.slane %v400, 5
      %v403 = vor.u32 %v399, %v402
      %v404 = vrot.slane %v403, 4
      %v406 = vshll.u32 %v212, 16
      %v408 = vrot.slane %v406, 5
      %v409 = vsel %vm251, %v404, %v408
      %v410 = vshrl.u32 %v212, 16
      %v412 = vrot.slane %v410, 4
      %v413 = vor.u32 %v412, %v408
      %v414 = vrot.slane %v413, 4
      %v416 = vshll.u32 %v239, 16
      %v418 = vrot.slane %v416, 5
      %v419 = vsel %vm251, %v414, %v418
      %v421 = vshrl.u32 %v213, 16
      %v423 = vrot.slane %v421, 4
      %v424 = vshll.u32 %v213, 16
      %v426 = vrot.slane %v424, 5
      %v427 = vor.u32 %v423, %v426
      %v428 = vrot.slane %v427, 4
      %v430 = vshll.u32 %v214, 16
      %v432 = vrot.slane %v430, 5
      %v433 = vsel %vm251, %v428, %v432
      %v434 = vshrl.u32 %v214, 16
      %v436 = vrot.slane %v434, 4
      %v437 = vor.u32 %v436, %v432
      %v438 = vrot.slane %v437, 4
      %v440 = vshll.u32 %v240, 16
      %v442 = vrot.slane %v440, 5
      %v443 = vsel %vm251, %v438, %v442
      %v445 = vshrl.u32 %v215, 16
      %v447 = vrot.slane %v445, 4
      %v448 = vshll.u32 %v215, 16
      %v450 = vrot.slane %v448, 5
      %v451 = vor.u32 %v447, %v450
      %v452 = vrot.slane %v451, 4
      %v454 = vshll.u32 %v216, 16
      %v456 = vrot.slane %v454, 5
      %v457 = vsel %vm251, %v452, %v456
      %v458 = vshrl.u32 %v216, 16
      %v460 = vrot.slane %v458, 4
      %v461 = vor.u32 %v460, %v456
      %v462 = vrot.slane %v461, 4
      %v464 = vshll.u32 %v241, 16
      %v466 = vrot.slane %v464, 5
      %v467 = vsel %vm251, %v462, %v466
      %v469 = vshrl.u32 %v217, 16
      %v471 = vrot.slane %v469, 4
      %v472 = vshll.u32 %v217, 16
      %v474 = vrot.slane %v472, 5
      %v475 = vor.u32 %v471, %v474
      %v476 = vrot.slane %v475, 4
      %v478 = vshll.u32 %v218, 16
      %v480 = vrot.slane %v478, 5
      %v481 = vsel %vm251, %v476, %v480
      %v482 = vshrl.u32 %v218, 16
      %v484 = vrot.slane %v482, 4
      %v485 = vor.u32 %v484, %v480
      %v486 = vrot.slane %v485, 4
      %v488 = vshll.u32 %v242, 16
      %v490 = vrot.slane %v488, 5
      %v491 = vsel %vm251, %v486, %v490
      %v493 = vshrl.u32 %v219, 16
      %v495 = vrot.slane %v493, 4
      %v496 = vshll.u32 %v219, 16
      %v498 = vrot.slane %v496, 5
      %v499 = vor.u32 %v495, %v498
      %v500 = vrot.slane %v499, 4
      %v502 = vshll.u32 %v220, 16
      %v504 = vrot.slane %v502, 5
      %v505 = vsel %vm251, %v500, %v504
      %v506 = vshrl.u32 %v220, 16
      %v508 = vrot.slane %v506, 4
      %v509 = vor.u32 %v508, %v504
      %v510 = vrot.slane %v509, 4
      %v512 = vshll.u32 %v243, 16
      %v514 = vrot.slane %v512, 5
      %v515 = vsel %vm251, %v510, %v514
      %v517 = vshrl.u32 %v221, 16
      %v519 = vrot.slane %v517, 4
      %v520 = vshll.u32 %v221, 16
      %v522 = vrot.slane %v520, 5
      %v523 = vor.u32 %v519, %v522
      %v524 = vrot.slane %v523, 4
      %v526 = vshll.u32 %v222, 16
      %v528 = vrot.slane %v526, 5
      %v529 = vsel %vm251, %v524, %v528
      %v530 = vshrl.u32 %v222, 16
      %v532 = vrot.slane %v530, 4
      %v533 = vor.u32 %v532, %v528
      %v534 = vrot.slane %v533, 4
      %v536 = vshll.u32 %v244, 16
      %v538 = vrot.slane %v536, 5
      %v539 = vsel %vm251, %v534, %v538
      %v541 = vshrl.u32 %v223, 16
      %v543 = vrot.slane %v541, 4
      %v544 = vshll.u32 %v223, 16
      %v546 = vrot.slane %v544, 5
      %v547 = vor.u32 %v543, %v546
      %v548 = vrot.slane %v547, 4
      %v550 = vshll.u32 %v224, 16
      %v552 = vrot.slane %v550, 5
      %v553 = vsel %vm251, %v548, %v552
      %v554 = vshrl.u32 %v224, 16
      %v556 = vrot.slane %v554, 4
      %v557 = vor.u32 %v556, %v552
      %v558 = vrot.slane %v557, 4
      %v560 = vshll.u32 %v245, 16
      %v562 = vrot.slane %v560, 5
      %v563 = vsel %vm251, %v558, %v562
      %v565 = vshrl.u32 %v225, 16
      %v567 = vrot.slane %v565, 4
      %v568 = vshll.u32 %v225, 16
      %v570 = vrot.slane %v568, 5
      %v571 = vor.u32 %v567, %v570
      %v572 = vrot.slane %v571, 4
      %v574 = vshll.u32 %v226, 16
      %v576 = vrot.slane %v574, 5
      %v577 = vsel %vm251, %v572, %v576
      %v578 = vshrl.u32 %v226, 16
      %v580 = vrot.slane %v578, 4
      %v581 = vor.u32 %v580, %v576
      %v582 = vrot.slane %v581, 4
      %v584 = vshll.u32 %v246, 16
      %v586 = vrot.slane %v584, 5
      %v587 = vsel %vm251, %v582, %v586
      %v589 = vshrl.u32 %v227, 16
      %v591 = vrot.slane %v589, 4
      %v592 = vshll.u32 %v227, 16
      %v594 = vrot.slane %v592, 5
      %v595 = vor.u32 %v591, %v594
      %v596 = vrot.slane %v595, 4
      %v598 = vshll.u32 %v228, 16
      %v600 = vrot.slane %v598, 5
      %v601 = vsel %vm251, %v596, %v600
      %v602 = vshrl.u32 %v228, 16
      %v604 = vrot.slane %v602, 4
      %v605 = vor.u32 %v604, %v600
      %v606 = vrot.slane %v605, 4
      %v608 = vshll.u32 %v247, 16
      %v610 = vrot.slane %v608, 5
      %v611 = vsel %vm251, %v606, %v610
      %v613 = vshrl.u32 %v229, 16
      %v615 = vrot.slane %v613, 4
      %v616 = vshll.u32 %v229, 16
      %v618 = vrot.slane %v616, 5
      %v619 = vor.u32 %v615, %v618
      %v620 = vrot.slane %v619, 4
      %v622 = vshll.u32 %v230, 16
      %v624 = vrot.slane %v622, 5
      %v625 = vsel %vm251, %v620, %v624
      %v626 = vshrl.u32 %v230, 16
      %v628 = vrot.slane %v626, 4
      %v629 = vor.u32 %v628, %v624
      %v630 = vrot.slane %v629, 4
      %v632 = vshll.u32 %v248, 16
      %v634 = vrot.slane %v632, 5
      %v635 = vsel %vm251, %v630, %v634
      %s636 = scalar_lea.vmem %s1, 8
      %v637 = vld [vmem:[%s636] sm:$0xf]
      %v638 = vld [vmem:[%s636 + $0x4] sm:$0xf]
      %v639 = vunpack.c.l.b16 %v265
      %v640 = vunpack.c.l.b16 %v275
      %v641 = vunpack.c.l.b16 %v289
      %v642 = vunpack.c.l.b16 %v299
      %v643 = vunpack.c.l.b16 %v313
      %v644 = vunpack.c.l.b16 %v323
      %v645 = vunpack.c.l.b16 %v337
      %v646 = vunpack.c.l.b16 %v347
      %v647 = vunpack.c.l.b16 %v361
      %v648 = vunpack.c.l.b16 %v371
      %v649 = vunpack.c.l.b16 %v385
      %v650 = vunpack.c.l.b16 %v395
      %v651 = vunpack.c.l.b16 %v409
      %v652 = vunpack.c.l.b16 %v419
      %v653 = vunpack.c.l.b16 %v433
      %v654 = vunpack.c.l.b16 %v443
      %v655 = vunpack.c.l.b16 %v457
      %v656 = vunpack.c.l.b16 %v467
      %v657 = vunpack.c.l.b16 %v481
      %v658 = vunpack.c.l.b16 %v491
      %v659 = vunpack.c.l.b16 %v505
      %v660 = vunpack.c.l.b16 %v515
      %v661 = vunpack.c.l.b16 %v529
      %v662 = vunpack.c.l.b16 %v539
      %v663 = vunpack.c.l.b16 %v553
      %v664 = vunpack.c.l.b16 %v563
      %v665 = vunpack.c.l.b16 %v577
      %v666 = vunpack.c.l.b16 %v587
      %v667 = vunpack.c.l.b16 %v601
      %v668 = vunpack.c.l.b16 %v611
      %v669 = vunpack.c.l.b16 %v625
      %v670 = vunpack.c.l.b16 %v635
      %v671 = vpack.c.b16 %v640, %v639
      %v672 = vpack.c.b16 %v642, %v641
      %v673 = vpack.c.b16 %v644, %v643
      %v674 = vpack.c.b16 %v646, %v645
      %v675 = vpack.c.b16 %v648, %v647
      %v676 = vpack.c.b16 %v650, %v649
      %v677 = vpack.c.b16 %v652, %v651
      %v678 = vpack.c.b16 %v654, %v653
      %v679 = vpack.c.b16 %v656, %v655
      %v680 = vpack.c.b16 %v658, %v657
      %v681 = vpack.c.b16 %v660, %v659
      %v682 = vpack.c.b16 %v662, %v661
      %v683 = vpack.c.b16 %v664, %v663
      %v684 = vpack.c.b16 %v666, %v665
      %v685 = vpack.c.b16 %v668, %v667
      %v686 = vpack.c.b16 %v670, %v669
      %v689 = vunpack.c.l.b16 %v637
      %v690 = vunpack.c.l.b16 %v638
      %v691 = vpack.c.b16 %v690, %v689
      %vm693 = vcmask 130048
      %v695 = vsel %vm693, %v671, 0
      %v698 = vsel %vm693, %v672, 0
      %v701 = vsel %vm693, %v673, 0
      %v704 = vsel %vm693, %v674, 0
      %v707 = vsel %vm693, %v675, 0
      %v710 = vsel %vm693, %v676, 0
      %v713 = vsel %vm693, %v677, 0
      %v716 = vsel %vm693, %v678, 0
      %v719 = vsel %vm693, %v679, 0
      %v722 = vsel %vm693, %v680, 0
      %v725 = vsel %vm693, %v681, 0
      %v728 = vsel %vm693, %v682, 0
      %v731 = vsel %vm693, %v683, 0
      %v734 = vsel %vm693, %v684, 0
      %v737 = vsel %vm693, %v685, 0
      %v740 = vsel %vm693, %v686, 0
      %742 = vmatpush.bf16.msra.mxu0 0
      %743 = vmatpush.bf16.msra.mxu0 0
      %744 = vmatpush.bf16.msra.mxu0 0
      %745 = vmatpush.bf16.msra.mxu0 0
      %746 = vmatpush.bf16.msra.mxu0 0
      %747 = vmatpush.bf16.msra.mxu0 0
      %748 = vmatpush.bf16.msra.mxu0 0
      %749 = vmatpush.bf16.msra.mxu0 %v691
      %750 = vmatmul.bf16.gmra.mxu0 %v695
      %v751 = vpop.f32.mrf.mxu0
      %v752 = vadd.f32 0.0, %v751
      %v753 = vpop.f32.mrf.mxu0
      %v754 = vadd.f32 0.0, %v753
      %755 = vmatmul.bf16.gmra.mxu0 %v698
      %v756 = vpop.f32.mrf.mxu0
      %v757 = vadd.f32 0.0, %v756
      %v758 = vpop.f32.mrf.mxu0
      %v759 = vadd.f32 0.0, %v758
      %760 = vmatmul.bf16.gmra.mxu0 %v701
      %v761 = vpop.f32.mrf.mxu0
      %v762 = vadd.f32 0.0, %v761
      %v763 = vpop.f32.mrf.mxu0
      %v764 = vadd.f32 0.0, %v763
      %765 = vmatmul.bf16.gmra.mxu0 %v704
      %v766 = vpop.f32.mrf.mxu0
      %v767 = vadd.f32 0.0, %v766
      %v768 = vpop.f32.mrf.mxu0
      %v769 = vadd.f32 0.0, %v768
      %770 = vmatmul.bf16.gmra.mxu0 %v707
      %v771 = vpop.f32.mrf.mxu0
      %v772 = vadd.f32 0.0, %v771
      %v773 = vpop.f32.mrf.mxu0
      %v774 = vadd.f32 0.0, %v773
      %775 = vmatmul.bf16.gmra.mxu0 %v710
      %v776 = vpop.f32.mrf.mxu0
      %v777 = vadd.f32 0.0, %v776
      %v778 = vpop.f32.mrf.mxu0
      %v779 = vadd.f32 0.0, %v778
      %780 = vmatmul.bf16.gmra.mxu0 %v713
      %v781 = vpop.f32.mrf.mxu0
      %v782 = vadd.f32 0.0, %v781
      %v783 = vpop.f32.mrf.mxu0
      %v784 = vadd.f32 0.0, %v783
      %785 = vmatmul.bf16.gmra.mxu0 %v716
      %v786 = vpop.f32.mrf.mxu0
      %v787 = vadd.f32 0.0, %v786
      %v788 = vpop.f32.mrf.mxu0
      %v789 = vadd.f32 0.0, %v788
      %790 = vmatmul.bf16.gmra.mxu0 %v719
      %v791 = vpop.f32.mrf.mxu0
      %v792 = vadd.f32 0.0, %v791
      %v793 = vpop.f32.mrf.mxu0
      %v794 = vadd.f32 0.0, %v793
      %795 = vmatmul.bf16.gmra.mxu0 %v722
      %v796 = vpop.f32.mrf.mxu0
      %v797 = vadd.f32 0.0, %v796
      %v798 = vpop.f32.mrf.mxu0
      %v799 = vadd.f32 0.0, %v798
      %800 = vmatmul.bf16.gmra.mxu0 %v725
      %v801 = vpop.f32.mrf.mxu0
      %v802 = vadd.f32 0.0, %v801
      %v803 = vpop.f32.mrf.mxu0
      %v804 = vadd.f32 0.0, %v803
      %805 = vmatmul.bf16.gmra.mxu0 %v728
      %v806 = vpop.f32.mrf.mxu0
      %v807 = vadd.f32 0.0, %v806
      %v808 = vpop.f32.mrf.mxu0
      %v809 = vadd.f32 0.0, %v808
      %810 = vmatmul.bf16.gmra.mxu0 %v731
      %v811 = vpop.f32.mrf.mxu0
      %v812 = vadd.f32 0.0, %v811
      %v813 = vpop.f32.mrf.mxu0
      %v814 = vadd.f32 0.0, %v813
      %815 = vmatmul.bf16.gmra.mxu0 %v734
      %v816 = vpop.f32.mrf.mxu0
      %v817 = vadd.f32 0.0, %v816
      %v818 = vpop.f32.mrf.mxu0
      %v819 = vadd.f32 0.0, %v818
      %820 = vmatmul.bf16.gmra.mxu0 %v737
      %v821 = vpop.f32.mrf.mxu0
      %v822 = vadd.f32 0.0, %v821
      %v823 = vpop.f32.mrf.mxu0
      %v824 = vadd.f32 0.0, %v823
      %825 = vmatmul.bf16.gmra.mxu0 %v740
      %v826 = vpop.f32.mrf.mxu0
      %v827 = vadd.f32 0.0, %v826
      %v828 = vpop.f32.mrf.mxu0
      %v829 = vadd.f32 0.0, %v828
      %830 = vdwg.mxu0
      %v863 = vunpack.c.l.b16 %v199
      %v864 = vunpack.c.l.b16 %v200
      %v865 = vunpack.c.l.b16 %v201
      %v866 = vunpack.c.l.b16 %v202
      %v867 = vunpack.c.l.b16 %v203
      %v868 = vunpack.c.l.b16 %v204
      %v869 = vunpack.c.l.b16 %v205
      %v870 = vunpack.c.l.b16 %v206
      %v871 = vunpack.c.l.b16 %v207
      %v872 = vunpack.c.l.b16 %v208
      %v873 = vunpack.c.l.b16 %v209
      %v874 = vunpack.c.l.b16 %v210
      %v875 = vunpack.c.l.b16 %v211
      %v876 = vunpack.c.l.b16 %v212
      %v877 = vunpack.c.l.b16 %v213
      %v878 = vunpack.c.l.b16 %v214
      %v879 = vunpack.c.l.b16 %v215
      %v880 = vunpack.c.l.b16 %v216
      %v881 = vunpack.c.l.b16 %v217
      %v882 = vunpack.c.l.b16 %v218
      %v883 = vunpack.c.l.b16 %v219
      %v884 = vunpack.c.l.b16 %v220
      %v885 = vunpack.c.l.b16 %v221
      %v886 = vunpack.c.l.b16 %v222
      %v887 = vunpack.c.l.b16 %v223
      %v888 = vunpack.c.l.b16 %v224
      %v889 = vunpack.c.l.b16 %v225
      %v890 = vunpack.c.l.b16 %v226
      %v891 = vunpack.c.l.b16 %v227
      %v892 = vunpack.c.l.b16 %v228
      %v893 = vunpack.c.l.b16 %v229
      %v894 = vunpack.c.l.b16 %v230
      %v895 = vpack.c.b16 %v864, %v863
      %v896 = vpack.c.b16 %v866, %v865
      %v897 = vpack.c.b16 %v868, %v867
      %v898 = vpack.c.b16 %v870, %v869
      %v899 = vpack.c.b16 %v872, %v871
      %v900 = vpack.c.b16 %v874, %v873
      %v901 = vpack.c.b16 %v876, %v875
      %v902 = vpack.c.b16 %v878, %v877
      %v903 = vpack.c.b16 %v880, %v879
      %v904 = vpack.c.b16 %v882, %v881
      %v905 = vpack.c.b16 %v884, %v883
      %v906 = vpack.c.b16 %v886, %v885
      %v907 = vpack.c.b16 %v888, %v887
      %v908 = vpack.c.b16 %v890, %v889
      %v909 = vpack.c.b16 %v892, %v891
      %v910 = vpack.c.b16 %v894, %v893
      %v913 = vunpack.c.l.b16 %v231
      %v914 = vunpack.c.l.b16 %v232
      %v915 = vpack.c.b16 %v914, %v913
      %v918 = vsel %vm693, %v895, 0
      %v921 = vsel %vm693, %v896, 0
      %v924 = vsel %vm693, %v897, 0
      %v927 = vsel %vm693, %v898, 0
      %v930 = vsel %vm693, %v899, 0
      %v933 = vsel %vm693, %v900, 0
      %v936 = vsel %vm693, %v901, 0
      %v939 = vsel %vm693, %v902, 0
      %v942 = vsel %vm693, %v903, 0
      %v945 = vsel %vm693, %v904, 0
      %v948 = vsel %vm693, %v905, 0
      %v951 = vsel %vm693, %v906, 0
      %v954 = vsel %vm693, %v907, 0
      %v957 = vsel %vm693, %v908, 0
      %v960 = vsel %vm693, %v909, 0
      %v963 = vsel %vm693, %v910, 0
      %965 = vmatpush.bf16.msra.mxu0 0
      %966 = vmatpush.bf16.msra.mxu0 0
      %967 = vmatpush.bf16.msra.mxu0 0
      %968 = vmatpush.bf16.msra.mxu0 0
      %969 = vmatpush.bf16.msra.mxu0 0
      %970 = vmatpush.bf16.msra.mxu0 0
      %971 = vmatpush.bf16.msra.mxu0 0
      %972 = vmatpush.bf16.msra.mxu0 %v915
      %973 = vmatmul.bf16.gmra.mxu0 %v918
      %v974 = vpop.f32.mrf.mxu0
      %v975 = vadd.f32 %v752, %v974
      %v976 = vpop.f32.mrf.mxu0
      %v977 = vadd.f32 %v754, %v976
      %978 = vmatmul.bf16.gmra.mxu0 %v921
      %v979 = vpop.f32.mrf.mxu0
      %v980 = vadd.f32 %v757, %v979
      %v981 = vpop.f32.mrf.mxu0
      %v982 = vadd.f32 %v759, %v981
      %983 = vmatmul.bf16.gmra.mxu0 %v924
      %v984 = vpop.f32.mrf.mxu0
      %v985 = vadd.f32 %v762, %v984
      %v986 = vpop.f32.mrf.mxu0
      %v987 = vadd.f32 %v764, %v986
      %988 = vmatmul.bf16.gmra.mxu0 %v927
      %v989 = vpop.f32.mrf.mxu0
      %v990 = vadd.f32 %v767, %v989
      %v991 = vpop.f32.mrf.mxu0
      %v992 = vadd.f32 %v769, %v991
      %993 = vmatmul.bf16.gmra.mxu0 %v930
      %v994 = vpop.f32.mrf.mxu0
      %v995 = vadd.f32 %v772, %v994
      %v996 = vpop.f32.mrf.mxu0
      %v997 = vadd.f32 %v774, %v996
      %998 = vmatmul.bf16.gmra.mxu0 %v933
      %v999 = vpop.f32.mrf.mxu0
      %v1000 = vadd.f32 %v777, %v999
      %v1001 = vpop.f32.mrf.mxu0
      %v1002 = vadd.f32 %v779, %v1001
      %1003 = vmatmul.bf16.gmra.mxu0 %v936
      %v1004 = vpop.f32.mrf.mxu0
      %v1005 = vadd.f32 %v782, %v1004
      %v1006 = vpop.f32.mrf.mxu0
      %v1007 = vadd.f32 %v784, %v1006
      %1008 = vmatmul.bf16.gmra.mxu0 %v939
      %v1009 = vpop.f32.mrf.mxu0
      %v1010 = vadd.f32 %v787, %v1009
      %v1011 = vpop.f32.mrf.mxu0
      %v1012 = vadd.f32 %v789, %v1011
      %1013 = vmatmul.bf16.gmra.mxu0 %v942
      %v1014 = vpop.f32.mrf.mxu0
      %v1015 = vadd.f32 %v792, %v1014
      %v1016 = vpop.f32.mrf.mxu0
      %v1017 = vadd.f32 %v794, %v1016
      %1018 = vmatmul.bf16.gmra.mxu0 %v945
      %v1019 = vpop.f32.mrf.mxu0
      %v1020 = vadd.f32 %v797, %v1019
      %v1021 = vpop.f32.mrf.mxu0
      %v1022 = vadd.f32 %v799, %v1021
      %1023 = vmatmul.bf16.gmra.mxu0 %v948
      %v1024 = vpop.f32.mrf.mxu0
      %v1025 = vadd.f32 %v802, %v1024
      %v1026 = vpop.f32.mrf.mxu0
      %v1027 = vadd.f32 %v804, %v1026
      %1028 = vmatmul.bf16.gmra.mxu0 %v951
      %v1029 = vpop.f32.mrf.mxu0
      %v1030 = vadd.f32 %v807, %v1029
      %v1031 = vpop.f32.mrf.mxu0
      %v1032 = vadd.f32 %v809, %v1031
      %1033 = vmatmul.bf16.gmra.mxu0 %v954
      %v1034 = vpop.f32.mrf.mxu0
      %v1035 = vadd.f32 %v812, %v1034
      %v1036 = vpop.f32.mrf.mxu0
      %v1037 = vadd.f32 %v814, %v1036
      %1038 = vmatmul.bf16.gmra.mxu0 %v957
      %v1039 = vpop.f32.mrf.mxu0
      %v1040 = vadd.f32 %v817, %v1039
      %v1041 = vpop.f32.mrf.mxu0
      %v1042 = vadd.f32 %v819, %v1041
      %1043 = vmatmul.bf16.gmra.mxu0 %v960
      %v1044 = vpop.f32.mrf.mxu0
      %v1045 = vadd.f32 %v822, %v1044
      %v1046 = vpop.f32.mrf.mxu0
      %v1047 = vadd.f32 %v824, %v1046
      %1048 = vmatmul.bf16.gmra.mxu0 %v963
      %v1049 = vpop.f32.mrf.mxu0
      %v1050 = vadd.f32 %v827, %v1049
      %v1051 = vpop.f32.mrf.mxu0
      %v1052 = vadd.f32 %v829, %v1051
      %1053 = vdwg.mxu0
      %v1054 = vld [vmem:[%s192] sm:$0xe]
      %v1055 = vld [vmem:[%s192 + $0xc] sm:$0xe]
      %v1056 = vld [vmem:[%s192 + $0x18] sm:$0xe]
      %v1057 = vld [vmem:[%s192 + $0x24] sm:$0xe]
      %v1058 = vld [vmem:[%s192 + $0x30] sm:$0xe]
      %v1059 = vld [vmem:[%s192 + $0x3c] sm:$0xe]
      %v1060 = vld [vmem:[%s192 + $0x48] sm:$0xe]
      %v1061 = vld [vmem:[%s192 + $0x54] sm:$0xe]
      %v1062 = vld [vmem:[%s192 + $0x60] sm:$0xe]
      %v1063 = vld [vmem:[%s192 + $0x6c] sm:$0xe]
      %v1064 = vld [vmem:[%s192 + $0x78] sm:$0xe]
      %v1065 = vld [vmem:[%s192 + $0x84] sm:$0xe]
      %v1066 = vld [vmem:[%s192 + $0x90] sm:$0xe]
      %v1067 = vld [vmem:[%s192 + $0x9c] sm:$0xe]
      %v1068 = vld [vmem:[%s192 + $0xa8] sm:$0xe]
      %v1069 = vld [vmem:[%s192 + $0xb4] sm:$0xe]
      %vm1102 = vcmask 1042432
      %vm1103 = vcmask 1046532
      %vm1104 = vmor %vm1102, %vm1103
      %v1105 = vrot.slane %v1054, 5
      %v1106 = vrot.slane %v1105, 4
      %v1107 = vrot.slane %v200, 5
      %v1108 = vsel %vm1104, %v1106, %v1107
      %v1109 = vrot.slane %v1107, 4
      %v1110 = vrot.slane %v233, 5
      %v1111 = vsel %vm1104, %v1109, %v1110
      %v1112 = vrot.slane %v1055, 5
      %v1113 = vrot.slane %v1112, 4
      %v1114 = vrot.slane %v202, 5
      %v1115 = vsel %vm1104, %v1113, %v1114
      %v1116 = vrot.slane %v1114, 4
      %v1117 = vrot.slane %v234, 5
      %v1118 = vsel %vm1104, %v1116, %v1117
      %v1119 = vrot.slane %v1056, 5
      %v1120 = vrot.slane %v1119, 4
      %v1121 = vrot.slane %v204, 5
      %v1122 = vsel %vm1104, %v1120, %v1121
      %v1123 = vrot.slane %v1121, 4
      %v1124 = vrot.slane %v235, 5
      %v1125 = vsel %vm1104, %v1123, %v1124
      %v1126 = vrot.slane %v1057, 5
      %v1127 = vrot.slane %v1126, 4
      %v1128 = vrot.slane %v206, 5
      %v1129 = vsel %vm1104, %v1127, %v1128
      %v1130 = vrot.slane %v1128, 4
      %v1131 = vrot.slane %v236, 5
      %v1132 = vsel %vm1104, %v1130, %v1131
      %v1133 = vrot.slane %v1058, 5
      %v1134 = vrot.slane %v1133, 4
      %v1135 = vrot.slane %v208, 5
      %v1136 = vsel %vm1104, %v1134, %v1135
      %v1137 = vrot.slane %v1135, 4
      %v1138 = vrot.slane %v237, 5
      %v1139 = vsel %vm1104, %v1137, %v1138
      %v1140 = vrot.slane %v1059, 5
      %v1141 = vrot.slane %v1140, 4
      %v1142 = vrot.slane %v210, 5
      %v1143 = vsel %vm1104, %v1141, %v1142
      %v1144 = vrot.slane %v1142, 4
      %v1145 = vrot.slane %v238, 5
      %v1146 = vsel %vm1104, %v1144, %v1145
      %v1147 = vrot.slane %v1060, 5
      %v1148 = vrot.slane %v1147, 4
      %v1149 = vrot.slane %v212, 5
      %v1150 = vsel %vm1104, %v1148, %v1149
      %v1151 = vrot.slane %v1149, 4
      %v1152 = vrot.slane %v239, 5
      %v1153 = vsel %vm1104, %v1151, %v1152
      %v1154 = vrot.slane %v1061, 5
      %v1155 = vrot.slane %v1154, 4
      %v1156 = vrot.slane %v214, 5
      %v1157 = vsel %vm1104, %v1155, %v1156
      %v1158 = vrot.slane %v1156, 4
      %v1159 = vrot.slane %v240, 5
      %v1160 = vsel %vm1104, %v1158, %v1159
      %v1161 = vrot.slane %v1062, 5
      %v1162 = vrot.slane %v1161, 4
      %v1163 = vrot.slane %v216, 5
      %v1164 = vsel %vm1104, %v1162, %v1163
      %v1165 = vrot.slane %v1163, 4
      %v1166 = vrot.slane %v241, 5
      %v1167 = vsel %vm1104, %v1165, %v1166
      %v1168 = vrot.slane %v1063, 5
      %v1169 = vrot.slane %v1168, 4
      %v1170 = vrot.slane %v218, 5
      %v1171 = vsel %vm1104, %v1169, %v1170
      %v1172 = vrot.slane %v1170, 4
      %v1173 = vrot.slane %v242, 5
      %v1174 = vsel %vm1104, %v1172, %v1173
      %v1175 = vrot.slane %v1064, 5
      %v1176 = vrot.slane %v1175, 4
      %v1177 = vrot.slane %v220, 5
      %v1178 = vsel %vm1104, %v1176, %v1177
      %v1179 = vrot.slane %v1177, 4
      %v1180 = vrot.slane %v243, 5
      %v1181 = vsel %vm1104, %v1179, %v1180
      %v1182 = vrot.slane %v1065, 5
      %v1183 = vrot.slane %v1182, 4
      %v1184 = vrot.slane %v222, 5
      %v1185 = vsel %vm1104, %v1183, %v1184
      %v1186 = vrot.slane %v1184, 4
      %v1187 = vrot.slane %v244, 5
      %v1188 = vsel %vm1104, %v1186, %v1187
      %v1189 = vrot.slane %v1066, 5
      %v1190 = vrot.slane %v1189, 4
      %v1191 = vrot.slane %v224, 5
      %v1192 = vsel %vm1104, %v1190, %v1191
      %v1193 = vrot.slane %v1191, 4
      %v1194 = vrot.slane %v245, 5
      %v1195 = vsel %vm1104, %v1193, %v1194
      %v1196 = vrot.slane %v1067, 5
      %v1197 = vrot.slane %v1196, 4
      %v1198 = vrot.slane %v226, 5
      %v1199 = vsel %vm1104, %v1197, %v1198
      %v1200 = vrot.slane %v1198, 4
      %v1201 = vrot.slane %v246, 5
      %v1202 = vsel %vm1104, %v1200, %v1201
      %v1203 = vrot.slane %v1068, 5
      %v1204 = vrot.slane %v1203, 4
      %v1205 = vrot.slane %v228, 5
      %v1206 = vsel %vm1104, %v1204, %v1205
      %v1207 = vrot.slane %v1205, 4
      %v1208 = vrot.slane %v247, 5
      %v1209 = vsel %vm1104, %v1207, %v1208
      %v1210 = vrot.slane %v1069, 5
      %v1211 = vrot.slane %v1210, 4
      %v1212 = vrot.slane %v230, 5
      %v1213 = vsel %vm1104, %v1211, %v1212
      %v1214 = vrot.slane %v1212, 4
      %v1215 = vrot.slane %v248, 5
      %v1216 = vsel %vm1104, %v1214, %v1215
      %s1217 = scalar_lea.vmem %s1, 16
      %v1218 = vld [vmem:[%s1217] sm:$0xf]
      %v1219 = vld [vmem:[%s1217 + $0x4] sm:$0xf]
      %v1220 = vunpack.c.l.b16 %v1108
      %v1221 = vunpack.c.l.b16 %v1111
      %v1222 = vunpack.c.l.b16 %v1115
      %v1223 = vunpack.c.l.b16 %v1118
      %v1224 = vunpack.c.l.b16 %v1122
      %v1225 = vunpack.c.l.b16 %v1125
      %v1226 = vunpack.c.l.b16 %v1129
      %v1227 = vunpack.c.l.b16 %v1132
      %v1228 = vunpack.c.l.b16 %v1136
      %v1229 = vunpack.c.l.b16 %v1139
      %v1230 = vunpack.c.l.b16 %v1143
      %v1231 = vunpack.c.l.b16 %v1146
      %v1232 = vunpack.c.l.b16 %v1150
      %v1233 = vunpack.c.l.b16 %v1153
      %v1234 = vunpack.c.l.b16 %v1157
      %v1235 = vunpack.c.l.b16 %v1160
      %v1236 = vunpack.c.l.b16 %v1164
      %v1237 = vunpack.c.l.b16 %v1167
      %v1238 = vunpack.c.l.b16 %v1171
      %v1239 = vunpack.c.l.b16 %v1174
      %v1240 = vunpack.c.l.b16 %v1178
      %v1241 = vunpack.c.l.b16 %v1181
      %v1242 = vunpack.c.l.b16 %v1185
      %v1243 = vunpack.c.l.b16 %v1188
      %v1244 = vunpack.c.l.b16 %v1192
      %v1245 = vunpack.c.l.b16 %v1195
      %v1246 = vunpack.c.l.b16 %v1199
      %v1247 = vunpack.c.l.b16 %v1202
      %v1248 = vunpack.c.l.b16 %v1206
      %v1249 = vunpack.c.l.b16 %v1209
      %v1250 = vunpack.c.l.b16 %v1213
      %v1251 = vunpack.c.l.b16 %v1216
      %v1252 = vpack.c.b16 %v1221, %v1220
      %v1253 = vpack.c.b16 %v1223, %v1222
      %v1254 = vpack.c.b16 %v1225, %v1224
      %v1255 = vpack.c.b16 %v1227, %v1226
      %v1256 = vpack.c.b16 %v1229, %v1228
      %v1257 = vpack.c.b16 %v1231, %v1230
      %v1258 = vpack.c.b16 %v1233, %v1232
      %v1259 = vpack.c.b16 %v1235, %v1234
      %v1260 = vpack.c.b16 %v1237, %v1236
      %v1261 = vpack.c.b16 %v1239, %v1238
      %v1262 = vpack.c.b16 %v1241, %v1240
      %v1263 = vpack.c.b16 %v1243, %v1242
      %v1264 = vpack.c.b16 %v1245, %v1244
      %v1265 = vpack.c.b16 %v1247, %v1246
      %v1266 = vpack.c.b16 %v1249, %v1248
      %v1267 = vpack.c.b16 %v1251, %v1250
      %v1270 = vunpack.c.l.b16 %v1218
      %v1271 = vunpack.c.l.b16 %v1219
      %v1272 = vpack.c.b16 %v1271, %v1270
      %v1275 = vsel %vm693, %v1252, 0
      %v1278 = vsel %vm693, %v1253, 0
      %v1281 = vsel %vm693, %v1254, 0
      %v1284 = vsel %vm693, %v1255, 0
      %v1287 = vsel %vm693, %v1256, 0
      %v1290 = vsel %vm693, %v1257, 0
      %v1293 = vsel %vm693, %v1258, 0
      %v1296 = vsel %vm693, %v1259, 0
      %v1299 = vsel %vm693, %v1260, 0
      %v1302 = vsel %vm693, %v1261, 0
      %v1305 = vsel %vm693, %v1262, 0
      %v1308 = vsel %vm693, %v1263, 0
      %v1311 = vsel %vm693, %v1264, 0
      %v1314 = vsel %vm693, %v1265, 0
      %v1317 = vsel %vm693, %v1266, 0
      %v1320 = vsel %vm693, %v1267, 0
      %1322 = vmatpush.bf16.msra.mxu0 0
      %1323 = vmatpush.bf16.msra.mxu0 0
      %1324 = vmatpush.bf16.msra.mxu0 0
      %1325 = vmatpush.bf16.msra.mxu0 0
      %1326 = vmatpush.bf16.msra.mxu0 0
      %1327 = vmatpush.bf16.msra.mxu0 0
      %1328 = vmatpush.bf16.msra.mxu0 0
      %1329 = vmatpush.bf16.msra.mxu0 %v1272
      %1330 = vmatmul.bf16.gmra.mxu0 %v1275
      %v1331 = vpop.f32.mrf.mxu0
      %v1332 = vadd.f32 0.0, %v1331
      %v1333 = vpop.f32.mrf.mxu0
      %v1334 = vadd.f32 0.0, %v1333
      %1335 = vmatmul.bf16.gmra.mxu0 %v1278
      %v1336 = vpop.f32.mrf.mxu0
      %v1337 = vadd.f32 0.0, %v1336
      %v1338 = vpop.f32.mrf.mxu0
      %v1339 = vadd.f32 0.0, %v1338
      %1340 = vmatmul.bf16.gmra.mxu0 %v1281
      %v1341 = vpop.f32.mrf.mxu0
      %v1342 = vadd.f32 0.0, %v1341
      %v1343 = vpop.f32.mrf.mxu0
      %v1344 = vadd.f32 0.0, %v1343
      %1345 = vmatmul.bf16.gmra.mxu0 %v1284
      %v1346 = vpop.f32.mrf.mxu0
      %v1347 = vadd.f32 0.0, %v1346
      %v1348 = vpop.f32.mrf.mxu0
      %v1349 = vadd.f32 0.0, %v1348
      %1350 = vmatmul.bf16.gmra.mxu0 %v1287
      %v1351 = vpop.f32.mrf.mxu0
      %v1352 = vadd.f32 0.0, %v1351
      %v1353 = vpop.f32.mrf.mxu0
      %v1354 = vadd.f32 0.0, %v1353
      %1355 = vmatmul.bf16.gmra.mxu0 %v1290
      %v1356 = vpop.f32.mrf.mxu0
      %v1357 = vadd.f32 0.0, %v1356
      %v1358 = vpop.f32.mrf.mxu0
      %v1359 = vadd.f32 0.0, %v1358
      %1360 = vmatmul.bf16.gmra.mxu0 %v1293
      %v1361 = vpop.f32.mrf.mxu0
      %v1362 = vadd.f32 0.0, %v1361
      %v1363 = vpop.f32.mrf.mxu0
      %v1364 = vadd.f32 0.0, %v1363
      %1365 = vmatmul.bf16.gmra.mxu0 %v1296
      %v1366 = vpop.f32.mrf.mxu0
      %v1367 = vadd.f32 0.0, %v1366
      %v1368 = vpop.f32.mrf.mxu0
      %v1369 = vadd.f32 0.0, %v1368
      %1370 = vmatmul.bf16.gmra.mxu0 %v1299
      %v1371 = vpop.f32.mrf.mxu0
      %v1372 = vadd.f32 0.0, %v1371
      %v1373 = vpop.f32.mrf.mxu0
      %v1374 = vadd.f32 0.0, %v1373
      %1375 = vmatmul.bf16.gmra.mxu0 %v1302
      %v1376 = vpop.f32.mrf.mxu0
      %v1377 = vadd.f32 0.0, %v1376
      %v1378 = vpop.f32.mrf.mxu0
      %v1379 = vadd.f32 0.0, %v1378
      %1380 = vmatmul.bf16.gmra.mxu0 %v1305
      %v1381 = vpop.f32.mrf.mxu0
      %v1382 = vadd.f32 0.0, %v1381
      %v1383 = vpop.f32.mrf.mxu0
      %v1384 = vadd.f32 0.0, %v1383
      %1385 = vmatmul.bf16.gmra.mxu0 %v1308
      %v1386 = vpop.f32.mrf.mxu0
      %v1387 = vadd.f32 0.0, %v1386
      %v1388 = vpop.f32.mrf.mxu0
      %v1389 = vadd.f32 0.0, %v1388
      %1390 = vmatmul.bf16.gmra.mxu0 %v1311
      %v1391 = vpop.f32.mrf.mxu0
      %v1392 = vadd.f32 0.0, %v1391
      %v1393 = vpop.f32.mrf.mxu0
      %v1394 = vadd.f32 0.0, %v1393
      %1395 = vmatmul.bf16.gmra.mxu0 %v1314
      %v1396 = vpop.f32.mrf.mxu0
      %v1397 = vadd.f32 0.0, %v1396
      %v1398 = vpop.f32.mrf.mxu0
      %v1399 = vadd.f32 0.0, %v1398
      %1400 = vmatmul.bf16.gmra.mxu0 %v1317
      %v1401 = vpop.f32.mrf.mxu0
      %v1402 = vadd.f32 0.0, %v1401
      %v1403 = vpop.f32.mrf.mxu0
      %v1404 = vadd.f32 0.0, %v1403
      %1405 = vmatmul.bf16.gmra.mxu0 %v1320
      %v1406 = vpop.f32.mrf.mxu0
      %v1407 = vadd.f32 0.0, %v1406
      %v1408 = vpop.f32.mrf.mxu0
      %v1409 = vadd.f32 0.0, %v1408
      %1410 = vdwg.mxu0
      %v1411 = vadd.f32 %v975, %v1332
      %v1412 = vadd.f32 %v977, %v1334
      %v1413 = vadd.f32 %v980, %v1337
      %v1414 = vadd.f32 %v982, %v1339
      %v1415 = vadd.f32 %v985, %v1342
      %v1416 = vadd.f32 %v987, %v1344
      %v1417 = vadd.f32 %v990, %v1347
      %v1418 = vadd.f32 %v992, %v1349
      %v1419 = vadd.f32 %v995, %v1352
      %v1420 = vadd.f32 %v997, %v1354
      %v1421 = vadd.f32 %v1000, %v1357
      %v1422 = vadd.f32 %v1002, %v1359
      %v1423 = vadd.f32 %v1005, %v1362
      %v1424 = vadd.f32 %v1007, %v1364
      %v1425 = vadd.f32 %v1010, %v1367
      %v1426 = vadd.f32 %v1012, %v1369
      %v1427 = vadd.f32 %v1015, %v1372
      %v1428 = vadd.f32 %v1017, %v1374
      %v1429 = vadd.f32 %v1020, %v1377
      %v1430 = vadd.f32 %v1022, %v1379
      %v1431 = vadd.f32 %v1025, %v1382
      %v1432 = vadd.f32 %v1027, %v1384
      %v1433 = vadd.f32 %v1030, %v1387
      %v1434 = vadd.f32 %v1032, %v1389
      %v1435 = vadd.f32 %v1035, %v1392
      %v1436 = vadd.f32 %v1037, %v1394
      %v1437 = vadd.f32 %v1040, %v1397
      %v1438 = vadd.f32 %v1042, %v1399
      %v1439 = vadd.f32 %v1045, %v1402
      %v1440 = vadd.f32 %v1047, %v1404
      %v1441 = vadd.f32 %v1050, %v1407
      %v1442 = vadd.f32 %v1052, %v1409
      %s1443 = scalar_lea.vmem %s192, 12
      %v1444 = vld [vmem:[%s1443] sm:$0xf]
      %v1445 = vld [vmem:[%s1443 + $0x4] sm:$0xf]
      %v1446 = vld [vmem:[%s1443 + $0xc] sm:$0xf]
      %v1447 = vld [vmem:[%s1443 + $0x10] sm:$0xf]
      %v1448 = vld [vmem:[%s1443 + $0x18] sm:$0xf]
      %v1449 = vld [vmem:[%s1443 + $0x1c] sm:$0xf]
      %v1450 = vld [vmem:[%s1443 + $0x24] sm:$0xf]
      %v1451 = vld [vmem:[%s1443 + $0x28] sm:$0xf]
      %v1452 = vld [vmem:[%s1443 + $0x30] sm:$0xf]
      %v1453 = vld [vmem:[%s1443 + $0x34] sm:$0xf]
      %v1454 = vld [vmem:[%s1443 + $0x3c] sm:$0xf]
      %v1455 = vld [vmem:[%s1443 + $0x40] sm:$0xf]
      %v1456 = vld [vmem:[%s1443 + $0x48] sm:$0xf]
      %v1457 = vld [vmem:[%s1443 + $0x4c] sm:$0xf]
      %v1458 = vld [vmem:[%s1443 + $0x54] sm:$0xf]
      %v1459 = vld [vmem:[%s1443 + $0x58] sm:$0xf]
      %v1460 = vld [vmem:[%s1443 + $0x60] sm:$0xf]
      %v1461 = vld [vmem:[%s1443 + $0x64] sm:$0xf]
      %v1462 = vld [vmem:[%s1443 + $0x6c] sm:$0xf]
      %v1463 = vld [vmem:[%s1443 + $0x70] sm:$0xf]
      %v1464 = vld [vmem:[%s1443 + $0x78] sm:$0xf]
      %v1465 = vld [vmem:[%s1443 + $0x7c] sm:$0xf]
      %v1466 = vld [vmem:[%s1443 + $0x84] sm:$0xf]
      %v1467 = vld [vmem:[%s1443 + $0x88] sm:$0xf]
      %v1468 = vld [vmem:[%s1443 + $0x90] sm:$0xf]
      %v1469 = vld [vmem:[%s1443 + $0x94] sm:$0xf]
      %v1470 = vld [vmem:[%s1443 + $0x9c] sm:$0xf]
      %v1471 = vld [vmem:[%s1443 + $0xa0] sm:$0xf]
      %v1472 = vld [vmem:[%s1443 + $0xa8] sm:$0xf]
      %v1473 = vld [vmem:[%s1443 + $0xac] sm:$0xf]
      %v1474 = vld [vmem:[%s1443 + $0xb4] sm:$0xf]
      %v1475 = vld [vmem:[%s1443 + $0xb8] sm:$0xf]
      %s1476 = scalar_lea.vmem %s1, 24
      %v1477 = vld [vmem:[%s1476] sm:$0xf]
      %v1478 = vld [vmem:[%s1476 + $0x4] sm:$0xf]
      %v1511 = vunpack.c.l.b16 %v1444
      %v1512 = vunpack.c.l.b16 %v1445
      %v1513 = vunpack.c.l.b16 %v1446
      %v1514 = vunpack.c.l.b16 %v1447
      %v1515 = vunpack.c.l.b16 %v1448
      %v1516 = vunpack.c.l.b16 %v1449
      %v1517 = vunpack.c.l.b16 %v1450
      %v1518 = vunpack.c.l.b16 %v1451
      %v1519 = vunpack.c.l.b16 %v1452
      %v1520 = vunpack.c.l.b16 %v1453
      %v1521 = vunpack.c.l.b16 %v1454
      %v1522 = vunpack.c.l.b16 %v1455
      %v1523 = vunpack.c.l.b16 %v1456
      %v1524 = vunpack.c.l.b16 %v1457
      %v1525 = vunpack.c.l.b16 %v1458
      %v1526 = vunpack.c.l.b16 %v1459
      %v1527 = vunpack.c.l.b16 %v1460
      %v1528 = vunpack.c.l.b16 %v1461
      %v1529 = vunpack.c.l.b16 %v1462
      %v1530 = vunpack.c.l.b16 %v1463
      %v1531 = vunpack.c.l.b16 %v1464
      %v1532 = vunpack.c.l.b16 %v1465
      %v1533 = vunpack.c.l.b16 %v1466
      %v1534 = vunpack.c.l.b16 %v1467
      %v1535 = vunpack.c.l.b16 %v1468
      %v1536 = vunpack.c.l.b16 %v1469
      %v1537 = vunpack.c.l.b16 %v1470
      %v1538 = vunpack.c.l.b16 %v1471
      %v1539 = vunpack.c.l.b16 %v1472
      %v1540 = vunpack.c.l.b16 %v1473
      %v1541 = vunpack.c.l.b16 %v1474
      %v1542 = vunpack.c.l.b16 %v1475
      %v1543 = vpack.c.b16 %v1512, %v1511
      %v1544 = vpack.c.b16 %v1514, %v1513
      %v1545 = vpack.c.b16 %v1516, %v1515
      %v1546 = vpack.c.b16 %v1518, %v1517
      %v1547 = vpack.c.b16 %v1520, %v1519
      %v1548 = vpack.c.b16 %v1522, %v1521
      %v1549 = vpack.c.b16 %v1524, %v1523
      %v1550 = vpack.c.b16 %v1526, %v1525
      %v1551 = vpack.c.b16 %v1528, %v1527
      %v1552 = vpack.c.b16 %v1530, %v1529
      %v1553 = vpack.c.b16 %v1532, %v1531
      %v1554 = vpack.c.b16 %v1534, %v1533
      %v1555 = vpack.c.b16 %v1536, %v1535
      %v1556 = vpack.c.b16 %v1538, %v1537
      %v1557 = vpack.c.b16 %v1540, %v1539
      %v1558 = vpack.c.b16 %v1542, %v1541
      %v1561 = vunpack.c.l.b16 %v1477
      %v1562 = vunpack.c.l.b16 %v1478
      %v1563 = vpack.c.b16 %v1562, %v1561
      %v1566 = vsel %vm693, %v1543, 0
      %v1569 = vsel %vm693, %v1544, 0
      %v1572 = vsel %vm693, %v1545, 0
      %v1575 = vsel %vm693, %v1546, 0
      %v1578 = vsel %vm693, %v1547, 0
      %v1581 = vsel %vm693, %v1548, 0
      %v1584 = vsel %vm693, %v1549, 0
      %v1587 = vsel %vm693, %v1550, 0
      %v1590 = vsel %vm693, %v1551, 0
      %v1593 = vsel %vm693, %v1552, 0
      %v1596 = vsel %vm693, %v1553, 0
      %v1599 = vsel %vm693, %v1554, 0
      %v1602 = vsel %vm693, %v1555, 0
      %v1605 = vsel %vm693, %v1556, 0
      %v1608 = vsel %vm693, %v1557, 0
      %v1611 = vsel %vm693, %v1558, 0
      %1613 = vmatpush.bf16.msra.mxu0 0
      %1614 = vmatpush.bf16.msra.mxu0 0
      %1615 = vmatpush.bf16.msra.mxu0 0
      %1616 = vmatpush.bf16.msra.mxu0 0
      %1617 = vmatpush.bf16.msra.mxu0 0
      %1618 = vmatpush.bf16.msra.mxu0 0
      %1619 = vmatpush.bf16.msra.mxu0 0
      %1620 = vmatpush.bf16.msra.mxu0 %v1563
      %1621 = vmatmul.bf16.gmra.mxu0 %v1566
      %v1622 = vpop.f32.mrf.mxu0
      %v1623 = vadd.f32 0.0, %v1622
      %v1624 = vpop.f32.mrf.mxu0
      %v1625 = vadd.f32 0.0, %v1624
      %1626 = vmatmul.bf16.gmra.mxu0 %v1569
      %v1627 = vpop.f32.mrf.mxu0
      %v1628 = vadd.f32 0.0, %v1627
      %v1629 = vpop.f32.mrf.mxu0
      %v1630 = vadd.f32 0.0, %v1629
      %1631 = vmatmul.bf16.gmra.mxu0 %v1572
      %v1632 = vpop.f32.mrf.mxu0
      %v1633 = vadd.f32 0.0, %v1632
      %v1634 = vpop.f32.mrf.mxu0
      %v1635 = vadd.f32 0.0, %v1634
      %1636 = vmatmul.bf16.gmra.mxu0 %v1575
      %v1637 = vpop.f32.mrf.mxu0
      %v1638 = vadd.f32 0.0, %v1637
      %v1639 = vpop.f32.mrf.mxu0
      %v1640 = vadd.f32 0.0, %v1639
      %1641 = vmatmul.bf16.gmra.mxu0 %v1578
      %v1642 = vpop.f32.mrf.mxu0
      %v1643 = vadd.f32 0.0, %v1642
      %v1644 = vpop.f32.mrf.mxu0
      %v1645 = vadd.f32 0.0, %v1644
      %1646 = vmatmul.bf16.gmra.mxu0 %v1581
      %v1647 = vpop.f32.mrf.mxu0
      %v1648 = vadd.f32 0.0, %v1647
      %v1649 = vpop.f32.mrf.mxu0
      %v1650 = vadd.f32 0.0, %v1649
      %1651 = vmatmul.bf16.gmra.mxu0 %v1584
      %v1652 = vpop.f32.mrf.mxu0
      %v1653 = vadd.f32 0.0, %v1652
      %v1654 = vpop.f32.mrf.mxu0
      %v1655 = vadd.f32 0.0, %v1654
      %1656 = vmatmul.bf16.gmra.mxu0 %v1587
      %v1657 = vpop.f32.mrf.mxu0
      %v1658 = vadd.f32 0.0, %v1657
      %v1659 = vpop.f32.mrf.mxu0
      %v1660 = vadd.f32 0.0, %v1659
      %1661 = vmatmul.bf16.gmra.mxu0 %v1590
      %v1662 = vpop.f32.mrf.mxu0
      %v1663 = vadd.f32 0.0, %v1662
      %v1664 = vpop.f32.mrf.mxu0
      %v1665 = vadd.f32 0.0, %v1664
      %1666 = vmatmul.bf16.gmra.mxu0 %v1593
      %v1667 = vpop.f32.mrf.mxu0
      %v1668 = vadd.f32 0.0, %v1667
      %v1669 = vpop.f32.mrf.mxu0
      %v1670 = vadd.f32 0.0, %v1669
      %1671 = vmatmul.bf16.gmra.mxu0 %v1596
      %v1672 = vpop.f32.mrf.mxu0
      %v1673 = vadd.f32 0.0, %v1672
      %v1674 = vpop.f32.mrf.mxu0
      %v1675 = vadd.f32 0.0, %v1674
      %1676 = vmatmul.bf16.gmra.mxu0 %v1599
      %v1677 = vpop.f32.mrf.mxu0
      %v1678 = vadd.f32 0.0, %v1677
      %v1679 = vpop.f32.mrf.mxu0
      %v1680 = vadd.f32 0.0, %v1679
      %1681 = vmatmul.bf16.gmra.mxu0 %v1602
      %v1682 = vpop.f32.mrf.mxu0
      %v1683 = vadd.f32 0.0, %v1682
      %v1684 = vpop.f32.mrf.mxu0
      %v1685 = vadd.f32 0.0, %v1684
      %1686 = vmatmul.bf16.gmra.mxu0 %v1605
      %v1687 = vpop.f32.mrf.mxu0
      %v1688 = vadd.f32 0.0, %v1687
      %v1689 = vpop.f32.mrf.mxu0
      %v1690 = vadd.f32 0.0, %v1689
      %1691 = vmatmul.bf16.gmra.mxu0 %v1608
      %v1692 = vpop.f32.mrf.mxu0
      %v1693 = vadd.f32 0.0, %v1692
      %v1694 = vpop.f32.mrf.mxu0
      %v1695 = vadd.f32 0.0, %v1694
      %1696 = vmatmul.bf16.gmra.mxu0 %v1611
      %v1697 = vpop.f32.mrf.mxu0
      %v1698 = vadd.f32 0.0, %v1697
      %v1699 = vpop.f32.mrf.mxu0
      %v1700 = vadd.f32 0.0, %v1699
      %1701 = vdwg.mxu0
      %v1702 = vadd.f32 %v1411, %v1623
      %v1703 = vadd.f32 %v1412, %v1625
      %v1704 = vadd.f32 %v1413, %v1628
      %v1705 = vadd.f32 %v1414, %v1630
      %v1706 = vadd.f32 %v1415, %v1633
      %v1707 = vadd.f32 %v1416, %v1635
      %v1708 = vadd.f32 %v1417, %v1638
      %v1709 = vadd.f32 %v1418, %v1640
      %v1710 = vadd.f32 %v1419, %v1643
      %v1711 = vadd.f32 %v1420, %v1645
      %v1712 = vadd.f32 %v1421, %v1648
      %v1713 = vadd.f32 %v1422, %v1650
      %v1714 = vadd.f32 %v1423, %v1653
      %v1715 = vadd.f32 %v1424, %v1655
      %v1716 = vadd.f32 %v1425, %v1658
      %v1717 = vadd.f32 %v1426, %v1660
      %v1718 = vadd.f32 %v1427, %v1663
      %v1719 = vadd.f32 %v1428, %v1665
      %v1720 = vadd.f32 %v1429, %v1668
      %v1721 = vadd.f32 %v1430, %v1670
      %v1722 = vadd.f32 %v1431, %v1673
      %v1723 = vadd.f32 %v1432, %v1675
      %v1724 = vadd.f32 %v1433, %v1678
      %v1725 = vadd.f32 %v1434, %v1680
      %v1726 = vadd.f32 %v1435, %v1683
      %v1727 = vadd.f32 %v1436, %v1685
      %v1728 = vadd.f32 %v1437, %v1688
      %v1729 = vadd.f32 %v1438, %v1690
      %v1730 = vadd.f32 %v1439, %v1693
      %v1731 = vadd.f32 %v1440, %v1695
      %v1732 = vadd.f32 %v1441, %v1698
      %v1733 = vadd.f32 %v1442, %v1700
      %v1734 = vld [vmem:[%s1443] sm:$0xf]
      %v1735 = vld [vmem:[%s1443 + $0x4] sm:$0xf]
      %v1736 = vld [vmem:[%s1443 + $0x8] sm:$0x1]
      %v1737 = vld [vmem:[%s1443 + $0xc] sm:$0xf]
      %v1738 = vld [vmem:[%s1443 + $0x10] sm:$0xf]
      %v1739 = vld [vmem:[%s1443 + $0x14] sm:$0x1]
      %v1740 = vld [vmem:[%s1443 + $0x18] sm:$0xf]
      %v1741 = vld [vmem:[%s1443 + $0x1c] sm:$0xf]
      %v1742 = vld [vmem:[%s1443 + $0x20] sm:$0x1]
      %v1743 = vld [vmem:[%s1443 + $0x24] sm:$0xf]
      %v1744 = vld [vmem:[%s1443 + $0x28] sm:$0xf]
      %v1745 = vld [vmem:[%s1443 + $0x2c] sm:$0x1]
      %v1746 = vld [vmem:[%s1443 + $0x30] sm:$0xf]
      %v1747 = vld [vmem:[%s1443 + $0x34] sm:$0xf]
      %v1748 = vld [vmem:[%s1443 + $0x38] sm:$0x1]
      %v1749 = vld [vmem:[%s1443 + $0x3c] sm:$0xf]
      %v1750 = vld [vmem:[%s1443 + $0x40] sm:$0xf]
      %v1751 = vld [vmem:[%s1443 + $0x44] sm:$0x1]
      %v1752 = vld [vmem:[%s1443 + $0x48] sm:$0xf]
      %v1753 = vld [vmem:[%s1443 + $0x4c] sm:$0xf]
      %v1754 = vld [vmem:[%s1443 + $0x50] sm:$0x1]
      %v1755 = vld [vmem:[%s1443 + $0x54] sm:$0xf]
      %v1756 = vld [vmem:[%s1443 + $0x58] sm:$0xf]
      %v1757 = vld [vmem:[%s1443 + $0x5c] sm:$0x1]
      %v1758 = vld [vmem:[%s1443 + $0x60] sm:$0xf]
      %v1759 = vld [vmem:[%s1443 + $0x64] sm:$0xf]
      %v1760 = vld [vmem:[%s1443 + $0x68] sm:$0x1]
      %v1761 = vld [vmem:[%s1443 + $0x6c] sm:$0xf]
      %v1762 = vld [vmem:[%s1443 + $0x70] sm:$0xf]
      %v1763 = vld [vmem:[%s1443 + $0x74] sm:$0x1]
      %v1764 = vld [vmem:[%s1443 + $0x78] sm:$0xf]
      %v1765 = vld [vmem:[%s1443 + $0x7c] sm:$0xf]
      %v1766 = vld [vmem:[%s1443 + $0x80] sm:$0x1]
      %v1767 = vld [vmem:[%s1443 + $0x84] sm:$0xf]
      %v1768 = vld [vmem:[%s1443 + $0x88] sm:$0xf]
      %v1769 = vld [vmem:[%s1443 + $0x8c] sm:$0x1]
      %v1770 = vld [vmem:[%s1443 + $0x90] sm:$0xf]
      %v1771 = vld [vmem:[%s1443 + $0x94] sm:$0xf]
      %v1772 = vld [vmem:[%s1443 + $0x98] sm:$0x1]
      %v1773 = vld [vmem:[%s1443 + $0x9c] sm:$0xf]
      %v1774 = vld [vmem:[%s1443 + $0xa0] sm:$0xf]
      %v1775 = vld [vmem:[%s1443 + $0xa4] sm:$0x1]
      %v1776 = vld [vmem:[%s1443 + $0xa8] sm:$0xf]
      %v1777 = vld [vmem:[%s1443 + $0xac] sm:$0xf]
      %v1778 = vld [vmem:[%s1443 + $0xb0] sm:$0x1]
      %v1779 = vld [vmem:[%s1443 + $0xb4] sm:$0xf]
      %v1780 = vld [vmem:[%s1443 + $0xb8] sm:$0xf]
      %v1781 = vld [vmem:[%s1443 + $0xbc] sm:$0x1]
      %v1783 = vshrl.u32 %v1734, 16
      %v1785 = vrot.slane %v1783, 4
      %v1786 = vshll.u32 %v1734, 16
      %v1788 = vrot.slane %v1786, 5
      %v1789 = vor.u32 %v1785, %v1788
      %v1790 = vrot.slane %v1789, 4
      %v1792 = vshll.u32 %v1735, 16
      %v1794 = vrot.slane %v1792, 5
      %v1795 = vsel %vm251, %v1790, %v1794
      %v1796 = vshrl.u32 %v1735, 16
      %v1798 = vrot.slane %v1796, 4
      %v1799 = vor.u32 %v1798, %v1794
      %v1800 = vrot.slane %v1799, 4
      %v1802 = vshll.u32 %v1736, 16
      %v1804 = vrot.slane %v1802, 5
      %v1805 = vsel %vm251, %v1800, %v1804
      %v1807 = vshrl.u32 %v1737, 16
      %v1809 = vrot.slane %v1807, 4
      %v1810 = vshll.u32 %v1737, 16
      %v1812 = vrot.slane %v1810, 5
      %v1813 = vor.u32 %v1809, %v1812
      %v1814 = vrot.slane %v1813, 4
      %v1816 = vshll.u32 %v1738, 16
      %v1818 = vrot.slane %v1816, 5
      %v1819 = vsel %vm251, %v1814, %v1818
      %v1820 = vshrl.u32 %v1738, 16
      %v1822 = vrot.slane %v1820, 4
      %v1823 = vor.u32 %v1822, %v1818
      %v1824 = vrot.slane %v1823, 4
      %v1826 = vshll.u32 %v1739, 16
      %v1828 = vrot.slane %v1826, 5
      %v1829 = vsel %vm251, %v1824, %v1828
      %v1831 = vshrl.u32 %v1740, 16
      %v1833 = vrot.slane %v1831, 4
      %v1834 = vshll.u32 %v1740, 16
      %v1836 = vrot.slane %v1834, 5
      %v1837 = vor.u32 %v1833, %v1836
      %v1838 = vrot.slane %v1837, 4
      %v1840 = vshll.u32 %v1741, 16
      %v1842 = vrot.slane %v1840, 5
      %v1843 = vsel %vm251, %v1838, %v1842
      %v1844 = vshrl.u32 %v1741, 16
      %v1846 = vrot.slane %v1844, 4
      %v1847 = vor.u32 %v1846, %v1842
      %v1848 = vrot.slane %v1847, 4
      %v1850 = vshll.u32 %v1742, 16
      %v1852 = vrot.slane %v1850, 5
      %v1853 = vsel %vm251, %v1848, %v1852
      %v1855 = vshrl.u32 %v1743, 16
      %v1857 = vrot.slane %v1855, 4
      %v1858 = vshll.u32 %v1743, 16
      %v1860 = vrot.slane %v1858, 5
      %v1861 = vor.u32 %v1857, %v1860
      %v1862 = vrot.slane %v1861, 4
      %v1864 = vshll.u32 %v1744, 16
      %v1866 = vrot.slane %v1864, 5
      %v1867 = vsel %vm251, %v1862, %v1866
      %v1868 = vshrl.u32 %v1744, 16
      %v1870 = vrot.slane %v1868, 4
      %v1871 = vor.u32 %v1870, %v1866
      %v1872 = vrot.slane %v1871, 4
      %v1874 = vshll.u32 %v1745, 16
      %v1876 = vrot.slane %v1874, 5
      %v1877 = vsel %vm251, %v1872, %v1876
      %v1879 = vshrl.u32 %v1746, 16
      %v1881 = vrot.slane %v1879, 4
      %v1882 = vshll.u32 %v1746, 16
      %v1884 = vrot.slane %v1882, 5
      %v1885 = vor.u32 %v1881, %v1884
      %v1886 = vrot.slane %v1885, 4
      %v1888 = vshll.u32 %v1747, 16
      %v1890 = vrot.slane %v1888, 5
      %v1891 = vsel %vm251, %v1886, %v1890
      %v1892 = vshrl.u32 %v1747, 16
      %v1894 = vrot.slane %v1892, 4
      %v1895 = vor.u32 %v1894, %v1890
      %v1896 = vrot.slane %v1895, 4
      %v1898 = vshll.u32 %v1748, 16
      %v1900 = vrot.slane %v1898, 5
      %v1901 = vsel %vm251, %v1896, %v1900
      %v1903 = vshrl.u32 %v1749, 16
      %v1905 = vrot.slane %v1903, 4
      %v1906 = vshll.u32 %v1749, 16
      %v1908 = vrot.slane %v1906, 5
      %v1909 = vor.u32 %v1905, %v1908
      %v1910 = vrot.slane %v1909, 4
      %v1912 = vshll.u32 %v1750, 16
      %v1914 = vrot.slane %v1912, 5
      %v1915 = vsel %vm251, %v1910, %v1914
      %v1916 = vshrl.u32 %v1750, 16
      %v1918 = vrot.slane %v1916, 4
      %v1919 = vor.u32 %v1918, %v1914
      %v1920 = vrot.slane %v1919, 4
      %v1922 = vshll.u32 %v1751, 16
      %v1924 = vrot.slane %v1922, 5
      %v1925 = vsel %vm251, %v1920, %v1924
      %v1927 = vshrl.u32 %v1752, 16
      %v1929 = vrot.slane %v1927, 4
      %v1930 = vshll.u32 %v1752, 16
      %v1932 = vrot.slane %v1930, 5
      %v1933 = vor.u32 %v1929, %v1932
      %v1934 = vrot.slane %v1933, 4
      %v1936 = vshll.u32 %v1753, 16
      %v1938 = vrot.slane %v1936, 5
      %v1939 = vsel %vm251, %v1934, %v1938
      %v1940 = vshrl.u32 %v1753, 16
      %v1942 = vrot.slane %v1940, 4
      %v1943 = vor.u32 %v1942, %v1938
      %v1944 = vrot.slane %v1943, 4
      %v1946 = vshll.u32 %v1754, 16
      %v1948 = vrot.slane %v1946, 5
      %v1949 = vsel %vm251, %v1944, %v1948
      %v1951 = vshrl.u32 %v1755, 16
      %v1953 = vrot.slane %v1951, 4
      %v1954 = vshll.u32 %v1755, 16
      %v1956 = vrot.slane %v1954, 5
      %v1957 = vor.u32 %v1953, %v1956
      %v1958 = vrot.slane %v1957, 4
      %v1960 = vshll.u32 %v1756, 16
      %v1962 = vrot.slane %v1960, 5
      %v1963 = vsel %vm251, %v1958, %v1962
      %v1964 = vshrl.u32 %v1756, 16
      %v1966 = vrot.slane %v1964, 4
      %v1967 = vor.u32 %v1966, %v1962
      %v1968 = vrot.slane %v1967, 4
      %v1970 = vshll.u32 %v1757, 16
      %v1972 = vrot.slane %v1970, 5
      %v1973 = vsel %vm251, %v1968, %v1972
      %v1975 = vshrl.u32 %v1758, 16
      %v1977 = vrot.slane %v1975, 4
      %v1978 = vshll.u32 %v1758, 16
      %v1980 = vrot.slane %v1978, 5
      %v1981 = vor.u32 %v1977, %v1980
      %v1982 = vrot.slane %v1981, 4
      %v1984 = vshll.u32 %v1759, 16
      %v1986 = vrot.slane %v1984, 5
      %v1987 = vsel %vm251, %v1982, %v1986
      %v1988 = vshrl.u32 %v1759, 16
      %v1990 = vrot.slane %v1988, 4
      %v1991 = vor.u32 %v1990, %v1986
      %v1992 = vrot.slane %v1991, 4
      %v1994 = vshll.u32 %v1760, 16
      %v1996 = vrot.slane %v1994, 5
      %v1997 = vsel %vm251, %v1992, %v1996
      %v1999 = vshrl.u32 %v1761, 16
      %v2001 = vrot.slane %v1999, 4
      %v2002 = vshll.u32 %v1761, 16
      %v2004 = vrot.slane %v2002, 5
      %v2005 = vor.u32 %v2001, %v2004
      %v2006 = vrot.slane %v2005, 4
      %v2008 = vshll.u32 %v1762, 16
      %v2010 = vrot.slane %v2008, 5
      %v2011 = vsel %vm251, %v2006, %v2010
      %v2012 = vshrl.u32 %v1762, 16
      %v2014 = vrot.slane %v2012, 4
      %v2015 = vor.u32 %v2014, %v2010
      %v2016 = vrot.slane %v2015, 4
      %v2018 = vshll.u32 %v1763, 16
      %v2020 = vrot.slane %v2018, 5
      %v2021 = vsel %vm251, %v2016, %v2020
      %v2023 = vshrl.u32 %v1764, 16
      %v2025 = vrot.slane %v2023, 4
      %v2026 = vshll.u32 %v1764, 16
      %v2028 = vrot.slane %v2026, 5
      %v2029 = vor.u32 %v2025, %v2028
      %v2030 = vrot.slane %v2029, 4
      %v2032 = vshll.u32 %v1765, 16
      %v2034 = vrot.slane %v2032, 5
      %v2035 = vsel %vm251, %v2030, %v2034
      %v2036 = vshrl.u32 %v1765, 16
      %v2038 = vrot.slane %v2036, 4
      %v2039 = vor.u32 %v2038, %v2034
      %v2040 = vrot.slane %v2039, 4
      %v2042 = vshll.u32 %v1766, 16
      %v2044 = vrot.slane %v2042, 5
      %v2045 = vsel %vm251, %v2040, %v2044
      %v2047 = vshrl.u32 %v1767, 16
      %v2049 = vrot.slane %v2047, 4
      %v2050 = vshll.u32 %v1767, 16
      %v2052 = vrot.slane %v2050, 5
      %v2053 = vor.u32 %v2049, %v2052
      %v2054 = vrot.slane %v2053, 4
      %v2056 = vshll.u32 %v1768, 16
      %v2058 = vrot.slane %v2056, 5
      %v2059 = vsel %vm251, %v2054, %v2058
      %v2060 = vshrl.u32 %v1768, 16
      %v2062 = vrot.slane %v2060, 4
      %v2063 = vor.u32 %v2062, %v2058
      %v2064 = vrot.slane %v2063, 4
      %v2066 = vshll.u32 %v1769, 16
      %v2068 = vrot.slane %v2066, 5
      %v2069 = vsel %vm251, %v2064, %v2068
      %v2071 = vshrl.u32 %v1770, 16
      %v2073 = vrot.slane %v2071, 4
      %v2074 = vshll.u32 %v1770, 16
      %v2076 = vrot.slane %v2074, 5
      %v2077 = vor.u32 %v2073, %v2076
      %v2078 = vrot.slane %v2077, 4
      %v2080 = vshll.u32 %v1771, 16
      %v2082 = vrot.slane %v2080, 5
      %v2083 = vsel %vm251, %v2078, %v2082
      %v2084 = vshrl.u32 %v1771, 16
      %v2086 = vrot.slane %v2084, 4
      %v2087 = vor.u32 %v2086, %v2082
      %v2088 = vrot.slane %v2087, 4
      %v2090 = vshll.u32 %v1772, 16
      %v2092 = vrot.slane %v2090, 5
      %v2093 = vsel %vm251, %v2088, %v2092
      %v2095 = vshrl.u32 %v1773, 16
      %v2097 = vrot.slane %v2095, 4
      %v2098 = vshll.u32 %v1773, 16
      %v2100 = vrot.slane %v2098, 5
      %v2101 = vor.u32 %v2097, %v2100
      %v2102 = vrot.slane %v2101, 4
      %v2104 = vshll.u32 %v1774, 16
      %v2106 = vrot.slane %v2104, 5
      %v2107 = vsel %vm251, %v2102, %v2106
      %v2108 = vshrl.u32 %v1774, 16
      %v2110 = vrot.slane %v2108, 4
      %v2111 = vor.u32 %v2110, %v2106
      %v2112 = vrot.slane %v2111, 4
      %v2114 = vshll.u32 %v1775, 16
      %v2116 = vrot.slane %v2114, 5
      %v2117 = vsel %vm251, %v2112, %v2116
      %v2119 = vshrl.u32 %v1776, 16
      %v2121 = vrot.slane %v2119, 4
      %v2122 = vshll.u32 %v1776, 16
      %v2124 = vrot.slane %v2122, 5
      %v2125 = vor.u32 %v2121, %v2124
      %v2126 = vrot.slane %v2125, 4
      %v2128 = vshll.u32 %v1777, 16
      %v2130 = vrot.slane %v2128, 5
      %v2131 = vsel %vm251, %v2126, %v2130
      %v2132 = vshrl.u32 %v1777, 16
      %v2134 = vrot.slane %v2132, 4
      %v2135 = vor.u32 %v2134, %v2130
      %v2136 = vrot.slane %v2135, 4
      %v2138 = vshll.u32 %v1778, 16
      %v2140 = vrot.slane %v2138, 5
      %v2141 = vsel %vm251, %v2136, %v2140
      %v2143 = vshrl.u32 %v1779, 16
      %v2145 = vrot.slane %v2143, 4
      %v2146 = vshll.u32 %v1779, 16
      %v2148 = vrot.slane %v2146, 5
      %v2149 = vor.u32 %v2145, %v2148
      %v2150 = vrot.slane %v2149, 4
      %v2152 = vshll.u32 %v1780, 16
      %v2154 = vrot.slane %v2152, 5
      %v2155 = vsel %vm251, %v2150, %v2154
      %v2156 = vshrl.u32 %v1780, 16
      %v2158 = vrot.slane %v2156, 4
      %v2159 = vor.u32 %v2158, %v2154
      %v2160 = vrot.slane %v2159, 4
      %v2162 = vshll.u32 %v1781, 16
      %v2164 = vrot.slane %v2162, 5
      %v2165 = vsel %vm251, %v2160, %v2164
      %s2166 = scalar_lea.vmem %s1, 32
      %v2167 = vld [vmem:[%s2166] sm:$0xf]
      %v2168 = vld [vmem:[%s2166 + $0x4] sm:$0xf]
      %v2169 = vunpack.c.l.b16 %v1795
      %v2170 = vunpack.c.l.b16 %v1805
      %v2171 = vunpack.c.l.b16 %v1819
      %v2172 = vunpack.c.l.b16 %v1829
      %v2173 = vunpack.c.l.b16 %v1843
      %v2174 = vunpack.c.l.b16 %v1853
      %v2175 = vunpack.c.l.b16 %v1867
      %v2176 = vunpack.c.l.b16 %v1877
      %v2177 = vunpack.c.l.b16 %v1891
      %v2178 = vunpack.c.l.b16 %v1901
      %v2179 = vunpack.c.l.b16 %v1915
      %v2180 = vunpack.c.l.b16 %v1925
      %v2181 = vunpack.c.l.b16 %v1939
      %v2182 = vunpack.c.l.b16 %v1949
      %v2183 = vunpack.c.l.b16 %v1963
      %v2184 = vunpack.c.l.b16 %v1973
      %v2185 = vunpack.c.l.b16 %v1987
      %v2186 = vunpack.c.l.b16 %v1997
      %v2187 = vunpack.c.l.b16 %v2011
      %v2188 = vunpack.c.l.b16 %v2021
      %v2189 = vunpack.c.l.b16 %v2035
      %v2190 = vunpack.c.l.b16 %v2045
      %v2191 = vunpack.c.l.b16 %v2059
      %v2192 = vunpack.c.l.b16 %v2069
      %v2193 = vunpack.c.l.b16 %v2083
      %v2194 = vunpack.c.l.b16 %v2093
      %v2195 = vunpack.c.l.b16 %v2107
      %v2196 = vunpack.c.l.b16 %v2117
      %v2197 = vunpack.c.l.b16 %v2131
      %v2198 = vunpack.c.l.b16 %v2141
      %v2199 = vunpack.c.l.b16 %v2155
      %v2200 = vunpack.c.l.b16 %v2165
      %v2201 = vpack.c.b16 %v2170, %v2169
      %v2202 = vpack.c.b16 %v2172, %v2171
      %v2203 = vpack.c.b16 %v2174, %v2173
      %v2204 = vpack.c.b16 %v2176, %v2175
      %v2205 = vpack.c.b16 %v2178, %v2177
      %v2206 = vpack.c.b16 %v2180, %v2179
      %v2207 = vpack.c.b16 %v2182, %v2181
      %v2208 = vpack.c.b16 %v2184, %v2183
      %v2209 = vpack.c.b16 %v2186, %v2185
      %v2210 = vpack.c.b16 %v2188, %v2187
      %v2211 = vpack.c.b16 %v2190, %v2189
      %v2212 = vpack.c.b16 %v2192, %v2191
      %v2213 = vpack.c.b16 %v2194, %v2193
      %v2214 = vpack.c.b16 %v2196, %v2195
      %v2215 = vpack.c.b16 %v2198, %v2197
      %v2216 = vpack.c.b16 %v2200, %v2199
      %v2219 = vunpack.c.l.b16 %v2167
      %v2220 = vunpack.c.l.b16 %v2168
      %v2221 = vpack.c.b16 %v2220, %v2219
      %v2224 = vsel %vm693, %v2201, 0
      %v2227 = vsel %vm693, %v2202, 0
      %v2230 = vsel %vm693, %v2203, 0
      %v2233 = vsel %vm693, %v2204, 0
      %v2236 = vsel %vm693, %v2205, 0
      %v2239 = vsel %vm693, %v2206, 0
      %v2242 = vsel %vm693, %v2207, 0
      %v2245 = vsel %vm693, %v2208, 0
      %v2248 = vsel %vm693, %v2209, 0
      %v2251 = vsel %vm693, %v2210, 0
      %v2254 = vsel %vm693, %v2211, 0
      %v2257 = vsel %vm693, %v2212, 0
      %v2260 = vsel %vm693, %v2213, 0
      %v2263 = vsel %vm693, %v2214, 0
      %v2266 = vsel %vm693, %v2215, 0
      %v2269 = vsel %vm693, %v2216, 0
      %2271 = vmatpush.bf16.msra.mxu0 0
      %2272 = vmatpush.bf16.msra.mxu0 0
      %2273 = vmatpush.bf16.msra.mxu0 0
      %2274 = vmatpush.bf16.msra.mxu0 0
      %2275 = vmatpush.bf16.msra.mxu0 0
      %2276 = vmatpush.bf16.msra.mxu0 0
      %2277 = vmatpush.bf16.msra.mxu0 0
      %2278 = vmatpush.bf16.msra.mxu0 %v2221
      %2279 = vmatmul.bf16.gmra.mxu0 %v2224
      %v2280 = vpop.f32.mrf.mxu0
      %v2281 = vadd.f32 0.0, %v2280
      %v2282 = vpop.f32.mrf.mxu0
      %v2283 = vadd.f32 0.0, %v2282
      %2284 = vmatmul.bf16.gmra.mxu0 %v2227
      %v2285 = vpop.f32.mrf.mxu0
      %v2286 = vadd.f32 0.0, %v2285
      %v2287 = vpop.f32.mrf.mxu0
      %v2288 = vadd.f32 0.0, %v2287
      %2289 = vmatmul.bf16.gmra.mxu0 %v2230
      %v2290 = vpop.f32.mrf.mxu0
      %v2291 = vadd.f32 0.0, %v2290
      %v2292 = vpop.f32.mrf.mxu0
      %v2293 = vadd.f32 0.0, %v2292
      %2294 = vmatmul.bf16.gmra.mxu0 %v2233
      %v2295 = vpop.f32.mrf.mxu0
      %v2296 = vadd.f32 0.0, %v2295
      %v2297 = vpop.f32.mrf.mxu0
      %v2298 = vadd.f32 0.0, %v2297
      %2299 = vmatmul.bf16.gmra.mxu0 %v2236
      %v2300 = vpop.f32.mrf.mxu0
      %v2301 = vadd.f32 0.0, %v2300
      %v2302 = vpop.f32.mrf.mxu0
      %v2303 = vadd.f32 0.0, %v2302
      %2304 = vmatmul.bf16.gmra.mxu0 %v2239
      %v2305 = vpop.f32.mrf.mxu0
      %v2306 = vadd.f32 0.0, %v2305
      %v2307 = vpop.f32.mrf.mxu0
      %v2308 = vadd.f32 0.0, %v2307
      %2309 = vmatmul.bf16.gmra.mxu0 %v2242
      %v2310 = vpop.f32.mrf.mxu0
      %v2311 = vadd.f32 0.0, %v2310
      %v2312 = vpop.f32.mrf.mxu0
      %v2313 = vadd.f32 0.0, %v2312
      %2314 = vmatmul.bf16.gmra.mxu0 %v2245
      %v2315 = vpop.f32.mrf.mxu0
      %v2316 = vadd.f32 0.0, %v2315
      %v2317 = vpop.f32.mrf.mxu0
      %v2318 = vadd.f32 0.0, %v2317
      %2319 = vmatmul.bf16.gmra.mxu0 %v2248
      %v2320 = vpop.f32.mrf.mxu0
      %v2321 = vadd.f32 0.0, %v2320
      %v2322 = vpop.f32.mrf.mxu0
      %v2323 = vadd.f32 0.0, %v2322
      %2324 = vmatmul.bf16.gmra.mxu0 %v2251
      %v2325 = vpop.f32.mrf.mxu0
      %v2326 = vadd.f32 0.0, %v2325
      %v2327 = vpop.f32.mrf.mxu0
      %v2328 = vadd.f32 0.0, %v2327
      %2329 = vmatmul.bf16.gmra.mxu0 %v2254
      %v2330 = vpop.f32.mrf.mxu0
      %v2331 = vadd.f32 0.0, %v2330
      %v2332 = vpop.f32.mrf.mxu0
      %v2333 = vadd.f32 0.0, %v2332
      %2334 = vmatmul.bf16.gmra.mxu0 %v2257
      %v2335 = vpop.f32.mrf.mxu0
      %v2336 = vadd.f32 0.0, %v2335
      %v2337 = vpop.f32.mrf.mxu0
      %v2338 = vadd.f32 0.0, %v2337
      %2339 = vmatmul.bf16.gmra.mxu0 %v2260
      %v2340 = vpop.f32.mrf.mxu0
      %v2341 = vadd.f32 0.0, %v2340
      %v2342 = vpop.f32.mrf.mxu0
      %v2343 = vadd.f32 0.0, %v2342
      %2344 = vmatmul.bf16.gmra.mxu0 %v2263
      %v2345 = vpop.f32.mrf.mxu0
      %v2346 = vadd.f32 0.0, %v2345
      %v2347 = vpop.f32.mrf.mxu0
      %v2348 = vadd.f32 0.0, %v2347
      %2349 = vmatmul.bf16.gmra.mxu0 %v2266
      %v2350 = vpop.f32.mrf.mxu0
      %v2351 = vadd.f32 0.0, %v2350
      %v2352 = vpop.f32.mrf.mxu0
      %v2353 = vadd.f32 0.0, %v2352
      %2354 = vmatmul.bf16.gmra.mxu0 %v2269
      %v2355 = vpop.f32.mrf.mxu0
      %v2356 = vadd.f32 0.0, %v2355
      %v2357 = vpop.f32.mrf.mxu0
      %v2358 = vadd.f32 0.0, %v2357
      %2359 = vdwg.mxu0
      %v2360 = vadd.f32 %v1702, %v2281
      %v2361 = vadd.f32 %v1703, %v2283
      %v2362 = vadd.f32 %v1704, %v2286
      %v2363 = vadd.f32 %v1705, %v2288
      %v2364 = vadd.f32 %v1706, %v2291
      %v2365 = vadd.f32 %v1707, %v2293
      %v2366 = vadd.f32 %v1708, %v2296
      %v2367 = vadd.f32 %v1709, %v2298
      %v2368 = vadd.f32 %v1710, %v2301
      %v2369 = vadd.f32 %v1711, %v2303
      %v2370 = vadd.f32 %v1712, %v2306
      %v2371 = vadd.f32 %v1713, %v2308
      %v2372 = vadd.f32 %v1714, %v2311
      %v2373 = vadd.f32 %v1715, %v2313
      %v2374 = vadd.f32 %v1716, %v2316
      %v2375 = vadd.f32 %v1717, %v2318
      %v2376 = vadd.f32 %v1718, %v2321
      %v2377 = vadd.f32 %v1719, %v2323
      %v2378 = vadd.f32 %v1720, %v2326
      %v2379 = vadd.f32 %v1721, %v2328
      %v2380 = vadd.f32 %v1722, %v2331
      %v2381 = vadd.f32 %v1723, %v2333
      %v2382 = vadd.f32 %v1724, %v2336
      %v2383 = vadd.f32 %v1725, %v2338
      %v2384 = vadd.f32 %v1726, %v2341
      %v2385 = vadd.f32 %v1727, %v2343
      %v2386 = vadd.f32 %v1728, %v2346
      %v2387 = vadd.f32 %v1729, %v2348
      %v2388 = vadd.f32 %v1730, %v2351
      %v2389 = vadd.f32 %v1731, %v2353
      %v2390 = vadd.f32 %v1732, %v2356
      %v2391 = vadd.f32 %v1733, %v2358
      %v2392 = vld [vmem:[%s1443] sm:$0xe]
      %v2393 = vld [vmem:[%s1443 + $0xc] sm:$0xe]
      %v2394 = vld [vmem:[%s1443 + $0x18] sm:$0xe]
      %v2395 = vld [vmem:[%s1443 + $0x24] sm:$0xe]
      %v2396 = vld [vmem:[%s1443 + $0x30] sm:$0xe]
      %v2397 = vld [vmem:[%s1443 + $0x3c] sm:$0xe]
      %v2398 = vld [vmem:[%s1443 + $0x48] sm:$0xe]
      %v2399 = vld [vmem:[%s1443 + $0x54] sm:$0xe]
      %v2400 = vld [vmem:[%s1443 + $0x60] sm:$0xe]
      %v2401 = vld [vmem:[%s1443 + $0x6c] sm:$0xe]
      %v2402 = vld [vmem:[%s1443 + $0x78] sm:$0xe]
      %v2403 = vld [vmem:[%s1443 + $0x84] sm:$0xe]
      %v2404 = vld [vmem:[%s1443 + $0x90] sm:$0xe]
      %v2405 = vld [vmem:[%s1443 + $0x9c] sm:$0xe]
      %v2406 = vld [vmem:[%s1443 + $0xa8] sm:$0xe]
      %v2407 = vld [vmem:[%s1443 + $0xb4] sm:$0xe]
      %v2456 = vrot.slane %v2392, 5
      %v2457 = vrot.slane %v2456, 4
      %v2458 = vrot.slane %v1735, 5
      %v2459 = vsel %vm1104, %v2457, %v2458
      %v2460 = vrot.slane %v2458, 4
      %v2461 = vrot.slane %v1736, 5
      %v2462 = vsel %vm1104, %v2460, %v2461
      %v2463 = vrot.slane %v2393, 5
      %v2464 = vrot.slane %v2463, 4
      %v2465 = vrot.slane %v1738, 5
      %v2466 = vsel %vm1104, %v2464, %v2465
      %v2467 = vrot.slane %v2465, 4
      %v2468 = vrot.slane %v1739, 5
      %v2469 = vsel %vm1104, %v2467, %v2468
      %v2470 = vrot.slane %v2394, 5
      %v2471 = vrot.slane %v2470, 4
      %v2472 = vrot.slane %v1741, 5
      %v2473 = vsel %vm1104, %v2471, %v2472
      %v2474 = vrot.slane %v2472, 4
      %v2475 = vrot.slane %v1742, 5
      %v2476 = vsel %vm1104, %v2474, %v2475
      %v2477 = vrot.slane %v2395, 5
      %v2478 = vrot.slane %v2477, 4
      %v2479 = vrot.slane %v1744, 5
      %v2480 = vsel %vm1104, %v2478, %v2479
      %v2481 = vrot.slane %v2479, 4
      %v2482 = vrot.slane %v1745, 5
      %v2483 = vsel %vm1104, %v2481, %v2482
      %v2484 = vrot.slane %v2396, 5
      %v2485 = vrot.slane %v2484, 4
      %v2486 = vrot.slane %v1747, 5
      %v2487 = vsel %vm1104, %v2485, %v2486
      %v2488 = vrot.slane %v2486, 4
      %v2489 = vrot.slane %v1748, 5
      %v2490 = vsel %vm1104, %v2488, %v2489
      %v2491 = vrot.slane %v2397, 5
      %v2492 = vrot.slane %v2491, 4
      %v2493 = vrot.slane %v1750, 5
      %v2494 = vsel %vm1104, %v2492, %v2493
      %v2495 = vrot.slane %v2493, 4
      %v2496 = vrot.slane %v1751, 5
      %v2497 = vsel %vm1104, %v2495, %v2496
      %v2498 = vrot.slane %v2398, 5
      %v2499 = vrot.slane %v2498, 4
      %v2500 = vrot.slane %v1753, 5
      %v2501 = vsel %vm1104, %v2499, %v2500
      %v2502 = vrot.slane %v2500, 4
      %v2503 = vrot.slane %v1754, 5
      %v2504 = vsel %vm1104, %v2502, %v2503
      %v2505 = vrot.slane %v2399, 5
      %v2506 = vrot.slane %v2505, 4
      %v2507 = vrot.slane %v1756, 5
      %v2508 = vsel %vm1104, %v2506, %v2507
      %v2509 = vrot.slane %v2507, 4
      %v2510 = vrot.slane %v1757, 5
      %v2511 = vsel %vm1104, %v2509, %v2510
      %v2512 = vrot.slane %v2400, 5
      %v2513 = vrot.slane %v2512, 4
      %v2514 = vrot.slane %v1759, 5
      %v2515 = vsel %vm1104, %v2513, %v2514
      %v2516 = vrot.slane %v2514, 4
      %v2517 = vrot.slane %v1760, 5
      %v2518 = vsel %vm1104, %v2516, %v2517
      %v2519 = vrot.slane %v2401, 5
      %v2520 = vrot.slane %v2519, 4
      %v2521 = vrot.slane %v1762, 5
      %v2522 = vsel %vm1104, %v2520, %v2521
      %v2523 = vrot.slane %v2521, 4
      %v2524 = vrot.slane %v1763, 5
      %v2525 = vsel %vm1104, %v2523, %v2524
      %v2526 = vrot.slane %v2402, 5
      %v2527 = vrot.slane %v2526, 4
      %v2528 = vrot.slane %v1765, 5
      %v2529 = vsel %vm1104, %v2527, %v2528
      %v2530 = vrot.slane %v2528, 4
      %v2531 = vrot.slane %v1766, 5
      %v2532 = vsel %vm1104, %v2530, %v2531
      %v2533 = vrot.slane %v2403, 5
      %v2534 = vrot.slane %v2533, 4
      %v2535 = vrot.slane %v1768, 5
      %v2536 = vsel %vm1104, %v2534, %v2535
      %v2537 = vrot.slane %v2535, 4
      %v2538 = vrot.slane %v1769, 5
      %v2539 = vsel %vm1104, %v2537, %v2538
      %v2540 = vrot.slane %v2404, 5
      %v2541 = vrot.slane %v2540, 4
      %v2542 = vrot.slane %v1771, 5
      %v2543 = vsel %vm1104, %v2541, %v2542
      %v2544 = vrot.slane %v2542, 4
      %v2545 = vrot.slane %v1772, 5
      %v2546 = vsel %vm1104, %v2544, %v2545
      %v2547 = vrot.slane %v2405, 5
      %v2548 = vrot.slane %v2547, 4
      %v2549 = vrot.slane %v1774, 5
      %v2550 = vsel %vm1104, %v2548, %v2549
      %v2551 = vrot.slane %v2549, 4
      %v2552 = vrot.slane %v1775, 5
      %v2553 = vsel %vm1104, %v2551, %v2552
      %v2554 = vrot.slane %v2406, 5
      %v2555 = vrot.slane %v2554, 4
      %v2556 = vrot.slane %v1777, 5
      %v2557 = vsel %vm1104, %v2555, %v2556
      %v2558 = vrot.slane %v2556, 4
      %v2559 = vrot.slane %v1778, 5
      %v2560 = vsel %vm1104, %v2558, %v2559
      %v2561 = vrot.slane %v2407, 5
      %v2562 = vrot.slane %v2561, 4
      %v2563 = vrot.slane %v1780, 5
      %v2564 = vsel %vm1104, %v2562, %v2563
      %v2565 = vrot.slane %v2563, 4
      %v2566 = vrot.slane %v1781, 5
      %v2567 = vsel %vm1104, %v2565, %v2566
      %s2568 = scalar_lea.vmem %s1, 40
      %v2569 = vld [vmem:[%s2568] sm:$0xf]
      %v2570 = vld [vmem:[%s2568 + $0x4] sm:$0xf]
      %v2571 = vunpack.c.l.b16 %v2459
      %v2572 = vunpack.c.l.b16 %v2462
      %v2573 = vunpack.c.l.b16 %v2466
      %v2574 = vunpack.c.l.b16 %v2469
      %v2575 = vunpack.c.l.b16 %v2473
      %v2576 = vunpack.c.l.b16 %v2476
      %v2577 = vunpack.c.l.b16 %v2480
      %v2578 = vunpack.c.l.b16 %v2483
      %v2579 = vunpack.c.l.b16 %v2487
      %v2580 = vunpack.c.l.b16 %v2490
      %v2581 = vunpack.c.l.b16 %v2494
      %v2582 = vunpack.c.l.b16 %v2497
      %v2583 = vunpack.c.l.b16 %v2501
      %v2584 = vunpack.c.l.b16 %v2504
      %v2585 = vunpack.c.l.b16 %v2508
      %v2586 = vunpack.c.l.b16 %v2511
      %v2587 = vunpack.c.l.b16 %v2515
      %v2588 = vunpack.c.l.b16 %v2518
      %v2589 = vunpack.c.l.b16 %v2522
      %v2590 = vunpack.c.l.b16 %v2525
      %v2591 = vunpack.c.l.b16 %v2529
      %v2592 = vunpack.c.l.b16 %v2532
      %v2593 = vunpack.c.l.b16 %v2536
      %v2594 = vunpack.c.l.b16 %v2539
      %v2595 = vunpack.c.l.b16 %v2543
      %v2596 = vunpack.c.l.b16 %v2546
      %v2597 = vunpack.c.l.b16 %v2550
      %v2598 = vunpack.c.l.b16 %v2553
      %v2599 = vunpack.c.l.b16 %v2557
      %v2600 = vunpack.c.l.b16 %v2560
      %v2601 = vunpack.c.l.b16 %v2564
      %v2602 = vunpack.c.l.b16 %v2567
      %v2603 = vpack.c.b16 %v2572, %v2571
      %v2604 = vpack.c.b16 %v2574, %v2573
      %v2605 = vpack.c.b16 %v2576, %v2575
      %v2606 = vpack.c.b16 %v2578, %v2577
      %v2607 = vpack.c.b16 %v2580, %v2579
      %v2608 = vpack.c.b16 %v2582, %v2581
      %v2609 = vpack.c.b16 %v2584, %v2583
      %v2610 = vpack.c.b16 %v2586, %v2585
      %v2611 = vpack.c.b16 %v2588, %v2587
      %v2612 = vpack.c.b16 %v2590, %v2589
      %v2613 = vpack.c.b16 %v2592, %v2591
      %v2614 = vpack.c.b16 %v2594, %v2593
      %v2615 = vpack.c.b16 %v2596, %v2595
      %v2616 = vpack.c.b16 %v2598, %v2597
      %v2617 = vpack.c.b16 %v2600, %v2599
      %v2618 = vpack.c.b16 %v2602, %v2601
      %v2621 = vunpack.c.l.b16 %v2569
      %v2622 = vunpack.c.l.b16 %v2570
      %v2623 = vpack.c.b16 %v2622, %v2621
      %v2626 = vsel %vm693, %v2603, 0
      %v2629 = vsel %vm693, %v2604, 0
      %v2632 = vsel %vm693, %v2605, 0
      %v2635 = vsel %vm693, %v2606, 0
      %v2638 = vsel %vm693, %v2607, 0
      %v2641 = vsel %vm693, %v2608, 0
      %v2644 = vsel %vm693, %v2609, 0
      %v2647 = vsel %vm693, %v2610, 0
      %v2650 = vsel %vm693, %v2611, 0
      %v2653 = vsel %vm693, %v2612, 0
      %v2656 = vsel %vm693, %v2613, 0
      %v2659 = vsel %vm693, %v2614, 0
      %v2662 = vsel %vm693, %v2615, 0
      %v2665 = vsel %vm693, %v2616, 0
      %v2668 = vsel %vm693, %v2617, 0
      %v2671 = vsel %vm693, %v2618, 0
      %2673 = vmatpush.bf16.msra.mxu0 0
      %2674 = vmatpush.bf16.msra.mxu0 0
      %2675 = vmatpush.bf16.msra.mxu0 0
      %2676 = vmatpush.bf16.msra.mxu0 0
      %2677 = vmatpush.bf16.msra.mxu0 0
      %2678 = vmatpush.bf16.msra.mxu0 0
      %2679 = vmatpush.bf16.msra.mxu0 0
      %2680 = vmatpush.bf16.msra.mxu0 %v2623
      %2681 = vmatmul.bf16.gmra.mxu0 %v2626
      %v2682 = vpop.f32.mrf.mxu0
      %v2683 = vadd.f32 0.0, %v2682
      %v2684 = vpop.f32.mrf.mxu0
      %v2685 = vadd.f32 0.0, %v2684
      %2686 = vmatmul.bf16.gmra.mxu0 %v2629
      %v2687 = vpop.f32.mrf.mxu0
      %v2688 = vadd.f32 0.0, %v2687
      %v2689 = vpop.f32.mrf.mxu0
      %v2690 = vadd.f32 0.0, %v2689
      %2691 = vmatmul.bf16.gmra.mxu0 %v2632
      %v2692 = vpop.f32.mrf.mxu0
      %v2693 = vadd.f32 0.0, %v2692
      %v2694 = vpop.f32.mrf.mxu0
      %v2695 = vadd.f32 0.0, %v2694
      %2696 = vmatmul.bf16.gmra.mxu0 %v2635
      %v2697 = vpop.f32.mrf.mxu0
      %v2698 = vadd.f32 0.0, %v2697
      %v2699 = vpop.f32.mrf.mxu0
      %v2700 = vadd.f32 0.0, %v2699
      %2701 = vmatmul.bf16.gmra.mxu0 %v2638
      %v2702 = vpop.f32.mrf.mxu0
      %v2703 = vadd.f32 0.0, %v2702
      %v2704 = vpop.f32.mrf.mxu0
      %v2705 = vadd.f32 0.0, %v2704
      %2706 = vmatmul.bf16.gmra.mxu0 %v2641
      %v2707 = vpop.f32.mrf.mxu0
      %v2708 = vadd.f32 0.0, %v2707
      %v2709 = vpop.f32.mrf.mxu0
      %v2710 = vadd.f32 0.0, %v2709
      %2711 = vmatmul.bf16.gmra.mxu0 %v2644
      %v2712 = vpop.f32.mrf.mxu0
      %v2713 = vadd.f32 0.0, %v2712
      %v2714 = vpop.f32.mrf.mxu0
      %v2715 = vadd.f32 0.0, %v2714
      %2716 = vmatmul.bf16.gmra.mxu0 %v2647
      %v2717 = vpop.f32.mrf.mxu0
      %v2718 = vadd.f32 0.0, %v2717
      %v2719 = vpop.f32.mrf.mxu0
      %v2720 = vadd.f32 0.0, %v2719
      %2721 = vmatmul.bf16.gmra.mxu0 %v2650
      %v2722 = vpop.f32.mrf.mxu0
      %v2723 = vadd.f32 0.0, %v2722
      %v2724 = vpop.f32.mrf.mxu0
      %v2725 = vadd.f32 0.0, %v2724
      %2726 = vmatmul.bf16.gmra.mxu0 %v2653
      %v2727 = vpop.f32.mrf.mxu0
      %v2728 = vadd.f32 0.0, %v2727
      %v2729 = vpop.f32.mrf.mxu0
      %v2730 = vadd.f32 0.0, %v2729
      %2731 = vmatmul.bf16.gmra.mxu0 %v2656
      %v2732 = vpop.f32.mrf.mxu0
      %v2733 = vadd.f32 0.0, %v2732
      %v2734 = vpop.f32.mrf.mxu0
      %v2735 = vadd.f32 0.0, %v2734
      %2736 = vmatmul.bf16.gmra.mxu0 %v2659
      %v2737 = vpop.f32.mrf.mxu0
      %v2738 = vadd.f32 0.0, %v2737
      %v2739 = vpop.f32.mrf.mxu0
      %v2740 = vadd.f32 0.0, %v2739
      %2741 = vmatmul.bf16.gmra.mxu0 %v2662
      %v2742 = vpop.f32.mrf.mxu0
      %v2743 = vadd.f32 0.0, %v2742
      %v2744 = vpop.f32.mrf.mxu0
      %v2745 = vadd.f32 0.0, %v2744
      %2746 = vmatmul.bf16.gmra.mxu0 %v2665
      %v2747 = vpop.f32.mrf.mxu0
      %v2748 = vadd.f32 0.0, %v2747
      %v2749 = vpop.f32.mrf.mxu0
      %v2750 = vadd.f32 0.0, %v2749
      %2751 = vmatmul.bf16.gmra.mxu0 %v2668
      %v2752 = vpop.f32.mrf.mxu0
      %v2753 = vadd.f32 0.0, %v2752
      %v2754 = vpop.f32.mrf.mxu0
      %v2755 = vadd.f32 0.0, %v2754
      %2756 = vmatmul.bf16.gmra.mxu0 %v2671
      %v2757 = vpop.f32.mrf.mxu0
      %v2758 = vadd.f32 0.0, %v2757
      %v2759 = vpop.f32.mrf.mxu0
      %v2760 = vadd.f32 0.0, %v2759
      %2761 = vdwg.mxu0
      %v2762 = vadd.f32 %v2360, %v2683
      %v2763 = vadd.f32 %v2361, %v2685
      %v2764 = vadd.f32 %v2362, %v2688
      %v2765 = vadd.f32 %v2363, %v2690
      %v2766 = vadd.f32 %v2364, %v2693
      %v2767 = vadd.f32 %v2365, %v2695
      %v2768 = vadd.f32 %v2366, %v2698
      %v2769 = vadd.f32 %v2367, %v2700
      %v2770 = vadd.f32 %v2368, %v2703
      %v2771 = vadd.f32 %v2369, %v2705
      %v2772 = vadd.f32 %v2370, %v2708
      %v2773 = vadd.f32 %v2371, %v2710
      %v2774 = vadd.f32 %v2372, %v2713
      %v2775 = vadd.f32 %v2373, %v2715
      %v2776 = vadd.f32 %v2374, %v2718
      %v2777 = vadd.f32 %v2375, %v2720
      %v2778 = vadd.f32 %v2376, %v2723
      %v2779 = vadd.f32 %v2377, %v2725
      %v2780 = vadd.f32 %v2378, %v2728
      %v2781 = vadd.f32 %v2379, %v2730
      %v2782 = vadd.f32 %v2380, %v2733
      %v2783 = vadd.f32 %v2381, %v2735
      %v2784 = vadd.f32 %v2382, %v2738
      %v2785 = vadd.f32 %v2383, %v2740
      %v2786 = vadd.f32 %v2384, %v2743
      %v2787 = vadd.f32 %v2385, %v2745
      %v2788 = vadd.f32 %v2386, %v2748
      %v2789 = vadd.f32 %v2387, %v2750
      %v2790 = vadd.f32 %v2388, %v2753
      %v2791 = vadd.f32 %v2389, %v2755
      %v2792 = vadd.f32 %v2390, %v2758
      %v2793 = vadd.f32 %v2391, %v2760
      %s2794 = scalar_lea.vmem %s192, 24
      %v2795 = vld [vmem:[%s2794] sm:$0xf]
      %v2796 = vld [vmem:[%s2794 + $0x4] sm:$0xf]
      %v2797 = vld [vmem:[%s2794 + $0xc] sm:$0xf]
      %v2798 = vld [vmem:[%s2794 + $0x10] sm:$0xf]
      %v2799 = vld [vmem:[%s2794 + $0x18] sm:$0xf]
      %v2800 = vld [vmem:[%s2794 + $0x1c] sm:$0xf]
      %v2801 = vld [vmem:[%s2794 + $0x24] sm:$0xf]
      %v2802 = vld [vmem:[%s2794 + $0x28] sm:$0xf]
      %v2803 = vld [vmem:[%s2794 + $0x30] sm:$0xf]
      %v2804 = vld [vmem:[%s2794 + $0x34] sm:$0xf]
      %v2805 = vld [vmem:[%s2794 + $0x3c] sm:$0xf]
      %v2806 = vld [vmem:[%s2794 + $0x40] sm:$0xf]
      %v2807 = vld [vmem:[%s2794 + $0x48] sm:$0xf]
      %v2808 = vld [vmem:[%s2794 + $0x4c] sm:$0xf]
      %v2809 = vld [vmem:[%s2794 + $0x54] sm:$0xf]
      %v2810 = vld [vmem:[%s2794 + $0x58] sm:$0xf]
      %v2811 = vld [vmem:[%s2794 + $0x60] sm:$0xf]
      %v2812 = vld [vmem:[%s2794 + $0x64] sm:$0xf]
      %v2813 = vld [vmem:[%s2794 + $0x6c] sm:$0xf]
      %v2814 = vld [vmem:[%s2794 + $0x70] sm:$0xf]
      %v2815 = vld [vmem:[%s2794 + $0x78] sm:$0xf]
      %v2816 = vld [vmem:[%s2794 + $0x7c] sm:$0xf]
      %v2817 = vld [vmem:[%s2794 + $0x84] sm:$0xf]
      %v2818 = vld [vmem:[%s2794 + $0x88] sm:$0xf]
      %v2819 = vld [vmem:[%s2794 + $0x90] sm:$0xf]
      %v2820 = vld [vmem:[%s2794 + $0x94] sm:$0xf]
      %v2821 = vld [vmem:[%s2794 + $0x9c] sm:$0xf]
      %v2822 = vld [vmem:[%s2794 + $0xa0] sm:$0xf]
      %v2823 = vld [vmem:[%s2794 + $0xa8] sm:$0xf]
      %v2824 = vld [vmem:[%s2794 + $0xac] sm:$0xf]
      %v2825 = vld [vmem:[%s2794 + $0xb4] sm:$0xf]
      %v2826 = vld [vmem:[%s2794 + $0xb8] sm:$0xf]
      %s2827 = scalar_lea.vmem %s1, 48
      %v2828 = vld [vmem:[%s2827] sm:$0xf]
      %v2829 = vld [vmem:[%s2827 + $0x4] sm:$0xf]
      %v2862 = vunpack.c.l.b16 %v2795
      %v2863 = vunpack.c.l.b16 %v2796
      %v2864 = vunpack.c.l.b16 %v2797
      %v2865 = vunpack.c.l.b16 %v2798
      %v2866 = vunpack.c.l.b16 %v2799
      %v2867 = vunpack.c.l.b16 %v2800
      %v2868 = vunpack.c.l.b16 %v2801
      %v2869 = vunpack.c.l.b16 %v2802
      %v2870 = vunpack.c.l.b16 %v2803
      %v2871 = vunpack.c.l.b16 %v2804
      %v2872 = vunpack.c.l.b16 %v2805
      %v2873 = vunpack.c.l.b16 %v2806
      %v2874 = vunpack.c.l.b16 %v2807
      %v2875 = vunpack.c.l.b16 %v2808
      %v2876 = vunpack.c.l.b16 %v2809
      %v2877 = vunpack.c.l.b16 %v2810
      %v2878 = vunpack.c.l.b16 %v2811
      %v2879 = vunpack.c.l.b16 %v2812
      %v2880 = vunpack.c.l.b16 %v2813
      %v2881 = vunpack.c.l.b16 %v2814
      %v2882 = vunpack.c.l.b16 %v2815
      %v2883 = vunpack.c.l.b16 %v2816
      %v2884 = vunpack.c.l.b16 %v2817
      %v2885 = vunpack.c.l.b16 %v2818
      %v2886 = vunpack.c.l.b16 %v2819
      %v2887 = vunpack.c.l.b16 %v2820
      %v2888 = vunpack.c.l.b16 %v2821
      %v2889 = vunpack.c.l.b16 %v2822
      %v2890 = vunpack.c.l.b16 %v2823
      %v2891 = vunpack.c.l.b16 %v2824
      %v2892 = vunpack.c.l.b16 %v2825
      %v2893 = vunpack.c.l.b16 %v2826
      %v2894 = vpack.c.b16 %v2863, %v2862
      %v2895 = vpack.c.b16 %v2865, %v2864
      %v2896 = vpack.c.b16 %v2867, %v2866
      %v2897 = vpack.c.b16 %v2869, %v2868
      %v2898 = vpack.c.b16 %v2871, %v2870
      %v2899 = vpack.c.b16 %v2873, %v2872
      %v2900 = vpack.c.b16 %v2875, %v2874
      %v2901 = vpack.c.b16 %v2877, %v2876
      %v2902 = vpack.c.b16 %v2879, %v2878
      %v2903 = vpack.c.b16 %v2881, %v2880
      %v2904 = vpack.c.b16 %v2883, %v2882
      %v2905 = vpack.c.b16 %v2885, %v2884
      %v2906 = vpack.c.b16 %v2887, %v2886
      %v2907 = vpack.c.b16 %v2889, %v2888
      %v2908 = vpack.c.b16 %v2891, %v2890
      %v2909 = vpack.c.b16 %v2893, %v2892
      %v2912 = vunpack.c.l.b16 %v2828
      %v2913 = vunpack.c.l.b16 %v2829
      %v2914 = vpack.c.b16 %v2913, %v2912
      %v2917 = vsel %vm693, %v2894, 0
      %v2920 = vsel %vm693, %v2895, 0
      %v2923 = vsel %vm693, %v2896, 0
      %v2926 = vsel %vm693, %v2897, 0
      %v2929 = vsel %vm693, %v2898, 0
      %v2932 = vsel %vm693, %v2899, 0
      %v2935 = vsel %vm693, %v2900, 0
      %v2938 = vsel %vm693, %v2901, 0
      %v2941 = vsel %vm693, %v2902, 0
      %v2944 = vsel %vm693, %v2903, 0
      %v2947 = vsel %vm693, %v2904, 0
      %v2950 = vsel %vm693, %v2905, 0
      %v2953 = vsel %vm693, %v2906, 0
      %v2956 = vsel %vm693, %v2907, 0
      %v2959 = vsel %vm693, %v2908, 0
      %v2962 = vsel %vm693, %v2909, 0
      %2964 = vmatpush.bf16.msra.mxu0 0
      %2965 = vmatpush.bf16.msra.mxu0 0
      %2966 = vmatpush.bf16.msra.mxu0 0
      %2967 = vmatpush.bf16.msra.mxu0 0
      %2968 = vmatpush.bf16.msra.mxu0 0
      %2969 = vmatpush.bf16.msra.mxu0 0
      %2970 = vmatpush.bf16.msra.mxu0 0
      %2971 = vmatpush.bf16.msra.mxu0 %v2914
      %2972 = vmatmul.bf16.gmra.mxu0 %v2917
      %v2973 = vpop.f32.mrf.mxu0
      %v2974 = vadd.f32 0.0, %v2973
      %v2975 = vpop.f32.mrf.mxu0
      %v2976 = vadd.f32 0.0, %v2975
      %2977 = vmatmul.bf16.gmra.mxu0 %v2920
      %v2978 = vpop.f32.mrf.mxu0
      %v2979 = vadd.f32 0.0, %v2978
      %v2980 = vpop.f32.mrf.mxu0
      %v2981 = vadd.f32 0.0, %v2980
      %2982 = vmatmul.bf16.gmra.mxu0 %v2923
      %v2983 = vpop.f32.mrf.mxu0
      %v2984 = vadd.f32 0.0, %v2983
      %v2985 = vpop.f32.mrf.mxu0
      %v2986 = vadd.f32 0.0, %v2985
      %2987 = vmatmul.bf16.gmra.mxu0 %v2926
      %v2988 = vpop.f32.mrf.mxu0
      %v2989 = vadd.f32 0.0, %v2988
      %v2990 = vpop.f32.mrf.mxu0
      %v2991 = vadd.f32 0.0, %v2990
      %2992 = vmatmul.bf16.gmra.mxu0 %v2929
      %v2993 = vpop.f32.mrf.mxu0
      %v2994 = vadd.f32 0.0, %v2993
      %v2995 = vpop.f32.mrf.mxu0
      %v2996 = vadd.f32 0.0, %v2995
      %2997 = vmatmul.bf16.gmra.mxu0 %v2932
      %v2998 = vpop.f32.mrf.mxu0
      %v2999 = vadd.f32 0.0, %v2998
      %v3000 = vpop.f32.mrf.mxu0
      %v3001 = vadd.f32 0.0, %v3000
      %3002 = vmatmul.bf16.gmra.mxu0 %v2935
      %v3003 = vpop.f32.mrf.mxu0
      %v3004 = vadd.f32 0.0, %v3003
      %v3005 = vpop.f32.mrf.mxu0
      %v3006 = vadd.f32 0.0, %v3005
      %3007 = vmatmul.bf16.gmra.mxu0 %v2938
      %v3008 = vpop.f32.mrf.mxu0
      %v3009 = vadd.f32 0.0, %v3008
      %v3010 = vpop.f32.mrf.mxu0
      %v3011 = vadd.f32 0.0, %v3010
      %3012 = vmatmul.bf16.gmra.mxu0 %v2941
      %v3013 = vpop.f32.mrf.mxu0
      %v3014 = vadd.f32 0.0, %v3013
      %v3015 = vpop.f32.mrf.mxu0
      %v3016 = vadd.f32 0.0, %v3015
      %3017 = vmatmul.bf16.gmra.mxu0 %v2944
      %v3018 = vpop.f32.mrf.mxu0
      %v3019 = vadd.f32 0.0, %v3018
      %v3020 = vpop.f32.mrf.mxu0
      %v3021 = vadd.f32 0.0, %v3020
      %3022 = vmatmul.bf16.gmra.mxu0 %v2947
      %v3023 = vpop.f32.mrf.mxu0
      %v3024 = vadd.f32 0.0, %v3023
      %v3025 = vpop.f32.mrf.mxu0
      %v3026 = vadd.f32 0.0, %v3025
      %3027 = vmatmul.bf16.gmra.mxu0 %v2950
      %v3028 = vpop.f32.mrf.mxu0
      %v3029 = vadd.f32 0.0, %v3028
      %v3030 = vpop.f32.mrf.mxu0
      %v3031 = vadd.f32 0.0, %v3030
      %3032 = vmatmul.bf16.gmra.mxu0 %v2953
      %v3033 = vpop.f32.mrf.mxu0
      %v3034 = vadd.f32 0.0, %v3033
      %v3035 = vpop.f32.mrf.mxu0
      %v3036 = vadd.f32 0.0, %v3035
      %3037 = vmatmul.bf16.gmra.mxu0 %v2956
      %v3038 = vpop.f32.mrf.mxu0
      %v3039 = vadd.f32 0.0, %v3038
      %v3040 = vpop.f32.mrf.mxu0
      %v3041 = vadd.f32 0.0, %v3040
      %3042 = vmatmul.bf16.gmra.mxu0 %v2959
      %v3043 = vpop.f32.mrf.mxu0
      %v3044 = vadd.f32 0.0, %v3043
      %v3045 = vpop.f32.mrf.mxu0
      %v3046 = vadd.f32 0.0, %v3045
      %3047 = vmatmul.bf16.gmra.mxu0 %v2962
      %v3048 = vpop.f32.mrf.mxu0
      %v3049 = vadd.f32 0.0, %v3048
      %v3050 = vpop.f32.mrf.mxu0
      %v3051 = vadd.f32 0.0, %v3050
      %3052 = vdwg.mxu0
      %v3053 = vadd.f32 %v2762, %v2974
      %v3054 = vadd.f32 %v2763, %v2976
      %v3055 = vadd.f32 %v2764, %v2979
      %v3056 = vadd.f32 %v2765, %v2981
      %v3057 = vadd.f32 %v2766, %v2984
      %v3058 = vadd.f32 %v2767, %v2986
      %v3059 = vadd.f32 %v2768, %v2989
      %v3060 = vadd.f32 %v2769, %v2991
      %v3061 = vadd.f32 %v2770, %v2994
      %v3062 = vadd.f32 %v2771, %v2996
      %v3063 = vadd.f32 %v2772, %v2999
      %v3064 = vadd.f32 %v2773, %v3001
      %v3065 = vadd.f32 %v2774, %v3004
      %v3066 = vadd.f32 %v2775, %v3006
      %v3067 = vadd.f32 %v2776, %v3009
      %v3068 = vadd.f32 %v2777, %v3011
      %v3069 = vadd.f32 %v2778, %v3014
      %v3070 = vadd.f32 %v2779, %v3016
      %v3071 = vadd.f32 %v2780, %v3019
      %v3072 = vadd.f32 %v2781, %v3021
      %v3073 = vadd.f32 %v2782, %v3024
      %v3074 = vadd.f32 %v2783, %v3026
      %v3075 = vadd.f32 %v2784, %v3029
      %v3076 = vadd.f32 %v2785, %v3031
      %v3077 = vadd.f32 %v2786, %v3034
      %v3078 = vadd.f32 %v2787, %v3036
      %v3079 = vadd.f32 %v2788, %v3039
      %v3080 = vadd.f32 %v2789, %v3041
      %v3081 = vadd.f32 %v2790, %v3044
      %v3082 = vadd.f32 %v2791, %v3046
      %v3083 = vadd.f32 %v2792, %v3049
      %v3084 = vadd.f32 %v2793, %v3051
      %v3085 = vld [vmem:[%s2794] sm:$0xf]
      %v3086 = vld [vmem:[%s2794 + $0x4] sm:$0xf]
      %v3087 = vld [vmem:[%s2794 + $0x8] sm:$0x1]
      %v3088 = vld [vmem:[%s2794 + $0xc] sm:$0xf]
      %v3089 = vld [vmem:[%s2794 + $0x10] sm:$0xf]
      %v3090 = vld [vmem:[%s2794 + $0x14] sm:$0x1]
      %v3091 = vld [vmem:[%s2794 + $0x18] sm:$0xf]
      %v3092 = vld [vmem:[%s2794 + $0x1c] sm:$0xf]
      %v3093 = vld [vmem:[%s2794 + $0x20] sm:$0x1]
      %v3094 = vld [vmem:[%s2794 + $0x24] sm:$0xf]
      %v3095 = vld [vmem:[%s2794 + $0x28] sm:$0xf]
      %v3096 = vld [vmem:[%s2794 + $0x2c] sm:$0x1]
      %v3097 = vld [vmem:[%s2794 + $0x30] sm:$0xf]
      %v3098 = vld [vmem:[%s2794 + $0x34] sm:$0xf]
      %v3099 = vld [vmem:[%s2794 + $0x38] sm:$0x1]
      %v3100 = vld [vmem:[%s2794 + $0x3c] sm:$0xf]
      %v3101 = vld [vmem:[%s2794 + $0x40] sm:$0xf]
      %v3102 = vld [vmem:[%s2794 + $0x44] sm:$0x1]
      %v3103 = vld [vmem:[%s2794 + $0x48] sm:$0xf]
      %v3104 = vld [vmem:[%s2794 + $0x4c] sm:$0xf]
      %v3105 = vld [vmem:[%s2794 + $0x50] sm:$0x1]
      %v3106 = vld [vmem:[%s2794 + $0x54] sm:$0xf]
      %v3107 = vld [vmem:[%s2794 + $0x58] sm:$0xf]
      %v3108 = vld [vmem:[%s2794 + $0x5c] sm:$0x1]
      %v3109 = vld [vmem:[%s2794 + $0x60] sm:$0xf]
      %v3110 = vld [vmem:[%s2794 + $0x64] sm:$0xf]
      %v3111 = vld [vmem:[%s2794 + $0x68] sm:$0x1]
      %v3112 = vld [vmem:[%s2794 + $0x6c] sm:$0xf]
      %v3113 = vld [vmem:[%s2794 + $0x70] sm:$0xf]
      %v3114 = vld [vmem:[%s2794 + $0x74] sm:$0x1]
      %v3115 = vld [vmem:[%s2794 + $0x78] sm:$0xf]
      %v3116 = vld [vmem:[%s2794 + $0x7c] sm:$0xf]
      %v3117 = vld [vmem:[%s2794 + $0x80] sm:$0x1]
      %v3118 = vld [vmem:[%s2794 + $0x84] sm:$0xf]
      %v3119 = vld [vmem:[%s2794 + $0x88] sm:$0xf]
      %v3120 = vld [vmem:[%s2794 + $0x8c] sm:$0x1]
      %v3121 = vld [vmem:[%s2794 + $0x90] sm:$0xf]
      %v3122 = vld [vmem:[%s2794 + $0x94] sm:$0xf]
      %v3123 = vld [vmem:[%s2794 + $0x98] sm:$0x1]
      %v3124 = vld [vmem:[%s2794 + $0x9c] sm:$0xf]
      %v3125 = vld [vmem:[%s2794 + $0xa0] sm:$0xf]
      %v3126 = vld [vmem:[%s2794 + $0xa4] sm:$0x1]
      %v3127 = vld [vmem:[%s2794 + $0xa8] sm:$0xf]
      %v3128 = vld [vmem:[%s2794 + $0xac] sm:$0xf]
      %v3129 = vld [vmem:[%s2794 + $0xb0] sm:$0x1]
      %v3130 = vld [vmem:[%s2794 + $0xb4] sm:$0xf]
      %v3131 = vld [vmem:[%s2794 + $0xb8] sm:$0xf]
      %v3132 = vld [vmem:[%s2794 + $0xbc] sm:$0x1]
      %v3134 = vshrl.u32 %v3085, 16
      %v3136 = vrot.slane %v3134, 4
      %v3137 = vshll.u32 %v3085, 16
      %v3139 = vrot.slane %v3137, 5
      %v3140 = vor.u32 %v3136, %v3139
      %v3141 = vrot.slane %v3140, 4
      %v3143 = vshll.u32 %v3086, 16
      %v3145 = vrot.slane %v3143, 5
      %v3146 = vsel %vm251, %v3141, %v3145
      %v3147 = vshrl.u32 %v3086, 16
      %v3149 = vrot.slane %v3147, 4
      %v3150 = vor.u32 %v3149, %v3145
      %v3151 = vrot.slane %v3150, 4
      %v3153 = vshll.u32 %v3087, 16
      %v3155 = vrot.slane %v3153, 5
      %v3156 = vsel %vm251, %v3151, %v3155
      %v3158 = vshrl.u32 %v3088, 16
      %v3160 = vrot.slane %v3158, 4
      %v3161 = vshll.u32 %v3088, 16
      %v3163 = vrot.slane %v3161, 5
      %v3164 = vor.u32 %v3160, %v3163
      %v3165 = vrot.slane %v3164, 4
      %v3167 = vshll.u32 %v3089, 16
      %v3169 = vrot.slane %v3167, 5
      %v3170 = vsel %vm251, %v3165, %v3169
      %v3171 = vshrl.u32 %v3089, 16
      %v3173 = vrot.slane %v3171, 4
      %v3174 = vor.u32 %v3173, %v3169
      %v3175 = vrot.slane %v3174, 4
      %v3177 = vshll.u32 %v3090, 16
      %v3179 = vrot.slane %v3177, 5
      %v3180 = vsel %vm251, %v3175, %v3179
      %v3182 = vshrl.u32 %v3091, 16
      %v3184 = vrot.slane %v3182, 4
      %v3185 = vshll.u32 %v3091, 16
      %v3187 = vrot.slane %v3185, 5
      %v3188 = vor.u32 %v3184, %v3187
      %v3189 = vrot.slane %v3188, 4
      %v3191 = vshll.u32 %v3092, 16
      %v3193 = vrot.slane %v3191, 5
      %v3194 = vsel %vm251, %v3189, %v3193
      %v3195 = vshrl.u32 %v3092, 16
      %v3197 = vrot.slane %v3195, 4
      %v3198 = vor.u32 %v3197, %v3193
      %v3199 = vrot.slane %v3198, 4
      %v3201 = vshll.u32 %v3093, 16
      %v3203 = vrot.slane %v3201, 5
      %v3204 = vsel %vm251, %v3199, %v3203
      %v3206 = vshrl.u32 %v3094, 16
      %v3208 = vrot.slane %v3206, 4
      %v3209 = vshll.u32 %v3094, 16
      %v3211 = vrot.slane %v3209, 5
      %v3212 = vor.u32 %v3208, %v3211
      %v3213 = vrot.slane %v3212, 4
      %v3215 = vshll.u32 %v3095, 16
      %v3217 = vrot.slane %v3215, 5
      %v3218 = vsel %vm251, %v3213, %v3217
      %v3219 = vshrl.u32 %v3095, 16
      %v3221 = vrot.slane %v3219, 4
      %v3222 = vor.u32 %v3221, %v3217
      %v3223 = vrot.slane %v3222, 4
      %v3225 = vshll.u32 %v3096, 16
      %v3227 = vrot.slane %v3225, 5
      %v3228 = vsel %vm251, %v3223, %v3227
      %v3230 = vshrl.u32 %v3097, 16
      %v3232 = vrot.slane %v3230, 4
      %v3233 = vshll.u32 %v3097, 16
      %v3235 = vrot.slane %v3233, 5
      %v3236 = vor.u32 %v3232, %v3235
      %v3237 = vrot.slane %v3236, 4
      %v3239 = vshll.u32 %v3098, 16
      %v3241 = vrot.slane %v3239, 5
      %v3242 = vsel %vm251, %v3237, %v3241
      %v3243 = vshrl.u32 %v3098, 16
      %v3245 = vrot.slane %v3243, 4
      %v3246 = vor.u32 %v3245, %v3241
      %v3247 = vrot.slane %v3246, 4
      %v3249 = vshll.u32 %v3099, 16
      %v3251 = vrot.slane %v3249, 5
      %v3252 = vsel %vm251, %v3247, %v3251
      %v3254 = vshrl.u32 %v3100, 16
      %v3256 = vrot.slane %v3254, 4
      %v3257 = vshll.u32 %v3100, 16
      %v3259 = vrot.slane %v3257, 5
      %v3260 = vor.u32 %v3256, %v3259
      %v3261 = vrot.slane %v3260, 4
      %v3263 = vshll.u32 %v3101, 16
      %v3265 = vrot.slane %v3263, 5
      %v3266 = vsel %vm251, %v3261, %v3265
      %v3267 = vshrl.u32 %v3101, 16
      %v3269 = vrot.slane %v3267, 4
      %v3270 = vor.u32 %v3269, %v3265
      %v3271 = vrot.slane %v3270, 4
      %v3273 = vshll.u32 %v3102, 16
      %v3275 = vrot.slane %v3273, 5
      %v3276 = vsel %vm251, %v3271, %v3275
      %v3278 = vshrl.u32 %v3103, 16
      %v3280 = vrot.slane %v3278, 4
      %v3281 = vshll.u32 %v3103, 16
      %v3283 = vrot.slane %v3281, 5
      %v3284 = vor.u32 %v3280, %v3283
      %v3285 = vrot.slane %v3284, 4
      %v3287 = vshll.u32 %v3104, 16
      %v3289 = vrot.slane %v3287, 5
      %v3290 = vsel %vm251, %v3285, %v3289
      %v3291 = vshrl.u32 %v3104, 16
      %v3293 = vrot.slane %v3291, 4
      %v3294 = vor.u32 %v3293, %v3289
      %v3295 = vrot.slane %v3294, 4
      %v3297 = vshll.u32 %v3105, 16
      %v3299 = vrot.slane %v3297, 5
      %v3300 = vsel %vm251, %v3295, %v3299
      %v3302 = vshrl.u32 %v3106, 16
      %v3304 = vrot.slane %v3302, 4
      %v3305 = vshll.u32 %v3106, 16
      %v3307 = vrot.slane %v3305, 5
      %v3308 = vor.u32 %v3304, %v3307
      %v3309 = vrot.slane %v3308, 4
      %v3311 = vshll.u32 %v3107, 16
      %v3313 = vrot.slane %v3311, 5
      %v3314 = vsel %vm251, %v3309, %v3313
      %v3315 = vshrl.u32 %v3107, 16
      %v3317 = vrot.slane %v3315, 4
      %v3318 = vor.u32 %v3317, %v3313
      %v3319 = vrot.slane %v3318, 4
      %v3321 = vshll.u32 %v3108, 16
      %v3323 = vrot.slane %v3321, 5
      %v3324 = vsel %vm251, %v3319, %v3323
      %v3326 = vshrl.u32 %v3109, 16
      %v3328 = vrot.slane %v3326, 4
      %v3329 = vshll.u32 %v3109, 16
      %v3331 = vrot.slane %v3329, 5
      %v3332 = vor.u32 %v3328, %v3331
      %v3333 = vrot.slane %v3332, 4
      %v3335 = vshll.u32 %v3110, 16
      %v3337 = vrot.slane %v3335, 5
      %v3338 = vsel %vm251, %v3333, %v3337
      %v3339 = vshrl.u32 %v3110, 16
      %v3341 = vrot.slane %v3339, 4
      %v3342 = vor.u32 %v3341, %v3337
      %v3343 = vrot.slane %v3342, 4
      %v3345 = vshll.u32 %v3111, 16
      %v3347 = vrot.slane %v3345, 5
      %v3348 = vsel %vm251, %v3343, %v3347
      %v3350 = vshrl.u32 %v3112, 16
      %v3352 = vrot.slane %v3350, 4
      %v3353 = vshll.u32 %v3112, 16
      %v3355 = vrot.slane %v3353, 5
      %v3356 = vor.u32 %v3352, %v3355
      %v3357 = vrot.slane %v3356, 4
      %v3359 = vshll.u32 %v3113, 16
      %v3361 = vrot.slane %v3359, 5
      %v3362 = vsel %vm251, %v3357, %v3361
      %v3363 = vshrl.u32 %v3113, 16
      %v3365 = vrot.slane %v3363, 4
      %v3366 = vor.u32 %v3365, %v3361
      %v3367 = vrot.slane %v3366, 4
      %v3369 = vshll.u32 %v3114, 16
      %v3371 = vrot.slane %v3369, 5
      %v3372 = vsel %vm251, %v3367, %v3371
      %v3374 = vshrl.u32 %v3115, 16
      %v3376 = vrot.slane %v3374, 4
      %v3377 = vshll.u32 %v3115, 16
      %v3379 = vrot.slane %v3377, 5
      %v3380 = vor.u32 %v3376, %v3379
      %v3381 = vrot.slane %v3380, 4
      %v3383 = vshll.u32 %v3116, 16
      %v3385 = vrot.slane %v3383, 5
      %v3386 = vsel %vm251, %v3381, %v3385
      %v3387 = vshrl.u32 %v3116, 16
      %v3389 = vrot.slane %v3387, 4
      %v3390 = vor.u32 %v3389, %v3385
      %v3391 = vrot.slane %v3390, 4
      %v3393 = vshll.u32 %v3117, 16
      %v3395 = vrot.slane %v3393, 5
      %v3396 = vsel %vm251, %v3391, %v3395
      %v3398 = vshrl.u32 %v3118, 16
      %v3400 = vrot.slane %v3398, 4
      %v3401 = vshll.u32 %v3118, 16
      %v3403 = vrot.slane %v3401, 5
      %v3404 = vor.u32 %v3400, %v3403
      %v3405 = vrot.slane %v3404, 4
      %v3407 = vshll.u32 %v3119, 16
      %v3409 = vrot.slane %v3407, 5
      %v3410 = vsel %vm251, %v3405, %v3409
      %v3411 = vshrl.u32 %v3119, 16
      %v3413 = vrot.slane %v3411, 4
      %v3414 = vor.u32 %v3413, %v3409
      %v3415 = vrot.slane %v3414, 4
      %v3417 = vshll.u32 %v3120, 16
      %v3419 = vrot.slane %v3417, 5
      %v3420 = vsel %vm251, %v3415, %v3419
      %v3422 = vshrl.u32 %v3121, 16
      %v3424 = vrot.slane %v3422, 4
      %v3425 = vshll.u32 %v3121, 16
      %v3427 = vrot.slane %v3425, 5
      %v3428 = vor.u32 %v3424, %v3427
      %v3429 = vrot.slane %v3428, 4
      %v3431 = vshll.u32 %v3122, 16
      %v3433 = vrot.slane %v3431, 5
      %v3434 = vsel %vm251, %v3429, %v3433
      %v3435 = vshrl.u32 %v3122, 16
      %v3437 = vrot.slane %v3435, 4
      %v3438 = vor.u32 %v3437, %v3433
      %v3439 = vrot.slane %v3438, 4
      %v3441 = vshll.u32 %v3123, 16
      %v3443 = vrot.slane %v3441, 5
      %v3444 = vsel %vm251, %v3439, %v3443
      %v3446 = vshrl.u32 %v3124, 16
      %v3448 = vrot.slane %v3446, 4
      %v3449 = vshll.u32 %v3124, 16
      %v3451 = vrot.slane %v3449, 5
      %v3452 = vor.u32 %v3448, %v3451
      %v3453 = vrot.slane %v3452, 4
      %v3455 = vshll.u32 %v3125, 16
      %v3457 = vrot.slane %v3455, 5
      %v3458 = vsel %vm251, %v3453, %v3457
      %v3459 = vshrl.u32 %v3125, 16
      %v3461 = vrot.slane %v3459, 4
      %v3462 = vor.u32 %v3461, %v3457
      %v3463 = vrot.slane %v3462, 4
      %v3465 = vshll.u32 %v3126, 16
      %v3467 = vrot.slane %v3465, 5
      %v3468 = vsel %vm251, %v3463, %v3467
      %v3470 = vshrl.u32 %v3127, 16
      %v3472 = vrot.slane %v3470, 4
      %v3473 = vshll.u32 %v3127, 16
      %v3475 = vrot.slane %v3473, 5
      %v3476 = vor.u32 %v3472, %v3475
      %v3477 = vrot.slane %v3476, 4
      %v3479 = vshll.u32 %v3128, 16
      %v3481 = vrot.slane %v3479, 5
      %v3482 = vsel %vm251, %v3477, %v3481
      %v3483 = vshrl.u32 %v3128, 16
      %v3485 = vrot.slane %v3483, 4
      %v3486 = vor.u32 %v3485, %v3481
      %v3487 = vrot.slane %v3486, 4
      %v3489 = vshll.u32 %v3129, 16
      %v3491 = vrot.slane %v3489, 5
      %v3492 = vsel %vm251, %v3487, %v3491
      %v3494 = vshrl.u32 %v3130, 16
      %v3496 = vrot.slane %v3494, 4
      %v3497 = vshll.u32 %v3130, 16
      %v3499 = vrot.slane %v3497, 5
      %v3500 = vor.u32 %v3496, %v3499
      %v3501 = vrot.slane %v3500, 4
      %v3503 = vshll.u32 %v3131, 16
      %v3505 = vrot.slane %v3503, 5
      %v3506 = vsel %vm251, %v3501, %v3505
      %v3507 = vshrl.u32 %v3131, 16
      %v3509 = vrot.slane %v3507, 4
      %v3510 = vor.u32 %v3509, %v3505
      %v3511 = vrot.slane %v3510, 4
      %v3513 = vshll.u32 %v3132, 16
      %v3515 = vrot.slane %v3513, 5
      %v3516 = vsel %vm251, %v3511, %v3515
      %s3517 = scalar_lea.vmem %s1, 56
      %v3518 = vld [vmem:[%s3517] sm:$0xf]
      %v3519 = vld [vmem:[%s3517 + $0x4] sm:$0xf]
      %v3520 = vunpack.c.l.b16 %v3146
      %v3521 = vunpack.c.l.b16 %v3156
      %v3522 = vunpack.c.l.b16 %v3170
      %v3523 = vunpack.c.l.b16 %v3180
      %v3524 = vunpack.c.l.b16 %v3194
      %v3525 = vunpack.c.l.b16 %v3204
      %v3526 = vunpack.c.l.b16 %v3218
      %v3527 = vunpack.c.l.b16 %v3228
      %v3528 = vunpack.c.l.b16 %v3242
      %v3529 = vunpack.c.l.b16 %v3252
      %v3530 = vunpack.c.l.b16 %v3266
      %v3531 = vunpack.c.l.b16 %v3276
      %v3532 = vunpack.c.l.b16 %v3290
      %v3533 = vunpack.c.l.b16 %v3300
      %v3534 = vunpack.c.l.b16 %v3314
      %v3535 = vunpack.c.l.b16 %v3324
      %v3536 = vunpack.c.l.b16 %v3338
      %v3537 = vunpack.c.l.b16 %v3348
      %v3538 = vunpack.c.l.b16 %v3362
      %v3539 = vunpack.c.l.b16 %v3372
      %v3540 = vunpack.c.l.b16 %v3386
      %v3541 = vunpack.c.l.b16 %v3396
      %v3542 = vunpack.c.l.b16 %v3410
      %v3543 = vunpack.c.l.b16 %v3420
      %v3544 = vunpack.c.l.b16 %v3434
      %v3545 = vunpack.c.l.b16 %v3444
      %v3546 = vunpack.c.l.b16 %v3458
      %v3547 = vunpack.c.l.b16 %v3468
      %v3548 = vunpack.c.l.b16 %v3482
      %v3549 = vunpack.c.l.b16 %v3492
      %v3550 = vunpack.c.l.b16 %v3506
      %v3551 = vunpack.c.l.b16 %v3516
      %v3552 = vpack.c.b16 %v3521, %v3520
      %v3553 = vpack.c.b16 %v3523, %v3522
      %v3554 = vpack.c.b16 %v3525, %v3524
      %v3555 = vpack.c.b16 %v3527, %v3526
      %v3556 = vpack.c.b16 %v3529, %v3528
      %v3557 = vpack.c.b16 %v3531, %v3530
      %v3558 = vpack.c.b16 %v3533, %v3532
      %v3559 = vpack.c.b16 %v3535, %v3534
      %v3560 = vpack.c.b16 %v3537, %v3536
      %v3561 = vpack.c.b16 %v3539, %v3538
      %v3562 = vpack.c.b16 %v3541, %v3540
      %v3563 = vpack.c.b16 %v3543, %v3542
      %v3564 = vpack.c.b16 %v3545, %v3544
      %v3565 = vpack.c.b16 %v3547, %v3546
      %v3566 = vpack.c.b16 %v3549, %v3548
      %v3567 = vpack.c.b16 %v3551, %v3550
      %v3570 = vunpack.c.l.b16 %v3518
      %v3571 = vunpack.c.l.b16 %v3519
      %v3572 = vpack.c.b16 %v3571, %v3570
      %v3575 = vsel %vm693, %v3552, 0
      %v3578 = vsel %vm693, %v3553, 0
      %v3581 = vsel %vm693, %v3554, 0
      %v3584 = vsel %vm693, %v3555, 0
      %v3587 = vsel %vm693, %v3556, 0
      %v3590 = vsel %vm693, %v3557, 0
      %v3593 = vsel %vm693, %v3558, 0
      %v3596 = vsel %vm693, %v3559, 0
      %v3599 = vsel %vm693, %v3560, 0
      %v3602 = vsel %vm693, %v3561, 0
      %v3605 = vsel %vm693, %v3562, 0
      %v3608 = vsel %vm693, %v3563, 0
      %v3611 = vsel %vm693, %v3564, 0
      %v3614 = vsel %vm693, %v3565, 0
      %v3617 = vsel %vm693, %v3566, 0
      %v3620 = vsel %vm693, %v3567, 0
      %3622 = vmatpush.bf16.msra.mxu0 0
      %3623 = vmatpush.bf16.msra.mxu0 0
      %3624 = vmatpush.bf16.msra.mxu0 0
      %3625 = vmatpush.bf16.msra.mxu0 0
      %3626 = vmatpush.bf16.msra.mxu0 0
      %3627 = vmatpush.bf16.msra.mxu0 0
      %3628 = vmatpush.bf16.msra.mxu0 0
      %3629 = vmatpush.bf16.msra.mxu0 %v3572
      %3630 = vmatmul.bf16.gmra.mxu0 %v3575
      %v3631 = vpop.f32.mrf.mxu0
      %v3632 = vadd.f32 0.0, %v3631
      %v3633 = vpop.f32.mrf.mxu0
      %v3634 = vadd.f32 0.0, %v3633
      %3635 = vmatmul.bf16.gmra.mxu0 %v3578
      %v3636 = vpop.f32.mrf.mxu0
      %v3637 = vadd.f32 0.0, %v3636
      %v3638 = vpop.f32.mrf.mxu0
      %v3639 = vadd.f32 0.0, %v3638
      %3640 = vmatmul.bf16.gmra.mxu0 %v3581
      %v3641 = vpop.f32.mrf.mxu0
      %v3642 = vadd.f32 0.0, %v3641
      %v3643 = vpop.f32.mrf.mxu0
      %v3644 = vadd.f32 0.0, %v3643
      %3645 = vmatmul.bf16.gmra.mxu0 %v3584
      %v3646 = vpop.f32.mrf.mxu0
      %v3647 = vadd.f32 0.0, %v3646
      %v3648 = vpop.f32.mrf.mxu0
      %v3649 = vadd.f32 0.0, %v3648
      %3650 = vmatmul.bf16.gmra.mxu0 %v3587
      %v3651 = vpop.f32.mrf.mxu0
      %v3652 = vadd.f32 0.0, %v3651
      %v3653 = vpop.f32.mrf.mxu0
      %v3654 = vadd.f32 0.0, %v3653
      %3655 = vmatmul.bf16.gmra.mxu0 %v3590
      %v3656 = vpop.f32.mrf.mxu0
      %v3657 = vadd.f32 0.0, %v3656
      %v3658 = vpop.f32.mrf.mxu0
      %v3659 = vadd.f32 0.0, %v3658
      %3660 = vmatmul.bf16.gmra.mxu0 %v3593
      %v3661 = vpop.f32.mrf.mxu0
      %v3662 = vadd.f32 0.0, %v3661
      %v3663 = vpop.f32.mrf.mxu0
      %v3664 = vadd.f32 0.0, %v3663
      %3665 = vmatmul.bf16.gmra.mxu0 %v3596
      %v3666 = vpop.f32.mrf.mxu0
      %v3667 = vadd.f32 0.0, %v3666
      %v3668 = vpop.f32.mrf.mxu0
      %v3669 = vadd.f32 0.0, %v3668
      %3670 = vmatmul.bf16.gmra.mxu0 %v3599
      %v3671 = vpop.f32.mrf.mxu0
      %v3672 = vadd.f32 0.0, %v3671
      %v3673 = vpop.f32.mrf.mxu0
      %v3674 = vadd.f32 0.0, %v3673
      %3675 = vmatmul.bf16.gmra.mxu0 %v3602
      %v3676 = vpop.f32.mrf.mxu0
      %v3677 = vadd.f32 0.0, %v3676
      %v3678 = vpop.f32.mrf.mxu0
      %v3679 = vadd.f32 0.0, %v3678
      %3680 = vmatmul.bf16.gmra.mxu0 %v3605
      %v3681 = vpop.f32.mrf.mxu0
      %v3682 = vadd.f32 0.0, %v3681
      %v3683 = vpop.f32.mrf.mxu0
      %v3684 = vadd.f32 0.0, %v3683
      %3685 = vmatmul.bf16.gmra.mxu0 %v3608
      %v3686 = vpop.f32.mrf.mxu0
      %v3687 = vadd.f32 0.0, %v3686
      %v3688 = vpop.f32.mrf.mxu0
      %v3689 = vadd.f32 0.0, %v3688
      %3690 = vmatmul.bf16.gmra.mxu0 %v3611
      %v3691 = vpop.f32.mrf.mxu0
      %v3692 = vadd.f32 0.0, %v3691
      %v3693 = vpop.f32.mrf.mxu0
      %v3694 = vadd.f32 0.0, %v3693
      %3695 = vmatmul.bf16.gmra.mxu0 %v3614
      %v3696 = vpop.f32.mrf.mxu0
      %v3697 = vadd.f32 0.0, %v3696
      %v3698 = vpop.f32.mrf.mxu0
      %v3699 = vadd.f32 0.0, %v3698
      %3700 = vmatmul.bf16.gmra.mxu0 %v3617
      %v3701 = vpop.f32.mrf.mxu0
      %v3702 = vadd.f32 0.0, %v3701
      %v3703 = vpop.f32.mrf.mxu0
      %v3704 = vadd.f32 0.0, %v3703
      %3705 = vmatmul.bf16.gmra.mxu0 %v3620
      %v3706 = vpop.f32.mrf.mxu0
      %v3707 = vadd.f32 0.0, %v3706
      %v3708 = vpop.f32.mrf.mxu0
      %v3709 = vadd.f32 0.0, %v3708
      %3710 = vdwg.mxu0
      %v3711 = vadd.f32 %v3053, %v3632
      %v3712 = vadd.f32 %v3054, %v3634
      %v3713 = vadd.f32 %v3055, %v3637
      %v3714 = vadd.f32 %v3056, %v3639
      %v3715 = vadd.f32 %v3057, %v3642
      %v3716 = vadd.f32 %v3058, %v3644
      %v3717 = vadd.f32 %v3059, %v3647
      %v3718 = vadd.f32 %v3060, %v3649
      %v3719 = vadd.f32 %v3061, %v3652
      %v3720 = vadd.f32 %v3062, %v3654
      %v3721 = vadd.f32 %v3063, %v3657
      %v3722 = vadd.f32 %v3064, %v3659
      %v3723 = vadd.f32 %v3065, %v3662
      %v3724 = vadd.f32 %v3066, %v3664
      %v3725 = vadd.f32 %v3067, %v3667
      %v3726 = vadd.f32 %v3068, %v3669
      %v3727 = vadd.f32 %v3069, %v3672
      %v3728 = vadd.f32 %v3070, %v3674
      %v3729 = vadd.f32 %v3071, %v3677
      %v3730 = vadd.f32 %v3072, %v3679
      %v3731 = vadd.f32 %v3073, %v3682
      %v3732 = vadd.f32 %v3074, %v3684
      %v3733 = vadd.f32 %v3075, %v3687
      %v3734 = vadd.f32 %v3076, %v3689
      %v3735 = vadd.f32 %v3077, %v3692
      %v3736 = vadd.f32 %v3078, %v3694
      %v3737 = vadd.f32 %v3079, %v3697
      %v3738 = vadd.f32 %v3080, %v3699
      %v3739 = vadd.f32 %v3081, %v3702
      %v3740 = vadd.f32 %v3082, %v3704
      %v3741 = vadd.f32 %v3083, %v3707
      %v3742 = vadd.f32 %v3084, %v3709
      %v3743 = vld [vmem:[%s2794] sm:$0xe]
      %v3744 = vld [vmem:[%s2794 + $0xc] sm:$0xe]
      %v3745 = vld [vmem:[%s2794 + $0x18] sm:$0xe]
      %v3746 = vld [vmem:[%s2794 + $0x24] sm:$0xe]
      %v3747 = vld [vmem:[%s2794 + $0x30] sm:$0xe]
      %v3748 = vld [vmem:[%s2794 + $0x3c] sm:$0xe]
      %v3749 = vld [vmem:[%s2794 + $0x48] sm:$0xe]
      %v3750 = vld [vmem:[%s2794 + $0x54] sm:$0xe]
      %v3751 = vld [vmem:[%s2794 + $0x60] sm:$0xe]
      %v3752 = vld [vmem:[%s2794 + $0x6c] sm:$0xe]
      %v3753 = vld [vmem:[%s2794 + $0x78] sm:$0xe]
      %v3754 = vld [vmem:[%s2794 + $0x84] sm:$0xe]
      %v3755 = vld [vmem:[%s2794 + $0x90] sm:$0xe]
      %v3756 = vld [vmem:[%s2794 + $0x9c] sm:$0xe]
      %v3757 = vld [vmem:[%s2794 + $0xa8] sm:$0xe]
      %v3758 = vld [vmem:[%s2794 + $0xb4] sm:$0xe]
      %v3807 = vrot.slane %v3743, 5
      %v3808 = vrot.slane %v3807, 4
      %v3809 = vrot.slane %v3086, 5
      %v3810 = vsel %vm1104, %v3808, %v3809
      %v3811 = vrot.slane %v3809, 4
      %v3812 = vrot.slane %v3087, 5
      %v3813 = vsel %vm1104, %v3811, %v3812
      %v3814 = vrot.slane %v3744, 5
      %v3815 = vrot.slane %v3814, 4
      %v3816 = vrot.slane %v3089, 5
      %v3817 = vsel %vm1104, %v3815, %v3816
      %v3818 = vrot.slane %v3816, 4
      %v3819 = vrot.slane %v3090, 5
      %v3820 = vsel %vm1104, %v3818, %v3819
      %v3821 = vrot.slane %v3745, 5
      %v3822 = vrot.slane %v3821, 4
      %v3823 = vrot.slane %v3092, 5
      %v3824 = vsel %vm1104, %v3822, %v3823
      %v3825 = vrot.slane %v3823, 4
      %v3826 = vrot.slane %v3093, 5
      %v3827 = vsel %vm1104, %v3825, %v3826
      %v3828 = vrot.slane %v3746, 5
      %v3829 = vrot.slane %v3828, 4
      %v3830 = vrot.slane %v3095, 5
      %v3831 = vsel %vm1104, %v3829, %v3830
      %v3832 = vrot.slane %v3830, 4
      %v3833 = vrot.slane %v3096, 5
      %v3834 = vsel %vm1104, %v3832, %v3833
      %v3835 = vrot.slane %v3747, 5
      %v3836 = vrot.slane %v3835, 4
      %v3837 = vrot.slane %v3098, 5
      %v3838 = vsel %vm1104, %v3836, %v3837
      %v3839 = vrot.slane %v3837, 4
      %v3840 = vrot.slane %v3099, 5
      %v3841 = vsel %vm1104, %v3839, %v3840
      %v3842 = vrot.slane %v3748, 5
      %v3843 = vrot.slane %v3842, 4
      %v3844 = vrot.slane %v3101, 5
      %v3845 = vsel %vm1104, %v3843, %v3844
      %v3846 = vrot.slane %v3844, 4
      %v3847 = vrot.slane %v3102, 5
      %v3848 = vsel %vm1104, %v3846, %v3847
      %v3849 = vrot.slane %v3749, 5
      %v3850 = vrot.slane %v3849, 4
      %v3851 = vrot.slane %v3104, 5
      %v3852 = vsel %vm1104, %v3850, %v3851
      %v3853 = vrot.slane %v3851, 4
      %v3854 = vrot.slane %v3105, 5
      %v3855 = vsel %vm1104, %v3853, %v3854
      %v3856 = vrot.slane %v3750, 5
      %v3857 = vrot.slane %v3856, 4
      %v3858 = vrot.slane %v3107, 5
      %v3859 = vsel %vm1104, %v3857, %v3858
      %v3860 = vrot.slane %v3858, 4
      %v3861 = vrot.slane %v3108, 5
      %v3862 = vsel %vm1104, %v3860, %v3861
      %v3863 = vrot.slane %v3751, 5
      %v3864 = vrot.slane %v3863, 4
      %v3865 = vrot.slane %v3110, 5
      %v3866 = vsel %vm1104, %v3864, %v3865
      %v3867 = vrot.slane %v3865, 4
      %v3868 = vrot.slane %v3111, 5
      %v3869 = vsel %vm1104, %v3867, %v3868
      %v3870 = vrot.slane %v3752, 5
      %v3871 = vrot.slane %v3870, 4
      %v3872 = vrot.slane %v3113, 5
      %v3873 = vsel %vm1104, %v3871, %v3872
      %v3874 = vrot.slane %v3872, 4
      %v3875 = vrot.slane %v3114, 5
      %v3876 = vsel %vm1104, %v3874, %v3875
      %v3877 = vrot.slane %v3753, 5
      %v3878 = vrot.slane %v3877, 4
      %v3879 = vrot.slane %v3116, 5
      %v3880 = vsel %vm1104, %v3878, %v3879
      %v3881 = vrot.slane %v3879, 4
      %v3882 = vrot.slane %v3117, 5
      %v3883 = vsel %vm1104, %v3881, %v3882
      %v3884 = vrot.slane %v3754, 5
      %v3885 = vrot.slane %v3884, 4
      %v3886 = vrot.slane %v3119, 5
      %v3887 = vsel %vm1104, %v3885, %v3886
      %v3888 = vrot.slane %v3886, 4
      %v3889 = vrot.slane %v3120, 5
      %v3890 = vsel %vm1104, %v3888, %v3889
      %v3891 = vrot.slane %v3755, 5
      %v3892 = vrot.slane %v3891, 4
      %v3893 = vrot.slane %v3122, 5
      %v3894 = vsel %vm1104, %v3892, %v3893
      %v3895 = vrot.slane %v3893, 4
      %v3896 = vrot.slane %v3123, 5
      %v3897 = vsel %vm1104, %v3895, %v3896
      %v3898 = vrot.slane %v3756, 5
      %v3899 = vrot.slane %v3898, 4
      %v3900 = vrot.slane %v3125, 5
      %v3901 = vsel %vm1104, %v3899, %v3900
      %v3902 = vrot.slane %v3900, 4
      %v3903 = vrot.slane %v3126, 5
      %v3904 = vsel %vm1104, %v3902, %v3903
      %v3905 = vrot.slane %v3757, 5
      %v3906 = vrot.slane %v3905, 4
      %v3907 = vrot.slane %v3128, 5
      %v3908 = vsel %vm1104, %v3906, %v3907
      %v3909 = vrot.slane %v3907, 4
      %v3910 = vrot.slane %v3129, 5
      %v3911 = vsel %vm1104, %v3909, %v3910
      %v3912 = vrot.slane %v3758, 5
      %v3913 = vrot.slane %v3912, 4
      %v3914 = vrot.slane %v3131, 5
      %v3915 = vsel %vm1104, %v3913, %v3914
      %v3916 = vrot.slane %v3914, 4
      %v3917 = vrot.slane %v3132, 5
      %v3918 = vsel %vm1104, %v3916, %v3917
      %s3919 = scalar_lea.vmem %s1, 64
      %v3920 = vld [vmem:[%s3919] sm:$0xf]
      %v3921 = vld [vmem:[%s3919 + $0x4] sm:$0xf]
      %v3922 = vunpack.c.l.b16 %v3810
      %v3923 = vunpack.c.l.b16 %v3813
      %v3924 = vunpack.c.l.b16 %v3817
      %v3925 = vunpack.c.l.b16 %v3820
      %v3926 = vunpack.c.l.b16 %v3824
      %v3927 = vunpack.c.l.b16 %v3827
      %v3928 = vunpack.c.l.b16 %v3831
      %v3929 = vunpack.c.l.b16 %v3834
      %v3930 = vunpack.c.l.b16 %v3838
      %v3931 = vunpack.c.l.b16 %v3841
      %v3932 = vunpack.c.l.b16 %v3845
      %v3933 = vunpack.c.l.b16 %v3848
      %v3934 = vunpack.c.l.b16 %v3852
      %v3935 = vunpack.c.l.b16 %v3855
      %v3936 = vunpack.c.l.b16 %v3859
      %v3937 = vunpack.c.l.b16 %v3862
      %v3938 = vunpack.c.l.b16 %v3866
      %v3939 = vunpack.c.l.b16 %v3869
      %v3940 = vunpack.c.l.b16 %v3873
      %v3941 = vunpack.c.l.b16 %v3876
      %v3942 = vunpack.c.l.b16 %v3880
      %v3943 = vunpack.c.l.b16 %v3883
      %v3944 = vunpack.c.l.b16 %v3887
      %v3945 = vunpack.c.l.b16 %v3890
      %v3946 = vunpack.c.l.b16 %v3894
      %v3947 = vunpack.c.l.b16 %v3897
      %v3948 = vunpack.c.l.b16 %v3901
      %v3949 = vunpack.c.l.b16 %v3904
      %v3950 = vunpack.c.l.b16 %v3908
      %v3951 = vunpack.c.l.b16 %v3911
      %v3952 = vunpack.c.l.b16 %v3915
      %v3953 = vunpack.c.l.b16 %v3918
      %v3954 = vpack.c.b16 %v3923, %v3922
      %v3955 = vpack.c.b16 %v3925, %v3924
      %v3956 = vpack.c.b16 %v3927, %v3926
      %v3957 = vpack.c.b16 %v3929, %v3928
      %v3958 = vpack.c.b16 %v3931, %v3930
      %v3959 = vpack.c.b16 %v3933, %v3932
      %v3960 = vpack.c.b16 %v3935, %v3934
      %v3961 = vpack.c.b16 %v3937, %v3936
      %v3962 = vpack.c.b16 %v3939, %v3938
      %v3963 = vpack.c.b16 %v3941, %v3940
      %v3964 = vpack.c.b16 %v3943, %v3942
      %v3965 = vpack.c.b16 %v3945, %v3944
      %v3966 = vpack.c.b16 %v3947, %v3946
      %v3967 = vpack.c.b16 %v3949, %v3948
      %v3968 = vpack.c.b16 %v3951, %v3950
      %v3969 = vpack.c.b16 %v3953, %v3952
      %v3972 = vunpack.c.l.b16 %v3920
      %v3973 = vunpack.c.l.b16 %v3921
      %v3974 = vpack.c.b16 %v3973, %v3972
      %v3977 = vsel %vm693, %v3954, 0
      %v3980 = vsel %vm693, %v3955, 0
      %v3983 = vsel %vm693, %v3956, 0
      %v3986 = vsel %vm693, %v3957, 0
      %v3989 = vsel %vm693, %v3958, 0
      %v3992 = vsel %vm693, %v3959, 0
      %v3995 = vsel %vm693, %v3960, 0
      %v3998 = vsel %vm693, %v3961, 0
      %v4001 = vsel %vm693, %v3962, 0
      %v4004 = vsel %vm693, %v3963, 0
      %v4007 = vsel %vm693, %v3964, 0
      %v4010 = vsel %vm693, %v3965, 0
      %v4013 = vsel %vm693, %v3966, 0
      %v4016 = vsel %vm693, %v3967, 0
      %v4019 = vsel %vm693, %v3968, 0
      %v4022 = vsel %vm693, %v3969, 0
      %4024 = vmatpush.bf16.msra.mxu0 0
      %4025 = vmatpush.bf16.msra.mxu0 0
      %4026 = vmatpush.bf16.msra.mxu0 0
      %4027 = vmatpush.bf16.msra.mxu0 0
      %4028 = vmatpush.bf16.msra.mxu0 0
      %4029 = vmatpush.bf16.msra.mxu0 0
      %4030 = vmatpush.bf16.msra.mxu0 0
      %4031 = vmatpush.bf16.msra.mxu0 %v3974
      %4032 = vmatmul.bf16.gmra.mxu0 %v3977
      %v4033 = vpop.f32.mrf.mxu0
      %v4034 = vadd.f32 0.0, %v4033
      %v4035 = vpop.f32.mrf.mxu0
      %v4036 = vadd.f32 0.0, %v4035
      %4037 = vmatmul.bf16.gmra.mxu0 %v3980
      %v4038 = vpop.f32.mrf.mxu0
      %v4039 = vadd.f32 0.0, %v4038
      %v4040 = vpop.f32.mrf.mxu0
      %v4041 = vadd.f32 0.0, %v4040
      %4042 = vmatmul.bf16.gmra.mxu0 %v3983
      %v4043 = vpop.f32.mrf.mxu0
      %v4044 = vadd.f32 0.0, %v4043
      %v4045 = vpop.f32.mrf.mxu0
      %v4046 = vadd.f32 0.0, %v4045
      %4047 = vmatmul.bf16.gmra.mxu0 %v3986
      %v4048 = vpop.f32.mrf.mxu0
      %v4049 = vadd.f32 0.0, %v4048
      %v4050 = vpop.f32.mrf.mxu0
      %v4051 = vadd.f32 0.0, %v4050
      %4052 = vmatmul.bf16.gmra.mxu0 %v3989
      %v4053 = vpop.f32.mrf.mxu0
      %v4054 = vadd.f32 0.0, %v4053
      %v4055 = vpop.f32.mrf.mxu0
      %v4056 = vadd.f32 0.0, %v4055
      %4057 = vmatmul.bf16.gmra.mxu0 %v3992
      %v4058 = vpop.f32.mrf.mxu0
      %v4059 = vadd.f32 0.0, %v4058
      %v4060 = vpop.f32.mrf.mxu0
      %v4061 = vadd.f32 0.0, %v4060
      %4062 = vmatmul.bf16.gmra.mxu0 %v3995
      %v4063 = vpop.f32.mrf.mxu0
      %v4064 = vadd.f32 0.0, %v4063
      %v4065 = vpop.f32.mrf.mxu0
      %v4066 = vadd.f32 0.0, %v4065
      %4067 = vmatmul.bf16.gmra.mxu0 %v3998
      %v4068 = vpop.f32.mrf.mxu0
      %v4069 = vadd.f32 0.0, %v4068
      %v4070 = vpop.f32.mrf.mxu0
      %v4071 = vadd.f32 0.0, %v4070
      %4072 = vmatmul.bf16.gmra.mxu0 %v4001
      %v4073 = vpop.f32.mrf.mxu0
      %v4074 = vadd.f32 0.0, %v4073
      %v4075 = vpop.f32.mrf.mxu0
      %v4076 = vadd.f32 0.0, %v4075
      %4077 = vmatmul.bf16.gmra.mxu0 %v4004
      %v4078 = vpop.f32.mrf.mxu0
      %v4079 = vadd.f32 0.0, %v4078
      %v4080 = vpop.f32.mrf.mxu0
      %v4081 = vadd.f32 0.0, %v4080
      %4082 = vmatmul.bf16.gmra.mxu0 %v4007
      %v4083 = vpop.f32.mrf.mxu0
      %v4084 = vadd.f32 0.0, %v4083
      %v4085 = vpop.f32.mrf.mxu0
      %v4086 = vadd.f32 0.0, %v4085
      %4087 = vmatmul.bf16.gmra.mxu0 %v4010
      %v4088 = vpop.f32.mrf.mxu0
      %v4089 = vadd.f32 0.0, %v4088
      %v4090 = vpop.f32.mrf.mxu0
      %v4091 = vadd.f32 0.0, %v4090
      %4092 = vmatmul.bf16.gmra.mxu0 %v4013
      %v4093 = vpop.f32.mrf.mxu0
      %v4094 = vadd.f32 0.0, %v4093
      %v4095 = vpop.f32.mrf.mxu0
      %v4096 = vadd.f32 0.0, %v4095
      %4097 = vmatmul.bf16.gmra.mxu0 %v4016
      %v4098 = vpop.f32.mrf.mxu0
      %v4099 = vadd.f32 0.0, %v4098
      %v4100 = vpop.f32.mrf.mxu0
      %v4101 = vadd.f32 0.0, %v4100
      %4102 = vmatmul.bf16.gmra.mxu0 %v4019
      %v4103 = vpop.f32.mrf.mxu0
      %v4104 = vadd.f32 0.0, %v4103
      %v4105 = vpop.f32.mrf.mxu0
      %v4106 = vadd.f32 0.0, %v4105
      %4107 = vmatmul.bf16.gmra.mxu0 %v4022
      %v4108 = vpop.f32.mrf.mxu0
      %v4109 = vadd.f32 0.0, %v4108
      %v4110 = vpop.f32.mrf.mxu0
      %v4111 = vadd.f32 0.0, %v4110
      %4112 = vdwg.mxu0
      %v4113 = vadd.f32 %v3711, %v4034
      %v4114 = vadd.f32 %v3712, %v4036
      %v4115 = vadd.f32 %v3713, %v4039
      %v4116 = vadd.f32 %v3714, %v4041
      %v4117 = vadd.f32 %v3715, %v4044
      %v4118 = vadd.f32 %v3716, %v4046
      %v4119 = vadd.f32 %v3717, %v4049
      %v4120 = vadd.f32 %v3718, %v4051
      %v4121 = vadd.f32 %v3719, %v4054
      %v4122 = vadd.f32 %v3720, %v4056
      %v4123 = vadd.f32 %v3721, %v4059
      %v4124 = vadd.f32 %v3722, %v4061
      %v4125 = vadd.f32 %v3723, %v4064
      %v4126 = vadd.f32 %v3724, %v4066
      %v4127 = vadd.f32 %v3725, %v4069
      %v4128 = vadd.f32 %v3726, %v4071
      %v4129 = vadd.f32 %v3727, %v4074
      %v4130 = vadd.f32 %v3728, %v4076
      %v4131 = vadd.f32 %v3729, %v4079
      %v4132 = vadd.f32 %v3730, %v4081
      %v4133 = vadd.f32 %v3731, %v4084
      %v4134 = vadd.f32 %v3732, %v4086
      %v4135 = vadd.f32 %v3733, %v4089
      %v4136 = vadd.f32 %v3734, %v4091
      %v4137 = vadd.f32 %v3735, %v4094
      %v4138 = vadd.f32 %v3736, %v4096
      %v4139 = vadd.f32 %v3737, %v4099
      %v4140 = vadd.f32 %v3738, %v4101
      %v4141 = vadd.f32 %v3739, %v4104
      %v4142 = vadd.f32 %v3740, %v4106
      %v4143 = vadd.f32 %v3741, %v4109
      %v4144 = vadd.f32 %v3742, %v4111
      %v4145 = vld [vmem:[%s2] sm:$0x1]
      %v4147 = vperm.slane %v4145, 0
      %v4149 = vmul.f32 %v4113, %v4147
      %v4150 = vmul.f32 %v4114, %v4147
      %v4151 = vmul.f32 %v4115, %v4147
      %v4152 = vmul.f32 %v4116, %v4147
      %v4153 = vmul.f32 %v4117, %v4147
      %v4154 = vmul.f32 %v4118, %v4147
      %v4155 = vmul.f32 %v4119, %v4147
      %v4156 = vmul.f32 %v4120, %v4147
      %v4157 = vmul.f32 %v4121, %v4147
      %v4158 = vmul.f32 %v4122, %v4147
      %v4159 = vmul.f32 %v4123, %v4147
      %v4160 = vmul.f32 %v4124, %v4147
      %v4161 = vmul.f32 %v4125, %v4147
      %v4162 = vmul.f32 %v4126, %v4147
      %v4163 = vmul.f32 %v4127, %v4147
      %v4164 = vmul.f32 %v4128, %v4147
      %v4165 = vmul.f32 %v4129, %v4147
      %v4166 = vmul.f32 %v4130, %v4147
      %v4167 = vmul.f32 %v4131, %v4147
      %v4168 = vmul.f32 %v4132, %v4147
      %v4169 = vmul.f32 %v4133, %v4147
      %v4170 = vmul.f32 %v4134, %v4147
      %v4171 = vmul.f32 %v4135, %v4147
      %v4172 = vmul.f32 %v4136, %v4147
      %v4173 = vmul.f32 %v4137, %v4147
      %v4174 = vmul.f32 %v4138, %v4147
      %v4175 = vmul.f32 %v4139, %v4147
      %v4176 = vmul.f32 %v4140, %v4147
      %v4177 = vmul.f32 %v4141, %v4147
      %v4178 = vmul.f32 %v4142, %v4147
      %v4179 = vmul.f32 %v4143, %v4147
      %v4180 = vmul.f32 %v4144, %v4147
      %v4181 = vld [vmem:[%s3] sm:$0x1]
      %v4183 = vperm.slane %v4181, 0
      %v4185 = vadd.f32 %v4149, %v4183
      %v4186 = vadd.f32 %v4150, %v4183
      %v4187 = vadd.f32 %v4151, %v4183
      %v4188 = vadd.f32 %v4152, %v4183
      %v4189 = vadd.f32 %v4153, %v4183
      %v4190 = vadd.f32 %v4154, %v4183
      %v4191 = vadd.f32 %v4155, %v4183
      %v4192 = vadd.f32 %v4156, %v4183
      %v4193 = vadd.f32 %v4157, %v4183
      %v4194 = vadd.f32 %v4158, %v4183
      %v4195 = vadd.f32 %v4159, %v4183
      %v4196 = vadd.f32 %v4160, %v4183
      %v4197 = vadd.f32 %v4161, %v4183
      %v4198 = vadd.f32 %v4162, %v4183
      %v4199 = vadd.f32 %v4163, %v4183
      %v4200 = vadd.f32 %v4164, %v4183
      %v4201 = vadd.f32 %v4165, %v4183
      %v4202 = vadd.f32 %v4166, %v4183
      %v4203 = vadd.f32 %v4167, %v4183
      %v4204 = vadd.f32 %v4168, %v4183
      %v4205 = vadd.f32 %v4169, %v4183
      %v4206 = vadd.f32 %v4170, %v4183
      %v4207 = vadd.f32 %v4171, %v4183
      %v4208 = vadd.f32 %v4172, %v4183
      %v4209 = vadd.f32 %v4173, %v4183
      %v4210 = vadd.f32 %v4174, %v4183
      %v4211 = vadd.f32 %v4175, %v4183
      %v4212 = vadd.f32 %v4176, %v4183
      %v4213 = vadd.f32 %v4177, %v4183
      %v4214 = vadd.f32 %v4178, %v4183
      %v4215 = vadd.f32 %v4179, %v4183
      %v4216 = vadd.f32 %v4180, %v4183
      %v4217 = vmul.f32 %v4185, 0.1
      %v4218 = vmul.f32 %v4186, 0.1
      %v4219 = vmul.f32 %v4187, 0.1
      %v4220 = vmul.f32 %v4188, 0.1
      %v4221 = vmul.f32 %v4189, 0.1
      %v4222 = vmul.f32 %v4190, 0.1
      %v4223 = vmul.f32 %v4191, 0.1
      %v4224 = vmul.f32 %v4192, 0.1
      %v4225 = vmul.f32 %v4193, 0.1
      %v4226 = vmul.f32 %v4194, 0.1
      %v4227 = vmul.f32 %v4195, 0.1
      %v4228 = vmul.f32 %v4196, 0.1
      %v4229 = vmul.f32 %v4197, 0.1
      %v4230 = vmul.f32 %v4198, 0.1
      %v4231 = vmul.f32 %v4199, 0.1
      %v4232 = vmul.f32 %v4200, 0.1
      %v4233 = vmul.f32 %v4201, 0.1
      %v4234 = vmul.f32 %v4202, 0.1
      %v4235 = vmul.f32 %v4203, 0.1
      %v4236 = vmul.f32 %v4204, 0.1
      %v4237 = vmul.f32 %v4205, 0.1
      %v4238 = vmul.f32 %v4206, 0.1
      %v4239 = vmul.f32 %v4207, 0.1
      %v4240 = vmul.f32 %v4208, 0.1
      %v4241 = vmul.f32 %v4209, 0.1
      %v4242 = vmul.f32 %v4210, 0.1
      %v4243 = vmul.f32 %v4211, 0.1
      %v4244 = vmul.f32 %v4212, 0.1
      %v4245 = vmul.f32 %v4213, 0.1
      %v4246 = vmul.f32 %v4214, 0.1
      %v4247 = vmul.f32 %v4215, 0.1
      %v4248 = vmul.f32 %v4216, 0.1
      %v4249 = vmax.f32 %v4185, %v4217
      %v4250 = vmax.f32 %v4186, %v4218
      %v4251 = vmax.f32 %v4187, %v4219
      %v4252 = vmax.f32 %v4188, %v4220
      %v4253 = vmax.f32 %v4189, %v4221
      %v4254 = vmax.f32 %v4190, %v4222
      %v4255 = vmax.f32 %v4191, %v4223
      %v4256 = vmax.f32 %v4192, %v4224
      %v4257 = vmax.f32 %v4193, %v4225
      %v4258 = vmax.f32 %v4194, %v4226
      %v4259 = vmax.f32 %v4195, %v4227
      %v4260 = vmax.f32 %v4196, %v4228
      %v4261 = vmax.f32 %v4197, %v4229
      %v4262 = vmax.f32 %v4198, %v4230
      %v4263 = vmax.f32 %v4199, %v4231
      %v4264 = vmax.f32 %v4200, %v4232
      %v4265 = vmax.f32 %v4201, %v4233
      %v4266 = vmax.f32 %v4202, %v4234
      %v4267 = vmax.f32 %v4203, %v4235
      %v4268 = vmax.f32 %v4204, %v4236
      %v4269 = vmax.f32 %v4205, %v4237
      %v4270 = vmax.f32 %v4206, %v4238
      %v4271 = vmax.f32 %v4207, %v4239
      %v4272 = vmax.f32 %v4208, %v4240
      %v4273 = vmax.f32 %v4209, %v4241
      %v4274 = vmax.f32 %v4210, %v4242
      %v4275 = vmax.f32 %v4211, %v4243
      %v4276 = vmax.f32 %v4212, %v4244
      %v4277 = vmax.f32 %v4213, %v4245
      %v4278 = vmax.f32 %v4214, %v4246
      %v4279 = vmax.f32 %v4215, %v4247
      %v4280 = vmax.f32 %v4216, %v4248
      %v4281 = vpack.c.bf16 %v4249, %v4249
      %v4282 = vpack.c.bf16 %v4250, %v4250
      %v4283 = vpack.c.bf16 %v4251, %v4251
      %v4284 = vpack.c.bf16 %v4252, %v4252
      %v4285 = vpack.c.bf16 %v4253, %v4253
      %v4286 = vpack.c.bf16 %v4254, %v4254
      %v4287 = vpack.c.bf16 %v4255, %v4255
      %v4288 = vpack.c.bf16 %v4256, %v4256
      %v4289 = vpack.c.bf16 %v4257, %v4257
      %v4290 = vpack.c.bf16 %v4258, %v4258
      %v4291 = vpack.c.bf16 %v4259, %v4259
      %v4292 = vpack.c.bf16 %v4260, %v4260
      %v4293 = vpack.c.bf16 %v4261, %v4261
      %v4294 = vpack.c.bf16 %v4262, %v4262
      %v4295 = vpack.c.bf16 %v4263, %v4263
      %v4296 = vpack.c.bf16 %v4264, %v4264
      %v4297 = vpack.c.bf16 %v4265, %v4265
      %v4298 = vpack.c.bf16 %v4266, %v4266
      %v4299 = vpack.c.bf16 %v4267, %v4267
      %v4300 = vpack.c.bf16 %v4268, %v4268
      %v4301 = vpack.c.bf16 %v4269, %v4269
      %v4302 = vpack.c.bf16 %v4270, %v4270
      %v4303 = vpack.c.bf16 %v4271, %v4271
      %v4304 = vpack.c.bf16 %v4272, %v4272
      %v4305 = vpack.c.bf16 %v4273, %v4273
      %v4306 = vpack.c.bf16 %v4274, %v4274
      %v4307 = vpack.c.bf16 %v4275, %v4275
      %v4308 = vpack.c.bf16 %v4276, %v4276
      %v4309 = vpack.c.bf16 %v4277, %v4277
      %v4310 = vpack.c.bf16 %v4278, %v4278
      %v4311 = vpack.c.bf16 %v4279, %v4279
      %v4312 = vpack.c.bf16 %v4280, %v4280
      %vm4313 = vcmask 60416
      %4314 = vst.msk [vmem:[%s197] sm:$0xf] %vm4313, %v4281
      %4315 = vst.msk [vmem:[%s197 + $0x4] sm:$0xf] %vm4313, %v4282
      %4316 = vst.msk [vmem:[%s197 + $0x8] sm:$0xf] %vm4313, %v4283
      %4317 = vst.msk [vmem:[%s197 + $0xc] sm:$0xf] %vm4313, %v4284
      %4318 = vst.msk [vmem:[%s197 + $0x10] sm:$0xf] %vm4313, %v4285
      %4319 = vst.msk [vmem:[%s197 + $0x14] sm:$0xf] %vm4313, %v4286
      %4320 = vst.msk [vmem:[%s197 + $0x18] sm:$0xf] %vm4313, %v4287
      %4321 = vst.msk [vmem:[%s197 + $0x1c] sm:$0xf] %vm4313, %v4288
      %4322 = vst.msk [vmem:[%s197 + $0x20] sm:$0xf] %vm4313, %v4289
      %4323 = vst.msk [vmem:[%s197 + $0x24] sm:$0xf] %vm4313, %v4290
      %4324 = vst.msk [vmem:[%s197 + $0x28] sm:$0xf] %vm4313, %v4291
      %4325 = vst.msk [vmem:[%s197 + $0x2c] sm:$0xf] %vm4313, %v4292
      %4326 = vst.msk [vmem:[%s197 + $0x30] sm:$0xf] %vm4313, %v4293
      %4327 = vst.msk [vmem:[%s197 + $0x34] sm:$0xf] %vm4313, %v4294
      %4328 = vst.msk [vmem:[%s197 + $0x38] sm:$0xf] %vm4313, %v4295
      %4329 = vst.msk [vmem:[%s197 + $0x3c] sm:$0xf] %vm4313, %v4296
      %4330 = vst.msk [vmem:[%s197 + $0x40] sm:$0xf] %vm4313, %v4297
      %4331 = vst.msk [vmem:[%s197 + $0x44] sm:$0xf] %vm4313, %v4298
      %4332 = vst.msk [vmem:[%s197 + $0x48] sm:$0xf] %vm4313, %v4299
      %4333 = vst.msk [vmem:[%s197 + $0x4c] sm:$0xf] %vm4313, %v4300
      %4334 = vst.msk [vmem:[%s197 + $0x50] sm:$0xf] %vm4313, %v4301
      %4335 = vst.msk [vmem:[%s197 + $0x54] sm:$0xf] %vm4313, %v4302
      %4336 = vst.msk [vmem:[%s197 + $0x58] sm:$0xf] %vm4313, %v4303
      %4337 = vst.msk [vmem:[%s197 + $0x5c] sm:$0xf] %vm4313, %v4304
      %4338 = vst.msk [vmem:[%s197 + $0x60] sm:$0xf] %vm4313, %v4305
      %4339 = vst.msk [vmem:[%s197 + $0x64] sm:$0xf] %vm4313, %v4306
      %4340 = vst.msk [vmem:[%s197 + $0x68] sm:$0xf] %vm4313, %v4307
      %4341 = vst.msk [vmem:[%s197 + $0x6c] sm:$0xf] %vm4313, %v4308
      %4342 = vst.msk [vmem:[%s197 + $0x70] sm:$0xf] %vm4313, %v4309
      %4343 = vst.msk [vmem:[%s197 + $0x74] sm:$0xf] %vm4313, %v4310
      %4344 = vst.msk [vmem:[%s197 + $0x78] sm:$0xf] %vm4313, %v4311
      %4345 = vst.msk [vmem:[%s197 + $0x7c] sm:$0xf] %vm4313, %v4312
      %p4346 = scmp.lt.s32.totalorder %s15, 1
      %s4347 = scalar_select %p4346, %s15, 1
      %s4348 = smul.addr %s4347, 32
      %s4349 = smul.addr %s4348, 4
      %s4350 = scalar_lea.vmem %s4, %s4349
      // Predicated region
      $region37: #{forward.15} parent=35 // pred_check
        %p4351 = pneg %p122
      $region38: #{forward.15} parent=35 // pred_check_branch
        %4353 = sbr.rel (%p4351) target = $region40
      $region39: #{forward.15} parent=35 // pred_region
        _
      $region40: #{forward.15} parent=35 // pred_fallthru
        _
    $region36: #{forward.15} parent=5 // pred_fallthru
      _
    %p4354 = scmp.le.s32.totalorder 2, %s10
    // Predicated region
    $region41: #{forward.15} parent=5 // pred_check
      %p4355 = pneg %p4354
    $region42: #{forward.15} parent=5 // pred_check_branch
      %4357 = sbr.rel (%p4355) target = $region44
    $region43: #{forward.15} parent=5 // pred_region
      %s4358 = ssub.s32 %s10, 2
      // Predicated region
      $region45: #{forward.15} parent=43 // pred_check
        %p4359 = pneg %p128
      $region46: #{forward.15} parent=43 // pred_check_branch
        %4361 = sbr.rel (%p4359) target = $region48
      $region47: #{forward.15} parent=43 // pred_region
        %p4362 = scmp.lt.s32.totalorder %s16, 1
        %s4363 = scalar_select %p4362, %s16, 1
        %s4364 = smul.addr %s4363, 32
        %s4365 = smul.addr %s4364, 4
        %s4366 = scalar_lea.vmem %s4, %s4365
      $region48: #{forward.15} parent=43 // pred_fallthru
        _
    $region44: #{forward.15} parent=5 // pred_fallthru
      _
  $region6: #{forward.15} parent=0 // loop_footer
    %s14 = sadd.s32 1, %s10
  $region7: #{forward.15} parent=0 // loop_footer_branch
    %9 = sbr.rel target = $region3
  $region8: #{forward.15} parent=0 // loop_exit
    _

</llo_original>
